<compile_context>
chip_gen: v7x
topology: tpu7x:2x2x1
jax: 0.10.0
libtpu: 0.0.40
codegen_flags: <defaults>
</compile_context>

<pallas_src>
import math

import jax
import jax.numpy as jnp
from jax import lax
from jax.experimental import pallas as pl
from jax.experimental.pallas import tpu as pltpu

# Hyper-parameters fixed by the PyTorch module's __init__ defaults.
NUM_PATCHES = 4
SEQ = NUM_PATCHES + 1           # CLS token + patches
IN_DIM = 768
HID_DIM = 512
NUM_HEADS = 8
HEAD_DIM = HID_DIM // NUM_HEADS
NUM_CLASSES = 10
PADDED_CLASSES = 128            # lane-dense classifier output
NUM_LAYERS = 8
LN_EPS = 1e-5


# --------------------------- fused forward kernel ----------------------------
def _vit_kernel(x_ref, patch_w_ref, emb_b_ref, ln_w_ref, ln_b_ref,
                wqkv_ref, bqkv_ref, wo_ref, bo_ref, wmlp_ref, bmlp_ref,
                head_w_ref, head_b_ref, o_ref,
                qh_sc, kh_sc, vh_sc, oc_sc):
    ln_w = ln_w_ref[...]                      # (1, D)
    ln_b = ln_b_ref[...]                      # (1, D)

    def layernorm(v):                          # shared `self.norm` (used twice)
        mu = jnp.mean(v, axis=-1, keepdims=True)
        c = v - mu
        var = jnp.mean(c * c, axis=-1, keepdims=True)
        return c * lax.rsqrt(var + LN_EPS) * ln_w + ln_b

    # ---- patch embedding + CLS token + arange position embedding -----------
    # Row 0 of x is a zero row; emb_b row 0 = CLS token (+pos 0), rows 1..P =
    # patch bias + position value, so one matmul covers the whole embed stage.
    xin = x_ref[0].astype(jnp.bfloat16)                               # (S, 768)
    x0 = jnp.dot(xin, patch_w_ref[...],
                 preferred_element_type=jnp.float32) + emb_b_ref[...]  # (S, D)

    # ---- transformer block (only the LAST block is observable) -------------
    nx = layernorm(x0)                                                # (S, D)

    # Single full-width packed QKV projection: (S,512) @ (512,1536).
    qkv = jnp.dot(nx.astype(jnp.bfloat16), wqkv_ref[...],
                  preferred_element_type=jnp.float32) + bqkv_ref[...]  # (S, 3D)
    scale = 1.0 / math.sqrt(HEAD_DIM)
    q = qkv[:, 0:HID_DIM] * scale
    k = qkv[:, HID_DIM:2 * HID_DIM]
    v = qkv[:, 2 * HID_DIM:3 * HID_DIM]

    # Split lanes into per-head (H, S, hd) views via small VMEM scratch.
    for h in range(NUM_HEADS):
        lo, hi = h * HEAD_DIM, (h + 1) * HEAD_DIM
        qh_sc[h] = q[:, lo:hi]
        kh_sc[h] = k[:, lo:hi]
        vh_sc[h] = v[:, lo:hi]

    qh = qh_sc[...]                                                   # (H, S, hd)
    kh = kh_sc[...]
    vh = vh_sc[...]

    # All-heads attention in one shot (batched matmuls + one softmax).
    s = jnp.einsum('hqd,hkd->hqk', qh, kh,
                   preferred_element_type=jnp.float32)                # (H, S, S)
    s = s - jnp.max(s, axis=-1, keepdims=True)
    p = jnp.exp(s)
    p = p * pl.reciprocal(jnp.sum(p, axis=-1, keepdims=True), approx=True)
    oh = jnp.einsum('hqk,hkd->hqd', p, vh,
                    preferred_element_type=jnp.float32)               # (H, S, hd)

    # Concat heads back along lanes, then one full-width output projection.
    for h in range(NUM_HEADS):
        oc_sc[:, h * HEAD_DIM:(h + 1) * HEAD_DIM] = oh[h]
    attn = jnp.dot(oc_sc[...].astype(jnp.bfloat16), wo_ref[...],
                   preferred_element_type=jnp.float32) + bo_ref[...]  # (S, D)

    mha_out = attn + x0                                               # residual
    mlp = jnp.dot(mha_out.astype(jnp.bfloat16), wmlp_ref[...],
                  preferred_element_type=jnp.float32) + bmlp_ref[...]
    out_seq = layernorm(mlp) + mha_out                                # (S, D)

    # ---- classifier on the CLS token (lane-padded to 128 columns) ----------
    cls_row = out_seq[0:1, :]                                         # (1, D)
    logits = jnp.dot(cls_row.astype(jnp.bfloat16), head_w_ref[...],
                     preferred_element_type=jnp.float32) + head_b_ref[...]
    o_ref[0] = logits                                                 # (1, 128)


def vit_forward(inputs, kp):
    """inputs: (B, NUM_PATCHES, 768) f32; kp: packed params (see pack_params)."""
    B, P, C = inputs.shape
    S = P + 1
    # Zero placeholder row for the CLS token (the kernel adds CLS via emb_b).
    x_ext = jnp.concatenate([jnp.zeros((B, 1, C), inputs.dtype), inputs], axis=1)

    def full(shape):
        n = len(shape)
        return pl.BlockSpec(shape, lambda b, n=n: (0,) * n)

    out = pl.pallas_call(
        _vit_kernel,
        out_shape=jax.ShapeDtypeStruct((B, 1, PADDED_CLASSES), jnp.float32),
        grid=(B,),
        in_specs=[
            pl.BlockSpec((1, S, C), lambda b: (b, 0, 0)),     # x (with zero CLS row)
            full((IN_DIM, HID_DIM)),                          # patch_w (bf16)
            full((S, HID_DIM)),                               # emb_b (cls/pos/bias)
            full((1, HID_DIM)), full((1, HID_DIM)),           # ln_w, ln_b
            full((HID_DIM, 3 * HID_DIM)),                     # wqkv (bf16)
            full((1, 3 * HID_DIM)),                           # bqkv
            full((HID_DIM, HID_DIM)), full((1, HID_DIM)),     # wo (bf16), bo
            full((HID_DIM, HID_DIM)), full((1, HID_DIM)),     # wmlp (bf16), bmlp
            full((HID_DIM, PADDED_CLASSES)),                  # head_w (bf16, padded)
            full((1, PADDED_CLASSES)),                        # head_b (padded)
        ],
        out_specs=pl.BlockSpec((1, 1, PADDED_CLASSES), lambda b: (b, 0, 0)),
        scratch_shapes=[
            pltpu.VMEM((NUM_HEADS, S, HEAD_DIM), jnp.float32),   # q heads
            pltpu.VMEM((NUM_HEADS, S, HEAD_DIM), jnp.float32),   # k heads
            pltpu.VMEM((NUM_HEADS, S, HEAD_DIM), jnp.float32),   # v heads
            pltpu.VMEM((S, HID_DIM), jnp.float32),               # concat-heads out
        ],
        compiler_params=pltpu.CompilerParams(
            dimension_semantics=("parallel",),       # batch across TCs on v7x
            vmem_limit_bytes=32 * 1024 * 1024,
        ),
    )(x_ext, kp["patch_w"], kp["emb_b"], kp["ln_w"], kp["ln_b"],
      kp["wqkv"], kp["bqkv"], kp["wo"], kp["bo"],
      kp["wmlp"], kp["bmlp"], kp["head_w"], kp["head_b"])

    return out.reshape(B, PADDED_CLASSES)[:, :NUM_CLASSES]


# ------------------------------- parameters ----------------------------------
def init_params(key):
    """Random parameters in PyTorch nn.Module layout (weights are (out, in))."""
    std = 0.02
    keys = jax.random.split(key, 6 + NUM_LAYERS)
    params = {
        "cls": jax.random.normal(keys[0], (1, 1, HID_DIM), jnp.float32),
        "patch_w": std * jax.random.normal(keys[1], (HID_DIM, IN_DIM), jnp.float32),
        "patch_b": std * jax.random.normal(keys[2], (HID_DIM,), jnp.float32),
        "head_w": std * jax.random.normal(keys[3], (NUM_CLASSES, HID_DIM), jnp.float32),
        "head_b": std * jax.random.normal(keys[4], (NUM_CLASSES,), jnp.float32),
        "blocks": [],
    }
    for l in range(NUM_LAYERS):
        lk = jax.random.split(keys[6 + l], 8)
        params["blocks"].append({
            "ln_w": 1.0 + std * jax.random.normal(lk[0], (HID_DIM,), jnp.float32),
            "ln_b": std * jax.random.normal(lk[1], (HID_DIM,), jnp.float32),
            "in_proj_w": std * jax.random.normal(lk[2], (3 * HID_DIM, HID_DIM), jnp.float32),
            "in_proj_b": std * jax.random.normal(lk[3], (3 * HID_DIM,), jnp.float32),
            "out_proj_w": std * jax.random.normal(lk[4], (HID_DIM, HID_DIM), jnp.float32),
            "out_proj_b": std * jax.random.normal(lk[5], (HID_DIM,), jnp.float32),
            "mlp_w": std * jax.random.normal(lk[6], (HID_DIM, HID_DIM), jnp.float32),
            "mlp_b": std * jax.random.normal(lk[7], (HID_DIM,), jnp.float32),
        })
    return params


def pack_params(params):
    """One-time conversion to the fused-kernel layout:
    pre-transposed (in,out) weights, packed QKV, folded CLS/pos/patch-bias
    table, lane-padded classifier, bf16 matmul weights, f32 biases."""
    # TransformerEncoder does `out = layer(inputs)` for every block, so only
    # the last block's parameters affect the output.
    blk = params["blocks"][-1]

    pos = jnp.arange(SEQ, dtype=jnp.float32)[:, None]                    # (S, 1)
    emb_b = jnp.concatenate(
        [params["cls"].reshape(1, HID_DIM),                              # row 0: CLS (+pos 0)
         params["patch_b"][None, :] + pos[1:]], axis=0)                  # rows 1..P

    head_w = jnp.zeros((HID_DIM, PADDED_CLASSES), jnp.float32)
    head_w = head_w.at[:, :NUM_CLASSES].set(params["head_w"].T)
    head_b = jnp.zeros((PADDED_CLASSES,), jnp.float32)
    head_b = head_b.at[:NUM_CLASSES].set(params["head_b"])

    bf16 = lambda w: w.astype(jnp.bfloat16)
    return {
        "patch_w": bf16(params["patch_w"].T),                            # (768, 512)
        "emb_b": emb_b,                                                  # (S, 512) f32
        "ln_w": blk["ln_w"].reshape(1, HID_DIM),
        "ln_b": blk["ln_b"].reshape(1, HID_DIM),
        "wqkv": bf16(blk["in_proj_w"].T),                                # (512, 1536)
        "bqkv": blk["in_proj_b"].reshape(1, 3 * HID_DIM),
        "wo": bf16(blk["out_proj_w"].T),                                 # (512, 512)
        "bo": blk["out_proj_b"].reshape(1, HID_DIM),
        "wmlp": bf16(blk["mlp_w"].T),                                    # (512, 512)
        "bmlp": blk["mlp_b"].reshape(1, HID_DIM),
        "head_w": bf16(head_w),                                          # (512, 128)
        "head_b": head_b.reshape(1, PADDED_CLASSES),
    }


if __name__ == "__main__":
    key = jax.random.PRNGKey(0)
    pkey, xkey = jax.random.split(key)
    params = init_params(pkey)
    kp = pack_params(params)
    inputs = jax.random.normal(xkey, (2, NUM_PATCHES, IN_DIM), jnp.float32)

    out = jax.jit(vit_forward)(inputs, kp)
    out = jax.block_until_ready(out)
    assert out.shape == (2, NUM_CLASSES), out.shape
    assert jnp.all(jnp.isfinite(out))
    print("KERNEL_OK")
</pallas_src>

<mosaic_0001>
module attributes {stable_mosaic.version = 11 : i64} {
  func.func @_vit_kernel(%arg0: i32, %arg1: memref<1x5x768xf32, #tpu.memory_space<vmem>>, %arg2: memref<768x512xbf16, #tpu.memory_space<vmem>>, %arg3: memref<5x512xf32, #tpu.memory_space<vmem>>, %arg4: memref<1x512xf32, #tpu.memory_space<vmem>>, %arg5: memref<1x512xf32, #tpu.memory_space<vmem>>, %arg6: memref<512x1536xbf16, #tpu.memory_space<vmem>>, %arg7: memref<1x1536xf32, #tpu.memory_space<vmem>>, %arg8: memref<512x512xbf16, #tpu.memory_space<vmem>>, %arg9: memref<1x512xf32, #tpu.memory_space<vmem>>, %arg10: memref<512x512xbf16, #tpu.memory_space<vmem>>, %arg11: memref<1x512xf32, #tpu.memory_space<vmem>>, %arg12: memref<512x128xbf16, #tpu.memory_space<vmem>>, %arg13: memref<1x128xf32, #tpu.memory_space<vmem>>, %arg14: memref<1x1x128xf32, #tpu.memory_space<vmem>>, %arg15: memref<8x5x64xf32, #tpu.memory_space<vmem>>, %arg16: memref<8x5x64xf32, #tpu.memory_space<vmem>>, %arg17: memref<8x5x64xf32, #tpu.memory_space<vmem>>, %arg18: memref<5x512xf32, #tpu.memory_space<vmem>>) attributes {dimension_semantics = [#tpu.dimension_semantics<parallel>], iteration_bounds = array<i64: 2>, scalar_prefetch = 0 : i64, scratch_operands = 4 : i64, tpu.core_type = #tpu.core_type<tc>, window_params = [{transform_indices = @transform_0, window_bounds = array<i64: 1, 5, 768>}, {pipeline_mode = #tpu.pipeline_mode<synchronous>, transform_indices = @transform_1, window_bounds = array<i64: 768, 512>}, {pipeline_mode = #tpu.pipeline_mode<synchronous>, transform_indices = @transform_2, window_bounds = array<i64: 5, 512>}, {pipeline_mode = #tpu.pipeline_mode<synchronous>, transform_indices = @transform_3, window_bounds = array<i64: 1, 512>}, {pipeline_mode = #tpu.pipeline_mode<synchronous>, transform_indices = @transform_4, window_bounds = array<i64: 1, 512>}, {pipeline_mode = #tpu.pipeline_mode<synchronous>, transform_indices = @transform_5, window_bounds = array<i64: 512, 1536>}, {pipeline_mode = #tpu.pipeline_mode<synchronous>, transform_indices = @transform_6, window_bounds = array<i64: 1, 1536>}, {pipeline_mode = #tpu.pipeline_mode<synchronous>, transform_indices = @transform_7, window_bounds = array<i64: 512, 512>}, {pipeline_mode = #tpu.pipeline_mode<synchronous>, transform_indices = @transform_8, window_bounds = array<i64: 1, 512>}, {pipeline_mode = #tpu.pipeline_mode<synchronous>, transform_indices = @transform_9, window_bounds = array<i64: 512, 512>}, {pipeline_mode = #tpu.pipeline_mode<synchronous>, transform_indices = @transform_10, window_bounds = array<i64: 1, 512>}, {pipeline_mode = #tpu.pipeline_mode<synchronous>, transform_indices = @transform_11, window_bounds = array<i64: 512, 128>}, {pipeline_mode = #tpu.pipeline_mode<synchronous>, transform_indices = @transform_12, window_bounds = array<i64: 1, 128>}, {transform_indices = @transform_13, window_bounds = array<i64: 1, 1, 128>}]} {
    %c0 = arith.constant 0 : index
    %c0_0 = arith.constant 0 : index
    %0 = vector.load %arg4[%c0, %c0_0] : memref<1x512xf32, #tpu.memory_space<vmem>>, vector<1x512xf32>
    %c0_1 = arith.constant 0 : index
    %c0_2 = arith.constant 0 : index
    %1 = vector.load %arg5[%c0_1, %c0_2] : memref<1x512xf32, #tpu.memory_space<vmem>>, vector<1x512xf32>
    %c0_3 = arith.constant 0 : index
    %c0_4 = arith.constant 0 : index
    %c0_5 = arith.constant 0 : index
    %2 = vector.load %arg1[%c0_3, %c0_4, %c0_5] : memref<1x5x768xf32, #tpu.memory_space<vmem>>, vector<1x5x768xf32>
    %3 = vector.shape_cast %2 : vector<1x5x768xf32> to vector<5x768xf32>
    %4 = arith.truncf %3 : vector<5x768xf32> to vector<5x768xbf16>
    %c0_6 = arith.constant 0 : index
    %c0_7 = arith.constant 0 : index
    %5 = vector.load %arg2[%c0_6, %c0_7] : memref<768x512xbf16, #tpu.memory_space<vmem>>, vector<768x512xbf16>
    %cst = arith.constant dense<0.000000e+00> : vector<5x512xf32>
    %6 = tpu.matmul %4, %5, %cst {dimension_numbers = #tpu.dot_dimension_numbers<[1], [0], [0], [1], [0, 0, 1, 1], [], []>} : vector<5x768xbf16>, vector<768x512xbf16>, vector<5x512xf32> -> vector<5x512xf32>
    %c0_8 = arith.constant 0 : index
    %c0_9 = arith.constant 0 : index
    %7 = vector.load %arg3[%c0_8, %c0_9] : memref<5x512xf32, #tpu.memory_space<vmem>>, vector<5x512xf32>
    %8 = arith.addf %6, %7 : vector<5x512xf32>
    %cst_10 = arith.constant dense<0.000000e+00> : vector<5xf32>
    %9 = vector.multi_reduction <add>, %8, %cst_10 [1] : vector<5x512xf32> to vector<5xf32>
    %10 = vector.shape_cast %9 : vector<5xf32> to vector<5x1xf32>
    %cst_11 = arith.constant 5.120000e+02 : f32
    %11 = vector.broadcast %cst_11 : f32 to vector<5x1xf32>
    %12 = arith.divf %10, %11 : vector<5x1xf32>
    %13 = vector.broadcast %12 : vector<5x1xf32> to vector<5x512xf32>
    %14 = arith.subf %8, %13 : vector<5x512xf32>
    %15 = arith.mulf %14, %14 : vector<5x512xf32>
    %cst_12 = arith.constant dense<0.000000e+00> : vector<5xf32>
    %16 = vector.multi_reduction <add>, %15, %cst_12 [1] : vector<5x512xf32> to vector<5xf32>
    %17 = vector.shape_cast %16 : vector<5xf32> to vector<5x1xf32>
    %cst_13 = arith.constant 5.120000e+02 : f32
    %18 = vector.broadcast %cst_13 : f32 to vector<5x1xf32>
    %19 = arith.divf %17, %18 : vector<5x1xf32>
    %cst_14 = arith.constant 9.99999974E-6 : f32
    %20 = vector.broadcast %cst_14 : f32 to vector<5x1xf32>
    %21 = arith.addf %19, %20 : vector<5x1xf32>
    %22 = math.rsqrt %21 : vector<5x1xf32>
    %23 = vector.broadcast %22 : vector<5x1xf32> to vector<5x512xf32>
    %24 = arith.mulf %14, %23 : vector<5x512xf32>
    %25 = vector.broadcast %0 : vector<1x512xf32> to vector<5x512xf32>
    %26 = arith.mulf %24, %25 : vector<5x512xf32>
    %27 = vector.broadcast %1 : vector<1x512xf32> to vector<5x512xf32>
    %28 = arith.addf %26, %27 : vector<5x512xf32>
    %29 = arith.truncf %28 : vector<5x512xf32> to vector<5x512xbf16>
    %c0_15 = arith.constant 0 : index
    %c0_16 = arith.constant 0 : index
    %30 = vector.load %arg6[%c0_15, %c0_16] : memref<512x1536xbf16, #tpu.memory_space<vmem>>, vector<512x1536xbf16>
    %cst_17 = arith.constant dense<0.000000e+00> : vector<5x1536xf32>
    %31 = tpu.matmul %29, %30, %cst_17 {dimension_numbers = #tpu.dot_dimension_numbers<[1], [0], [0], [1], [0, 0, 1, 1], [], []>} : vector<5x512xbf16>, vector<512x1536xbf16>, vector<5x1536xf32> -> vector<5x1536xf32>
    %c0_18 = arith.constant 0 : index
    %c0_19 = arith.constant 0 : index
    %32 = vector.load %arg7[%c0_18, %c0_19] : memref<1x1536xf32, #tpu.memory_space<vmem>>, vector<1x1536xf32>
    %33 = vector.broadcast %32 : vector<1x1536xf32> to vector<5x1536xf32>
    %34 = arith.addf %31, %33 : vector<5x1536xf32>
    %35 = vector.extract_strided_slice %34 {offsets = [0, 0], sizes = [5, 512], strides = [1, 1]} : vector<5x1536xf32> to vector<5x512xf32>
    %cst_20 = arith.constant 1.250000e-01 : f32
    %36 = vector.broadcast %cst_20 : f32 to vector<5x512xf32>
    %37 = arith.mulf %35, %36 : vector<5x512xf32>
    %38 = vector.extract_strided_slice %34 {offsets = [0, 512], sizes = [5, 512], strides = [1, 1]} : vector<5x1536xf32> to vector<5x512xf32>
    %39 = vector.extract_strided_slice %34 {offsets = [0, 1024], sizes = [5, 512], strides = [1, 1]} : vector<5x1536xf32> to vector<5x512xf32>
    %40 = vector.extract_strided_slice %37 {offsets = [0, 0], sizes = [5, 64], strides = [1, 1]} : vector<5x512xf32> to vector<5x64xf32>
    %c0_21 = arith.constant 0 : index
    %c0_22 = arith.constant 0 : index
    %c0_23 = arith.constant 0 : index
    %41 = vector.load %arg15[%c0_21, %c0_22, %c0_23] : memref<8x5x64xf32, #tpu.memory_space<vmem>>, vector<1x5x64xf32>
    %42 = vector.shape_cast %41 : vector<1x5x64xf32> to vector<5x64xf32>
    %43 = vector.shape_cast %40 : vector<5x64xf32> to vector<1x5x64xf32>
    tpu.vector_store %arg15[%c0_21, %c0_22, %c0_23], %43 {strides = array<i32>} : memref<8x5x64xf32, #tpu.memory_space<vmem>>, vector<1x5x64xf32>,
    %44 = vector.extract_strided_slice %38 {offsets = [0, 0], sizes = [5, 64], strides = [1, 1]} : vector<5x512xf32> to vector<5x64xf32>
    %c0_24 = arith.constant 0 : index
    %c0_25 = arith.constant 0 : index
    %c0_26 = arith.constant 0 : index
    %45 = vector.load %arg16[%c0_24, %c0_25, %c0_26] : memref<8x5x64xf32, #tpu.memory_space<vmem>>, vector<1x5x64xf32>
    %46 = vector.shape_cast %45 : vector<1x5x64xf32> to vector<5x64xf32>
    %47 = vector.shape_cast %44 : vector<5x64xf32> to vector<1x5x64xf32>
    tpu.vector_store %arg16[%c0_24, %c0_25, %c0_26], %47 {strides = array<i32>} : memref<8x5x64xf32, #tpu.memory_space<vmem>>, vector<1x5x64xf32>,
    %48 = vector.extract_strided_slice %39 {offsets = [0, 0], sizes = [5, 64], strides = [1, 1]} : vector<5x512xf32> to vector<5x64xf32>
    %c0_27 = arith.constant 0 : index
    %c0_28 = arith.constant 0 : index
    %c0_29 = arith.constant 0 : index
    %49 = vector.load %arg17[%c0_27, %c0_28, %c0_29] : memref<8x5x64xf32, #tpu.memory_space<vmem>>, vector<1x5x64xf32>
    %50 = vector.shape_cast %49 : vector<1x5x64xf32> to vector<5x64xf32>
    %51 = vector.shape_cast %48 : vector<5x64xf32> to vector<1x5x64xf32>
    tpu.vector_store %arg17[%c0_27, %c0_28, %c0_29], %51 {strides = array<i32>} : memref<8x5x64xf32, #tpu.memory_space<vmem>>, vector<1x5x64xf32>,
    %52 = vector.extract_strided_slice %37 {offsets = [0, 64], sizes = [5, 64], strides = [1, 1]} : vector<5x512xf32> to vector<5x64xf32>
    %c1 = arith.constant 1 : index
    %c0_30 = arith.constant 0 : index
    %c0_31 = arith.constant 0 : index
    %53 = vector.load %arg15[%c1, %c0_30, %c0_31] : memref<8x5x64xf32, #tpu.memory_space<vmem>>, vector<1x5x64xf32>
    %54 = vector.shape_cast %53 : vector<1x5x64xf32> to vector<5x64xf32>
    %55 = vector.shape_cast %52 : vector<5x64xf32> to vector<1x5x64xf32>
    tpu.vector_store %arg15[%c1, %c0_30, %c0_31], %55 {strides = array<i32>} : memref<8x5x64xf32, #tpu.memory_space<vmem>>, vector<1x5x64xf32>,
    %56 = vector.extract_strided_slice %38 {offsets = [0, 64], sizes = [5, 64], strides = [1, 1]} : vector<5x512xf32> to vector<5x64xf32>
    %c1_32 = arith.constant 1 : index
    %c0_33 = arith.constant 0 : index
    %c0_34 = arith.constant 0 : index
    %57 = vector.load %arg16[%c1_32, %c0_33, %c0_34] : memref<8x5x64xf32, #tpu.memory_space<vmem>>, vector<1x5x64xf32>
    %58 = vector.shape_cast %57 : vector<1x5x64xf32> to vector<5x64xf32>
    %59 = vector.shape_cast %56 : vector<5x64xf32> to vector<1x5x64xf32>
    tpu.vector_store %arg16[%c1_32, %c0_33, %c0_34], %59 {strides = array<i32>} : memref<8x5x64xf32, #tpu.memory_space<vmem>>, vector<1x5x64xf32>,
    %60 = vector.extract_strided_slice %39 {offsets = [0, 64], sizes = [5, 64], strides = [1, 1]} : vector<5x512xf32> to vector<5x64xf32>
    %c1_35 = arith.constant 1 : index
    %c0_36 = arith.constant 0 : index
    %c0_37 = arith.constant 0 : index
    %61 = vector.load %arg17[%c1_35, %c0_36, %c0_37] : memref<8x5x64xf32, #tpu.memory_space<vmem>>, vector<1x5x64xf32>
    %62 = vector.shape_cast %61 : vector<1x5x64xf32> to vector<5x64xf32>
    %63 = vector.shape_cast %60 : vector<5x64xf32> to vector<1x5x64xf32>
    tpu.vector_store %arg17[%c1_35, %c0_36, %c0_37], %63 {strides = array<i32>} : memref<8x5x64xf32, #tpu.memory_space<vmem>>, vector<1x5x64xf32>,
    %64 = vector.extract_strided_slice %37 {offsets = [0, 128], sizes = [5, 64], strides = [1, 1]} : vector<5x512xf32> to vector<5x64xf32>
    %c2 = arith.constant 2 : index
    %c0_38 = arith.constant 0 : index
    %c0_39 = arith.constant 0 : index
    %65 = vector.load %arg15[%c2, %c0_38, %c0_39] : memref<8x5x64xf32, #tpu.memory_space<vmem>>, vector<1x5x64xf32>
    %66 = vector.shape_cast %65 : vector<1x5x64xf32> to vector<5x64xf32>
    %67 = vector.shape_cast %64 : vector<5x64xf32> to vector<1x5x64xf32>
    tpu.vector_store %arg15[%c2, %c0_38, %c0_39], %67 {strides = array<i32>} : memref<8x5x64xf32, #tpu.memory_space<vmem>>, vector<1x5x64xf32>,
    %68 = vector.extract_strided_slice %38 {offsets = [0, 128], sizes = [5, 64], strides = [1, 1]} : vector<5x512xf32> to vector<5x64xf32>
    %c2_40 = arith.constant 2 : index
    %c0_41 = arith.constant 0 : index
    %c0_42 = arith.constant 0 : index
    %69 = vector.load %arg16[%c2_40, %c0_41, %c0_42] : memref<8x5x64xf32, #tpu.memory_space<vmem>>, vector<1x5x64xf32>
    %70 = vector.shape_cast %69 : vector<1x5x64xf32> to vector<5x64xf32>
    %71 = vector.shape_cast %68 : vector<5x64xf32> to vector<1x5x64xf32>
    tpu.vector_store %arg16[%c2_40, %c0_41, %c0_42], %71 {strides = array<i32>} : memref<8x5x64xf32, #tpu.memory_space<vmem>>, vector<1x5x64xf32>,
    %72 = vector.extract_strided_slice %39 {offsets = [0, 128], sizes = [5, 64], strides = [1, 1]} : vector<5x512xf32> to vector<5x64xf32>
    %c2_43 = arith.constant 2 : index
    %c0_44 = arith.constant 0 : index
    %c0_45 = arith.constant 0 : index
    %73 = vector.load %arg17[%c2_43, %c0_44, %c0_45] : memref<8x5x64xf32, #tpu.memory_space<vmem>>, vector<1x5x64xf32>
    %74 = vector.shape_cast %73 : vector<1x5x64xf32> to vector<5x64xf32>
    %75 = vector.shape_cast %72 : vector<5x64xf32> to vector<1x5x64xf32>
    tpu.vector_store %arg17[%c2_43, %c0_44, %c0_45], %75 {strides = array<i32>} : memref<8x5x64xf32, #tpu.memory_space<vmem>>, vector<1x5x64xf32>,
    %76 = vector.extract_strided_slice %37 {offsets = [0, 192], sizes = [5, 64], strides = [1, 1]} : vector<5x512xf32> to vector<5x64xf32>
    %c3 = arith.constant 3 : index
    %c0_46 = arith.constant 0 : index
    %c0_47 = arith.constant 0 : index
    %77 = vector.load %arg15[%c3, %c0_46, %c0_47] : memref<8x5x64xf32, #tpu.memory_space<vmem>>, vector<1x5x64xf32>
    %78 = vector.shape_cast %77 : vector<1x5x64xf32> to vector<5x64xf32>
    %79 = vector.shape_cast %76 : vector<5x64xf32> to vector<1x5x64xf32>
    tpu.vector_store %arg15[%c3, %c0_46, %c0_47], %79 {strides = array<i32>} : memref<8x5x64xf32, #tpu.memory_space<vmem>>, vector<1x5x64xf32>,
    %80 = vector.extract_strided_slice %38 {offsets = [0, 192], sizes = [5, 64], strides = [1, 1]} : vector<5x512xf32> to vector<5x64xf32>
    %c3_48 = arith.constant 3 : index
    %c0_49 = arith.constant 0 : index
    %c0_50 = arith.constant 0 : index
    %81 = vector.load %arg16[%c3_48, %c0_49, %c0_50] : memref<8x5x64xf32, #tpu.memory_space<vmem>>, vector<1x5x64xf32>
    %82 = vector.shape_cast %81 : vector<1x5x64xf32> to vector<5x64xf32>
    %83 = vector.shape_cast %80 : vector<5x64xf32> to vector<1x5x64xf32>
    tpu.vector_store %arg16[%c3_48, %c0_49, %c0_50], %83 {strides = array<i32>} : memref<8x5x64xf32, #tpu.memory_space<vmem>>, vector<1x5x64xf32>,
    %84 = vector.extract_strided_slice %39 {offsets = [0, 192], sizes = [5, 64], strides = [1, 1]} : vector<5x512xf32> to vector<5x64xf32>
    %c3_51 = arith.constant 3 : index
    %c0_52 = arith.constant 0 : index
    %c0_53 = arith.constant 0 : index
    %85 = vector.load %arg17[%c3_51, %c0_52, %c0_53] : memref<8x5x64xf32, #tpu.memory_space<vmem>>, vector<1x5x64xf32>
    %86 = vector.shape_cast %85 : vector<1x5x64xf32> to vector<5x64xf32>
    %87 = vector.shape_cast %84 : vector<5x64xf32> to vector<1x5x64xf32>
    tpu.vector_store %arg17[%c3_51, %c0_52, %c0_53], %87 {strides = array<i32>} : memref<8x5x64xf32, #tpu.memory_space<vmem>>, vector<1x5x64xf32>,
    %88 = vector.extract_strided_slice %37 {offsets = [0, 256], sizes = [5, 64], strides = [1, 1]} : vector<5x512xf32> to vector<5x64xf32>
    %c4 = arith.constant 4 : index
    %c0_54 = arith.constant 0 : index
    %c0_55 = arith.constant 0 : index
    %89 = vector.load %arg15[%c4, %c0_54, %c0_55] : memref<8x5x64xf32, #tpu.memory_space<vmem>>, vector<1x5x64xf32>
    %90 = vector.shape_cast %89 : vector<1x5x64xf32> to vector<5x64xf32>
    %91 = vector.shape_cast %88 : vector<5x64xf32> to vector<1x5x64xf32>
    tpu.vector_store %arg15[%c4, %c0_54, %c0_55], %91 {strides = array<i32>} : memref<8x5x64xf32, #tpu.memory_space<vmem>>, vector<1x5x64xf32>,
    %92 = vector.extract_strided_slice %38 {offsets = [0, 256], sizes = [5, 64], strides = [1, 1]} : vector<5x512xf32> to vector<5x64xf32>
    %c4_56 = arith.constant 4 : index
    %c0_57 = arith.constant 0 : index
    %c0_58 = arith.constant 0 : index
    %93 = vector.load %arg16[%c4_56, %c0_57, %c0_58] : memref<8x5x64xf32, #tpu.memory_space<vmem>>, vector<1x5x64xf32>
    %94 = vector.shape_cast %93 : vector<1x5x64xf32> to vector<5x64xf32>
    %95 = vector.shape_cast %92 : vector<5x64xf32> to vector<1x5x64xf32>
    tpu.vector_store %arg16[%c4_56, %c0_57, %c0_58], %95 {strides = array<i32>} : memref<8x5x64xf32, #tpu.memory_space<vmem>>, vector<1x5x64xf32>,
    %96 = vector.extract_strided_slice %39 {offsets = [0, 256], sizes = [5, 64], strides = [1, 1]} : vector<5x512xf32> to vector<5x64xf32>
    %c4_59 = arith.constant 4 : index
    %c0_60 = arith.constant 0 : index
    %c0_61 = arith.constant 0 : index
    %97 = vector.load %arg17[%c4_59, %c0_60, %c0_61] : memref<8x5x64xf32, #tpu.memory_space<vmem>>, vector<1x5x64xf32>
    %98 = vector.shape_cast %97 : vector<1x5x64xf32> to vector<5x64xf32>
    %99 = vector.shape_cast %96 : vector<5x64xf32> to vector<1x5x64xf32>
    tpu.vector_store %arg17[%c4_59, %c0_60, %c0_61], %99 {strides = array<i32>} : memref<8x5x64xf32, #tpu.memory_space<vmem>>, vector<1x5x64xf32>,
    %100 = vector.extract_strided_slice %37 {offsets = [0, 320], sizes = [5, 64], strides = [1, 1]} : vector<5x512xf32> to vector<5x64xf32>
    %c5 = arith.constant 5 : index
    %c0_62 = arith.constant 0 : index
    %c0_63 = arith.constant 0 : index
    %101 = vector.load %arg15[%c5, %c0_62, %c0_63] : memref<8x5x64xf32, #tpu.memory_space<vmem>>, vector<1x5x64xf32>
    %102 = vector.shape_cast %101 : vector<1x5x64xf32> to vector<5x64xf32>
    %103 = vector.shape_cast %100 : vector<5x64xf32> to vector<1x5x64xf32>
    tpu.vector_store %arg15[%c5, %c0_62, %c0_63], %103 {strides = array<i32>} : memref<8x5x64xf32, #tpu.memory_space<vmem>>, vector<1x5x64xf32>,
    %104 = vector.extract_strided_slice %38 {offsets = [0, 320], sizes = [5, 64], strides = [1, 1]} : vector<5x512xf32> to vector<5x64xf32>
    %c5_64 = arith.constant 5 : index
    %c0_65 = arith.constant 0 : index
    %c0_66 = arith.constant 0 : index
    %105 = vector.load %arg16[%c5_64, %c0_65, %c0_66] : memref<8x5x64xf32, #tpu.memory_space<vmem>>, vector<1x5x64xf32>
    %106 = vector.shape_cast %105 : vector<1x5x64xf32> to vector<5x64xf32>
    %107 = vector.shape_cast %104 : vector<5x64xf32> to vector<1x5x64xf32>
    tpu.vector_store %arg16[%c5_64, %c0_65, %c0_66], %107 {strides = array<i32>} : memref<8x5x64xf32, #tpu.memory_space<vmem>>, vector<1x5x64xf32>,
    %108 = vector.extract_strided_slice %39 {offsets = [0, 320], sizes = [5, 64], strides = [1, 1]} : vector<5x512xf32> to vector<5x64xf32>
    %c5_67 = arith.constant 5 : index
    %c0_68 = arith.constant 0 : index
    %c0_69 = arith.constant 0 : index
    %109 = vector.load %arg17[%c5_67, %c0_68, %c0_69] : memref<8x5x64xf32, #tpu.memory_space<vmem>>, vector<1x5x64xf32>
    %110 = vector.shape_cast %109 : vector<1x5x64xf32> to vector<5x64xf32>
    %111 = vector.shape_cast %108 : vector<5x64xf32> to vector<1x5x64xf32>
    tpu.vector_store %arg17[%c5_67, %c0_68, %c0_69], %111 {strides = array<i32>} : memref<8x5x64xf32, #tpu.memory_space<vmem>>, vector<1x5x64xf32>,
    %112 = vector.extract_strided_slice %37 {offsets = [0, 384], sizes = [5, 64], strides = [1, 1]} : vector<5x512xf32> to vector<5x64xf32>
    %c6 = arith.constant 6 : index
    %c0_70 = arith.constant 0 : index
    %c0_71 = arith.constant 0 : index
    %113 = vector.load %arg15[%c6, %c0_70, %c0_71] : memref<8x5x64xf32, #tpu.memory_space<vmem>>, vector<1x5x64xf32>
    %114 = vector.shape_cast %113 : vector<1x5x64xf32> to vector<5x64xf32>
    %115 = vector.shape_cast %112 : vector<5x64xf32> to vector<1x5x64xf32>
    tpu.vector_store %arg15[%c6, %c0_70, %c0_71], %115 {strides = array<i32>} : memref<8x5x64xf32, #tpu.memory_space<vmem>>, vector<1x5x64xf32>,
    %116 = vector.extract_strided_slice %38 {offsets = [0, 384], sizes = [5, 64], strides = [1, 1]} : vector<5x512xf32> to vector<5x64xf32>
    %c6_72 = arith.constant 6 : index
    %c0_73 = arith.constant 0 : index
    %c0_74 = arith.constant 0 : index
    %117 = vector.load %arg16[%c6_72, %c0_73, %c0_74] : memref<8x5x64xf32, #tpu.memory_space<vmem>>, vector<1x5x64xf32>
    %118 = vector.shape_cast %117 : vector<1x5x64xf32> to vector<5x64xf32>
    %119 = vector.shape_cast %116 : vector<5x64xf32> to vector<1x5x64xf32>
    tpu.vector_store %arg16[%c6_72, %c0_73, %c0_74], %119 {strides = array<i32>} : memref<8x5x64xf32, #tpu.memory_space<vmem>>, vector<1x5x64xf32>,
    %120 = vector.extract_strided_slice %39 {offsets = [0, 384], sizes = [5, 64], strides = [1, 1]} : vector<5x512xf32> to vector<5x64xf32>
    %c6_75 = arith.constant 6 : index
    %c0_76 = arith.constant 0 : index
    %c0_77 = arith.constant 0 : index
    %121 = vector.load %arg17[%c6_75, %c0_76, %c0_77] : memref<8x5x64xf32, #tpu.memory_space<vmem>>, vector<1x5x64xf32>
    %122 = vector.shape_cast %121 : vector<1x5x64xf32> to vector<5x64xf32>
    %123 = vector.shape_cast %120 : vector<5x64xf32> to vector<1x5x64xf32>
    tpu.vector_store %arg17[%c6_75, %c0_76, %c0_77], %123 {strides = array<i32>} : memref<8x5x64xf32, #tpu.memory_space<vmem>>, vector<1x5x64xf32>,
    %124 = vector.extract_strided_slice %37 {offsets = [0, 448], sizes = [5, 64], strides = [1, 1]} : vector<5x512xf32> to vector<5x64xf32>
    %c7 = arith.constant 7 : index
    %c0_78 = arith.constant 0 : index
    %c0_79 = arith.constant 0 : index
    %125 = vector.load %arg15[%c7, %c0_78, %c0_79] : memref<8x5x64xf32, #tpu.memory_space<vmem>>, vector<1x5x64xf32>
    %126 = vector.shape_cast %125 : vector<1x5x64xf32> to vector<5x64xf32>
    %127 = vector.shape_cast %124 : vector<5x64xf32> to vector<1x5x64xf32>
    tpu.vector_store %arg15[%c7, %c0_78, %c0_79], %127 {strides = array<i32>} : memref<8x5x64xf32, #tpu.memory_space<vmem>>, vector<1x5x64xf32>,
    %128 = vector.extract_strided_slice %38 {offsets = [0, 448], sizes = [5, 64], strides = [1, 1]} : vector<5x512xf32> to vector<5x64xf32>
    %c7_80 = arith.constant 7 : index
    %c0_81 = arith.constant 0 : index
    %c0_82 = arith.constant 0 : index
    %129 = vector.load %arg16[%c7_80, %c0_81, %c0_82] : memref<8x5x64xf32, #tpu.memory_space<vmem>>, vector<1x5x64xf32>
    %130 = vector.shape_cast %129 : vector<1x5x64xf32> to vector<5x64xf32>
    %131 = vector.shape_cast %128 : vector<5x64xf32> to vector<1x5x64xf32>
    tpu.vector_store %arg16[%c7_80, %c0_81, %c0_82], %131 {strides = array<i32>} : memref<8x5x64xf32, #tpu.memory_space<vmem>>, vector<1x5x64xf32>,
    %132 = vector.extract_strided_slice %39 {offsets = [0, 448], sizes = [5, 64], strides = [1, 1]} : vector<5x512xf32> to vector<5x64xf32>
    %c7_83 = arith.constant 7 : index
    %c0_84 = arith.constant 0 : index
    %c0_85 = arith.constant 0 : index
    %133 = vector.load %arg17[%c7_83, %c0_84, %c0_85] : memref<8x5x64xf32, #tpu.memory_space<vmem>>, vector<1x5x64xf32>
    %134 = vector.shape_cast %133 : vector<1x5x64xf32> to vector<5x64xf32>
    %135 = vector.shape_cast %132 : vector<5x64xf32> to vector<1x5x64xf32>
    tpu.vector_store %arg17[%c7_83, %c0_84, %c0_85], %135 {strides = array<i32>} : memref<8x5x64xf32, #tpu.memory_space<vmem>>, vector<1x5x64xf32>,
    %c0_86 = arith.constant 0 : index
    %c0_87 = arith.constant 0 : index
    %c0_88 = arith.constant 0 : index
    %136 = vector.load %arg15[%c0_86, %c0_87, %c0_88] : memref<8x5x64xf32, #tpu.memory_space<vmem>>, vector<8x5x64xf32>
    %c0_89 = arith.constant 0 : index
    %c0_90 = arith.constant 0 : index
    %c0_91 = arith.constant 0 : index
    %137 = vector.load %arg16[%c0_89, %c0_90, %c0_91] : memref<8x5x64xf32, #tpu.memory_space<vmem>>, vector<8x5x64xf32>
    %c0_92 = arith.constant 0 : index
    %c0_93 = arith.constant 0 : index
    %c0_94 = arith.constant 0 : index
    %138 = vector.load %arg17[%c0_92, %c0_93, %c0_94] : memref<8x5x64xf32, #tpu.memory_space<vmem>>, vector<8x5x64xf32>
    "tpu.trace_start"() <{level = 10 : i32, message = "hqd,hkd->hqk"}> : () -> ()
    %cst_95 = arith.constant dense<0.000000e+00> : vector<8x5x5xf32>
    %139 = tpu.matmul %136, %137, %cst_95 {dimension_numbers = #tpu.dot_dimension_numbers<[2], [2], [1], [1], [0, 0, 0, 1, 1, 1], [0], [0]>} : vector<8x5x64xf32>, vector<8x5x64xf32>, vector<8x5x5xf32> -> vector<8x5x5xf32>
    "tpu.trace_stop"() : () -> ()
    %cst_96 = arith.constant dense<0xFF800000> : vector<8x5xf32>
    %140 = vector.multi_reduction <maximumf>, %139, %cst_96 [2] : vector<8x5x5xf32> to vector<8x5xf32>
    %141 = vector.shape_cast %140 : vector<8x5xf32> to vector<8x5x1xf32>
    %142 = vector.broadcast %141 : vector<8x5x1xf32> to vector<8x5x5xf32>
    %143 = arith.subf %139, %142 : vector<8x5x5xf32>
    %144 = math.exp %143 : vector<8x5x5xf32>
    %cst_97 = arith.constant dense<0.000000e+00> : vector<8x5xf32>
    %145 = vector.multi_reduction <add>, %144, %cst_97 [2] : vector<8x5x5xf32> to vector<8x5xf32>
    %146 = vector.shape_cast %145 : vector<8x5xf32> to vector<8x5x1xf32>
    %147 = tpu.reciprocal %146 {approx = true} : vector<8x5x1xf32> -> vector<8x5x1xf32>
    %148 = vector.broadcast %147 : vector<8x5x1xf32> to vector<8x5x5xf32>
    %149 = arith.mulf %144, %148 : vector<8x5x5xf32>
    "tpu.trace_start"() <{level = 10 : i32, message = "hqk,hkd->hqd"}> : () -> ()
    %cst_98 = arith.constant dense<0.000000e+00> : vector<8x5x64xf32>
    %150 = tpu.matmul %149, %138, %cst_98 {dimension_numbers = #tpu.dot_dimension_numbers<[2], [1], [1], [2], [0, 0, 0, 1, 1, 2], [0], [0]>} : vector<8x5x5xf32>, vector<8x5x64xf32>, vector<8x5x64xf32> -> vector<8x5x64xf32>
    "tpu.trace_stop"() : () -> ()
    %151 = vector.extract_strided_slice %150 {offsets = [0, 0, 0], sizes = [1, 5, 64], strides = [1, 1, 1]} : vector<8x5x64xf32> to vector<1x5x64xf32>
    %152 = vector.shape_cast %151 : vector<1x5x64xf32> to vector<5x64xf32>
    %c0_99 = arith.constant 0 : index
    %c0_100 = arith.constant 0 : index
    %153 = vector.load %arg18[%c0_99, %c0_100] : memref<5x512xf32, #tpu.memory_space<vmem>>, vector<5x64xf32>
    tpu.vector_store %arg18[%c0_99, %c0_100], %152 {strides = array<i32>} : memref<5x512xf32, #tpu.memory_space<vmem>>, vector<5x64xf32>,
    %154 = vector.extract_strided_slice %150 {offsets = [1, 0, 0], sizes = [1, 5, 64], strides = [1, 1, 1]} : vector<8x5x64xf32> to vector<1x5x64xf32>
    %155 = vector.shape_cast %154 : vector<1x5x64xf32> to vector<5x64xf32>
    %c0_101 = arith.constant 0 : index
    %c64 = arith.constant 64 : index
    %156 = vector.load %arg18[%c0_101, %c64] : memref<5x512xf32, #tpu.memory_space<vmem>>, vector<5x64xf32>
    tpu.vector_store %arg18[%c0_101, %c64], %155 {strides = array<i32>} : memref<5x512xf32, #tpu.memory_space<vmem>>, vector<5x64xf32>,
    %157 = vector.extract_strided_slice %150 {offsets = [2, 0, 0], sizes = [1, 5, 64], strides = [1, 1, 1]} : vector<8x5x64xf32> to vector<1x5x64xf32>
    %158 = vector.shape_cast %157 : vector<1x5x64xf32> to vector<5x64xf32>
    %c0_102 = arith.constant 0 : index
    %c128 = arith.constant 128 : index
    %159 = vector.load %arg18[%c0_102, %c128] : memref<5x512xf32, #tpu.memory_space<vmem>>, vector<5x64xf32>
    tpu.vector_store %arg18[%c0_102, %c128], %158 {strides = array<i32>} : memref<5x512xf32, #tpu.memory_space<vmem>>, vector<5x64xf32>,
    %160 = vector.extract_strided_slice %150 {offsets = [3, 0, 0], sizes = [1, 5, 64], strides = [1, 1, 1]} : vector<8x5x64xf32> to vector<1x5x64xf32>
    %161 = vector.shape_cast %160 : vector<1x5x64xf32> to vector<5x64xf32>
    %c0_103 = arith.constant 0 : index
    %c192 = arith.constant 192 : index
    %162 = vector.load %arg18[%c0_103, %c192] : memref<5x512xf32, #tpu.memory_space<vmem>>, vector<5x64xf32>
    tpu.vector_store %arg18[%c0_103, %c192], %161 {strides = array<i32>} : memref<5x512xf32, #tpu.memory_space<vmem>>, vector<5x64xf32>,
    %163 = vector.extract_strided_slice %150 {offsets = [4, 0, 0], sizes = [1, 5, 64], strides = [1, 1, 1]} : vector<8x5x64xf32> to vector<1x5x64xf32>
    %164 = vector.shape_cast %163 : vector<1x5x64xf32> to vector<5x64xf32>
    %c0_104 = arith.constant 0 : index
    %c256 = arith.constant 256 : index
    %165 = vector.load %arg18[%c0_104, %c256] : memref<5x512xf32, #tpu.memory_space<vmem>>, vector<5x64xf32>
    tpu.vector_store %arg18[%c0_104, %c256], %164 {strides = array<i32>} : memref<5x512xf32, #tpu.memory_space<vmem>>, vector<5x64xf32>,
    %166 = vector.extract_strided_slice %150 {offsets = [5, 0, 0], sizes = [1, 5, 64], strides = [1, 1, 1]} : vector<8x5x64xf32> to vector<1x5x64xf32>
    %167 = vector.shape_cast %166 : vector<1x5x64xf32> to vector<5x64xf32>
    %c0_105 = arith.constant 0 : index
    %c320 = arith.constant 320 : index
    %168 = vector.load %arg18[%c0_105, %c320] : memref<5x512xf32, #tpu.memory_space<vmem>>, vector<5x64xf32>
    tpu.vector_store %arg18[%c0_105, %c320], %167 {strides = array<i32>} : memref<5x512xf32, #tpu.memory_space<vmem>>, vector<5x64xf32>,
    %169 = vector.extract_strided_slice %150 {offsets = [6, 0, 0], sizes = [1, 5, 64], strides = [1, 1, 1]} : vector<8x5x64xf32> to vector<1x5x64xf32>
    %170 = vector.shape_cast %169 : vector<1x5x64xf32> to vector<5x64xf32>
    %c0_106 = arith.constant 0 : index
    %c384 = arith.constant 384 : index
    %171 = vector.load %arg18[%c0_106, %c384] : memref<5x512xf32, #tpu.memory_space<vmem>>, vector<5x64xf32>
    tpu.vector_store %arg18[%c0_106, %c384], %170 {strides = array<i32>} : memref<5x512xf32, #tpu.memory_space<vmem>>, vector<5x64xf32>,
    %172 = vector.extract_strided_slice %150 {offsets = [7, 0, 0], sizes = [1, 5, 64], strides = [1, 1, 1]} : vector<8x5x64xf32> to vector<1x5x64xf32>
    %173 = vector.shape_cast %172 : vector<1x5x64xf32> to vector<5x64xf32>
    %c0_107 = arith.constant 0 : index
    %c448 = arith.constant 448 : index
    %174 = vector.load %arg18[%c0_107, %c448] : memref<5x512xf32, #tpu.memory_space<vmem>>, vector<5x64xf32>
    tpu.vector_store %arg18[%c0_107, %c448], %173 {strides = array<i32>} : memref<5x512xf32, #tpu.memory_space<vmem>>, vector<5x64xf32>,
    %c0_108 = arith.constant 0 : index
    %c0_109 = arith.constant 0 : index
    %175 = vector.load %arg18[%c0_108, %c0_109] : memref<5x512xf32, #tpu.memory_space<vmem>>, vector<5x512xf32>
    %176 = arith.truncf %175 : vector<5x512xf32> to vector<5x512xbf16>
    %c0_110 = arith.constant 0 : index
    %c0_111 = arith.constant 0 : index
    %177 = vector.load %arg8[%c0_110, %c0_111] : memref<512x512xbf16, #tpu.memory_space<vmem>>, vector<512x512xbf16>
    %cst_112 = arith.constant dense<0.000000e+00> : vector<5x512xf32>
    %178 = tpu.matmul %176, %177, %cst_112 {dimension_numbers = #tpu.dot_dimension_numbers<[1], [0], [0], [1], [0, 0, 1, 1], [], []>} : vector<5x512xbf16>, vector<512x512xbf16>, vector<5x512xf32> -> vector<5x512xf32>
    %c0_113 = arith.constant 0 : index
    %c0_114 = arith.constant 0 : index
    %179 = vector.load %arg9[%c0_113, %c0_114] : memref<1x512xf32, #tpu.memory_space<vmem>>, vector<1x512xf32>
    %180 = vector.broadcast %179 : vector<1x512xf32> to vector<5x512xf32>
    %181 = arith.addf %178, %180 : vector<5x512xf32>
    %182 = arith.addf %181, %8 : vector<5x512xf32>
    %183 = arith.truncf %182 : vector<5x512xf32> to vector<5x512xbf16>
    %c0_115 = arith.constant 0 : index
    %c0_116 = arith.constant 0 : index
    %184 = vector.load %arg10[%c0_115, %c0_116] : memref<512x512xbf16, #tpu.memory_space<vmem>>, vector<512x512xbf16>
    %cst_117 = arith.constant dense<0.000000e+00> : vector<5x512xf32>
    %185 = tpu.matmul %183, %184, %cst_117 {dimension_numbers = #tpu.dot_dimension_numbers<[1], [0], [0], [1], [0, 0, 1, 1], [], []>} : vector<5x512xbf16>, vector<512x512xbf16>, vector<5x512xf32> -> vector<5x512xf32>
    %c0_118 = arith.constant 0 : index
    %c0_119 = arith.constant 0 : index
    %186 = vector.load %arg11[%c0_118, %c0_119] : memref<1x512xf32, #tpu.memory_space<vmem>>, vector<1x512xf32>
    %187 = vector.broadcast %186 : vector<1x512xf32> to vector<5x512xf32>
    %188 = arith.addf %185, %187 : vector<5x512xf32>
    %cst_120 = arith.constant dense<0.000000e+00> : vector<5xf32>
    %189 = vector.multi_reduction <add>, %188, %cst_120 [1] : vector<5x512xf32> to vector<5xf32>
    %190 = vector.shape_cast %189 : vector<5xf32> to vector<5x1xf32>
    %cst_121 = arith.constant 5.120000e+02 : f32
    %191 = vector.broadcast %cst_121 : f32 to vector<5x1xf32>
    %192 = arith.divf %190, %191 : vector<5x1xf32>
    %193 = vector.broadcast %192 : vector<5x1xf32> to vector<5x512xf32>
    %194 = arith.subf %188, %193 : vector<5x512xf32>
    %195 = arith.mulf %194, %194 : vector<5x512xf32>
    %cst_122 = arith.constant dense<0.000000e+00> : vector<5xf32>
    %196 = vector.multi_reduction <add>, %195, %cst_122 [1] : vector<5x512xf32> to vector<5xf32>
    %197 = vector.shape_cast %196 : vector<5xf32> to vector<5x1xf32>
    %cst_123 = arith.constant 5.120000e+02 : f32
    %198 = vector.broadcast %cst_123 : f32 to vector<5x1xf32>
    %199 = arith.divf %197, %198 : vector<5x1xf32>
    %cst_124 = arith.constant 9.99999974E-6 : f32
    %200 = vector.broadcast %cst_124 : f32 to vector<5x1xf32>
    %201 = arith.addf %199, %200 : vector<5x1xf32>
    %202 = math.rsqrt %201 : vector<5x1xf32>
    %203 = vector.broadcast %202 : vector<5x1xf32> to vector<5x512xf32>
    %204 = arith.mulf %194, %203 : vector<5x512xf32>
    %205 = vector.broadcast %0 : vector<1x512xf32> to vector<5x512xf32>
    %206 = arith.mulf %204, %205 : vector<5x512xf32>
    %207 = vector.broadcast %1 : vector<1x512xf32> to vector<5x512xf32>
    %208 = arith.addf %206, %207 : vector<5x512xf32>
    %209 = arith.addf %208, %182 : vector<5x512xf32>
    %210 = vector.extract_strided_slice %209 {offsets = [0, 0], sizes = [1, 512], strides = [1, 1]} : vector<5x512xf32> to vector<1x512xf32>
    %211 = arith.truncf %210 : vector<1x512xf32> to vector<1x512xbf16>
    %c0_125 = arith.constant 0 : index
    %c0_126 = arith.constant 0 : index
    %212 = vector.load %arg12[%c0_125, %c0_126] : memref<512x128xbf16, #tpu.memory_space<vmem>>, vector<512x128xbf16>
    %cst_127 = arith.constant dense<0.000000e+00> : vector<1x128xf32>
    %213 = tpu.matmul %211, %212, %cst_127 {dimension_numbers = #tpu.dot_dimension_numbers<[1], [0], [0], [1], [0, 0, 1, 1], [], []>} : vector<1x512xbf16>, vector<512x128xbf16>, vector<1x128xf32> -> vector<1x128xf32>
    %c0_128 = arith.constant 0 : index
    %c0_129 = arith.constant 0 : index
    %214 = vector.load %arg13[%c0_128, %c0_129] : memref<1x128xf32, #tpu.memory_space<vmem>>, vector<1x128xf32>
    %215 = arith.addf %213, %214 : vector<1x128xf32>
    %c0_130 = arith.constant 0 : index
    %c0_131 = arith.constant 0 : index
    %c0_132 = arith.constant 0 : index
    %216 = vector.load %arg14[%c0_130, %c0_131, %c0_132] : memref<1x1x128xf32, #tpu.memory_space<vmem>>, vector<1x1x128xf32>
    %217 = vector.shape_cast %216 : vector<1x1x128xf32> to vector<1x128xf32>
    %218 = vector.shape_cast %215 : vector<1x128xf32> to vector<1x1x128xf32>
    tpu.vector_store %arg14[%c0_130, %c0_131, %c0_132], %218 {strides = array<i32>} : memref<1x1x128xf32, #tpu.memory_space<vmem>>, vector<1x1x128xf32>,
    return
  }
  func.func @transform_0(%arg0: i32) -> (i32, i32, i32) {
    %c0_i32 = arith.constant 0 : i32
    %c0_i32_0 = arith.constant 0 : i32
    %c0_i32_1 = arith.constant 0 : i32
    return %arg0, %c0_i32, %c0_i32_0 : i32, i32, i32
  }
  func.func @transform_1(%arg0: i32) -> (i32, i32) {
    %c0_i32 = arith.constant 0 : i32
    %c0_i32_0 = arith.constant 0 : i32
    %c0_i32_1 = arith.constant 0 : i32
    return %c0_i32, %c0_i32_0 : i32, i32
  }
  func.func @transform_2(%arg0: i32) -> (i32, i32) {
    %c0_i32 = arith.constant 0 : i32
    %c0_i32_0 = arith.constant 0 : i32
    %c0_i32_1 = arith.constant 0 : i32
    return %c0_i32, %c0_i32_0 : i32, i32
  }
  func.func @transform_3(%arg0: i32) -> (i32, i32) {
    %c0_i32 = arith.constant 0 : i32
    %c0_i32_0 = arith.constant 0 : i32
    %c0_i32_1 = arith.constant 0 : i32
    return %c0_i32, %c0_i32_0 : i32, i32
  }
  func.func @transform_4(%arg0: i32) -> (i32, i32) {
    %c0_i32 = arith.constant 0 : i32
    %c0_i32_0 = arith.constant 0 : i32
    %c0_i32_1 = arith.constant 0 : i32
    return %c0_i32, %c0_i32_0 : i32, i32
  }
  func.func @transform_5(%arg0: i32) -> (i32, i32) {
    %c0_i32 = arith.constant 0 : i32
    %c0_i32_0 = arith.constant 0 : i32
    %c0_i32_1 = arith.constant 0 : i32
    return %c0_i32, %c0_i32_0 : i32, i32
  }
  func.func @transform_6(%arg0: i32) -> (i32, i32) {
    %c0_i32 = arith.constant 0 : i32
    %c0_i32_0 = arith.constant 0 : i32
    %c0_i32_1 = arith.constant 0 : i32
    return %c0_i32, %c0_i32_0 : i32, i32
  }
  func.func @transform_7(%arg0: i32) -> (i32, i32) {
    %c0_i32 = arith.constant 0 : i32
    %c0_i32_0 = arith.constant 0 : i32
    %c0_i32_1 = arith.constant 0 : i32
    return %c0_i32, %c0_i32_0 : i32, i32
  }
  func.func @transform_8(%arg0: i32) -> (i32, i32) {
    %c0_i32 = arith.constant 0 : i32
    %c0_i32_0 = arith.constant 0 : i32
    %c0_i32_1 = arith.constant 0 : i32
    return %c0_i32, %c0_i32_0 : i32, i32
  }
  func.func @transform_9(%arg0: i32) -> (i32, i32) {
    %c0_i32 = arith.constant 0 : i32
    %c0_i32_0 = arith.constant 0 : i32
    %c0_i32_1 = arith.constant 0 : i32
    return %c0_i32, %c0_i32_0 : i32, i32
  }
  func.func @transform_10(%arg0: i32) -> (i32, i32) {
    %c0_i32 = arith.constant 0 : i32
    %c0_i32_0 = arith.constant 0 : i32
    %c0_i32_1 = arith.constant 0 : i32
    return %c0_i32, %c0_i32_0 : i32, i32
  }
  func.func @transform_11(%arg0: i32) -> (i32, i32) {
    %c0_i32 = arith.constant 0 : i32
    %c0_i32_0 = arith.constant 0 : i32
    %c0_i32_1 = arith.constant 0 : i32
    return %c0_i32, %c0_i32_0 : i32, i32
  }
  func.func @transform_12(%arg0: i32) -> (i32, i32) {
    %c0_i32 = arith.constant 0 : i32
    %c0_i32_0 = arith.constant 0 : i32
    %c0_i32_1 = arith.constant 0 : i32
    return %c0_i32, %c0_i32_0 : i32, i32
  }
  func.func @transform_13(%arg0: i32) -> (i32, i32, i32) {
    %c0_i32 = arith.constant 0 : i32
    %c0_i32_0 = arith.constant 0 : i32
    %c0_i32_1 = arith.constant 0 : i32
    return %arg0, %c0_i32, %c0_i32_0 : i32, i32, i32
  }
}

</mosaic_0001>

<llo_original>
// kernel: vit_forward.1
$region0: #{vit_forward.1}
  #allocation0 [shape = 'u32[]', space=smem, size = 0x4, offset = 0x4, fixed_abs, tag = 'smem constant byte address 0x4 - core index']
  #allocation1 [shape = 'u32[144,128]{1,0:T(1,128)}', space=vmem, size = 0x12000, scoped, tag = 'internal scratch']
  #allocation2 [shape = 'f32[8,5,64]{2,1,0:T(8,128)}', space=vmem, size = 0x8000, scoped, tag = 'scratch operand']
  #allocation3 [shape = 'f32[8,5,64]{2,1,0:T(8,128)}', space=vmem, size = 0x8000, scoped, tag = 'scratch operand']
  #allocation4 [shape = 'f32[8,5,64]{2,1,0:T(8,128)}', space=vmem, size = 0x8000, scoped, tag = 'scratch operand']
  #allocation5 [shape = 'f32[5,512]{1,0:T(8,128)}', space=vmem, size = 0x4000, scoped, tag = 'scratch operand']
  %s0 = inlined_call_operand.vmem [shape: f32[2,5,768], index: 0, kind: input, shape index: {}]
  %s1 = inlined_call_operand.hbm [shape: bf16[768,512], index: 1, kind: input, shape index: {}]
  %s2 = inlined_call_operand.hbm [shape: f32[5,512], index: 2, kind: input, shape index: {}]
  %s3 = inlined_call_operand.hbm [shape: f32[1,512], index: 3, kind: input, shape index: {}]
  %s4 = inlined_call_operand.hbm [shape: f32[1,512], index: 4, kind: input, shape index: {}]
  %s5 = inlined_call_operand.hbm [shape: bf16[512,1536], index: 5, kind: input, shape index: {}]
  %s6 = inlined_call_operand.hbm [shape: f32[1,1536], index: 6, kind: input, shape index: {}]
  %s7 = inlined_call_operand.hbm [shape: bf16[512,512], index: 7, kind: input, shape index: {}]
  %s8 = inlined_call_operand.hbm [shape: f32[1,512], index: 8, kind: input, shape index: {}]
  %s9 = inlined_call_operand.hbm [shape: bf16[512,512], index: 9, kind: input, shape index: {}]
  %s10 = inlined_call_operand.hbm [shape: f32[1,512], index: 10, kind: input, shape index: {}]
  %s11 = inlined_call_operand.hbm [shape: bf16[512,128], index: 11, kind: input, shape index: {}]
  %s12 = inlined_call_operand.hbm [shape: f32[1,128], index: 12, kind: input, shape index: {}]
  %s13 = inlined_call_operand.hbm [shape: f32[2,1,128], index: 13, kind: output, shape index: {}]
  %s14 = sld [smem:[#allocation0]]
  $region133: #{vit_forward.1} parent=0
    _
  %s16 = ssub.s32 1, %s14
  %s17 = scalar_select 0, %s16, %s14
  $region1: #{vit_forward.1} parent=0
    #allocation6 [shape = 'u8[786432]{0}', space=vmem, size = 0xc0000, scoped, tag = 'input window, operand 1, single buffered']
    #allocation7 [shape = 's32[2]{0}', space=sflag, size = 0x8, scoped, tag = 'scoped memory for vit_forward.1']
    #allocation8 [shape = 's32[2]{0}', space=sflag, size = 0x8, scoped, tag = 'scoped memory for vit_forward.1']
    #allocation9 [shape = 'u8[16384]{0}', space=vmem, size = 0x4000, scoped, tag = 'input window, operand 2, single buffered']
    #allocation10 [shape = 's32[1]{0}', space=sflag, size = 0x4, scoped, tag = 'scoped memory for vit_forward.1']
    #allocation11 [shape = 'u8[2048]{0}', space=vmem, size = 0x800, scoped, tag = 'input window, operand 3, single buffered']
    #allocation12 [shape = 'u8[2048]{0}', space=vmem, size = 0x800, scoped, tag = 'input window, operand 4, single buffered']
    #allocation13 [shape = 's32[1]{0}', space=sflag, size = 0x4, scoped, tag = 'scoped memory for vit_forward.1']
    #allocation14 [shape = 'u8[1572864]{0}', space=vmem, size = 0x180000, scoped, tag = 'input window, operand 5, single buffered']
    #allocation15 [shape = 'u8[6144]{0}', space=vmem, size = 0x1800, scoped, tag = 'input window, operand 6, single buffered']
    #allocation16 [shape = 's32[1]{0}', space=sflag, size = 0x4, scoped, tag = 'scoped memory for vit_forward.1']
    #allocation17 [shape = 'u8[524288]{0}', space=vmem, size = 0x80000, scoped, tag = 'input window, operand 7, single buffered']
    #allocation18 [shape = 'u8[2048]{0}', space=vmem, size = 0x800, scoped, tag = 'input window, operand 8, single buffered']
    #allocation19 [shape = 's32[1]{0}', space=sflag, size = 0x4, scoped, tag = 'scoped memory for vit_forward.1']
    #allocation20 [shape = 'u8[524288]{0}', space=vmem, size = 0x80000, scoped, tag = 'input window, operand 9, single buffered']
    #allocation21 [shape = 'u8[2048]{0}', space=vmem, size = 0x800, scoped, tag = 'input window, operand 10, single buffered']
    #allocation22 [shape = 's32[1]{0}', space=sflag, size = 0x4, scoped, tag = 'scoped memory for vit_forward.1']
    #allocation23 [shape = 'u8[131072]{0}', space=vmem, size = 0x20000, scoped, tag = 'input window, operand 11, single buffered']
    #allocation24 [shape = 'u8[512]{0}', space=vmem, size = 0x400, scoped, tag = 'input window, operand 12, single buffered']
    #allocation25 [shape = 's32[1]{0}', space=sflag, size = 0x4, scoped, tag = 'scoped memory for vit_forward.1']
    #allocation26 [shape = 'u8[1024]{0}', space=vmem, size = 0x400, scoped, tag = 'output window, operand 0']
    %18 = vsyncpa [#allocation7], 0
    %19 = vsyncpa [#allocation10], 0
    %20 = vsyncpa [#allocation13], 0
    %21 = vsyncpa [#allocation16], 0
    %22 = vsyncpa [#allocation19], 0
    %23 = vsyncpa [#allocation22], 0
    %24 = vsyncpa [#allocation25], 0
    %25 = vsyncpa [#allocation8], 0
    %s26 = scalar_lea.sflag [#allocation8], 1
    %27 = vsyncpa %s26, 0
    loop: start=0, step=1, limit=4
    $region2: #{vit_forward.1} parent=1 // loop_pre_header
      _
    $region3: #{vit_forward.1} parent=1 // loop_header
      %s29 = sphi 0, %s33
      %p30 = scmp.ge.s32.totalorder %s29, 4
      %s39 = sphi 0, %s41
      %s42 = sphi 0, %s39
      %s43 = sphi 0, %s42
      %s59 = sphi 0, %s43
      %s63 = sphi 0, %s63
      %s65 = sphi 0, %s63
      %s66 = sphi 0, %s65
      %s80 = sphi 0, %s66
      %s84 = sphi 0, %s84
      %s86 = sphi 0, %s84
      %s87 = sphi 0, %s86
      %s101 = sphi 0, %s87
      %s105 = sphi 0, %s105
      %s107 = sphi 0, %s105
      %s108 = sphi 0, %s107
      %s122 = sphi 0, %s108
      %s126 = sphi 0, %s126
      %s128 = sphi 0, %s126
      %s129 = sphi 0, %s128
      %s143 = sphi 0, %s129
      %s147 = sphi 0, %s147
      %s149 = sphi 0, %s147
      %s150 = sphi 0, %s149
      %s164 = sphi 0, %s150
      %s168 = sphi 0, %s168
      %s170 = sphi 0, %s168
      %s171 = sphi 0, %s170
      %s185 = sphi 0, %s171
      %s189 = sphi 0, %s189
      %s191 = sphi 0, %s189
      %s192 = sphi 0, %s191
      %s206 = sphi 0, %s192
      %s210 = sphi 0, %s210
      %s212 = sphi 0, %s210
      %s213 = sphi 0, %s212
      %s227 = sphi 0, %s213
      %s231 = sphi 0, %s231
      %s233 = sphi 0, %s231
      %s234 = sphi 0, %s233
      %s248 = sphi 0, %s234
      %s252 = sphi 0, %s252
      %s254 = sphi 0, %s252
      %s255 = sphi 0, %s254
      %s269 = sphi 0, %s255
      %s273 = sphi 0, %s273
      %s275 = sphi 0, %s273
      %s276 = sphi 0, %s275
      %s290 = sphi 0, %s276
      %s294 = sphi 0, %s294
      %s296 = sphi 0, %s294
      %s297 = sphi 0, %s296
      %s311 = sphi 0, %s297
      %s317 = sphi 0, %s319
      %s320 = sphi 0, %s317
      %s321 = sphi 0, %s320
      %s337 = sphi 0, %s321
    $region4: #{vit_forward.1} parent=1 // loop_header_branch
      %32 = sbr.rel (%p30) target = $region8
    $region5: #{vit_forward.1} parent=1 // loop_body
      %s34 = ssub.s32 %s29, 1
      %s35 = ssub.s32 %s29, 2
      %s36 = sadd.s32 %s29, 1
      %s37 = ssub.s32 %s29, %s36
      %p38 = scmp.eq.s32.totalorder %s37, 0
      %s40 = sadd.s32 %s39, 1
      %s41 = scalar_select %p38, %s39, %s40
      %p44 = pneg %p38
      %p45 = scmp.eq.s32.totalorder %s29, 1
      %p46 = por %p44, %p45
      %p47 = scmp.ne.s32.totalorder %s39, %s42
      %p48 = scmp.eq.s32.totalorder %s29, 0
      %p49 = por %p47, %p48
      %p50 = scmp.ne.s32.totalorder %s39, %s42
      %p51 = scmp.eq.s32.totalorder %s34, 1
      %p52 = por %p50, %p51
      %p53 = scmp.ne.s32.totalorder %s42, %s43
      %p54 = scmp.eq.s32.totalorder %s34, 0
      %p55 = por %p53, %p54
      %p56 = scmp.ne.s32.totalorder %s42, %s43
      %p57 = scmp.eq.s32.totalorder %s35, 1
      %p58 = por %p56, %p57
      %p60 = scmp.ne.s32.totalorder %s43, %s59
      %p61 = scmp.eq.s32.totalorder %s35, 0
      %p62 = por %p60, %p61
      %s64 = sadd.s32 %s63, 1
      %p67 = scmp.eq.s32.totalorder %s29, 1
      %p68 = scmp.ne.s32.totalorder %s63, %s65
      %p69 = scmp.eq.s32.totalorder %s29, 0
      %p70 = por %p68, %p69
      %p71 = scmp.ne.s32.totalorder %s63, %s65
      %p72 = scmp.eq.s32.totalorder %s34, 1
      %p73 = por %p71, %p72
      %p74 = scmp.ne.s32.totalorder %s65, %s66
      %p75 = scmp.eq.s32.totalorder %s34, 0
      %p76 = por %p74, %p75
      %p77 = scmp.ne.s32.totalorder %s65, %s66
      %p78 = scmp.eq.s32.totalorder %s35, 1
      %p79 = por %p77, %p78
      %p81 = scmp.ne.s32.totalorder %s66, %s80
      %p82 = scmp.eq.s32.totalorder %s35, 0
      %p83 = por %p81, %p82
      %s85 = sadd.s32 %s84, 1
      %p88 = scmp.eq.s32.totalorder %s29, 1
      %p89 = scmp.ne.s32.totalorder %s84, %s86
      %p90 = scmp.eq.s32.totalorder %s29, 0
      %p91 = por %p89, %p90
      %p92 = scmp.ne.s32.totalorder %s84, %s86
      %p93 = scmp.eq.s32.totalorder %s34, 1
      %p94 = por %p92, %p93
      %p95 = scmp.ne.s32.totalorder %s86, %s87
      %p96 = scmp.eq.s32.totalorder %s34, 0
      %p97 = por %p95, %p96
      %p98 = scmp.ne.s32.totalorder %s86, %s87
      %p99 = scmp.eq.s32.totalorder %s35, 1
      %p100 = por %p98, %p99
      %p102 = scmp.ne.s32.totalorder %s87, %s101
      %p103 = scmp.eq.s32.totalorder %s35, 0
      %p104 = por %p102, %p103
      %s106 = sadd.s32 %s105, 1
      %p109 = scmp.eq.s32.totalorder %s29, 1
      %p110 = scmp.ne.s32.totalorder %s105, %s107
      %p111 = scmp.eq.s32.totalorder %s29, 0
      %p112 = por %p110, %p111
      %p113 = scmp.ne.s32.totalorder %s105, %s107
      %p114 = scmp.eq.s32.totalorder %s34, 1
      %p115 = por %p113, %p114
      %p116 = scmp.ne.s32.totalorder %s107, %s108
      %p117 = scmp.eq.s32.totalorder %s34, 0
      %p118 = por %p116, %p117
      %p119 = scmp.ne.s32.totalorder %s107, %s108
      %p120 = scmp.eq.s32.totalorder %s35, 1
      %p121 = por %p119, %p120
      %p123 = scmp.ne.s32.totalorder %s108, %s122
      %p124 = scmp.eq.s32.totalorder %s35, 0
      %p125 = por %p123, %p124
      %s127 = sadd.s32 %s126, 1
      %p130 = scmp.eq.s32.totalorder %s29, 1
      %p131 = scmp.ne.s32.totalorder %s126, %s128
      %p132 = scmp.eq.s32.totalorder %s29, 0
      %p133 = por %p131, %p132
      %p134 = scmp.ne.s32.totalorder %s126, %s128
      %p135 = scmp.eq.s32.totalorder %s34, 1
      %p136 = por %p134, %p135
      %p137 = scmp.ne.s32.totalorder %s128, %s129
      %p138 = scmp.eq.s32.totalorder %s34, 0
      %p139 = por %p137, %p138
      %p140 = scmp.ne.s32.totalorder %s128, %s129
      %p141 = scmp.eq.s32.totalorder %s35, 1
      %p142 = por %p140, %p141
      %p144 = scmp.ne.s32.totalorder %s129, %s143
      %p145 = scmp.eq.s32.totalorder %s35, 0
      %p146 = por %p144, %p145
      %s148 = sadd.s32 %s147, 1
      %p151 = scmp.eq.s32.totalorder %s29, 1
      %p152 = scmp.ne.s32.totalorder %s147, %s149
      %p153 = scmp.eq.s32.totalorder %s29, 0
      %p154 = por %p152, %p153
      %p155 = scmp.ne.s32.totalorder %s147, %s149
      %p156 = scmp.eq.s32.totalorder %s34, 1
      %p157 = por %p155, %p156
      %p158 = scmp.ne.s32.totalorder %s149, %s150
      %p159 = scmp.eq.s32.totalorder %s34, 0
      %p160 = por %p158, %p159
      %p161 = scmp.ne.s32.totalorder %s149, %s150
      %p162 = scmp.eq.s32.totalorder %s35, 1
      %p163 = por %p161, %p162
      %p165 = scmp.ne.s32.totalorder %s150, %s164
      %p166 = scmp.eq.s32.totalorder %s35, 0
      %p167 = por %p165, %p166
      %s169 = sadd.s32 %s168, 1
      %p172 = scmp.eq.s32.totalorder %s29, 1
      %p173 = scmp.ne.s32.totalorder %s168, %s170
      %p174 = scmp.eq.s32.totalorder %s29, 0
      %p175 = por %p173, %p174
      %p176 = scmp.ne.s32.totalorder %s168, %s170
      %p177 = scmp.eq.s32.totalorder %s34, 1
      %p178 = por %p176, %p177
      %p179 = scmp.ne.s32.totalorder %s170, %s171
      %p180 = scmp.eq.s32.totalorder %s34, 0
      %p181 = por %p179, %p180
      %p182 = scmp.ne.s32.totalorder %s170, %s171
      %p183 = scmp.eq.s32.totalorder %s35, 1
      %p184 = por %p182, %p183
      %p186 = scmp.ne.s32.totalorder %s171, %s185
      %p187 = scmp.eq.s32.totalorder %s35, 0
      %p188 = por %p186, %p187
      %s190 = sadd.s32 %s189, 1
      %p193 = scmp.eq.s32.totalorder %s29, 1
      %p194 = scmp.ne.s32.totalorder %s189, %s191
      %p195 = scmp.eq.s32.totalorder %s29, 0
      %p196 = por %p194, %p195
      %p197 = scmp.ne.s32.totalorder %s189, %s191
      %p198 = scmp.eq.s32.totalorder %s34, 1
      %p199 = por %p197, %p198
      %p200 = scmp.ne.s32.totalorder %s191, %s192
      %p201 = scmp.eq.s32.totalorder %s34, 0
      %p202 = por %p200, %p201
      %p203 = scmp.ne.s32.totalorder %s191, %s192
      %p204 = scmp.eq.s32.totalorder %s35, 1
      %p205 = por %p203, %p204
      %p207 = scmp.ne.s32.totalorder %s192, %s206
      %p208 = scmp.eq.s32.totalorder %s35, 0
      %p209 = por %p207, %p208
      %s211 = sadd.s32 %s210, 1
      %p214 = scmp.eq.s32.totalorder %s29, 1
      %p215 = scmp.ne.s32.totalorder %s210, %s212
      %p216 = scmp.eq.s32.totalorder %s29, 0
      %p217 = por %p215, %p216
      %p218 = scmp.ne.s32.totalorder %s210, %s212
      %p219 = scmp.eq.s32.totalorder %s34, 1
      %p220 = por %p218, %p219
      %p221 = scmp.ne.s32.totalorder %s212, %s213
      %p222 = scmp.eq.s32.totalorder %s34, 0
      %p223 = por %p221, %p222
      %p224 = scmp.ne.s32.totalorder %s212, %s213
      %p225 = scmp.eq.s32.totalorder %s35, 1
      %p226 = por %p224, %p225
      %p228 = scmp.ne.s32.totalorder %s213, %s227
      %p229 = scmp.eq.s32.totalorder %s35, 0
      %p230 = por %p228, %p229
      %s232 = sadd.s32 %s231, 1
      %p235 = scmp.eq.s32.totalorder %s29, 1
      %p236 = scmp.ne.s32.totalorder %s231, %s233
      %p237 = scmp.eq.s32.totalorder %s29, 0
      %p238 = por %p236, %p237
      %p239 = scmp.ne.s32.totalorder %s231, %s233
      %p240 = scmp.eq.s32.totalorder %s34, 1
      %p241 = por %p239, %p240
      %p242 = scmp.ne.s32.totalorder %s233, %s234
      %p243 = scmp.eq.s32.totalorder %s34, 0
      %p244 = por %p242, %p243
      %p245 = scmp.ne.s32.totalorder %s233, %s234
      %p246 = scmp.eq.s32.totalorder %s35, 1
      %p247 = por %p245, %p246
      %p249 = scmp.ne.s32.totalorder %s234, %s248
      %p250 = scmp.eq.s32.totalorder %s35, 0
      %p251 = por %p249, %p250
      %s253 = sadd.s32 %s252, 1
      %p256 = scmp.eq.s32.totalorder %s29, 1
      %p257 = scmp.ne.s32.totalorder %s252, %s254
      %p258 = scmp.eq.s32.totalorder %s29, 0
      %p259 = por %p257, %p258
      %p260 = scmp.ne.s32.totalorder %s252, %s254
      %p261 = scmp.eq.s32.totalorder %s34, 1
      %p262 = por %p260, %p261
      %p263 = scmp.ne.s32.totalorder %s254, %s255
      %p264 = scmp.eq.s32.totalorder %s34, 0
      %p265 = por %p263, %p264
      %p266 = scmp.ne.s32.totalorder %s254, %s255
      %p267 = scmp.eq.s32.totalorder %s35, 1
      %p268 = por %p266, %p267
      %p270 = scmp.ne.s32.totalorder %s255, %s269
      %p271 = scmp.eq.s32.totalorder %s35, 0
      %p272 = por %p270, %p271
      %s274 = sadd.s32 %s273, 1
      %p277 = scmp.eq.s32.totalorder %s29, 1
      %p278 = scmp.ne.s32.totalorder %s273, %s275
      %p279 = scmp.eq.s32.totalorder %s29, 0
      %p280 = por %p278, %p279
      %p281 = scmp.ne.s32.totalorder %s273, %s275
      %p282 = scmp.eq.s32.totalorder %s34, 1
      %p283 = por %p281, %p282
      %p284 = scmp.ne.s32.totalorder %s275, %s276
      %p285 = scmp.eq.s32.totalorder %s34, 0
      %p286 = por %p284, %p285
      %p287 = scmp.ne.s32.totalorder %s275, %s276
      %p288 = scmp.eq.s32.totalorder %s35, 1
      %p289 = por %p287, %p288
      %p291 = scmp.ne.s32.totalorder %s276, %s290
      %p292 = scmp.eq.s32.totalorder %s35, 0
      %p293 = por %p291, %p292
      %s295 = sadd.s32 %s294, 1
      %p298 = scmp.eq.s32.totalorder %s29, 1
      %p299 = scmp.ne.s32.totalorder %s294, %s296
      %p300 = scmp.eq.s32.totalorder %s29, 0
      %p301 = por %p299, %p300
      %p302 = scmp.ne.s32.totalorder %s294, %s296
      %p303 = scmp.eq.s32.totalorder %s34, 1
      %p304 = por %p302, %p303
      %p305 = scmp.ne.s32.totalorder %s296, %s297
      %p306 = scmp.eq.s32.totalorder %s34, 0
      %p307 = por %p305, %p306
      %p308 = scmp.ne.s32.totalorder %s296, %s297
      %p309 = scmp.eq.s32.totalorder %s35, 1
      %p310 = por %p308, %p309
      %p312 = scmp.ne.s32.totalorder %s297, %s311
      %p313 = scmp.eq.s32.totalorder %s35, 0
      %p314 = por %p312, %p313
      %s315 = ssub.s32 %s29, %s36
      %p316 = scmp.eq.s32.totalorder %s315, 0
      %s318 = sadd.s32 %s317, 1
      %s319 = scalar_select %p316, %s317, %s318
      %p322 = pneg %p316
      %p323 = scmp.eq.s32.totalorder %s29, 1
      %p324 = por %p322, %p323
      %p325 = scmp.ne.s32.totalorder %s317, %s320
      %p326 = scmp.eq.s32.totalorder %s29, 0
      %p327 = por %p325, %p326
      %p328 = scmp.ne.s32.totalorder %s317, %s320
      %p329 = scmp.eq.s32.totalorder %s34, 1
      %p330 = por %p328, %p329
      %p331 = scmp.ne.s32.totalorder %s320, %s321
      %p332 = scmp.eq.s32.totalorder %s34, 0
      %p333 = por %p331, %p332
      %p334 = scmp.ne.s32.totalorder %s320, %s321
      %p335 = scmp.eq.s32.totalorder %s35, 1
      %p336 = por %p334, %p335
      %p338 = scmp.ne.s32.totalorder %s321, %s337
      %p339 = scmp.eq.s32.totalorder %s35, 0
      %p340 = por %p338, %p339
      %p341 = scmp.le.s32.totalorder 1, %s29
      %p342 = scmp.lt.s32.totalorder %s29, 3
      %p343 = pnand %p341, %p342
      %p344 = pneg %p343
      // Predicated region
      $region9: #{vit_forward.1} parent=5 // pred_check
        _
      $region10: #{vit_forward.1} parent=5 // pred_check_branch
        %346 = sbr.rel (%p343) target = $region12
      $region11: #{vit_forward.1} parent=5 // pred_region
        %s347 = ssub.s32 %s29, 1
        // Predicated region
        $region13: #{vit_forward.1} parent=11 // pred_check
          %p348 = pneg %p76
        $region14: #{vit_forward.1} parent=11 // pred_check_branch
          %350 = sbr.rel (%p348) target = $region16
        $region15: #{vit_forward.1} parent=11 // pred_region
          %s352 = ssub.s32 24576, 24576
          %353 = vsyncadd [#allocation7], %s352
          %s354 = sshll.u32 [#allocation6], 4
          %s355 = int_to_ptr.vmem [resolvable:$true] %s354
          %360 = dma.hbm_to_vmem [thread:$0]  %s1, 24576, %s355, [#allocation7], 256, 256, 16
        $region16: #{vit_forward.1} parent=11 // pred_fallthru
          _
        // Predicated region
        $region17: #{vit_forward.1} parent=11 // pred_check
          %p361 = pneg %p97
        $region18: #{vit_forward.1} parent=11 // pred_check_branch
          %363 = sbr.rel (%p361) target = $region20
        $region19: #{vit_forward.1} parent=11 // pred_region
          %s365 = ssub.s32 512, 512
          %366 = vsyncadd [#allocation10], %s365
          %s368 = sshll.u32 [#allocation9], 4
          %s369 = int_to_ptr.vmem [resolvable:$true] %s368
          %371 = dma.hbm_to_vmem [thread:$0]  %s2, 512, %s369, [#allocation10]
        $region20: #{vit_forward.1} parent=11 // pred_fallthru
          _
        // Predicated region
        $region21: #{vit_forward.1} parent=11 // pred_check
          %p372 = pneg %p118
        $region22: #{vit_forward.1} parent=11 // pred_check_branch
          %374 = sbr.rel (%p372) target = $region24
        $region23: #{vit_forward.1} parent=11 // pred_region
          %s376 = ssub.s32 64, 64
          %377 = vsyncadd [#allocation10], %s376
          %s379 = sshll.u32 [#allocation11], 4
          %s380 = int_to_ptr.vmem [resolvable:$true] %s379
          %382 = dma.hbm_to_vmem [thread:$0]  %s3, 64, %s380, [#allocation10]
        $region24: #{vit_forward.1} parent=11 // pred_fallthru
          _
        // Predicated region
        $region25: #{vit_forward.1} parent=11 // pred_check
          %p383 = pneg %p139
        $region26: #{vit_forward.1} parent=11 // pred_check_branch
          %385 = sbr.rel (%p383) target = $region28
        $region27: #{vit_forward.1} parent=11 // pred_region
          %s387 = ssub.s32 64, 64
          %388 = vsyncadd [#allocation13], %s387
          %s390 = sshll.u32 [#allocation12], 4
          %s391 = int_to_ptr.vmem [resolvable:$true] %s390
          %393 = dma.hbm_to_vmem [thread:$0]  %s4, 64, %s391, [#allocation13]
        $region28: #{vit_forward.1} parent=11 // pred_fallthru
          _
        // Predicated region
        $region29: #{vit_forward.1} parent=11 // pred_check
          %p394 = pneg %p160
        $region30: #{vit_forward.1} parent=11 // pred_check_branch
          %396 = sbr.rel (%p394) target = $region32
        $region31: #{vit_forward.1} parent=11 // pred_region
          %s398 = ssub.s32 49152, 49152
          %399 = vsyncadd [#allocation13], %s398
          %s400 = sshll.u32 [#allocation14], 4
          %s401 = int_to_ptr.vmem [resolvable:$true] %s400
          %406 = dma.hbm_to_vmem [thread:$0]  %s5, 49152, %s401, [#allocation13], 768, 768, 48
        $region32: #{vit_forward.1} parent=11 // pred_fallthru
          _
        // Predicated region
        $region33: #{vit_forward.1} parent=11 // pred_check
          %p407 = pneg %p181
        $region34: #{vit_forward.1} parent=11 // pred_check_branch
          %409 = sbr.rel (%p407) target = $region36
        $region35: #{vit_forward.1} parent=11 // pred_region
          %s411 = ssub.s32 192, 192
          %412 = vsyncadd [#allocation16], %s411
          %s414 = sshll.u32 [#allocation15], 4
          %s415 = int_to_ptr.vmem [resolvable:$true] %s414
          %417 = dma.hbm_to_vmem [thread:$0]  %s6, 192, %s415, [#allocation16]
        $region36: #{vit_forward.1} parent=11 // pred_fallthru
          _
        // Predicated region
        $region37: #{vit_forward.1} parent=11 // pred_check
          %p418 = pneg %p202
        $region38: #{vit_forward.1} parent=11 // pred_check_branch
          %420 = sbr.rel (%p418) target = $region40
        $region39: #{vit_forward.1} parent=11 // pred_region
          %s422 = ssub.s32 16384, 16384
          %423 = vsyncadd [#allocation16], %s422
          %s424 = sshll.u32 [#allocation17], 4
          %s425 = int_to_ptr.vmem [resolvable:$true] %s424
          %430 = dma.hbm_to_vmem [thread:$0]  %s7, 16384, %s425, [#allocation16], 256, 256, 16
        $region40: #{vit_forward.1} parent=11 // pred_fallthru
          _
        // Predicated region
        $region41: #{vit_forward.1} parent=11 // pred_check
          %p431 = pneg %p223
        $region42: #{vit_forward.1} parent=11 // pred_check_branch
          %433 = sbr.rel (%p431) target = $region44
        $region43: #{vit_forward.1} parent=11 // pred_region
          %s435 = ssub.s32 64, 64
          %436 = vsyncadd [#allocation19], %s435
          %s438 = sshll.u32 [#allocation18], 4
          %s439 = int_to_ptr.vmem [resolvable:$true] %s438
          %441 = dma.hbm_to_vmem [thread:$0]  %s8, 64, %s439, [#allocation19]
        $region44: #{vit_forward.1} parent=11 // pred_fallthru
          _
        // Predicated region
        $region45: #{vit_forward.1} parent=11 // pred_check
          %p442 = pneg %p244
        $region46: #{vit_forward.1} parent=11 // pred_check_branch
          %444 = sbr.rel (%p442) target = $region48
        $region47: #{vit_forward.1} parent=11 // pred_region
          %s446 = ssub.s32 16384, 16384
          %447 = vsyncadd [#allocation19], %s446
          %s448 = sshll.u32 [#allocation20], 4
          %s449 = int_to_ptr.vmem [resolvable:$true] %s448
          %454 = dma.hbm_to_vmem [thread:$0]  %s9, 16384, %s449, [#allocation19], 256, 256, 16
        $region48: #{vit_forward.1} parent=11 // pred_fallthru
          _
        // Predicated region
        $region49: #{vit_forward.1} parent=11 // pred_check
          %p455 = pneg %p265
        $region50: #{vit_forward.1} parent=11 // pred_check_branch
          %457 = sbr.rel (%p455) target = $region52
        $region51: #{vit_forward.1} parent=11 // pred_region
          %s459 = ssub.s32 64, 64
          %460 = vsyncadd [#allocation22], %s459
          %s462 = sshll.u32 [#allocation21], 4
          %s463 = int_to_ptr.vmem [resolvable:$true] %s462
          %465 = dma.hbm_to_vmem [thread:$0]  %s10, 64, %s463, [#allocation22]
        $region52: #{vit_forward.1} parent=11 // pred_fallthru
          _
        // Predicated region
        $region53: #{vit_forward.1} parent=11 // pred_check
          %p466 = pneg %p286
        $region54: #{vit_forward.1} parent=11 // pred_check_branch
          %468 = sbr.rel (%p466) target = $region56
        $region55: #{vit_forward.1} parent=11 // pred_region
          %s470 = ssub.s32 4096, 4096
          %471 = vsyncadd [#allocation22], %s470
          %s472 = sshll.u32 [#allocation23], 4
          %s473 = int_to_ptr.vmem [resolvable:$true] %s472
          %478 = dma.hbm_to_vmem [thread:$0]  %s11, 4096, %s473, [#allocation22], 64, 64, 4
        $region56: #{vit_forward.1} parent=11 // pred_fallthru
          _
        // Predicated region
        $region57: #{vit_forward.1} parent=11 // pred_check
          %p479 = pneg %p307
        $region58: #{vit_forward.1} parent=11 // pred_check_branch
          %481 = sbr.rel (%p479) target = $region60
        $region59: #{vit_forward.1} parent=11 // pred_region
          %s483 = ssub.s32 16, 16
          %484 = vsyncadd [#allocation25], %s483
          %s486 = sshll.u32 [#allocation24], 4
          %s487 = int_to_ptr.vmem [resolvable:$true] %s486
          %489 = dma.hbm_to_vmem [thread:$0]  %s12, 16, %s487, [#allocation25]
        $region60: #{vit_forward.1} parent=11 // pred_fallthru
          _
      $region12: #{vit_forward.1} parent=5 // pred_fallthru
        _
      %p490 = scmp.lt.s32.totalorder %s29, 2
      // Predicated region
      $region61: #{vit_forward.1} parent=5 // pred_check
        %p491 = pneg %p490
      $region62: #{vit_forward.1} parent=5 // pred_check_branch
        %493 = sbr.rel (%p491) target = $region64
      $region63: #{vit_forward.1} parent=5 // pred_region
        // Predicated region
        $region65: #{vit_forward.1} parent=63 // pred_check
          %p494 = pneg %p49
        $region66: #{vit_forward.1} parent=63 // pred_check_branch
          %496 = sbr.rel (%p494) target = $region68
        $region67: #{vit_forward.1} parent=63 // pred_region
          %p497 = scmp.lt.s32.totalorder %s29, 1
          %s498 = scalar_select %p497, %s29, 1
          %s499 = smul.addr %s498, 6
          %s500 = smul.addr %s499, 8
          %s501 = scalar_lea.vmem %s0, %s500
        $region68: #{vit_forward.1} parent=63 // pred_fallthru
          _
      $region64: #{vit_forward.1} parent=5 // pred_fallthru
        _
      %p502 = scmp.le.s32.totalorder 1, %s29
      %p503 = scmp.lt.s32.totalorder %s29, 3
      %p504 = pnand %p502, %p503
      %p505 = pneg %p504
      // Predicated region
      $region69: #{vit_forward.1} parent=5 // pred_check
        _
      $region70: #{vit_forward.1} parent=5 // pred_check_branch
        %507 = sbr.rel (%p504) target = $region72
      $region71: #{vit_forward.1} parent=5 // pred_region
        %s508 = ssub.s32 %s29, 1
        // Predicated region
        $region73: #{vit_forward.1} parent=71 // pred_check
          %p509 = pneg %p76
        $region74: #{vit_forward.1} parent=71 // pred_check_branch
          %511 = sbr.rel (%p509) target = $region76
        $region75: #{vit_forward.1} parent=71 // pred_region
          %512 = dma.done [#allocation7], 24576
        $region76: #{vit_forward.1} parent=71 // pred_fallthru
          _
        // Predicated region
        $region77: #{vit_forward.1} parent=71 // pred_check
          %p513 = pneg %p97
        $region78: #{vit_forward.1} parent=71 // pred_check_branch
          %515 = sbr.rel (%p513) target = $region80
        $region79: #{vit_forward.1} parent=71 // pred_region
          %516 = dma.done [#allocation10], 512
        $region80: #{vit_forward.1} parent=71 // pred_fallthru
          _
        // Predicated region
        $region81: #{vit_forward.1} parent=71 // pred_check
          %p517 = pneg %p118
        $region82: #{vit_forward.1} parent=71 // pred_check_branch
          %519 = sbr.rel (%p517) target = $region84
        $region83: #{vit_forward.1} parent=71 // pred_region
          %520 = dma.done [#allocation10], 64
        $region84: #{vit_forward.1} parent=71 // pred_fallthru
          _
        // Predicated region
        $region85: #{vit_forward.1} parent=71 // pred_check
          %p521 = pneg %p139
        $region86: #{vit_forward.1} parent=71 // pred_check_branch
          %523 = sbr.rel (%p521) target = $region88
        $region87: #{vit_forward.1} parent=71 // pred_region
          %524 = dma.done [#allocation13], 64
        $region88: #{vit_forward.1} parent=71 // pred_fallthru
          _
        // Predicated region
        $region89: #{vit_forward.1} parent=71 // pred_check
          %p525 = pneg %p160
        $region90: #{vit_forward.1} parent=71 // pred_check_branch
          %527 = sbr.rel (%p525) target = $region92
        $region91: #{vit_forward.1} parent=71 // pred_region
          %528 = dma.done [#allocation13], 49152
        $region92: #{vit_forward.1} parent=71 // pred_fallthru
          _
        // Predicated region
        $region93: #{vit_forward.1} parent=71 // pred_check
          %p529 = pneg %p181
        $region94: #{vit_forward.1} parent=71 // pred_check_branch
          %531 = sbr.rel (%p529) target = $region96
        $region95: #{vit_forward.1} parent=71 // pred_region
          %532 = dma.done [#allocation16], 192
        $region96: #{vit_forward.1} parent=71 // pred_fallthru
          _
        // Predicated region
        $region97: #{vit_forward.1} parent=71 // pred_check
          %p533 = pneg %p202
        $region98: #{vit_forward.1} parent=71 // pred_check_branch
          %535 = sbr.rel (%p533) target = $region100
        $region99: #{vit_forward.1} parent=71 // pred_region
          %536 = dma.done [#allocation16], 16384
        $region100: #{vit_forward.1} parent=71 // pred_fallthru
          _
        // Predicated region
        $region101: #{vit_forward.1} parent=71 // pred_check
          %p537 = pneg %p223
        $region102: #{vit_forward.1} parent=71 // pred_check_branch
          %539 = sbr.rel (%p537) target = $region104
        $region103: #{vit_forward.1} parent=71 // pred_region
          %540 = dma.done [#allocation19], 64
        $region104: #{vit_forward.1} parent=71 // pred_fallthru
          _
        // Predicated region
        $region105: #{vit_forward.1} parent=71 // pred_check
          %p541 = pneg %p244
        $region106: #{vit_forward.1} parent=71 // pred_check_branch
          %543 = sbr.rel (%p541) target = $region108
        $region107: #{vit_forward.1} parent=71 // pred_region
          %544 = dma.done [#allocation19], 16384
        $region108: #{vit_forward.1} parent=71 // pred_fallthru
          _
        // Predicated region
        $region109: #{vit_forward.1} parent=71 // pred_check
          %p545 = pneg %p265
        $region110: #{vit_forward.1} parent=71 // pred_check_branch
          %547 = sbr.rel (%p545) target = $region112
        $region111: #{vit_forward.1} parent=71 // pred_region
          %548 = dma.done [#allocation22], 64
        $region112: #{vit_forward.1} parent=71 // pred_fallthru
          _
        // Predicated region
        $region113: #{vit_forward.1} parent=71 // pred_check
          %p549 = pneg %p286
        $region114: #{vit_forward.1} parent=71 // pred_check_branch
          %551 = sbr.rel (%p549) target = $region116
        $region115: #{vit_forward.1} parent=71 // pred_region
          %552 = dma.done [#allocation22], 4096
        $region116: #{vit_forward.1} parent=71 // pred_fallthru
          _
        // Predicated region
        $region117: #{vit_forward.1} parent=71 // pred_check
          %p553 = pneg %p307
        $region118: #{vit_forward.1} parent=71 // pred_check_branch
          %555 = sbr.rel (%p553) target = $region120
        $region119: #{vit_forward.1} parent=71 // pred_region
          %556 = dma.done [#allocation25], 16
        $region120: #{vit_forward.1} parent=71 // pred_fallthru
          _
        %p557 = scmp.lt.s32.totalorder %s34, 1
        %s558 = scalar_select %p557, %s34, 1
        %s559 = smul.addr %s558, 6
        %s560 = smul.addr %s559, 8
        %s561 = scalar_lea.vmem %s0, %s560
        %p562 = pneg %p55
        %p563 = pneg %p52
        %p564 = pneg %p76
        %p565 = pneg %p73
        %p566 = pneg %p97
        %p567 = pneg %p94
        %p568 = pneg %p118
        %p569 = pneg %p115
        %p570 = pneg %p139
        %p571 = pneg %p136
        %p572 = pneg %p160
        %p573 = pneg %p157
        %p574 = pneg %p181
        %p575 = pneg %p178
        %p576 = pneg %p202
        %p577 = pneg %p199
        %p578 = pneg %p223
        %p579 = pneg %p220
        %p580 = pneg %p244
        %p581 = pneg %p241
        %p582 = pneg %p265
        %p583 = pneg %p262
        %p584 = pneg %p286
        %p585 = pneg %p283
        %p586 = pneg %p307
        %p587 = pneg %p304
        %p588 = pneg %p333
        %p589 = pneg %p330
        %s590 = sand.u32 %s320, 1
        %s591 = scalar_lea.sflag [#allocation8], %s590
        %s592 = sand.u32 %s320, 1
        %s593 = scalar_lea.vmem [#allocation26], %s592
        %p594 = scmp.lt.s32.totalorder %s34, 1
        %s595 = scalar_select %p594, %s34, 1
        %s596 = smul.addr %s595, 6
        %s597 = smul.addr %s596, 8
        %s598 = scalar_lea.vmem %s0, %s597
        %v600 = vld [vmem:[#allocation11] sm:$0xf]
        %v601 = vld [vmem:[#allocation12] sm:$0xf]
        %v602 = vld [vmem:[%s598] sm:$0x1f]
        %v603 = vld [vmem:[%s598 + $0x8] sm:$0x1f]
        %v604 = vld [vmem:[%s598 + $0x10] sm:$0x1f]
        %v605 = vld [vmem:[%s598 + $0x18] sm:$0x1f]
        %v606 = vld [vmem:[%s598 + $0x20] sm:$0x1f]
        %v607 = vld [vmem:[%s598 + $0x28] sm:$0x1f]
        %v608 = vpack.c.bf16 %v602, %v602
        %v609 = vpack.c.bf16 %v603, %v603
        %v610 = vpack.c.bf16 %v604, %v604
        %v611 = vpack.c.bf16 %v605, %v605
        %v612 = vpack.c.bf16 %v606, %v606
        %v613 = vpack.c.bf16 %v607, %v607
        %v614 = vld [vmem:[#allocation6] sm:$0xff]
        %v615 = vld [vmem:[#allocation6 + $0x8] sm:$0xff]
        %v616 = vld [vmem:[#allocation6 + $0x10] sm:$0xff]
        %v617 = vld [vmem:[#allocation6 + $0x18] sm:$0xff]
        %v618 = vld [vmem:[#allocation6 + $0x20] sm:$0xff]
        %v619 = vld [vmem:[#allocation6 + $0x28] sm:$0xff]
        %v620 = vld [vmem:[#allocation6 + $0x30] sm:$0xff]
        %v621 = vld [vmem:[#allocation6 + $0x38] sm:$0xff]
        %v622 = vld [vmem:[#allocation6 + $0x40] sm:$0xff]
        %v623 = vld [vmem:[#allocation6 + $0x48] sm:$0xff]
        %v624 = vld [vmem:[#allocation6 + $0x50] sm:$0xff]
        %v625 = vld [vmem:[#allocation6 + $0x58] sm:$0xff]
        %v626 = vld [vmem:[#allocation6 + $0x60] sm:$0xff]
        %v627 = vld [vmem:[#allocation6 + $0x68] sm:$0xff]
        %v628 = vld [vmem:[#allocation6 + $0x70] sm:$0xff]
        %v629 = vld [vmem:[#allocation6 + $0x78] sm:$0xff]
        %v630 = vld [vmem:[#allocation6 + $0x80] sm:$0xff]
        %v631 = vld [vmem:[#allocation6 + $0x88] sm:$0xff]
        %v632 = vld [vmem:[#allocation6 + $0x90] sm:$0xff]
        %v633 = vld [vmem:[#allocation6 + $0x98] sm:$0xff]
        %v634 = vld [vmem:[#allocation6 + $0xa0] sm:$0xff]
        %v635 = vld [vmem:[#allocation6 + $0xa8] sm:$0xff]
        %v636 = vld [vmem:[#allocation6 + $0xb0] sm:$0xff]
        %v637 = vld [vmem:[#allocation6 + $0xb8] sm:$0xff]
        %v638 = vld [vmem:[#allocation6 + $0xc0] sm:$0xff]
        %v639 = vld [vmem:[#allocation6 + $0xc8] sm:$0xff]
        %v640 = vld [vmem:[#allocation6 + $0xd0] sm:$0xff]
        %v641 = vld [vmem:[#allocation6 + $0xd8] sm:$0xff]
        %v642 = vld [vmem:[#allocation6 + $0xe0] sm:$0xff]
        %v643 = vld [vmem:[#allocation6 + $0xe8] sm:$0xff]
        %v644 = vld [vmem:[#allocation6 + $0xf0] sm:$0xff]
        %v645 = vld [vmem:[#allocation6 + $0xf8] sm:$0xff]
        %v646 = vld [vmem:[#allocation6 + $0x100] sm:$0xff]
        %v647 = vld [vmem:[#allocation6 + $0x108] sm:$0xff]
        %v648 = vld [vmem:[#allocation6 + $0x110] sm:$0xff]
        %v649 = vld [vmem:[#allocation6 + $0x118] sm:$0xff]
        %v650 = vld [vmem:[#allocation6 + $0x120] sm:$0xff]
        %v651 = vld [vmem:[#allocation6 + $0x128] sm:$0xff]
        %v652 = vld [vmem:[#allocation6 + $0x130] sm:$0xff]
        %v653 = vld [vmem:[#allocation6 + $0x138] sm:$0xff]
        %v654 = vld [vmem:[#allocation6 + $0x140] sm:$0xff]
        %v655 = vld [vmem:[#allocation6 + $0x148] sm:$0xff]
        %v656 = vld [vmem:[#allocation6 + $0x150] sm:$0xff]
        %v657 = vld [vmem:[#allocation6 + $0x158] sm:$0xff]
        %v658 = vld [vmem:[#allocation6 + $0x160] sm:$0xff]
        %v659 = vld [vmem:[#allocation6 + $0x168] sm:$0xff]
        %v660 = vld [vmem:[#allocation6 + $0x170] sm:$0xff]
        %v661 = vld [vmem:[#allocation6 + $0x178] sm:$0xff]
        %v662 = vld [vmem:[#allocation6 + $0x180] sm:$0xff]
        %v663 = vld [vmem:[#allocation6 + $0x188] sm:$0xff]
        %v664 = vld [vmem:[#allocation6 + $0x190] sm:$0xff]
        %v665 = vld [vmem:[#allocation6 + $0x198] sm:$0xff]
        %v666 = vld [vmem:[#allocation6 + $0x1a0] sm:$0xff]
        %v667 = vld [vmem:[#allocation6 + $0x1a8] sm:$0xff]
        %v668 = vld [vmem:[#allocation6 + $0x1b0] sm:$0xff]
        %v669 = vld [vmem:[#allocation6 + $0x1b8] sm:$0xff]
        %v670 = vld [vmem:[#allocation6 + $0x1c0] sm:$0xff]
        %v671 = vld [vmem:[#allocation6 + $0x1c8] sm:$0xff]
        %v672 = vld [vmem:[#allocation6 + $0x1d0] sm:$0xff]
        %v673 = vld [vmem:[#allocation6 + $0x1d8] sm:$0xff]
        %v674 = vld [vmem:[#allocation6 + $0x1e0] sm:$0xff]
        %v675 = vld [vmem:[#allocation6 + $0x1e8] sm:$0xff]
        %v676 = vld [vmem:[#allocation6 + $0x1f0] sm:$0xff]
        %v677 = vld [vmem:[#allocation6 + $0x1f8] sm:$0xff]
        %v678 = vld [vmem:[#allocation6 + $0x200] sm:$0xff]
        %v679 = vld [vmem:[#allocation6 + $0x208] sm:$0xff]
        %v680 = vld [vmem:[#allocation6 + $0x210] sm:$0xff]
        %v681 = vld [vmem:[#allocation6 + $0x218] sm:$0xff]
        %v682 = vld [vmem:[#allocation6 + $0x220] sm:$0xff]
        %v683 = vld [vmem:[#allocation6 + $0x228] sm:$0xff]
        %v684 = vld [vmem:[#allocation6 + $0x230] sm:$0xff]
        %v685 = vld [vmem:[#allocation6 + $0x238] sm:$0xff]
        %v686 = vld [vmem:[#allocation6 + $0x240] sm:$0xff]
        %v687 = vld [vmem:[#allocation6 + $0x248] sm:$0xff]
        %v688 = vld [vmem:[#allocation6 + $0x250] sm:$0xff]
        %v689 = vld [vmem:[#allocation6 + $0x258] sm:$0xff]
        %v690 = vld [vmem:[#allocation6 + $0x260] sm:$0xff]
        %v691 = vld [vmem:[#allocation6 + $0x268] sm:$0xff]
        %v692 = vld [vmem:[#allocation6 + $0x270] sm:$0xff]
        %v693 = vld [vmem:[#allocation6 + $0x278] sm:$0xff]
        %v694 = vld [vmem:[#allocation6 + $0x280] sm:$0xff]
        %v695 = vld [vmem:[#allocation6 + $0x288] sm:$0xff]
        %v696 = vld [vmem:[#allocation6 + $0x290] sm:$0xff]
        %v697 = vld [vmem:[#allocation6 + $0x298] sm:$0xff]
        %v698 = vld [vmem:[#allocation6 + $0x2a0] sm:$0xff]
        %v699 = vld [vmem:[#allocation6 + $0x2a8] sm:$0xff]
        %v700 = vld [vmem:[#allocation6 + $0x2b0] sm:$0xff]
        %v701 = vld [vmem:[#allocation6 + $0x2b8] sm:$0xff]
        %v702 = vld [vmem:[#allocation6 + $0x2c0] sm:$0xff]
        %v703 = vld [vmem:[#allocation6 + $0x2c8] sm:$0xff]
        %v704 = vld [vmem:[#allocation6 + $0x2d0] sm:$0xff]
        %v705 = vld [vmem:[#allocation6 + $0x2d8] sm:$0xff]
        %v706 = vld [vmem:[#allocation6 + $0x2e0] sm:$0xff]
        %v707 = vld [vmem:[#allocation6 + $0x2e8] sm:$0xff]
        %v708 = vld [vmem:[#allocation6 + $0x2f0] sm:$0xff]
        %v709 = vld [vmem:[#allocation6 + $0x2f8] sm:$0xff]
        %v710 = vld [vmem:[#allocation6 + $0x300] sm:$0xff]
        %v711 = vld [vmem:[#allocation6 + $0x308] sm:$0xff]
        %v712 = vld [vmem:[#allocation6 + $0x310] sm:$0xff]
        %v713 = vld [vmem:[#allocation6 + $0x318] sm:$0xff]
        %v714 = vld [vmem:[#allocation6 + $0x320] sm:$0xff]
        %v715 = vld [vmem:[#allocation6 + $0x328] sm:$0xff]
        %v716 = vld [vmem:[#allocation6 + $0x330] sm:$0xff]
        %v717 = vld [vmem:[#allocation6 + $0x338] sm:$0xff]
        %v718 = vld [vmem:[#allocation6 + $0x340] sm:$0xff]
        %v719 = vld [vmem:[#allocation6 + $0x348] sm:$0xff]
        %v720 = vld [vmem:[#allocation6 + $0x350] sm:$0xff]
        %v721 = vld [vmem:[#allocation6 + $0x358] sm:$0xff]
        %v722 = vld [vmem:[#allocation6 + $0x360] sm:$0xff]
        %v723 = vld [vmem:[#allocation6 + $0x368] sm:$0xff]
        %v724 = vld [vmem:[#allocation6 + $0x370] sm:$0xff]
        %v725 = vld [vmem:[#allocation6 + $0x378] sm:$0xff]
        %v726 = vld [vmem:[#allocation6 + $0x380] sm:$0xff]
        %v727 = vld [vmem:[#allocation6 + $0x388] sm:$0xff]
        %v728 = vld [vmem:[#allocation6 + $0x390] sm:$0xff]
        %v729 = vld [vmem:[#allocation6 + $0x398] sm:$0xff]
        %v730 = vld [vmem:[#allocation6 + $0x3a0] sm:$0xff]
        %v731 = vld [vmem:[#allocation6 + $0x3a8] sm:$0xff]
        %v732 = vld [vmem:[#allocation6 + $0x3b0] sm:$0xff]
        %v733 = vld [vmem:[#allocation6 + $0x3b8] sm:$0xff]
        %v734 = vld [vmem:[#allocation6 + $0x3c0] sm:$0xff]
        %v735 = vld [vmem:[#allocation6 + $0x3c8] sm:$0xff]
        %v736 = vld [vmem:[#allocation6 + $0x3d0] sm:$0xff]
        %v737 = vld [vmem:[#allocation6 + $0x3d8] sm:$0xff]
        %v738 = vld [vmem:[#allocation6 + $0x3e0] sm:$0xff]
        %v739 = vld [vmem:[#allocation6 + $0x3e8] sm:$0xff]
        %v740 = vld [vmem:[#allocation6 + $0x3f0] sm:$0xff]
        %v741 = vld [vmem:[#allocation6 + $0x3f8] sm:$0xff]
        %v742 = vld [vmem:[#allocation6 + $0x400] sm:$0xff]
        %v743 = vld [vmem:[#allocation6 + $0x408] sm:$0xff]
        %v744 = vld [vmem:[#allocation6 + $0x410] sm:$0xff]
        %v745 = vld [vmem:[#allocation6 + $0x418] sm:$0xff]
        %v746 = vld [vmem:[#allocation6 + $0x420] sm:$0xff]
        %v747 = vld [vmem:[#allocation6 + $0x428] sm:$0xff]
        %v748 = vld [vmem:[#allocation6 + $0x430] sm:$0xff]
        %v749 = vld [vmem:[#allocation6 + $0x438] sm:$0xff]
        %v750 = vld [vmem:[#allocation6 + $0x440] sm:$0xff]
        %v751 = vld [vmem:[#allocation6 + $0x448] sm:$0xff]
        %v752 = vld [vmem:[#allocation6 + $0x450] sm:$0xff]
        %v753 = vld [vmem:[#allocation6 + $0x458] sm:$0xff]
        %v754 = vld [vmem:[#allocation6 + $0x460] sm:$0xff]
        %v755 = vld [vmem:[#allocation6 + $0x468] sm:$0xff]
        %v756 = vld [vmem:[#allocation6 + $0x470] sm:$0xff]
        %v757 = vld [vmem:[#allocation6 + $0x478] sm:$0xff]
        %v758 = vld [vmem:[#allocation6 + $0x480] sm:$0xff]
        %v759 = vld [vmem:[#allocation6 + $0x488] sm:$0xff]
        %v760 = vld [vmem:[#allocation6 + $0x490] sm:$0xff]
        %v761 = vld [vmem:[#allocation6 + $0x498] sm:$0xff]
        %v762 = vld [vmem:[#allocation6 + $0x4a0] sm:$0xff]
        %v763 = vld [vmem:[#allocation6 + $0x4a8] sm:$0xff]
        %v764 = vld [vmem:[#allocation6 + $0x4b0] sm:$0xff]
        %v765 = vld [vmem:[#allocation6 + $0x4b8] sm:$0xff]
        %v766 = vld [vmem:[#allocation6 + $0x4c0] sm:$0xff]
        %v767 = vld [vmem:[#allocation6 + $0x4c8] sm:$0xff]
        %v768 = vld [vmem:[#allocation6 + $0x4d0] sm:$0xff]
        %v769 = vld [vmem:[#allocation6 + $0x4d8] sm:$0xff]
        %v770 = vld [vmem:[#allocation6 + $0x4e0] sm:$0xff]
        %v771 = vld [vmem:[#allocation6 + $0x4e8] sm:$0xff]
        %v772 = vld [vmem:[#allocation6 + $0x4f0] sm:$0xff]
        %v773 = vld [vmem:[#allocation6 + $0x4f8] sm:$0xff]
        %v774 = vld [vmem:[#allocation6 + $0x500] sm:$0xff]
        %v775 = vld [vmem:[#allocation6 + $0x508] sm:$0xff]
        %v776 = vld [vmem:[#allocation6 + $0x510] sm:$0xff]
        %v777 = vld [vmem:[#allocation6 + $0x518] sm:$0xff]
        %v778 = vld [vmem:[#allocation6 + $0x520] sm:$0xff]
        %v779 = vld [vmem:[#allocation6 + $0x528] sm:$0xff]
        %v780 = vld [vmem:[#allocation6 + $0x530] sm:$0xff]
        %v781 = vld [vmem:[#allocation6 + $0x538] sm:$0xff]
        %v782 = vld [vmem:[#allocation6 + $0x540] sm:$0xff]
        %v783 = vld [vmem:[#allocation6 + $0x548] sm:$0xff]
        %v784 = vld [vmem:[#allocation6 + $0x550] sm:$0xff]
        %v785 = vld [vmem:[#allocation6 + $0x558] sm:$0xff]
        %v786 = vld [vmem:[#allocation6 + $0x560] sm:$0xff]
        %v787 = vld [vmem:[#allocation6 + $0x568] sm:$0xff]
        %v788 = vld [vmem:[#allocation6 + $0x570] sm:$0xff]
        %v789 = vld [vmem:[#allocation6 + $0x578] sm:$0xff]
        %v790 = vld [vmem:[#allocation6 + $0x580] sm:$0xff]
        %v791 = vld [vmem:[#allocation6 + $0x588] sm:$0xff]
        %v792 = vld [vmem:[#allocation6 + $0x590] sm:$0xff]
        %v793 = vld [vmem:[#allocation6 + $0x598] sm:$0xff]
        %v794 = vld [vmem:[#allocation6 + $0x5a0] sm:$0xff]
        %v795 = vld [vmem:[#allocation6 + $0x5a8] sm:$0xff]
        %v796 = vld [vmem:[#allocation6 + $0x5b0] sm:$0xff]
        %v797 = vld [vmem:[#allocation6 + $0x5b8] sm:$0xff]
        %v798 = vld [vmem:[#allocation6 + $0x5c0] sm:$0xff]
        %v799 = vld [vmem:[#allocation6 + $0x5c8] sm:$0xff]
        %v800 = vld [vmem:[#allocation6 + $0x5d0] sm:$0xff]
        %v801 = vld [vmem:[#allocation6 + $0x5d8] sm:$0xff]
        %v802 = vld [vmem:[#allocation6 + $0x5e0] sm:$0xff]
        %v803 = vld [vmem:[#allocation6 + $0x5e8] sm:$0xff]
        %v804 = vld [vmem:[#allocation6 + $0x5f0] sm:$0xff]
        %v805 = vld [vmem:[#allocation6 + $0x5f8] sm:$0xff]
        %v806 = vld [vmem:[#allocation9] sm:$0x1f]
        %v807 = vld [vmem:[#allocation9 + $0x8] sm:$0x1f]
        %v808 = vld [vmem:[#allocation9 + $0x10] sm:$0x1f]
        %v809 = vld [vmem:[#allocation9 + $0x18] sm:$0x1f]
        %v1002 = vunpack.c.l.b16 %v614
        %v1003 = vunpack.c.h.b16 %v614
        %v1004 = vunpack.c.l.b16 %v615
        %v1005 = vunpack.c.h.b16 %v615
        %v1006 = vunpack.c.l.b16 %v616
        %v1007 = vunpack.c.h.b16 %v616
        %v1008 = vunpack.c.l.b16 %v617
        %v1009 = vunpack.c.h.b16 %v617
        %v1010 = vunpack.c.l.b16 %v618
        %v1011 = vunpack.c.h.b16 %v618
        %v1012 = vunpack.c.l.b16 %v619
        %v1013 = vunpack.c.h.b16 %v619
        %v1014 = vunpack.c.l.b16 %v620
        %v1015 = vunpack.c.h.b16 %v620
        %v1016 = vunpack.c.l.b16 %v621
        %v1017 = vunpack.c.h.b16 %v621
        %v1018 = vunpack.c.l.b16 %v622
        %v1019 = vunpack.c.h.b16 %v622
        %v1020 = vunpack.c.l.b16 %v623
        %v1021 = vunpack.c.h.b16 %v623
        %v1022 = vunpack.c.l.b16 %v624
        %v1023 = vunpack.c.h.b16 %v624
        %v1024 = vunpack.c.l.b16 %v625
        %v1025 = vunpack.c.h.b16 %v625
        %v1026 = vunpack.c.l.b16 %v626
        %v1027 = vunpack.c.h.b16 %v626
        %v1028 = vunpack.c.l.b16 %v627
        %v1029 = vunpack.c.h.b16 %v627
        %v1030 = vunpack.c.l.b16 %v628
        %v1031 = vunpack.c.h.b16 %v628
        %v1032 = vunpack.c.l.b16 %v629
        %v1033 = vunpack.c.h.b16 %v629
        %v1034 = vunpack.c.l.b16 %v630
        %v1035 = vunpack.c.h.b16 %v630
        %v1036 = vunpack.c.l.b16 %v631
        %v1037 = vunpack.c.h.b16 %v631
        %v1038 = vunpack.c.l.b16 %v632
        %v1039 = vunpack.c.h.b16 %v632
        %v1040 = vunpack.c.l.b16 %v633
        %v1041 = vunpack.c.h.b16 %v633
        %v1042 = vunpack.c.l.b16 %v634
        %v1043 = vunpack.c.h.b16 %v634
        %v1044 = vunpack.c.l.b16 %v635
        %v1045 = vunpack.c.h.b16 %v635
        %v1046 = vunpack.c.l.b16 %v636
        %v1047 = vunpack.c.h.b16 %v636
        %v1048 = vunpack.c.l.b16 %v637
        %v1049 = vunpack.c.h.b16 %v637
        %v1050 = vunpack.c.l.b16 %v638
        %v1051 = vunpack.c.h.b16 %v638
        %v1052 = vunpack.c.l.b16 %v639
        %v1053 = vunpack.c.h.b16 %v639
        %v1054 = vunpack.c.l.b16 %v640
        %v1055 = vunpack.c.h.b16 %v640
        %v1056 = vunpack.c.l.b16 %v641
        %v1057 = vunpack.c.h.b16 %v641
        %v1058 = vunpack.c.l.b16 %v642
        %v1059 = vunpack.c.h.b16 %v642
        %v1060 = vunpack.c.l.b16 %v643
        %v1061 = vunpack.c.h.b16 %v643
        %v1062 = vunpack.c.l.b16 %v644
        %v1063 = vunpack.c.h.b16 %v644
        %v1064 = vunpack.c.l.b16 %v645
        %v1065 = vunpack.c.h.b16 %v645
        %v1066 = vunpack.c.l.b16 %v646
        %v1067 = vunpack.c.h.b16 %v646
        %v1068 = vunpack.c.l.b16 %v647
        %v1069 = vunpack.c.h.b16 %v647
        %v1070 = vunpack.c.l.b16 %v648
        %v1071 = vunpack.c.h.b16 %v648
        %v1072 = vunpack.c.l.b16 %v649
        %v1073 = vunpack.c.h.b16 %v649
        %v1074 = vunpack.c.l.b16 %v650
        %v1075 = vunpack.c.h.b16 %v650
        %v1076 = vunpack.c.l.b16 %v651
        %v1077 = vunpack.c.h.b16 %v651
        %v1078 = vunpack.c.l.b16 %v652
        %v1079 = vunpack.c.h.b16 %v652
        %v1080 = vunpack.c.l.b16 %v653
        %v1081 = vunpack.c.h.b16 %v653
        %v1082 = vunpack.c.l.b16 %v654
        %v1083 = vunpack.c.h.b16 %v654
        %v1084 = vunpack.c.l.b16 %v655
        %v1085 = vunpack.c.h.b16 %v655
        %v1086 = vunpack.c.l.b16 %v656
        %v1087 = vunpack.c.h.b16 %v656
        %v1088 = vunpack.c.l.b16 %v657
        %v1089 = vunpack.c.h.b16 %v657
        %v1090 = vunpack.c.l.b16 %v658
        %v1091 = vunpack.c.h.b16 %v658
        %v1092 = vunpack.c.l.b16 %v659
        %v1093 = vunpack.c.h.b16 %v659
        %v1094 = vunpack.c.l.b16 %v660
        %v1095 = vunpack.c.h.b16 %v660
        %v1096 = vunpack.c.l.b16 %v661
        %v1097 = vunpack.c.h.b16 %v661
        %v1098 = vunpack.c.l.b16 %v662
        %v1099 = vunpack.c.h.b16 %v662
        %v1100 = vunpack.c.l.b16 %v663
        %v1101 = vunpack.c.h.b16 %v663
        %v1102 = vunpack.c.l.b16 %v664
        %v1103 = vunpack.c.h.b16 %v664
        %v1104 = vunpack.c.l.b16 %v665
        %v1105 = vunpack.c.h.b16 %v665
        %v1106 = vunpack.c.l.b16 %v666
        %v1107 = vunpack.c.h.b16 %v666
        %v1108 = vunpack.c.l.b16 %v667
        %v1109 = vunpack.c.h.b16 %v667
        %v1110 = vunpack.c.l.b16 %v668
        %v1111 = vunpack.c.h.b16 %v668
        %v1112 = vunpack.c.l.b16 %v669
        %v1113 = vunpack.c.h.b16 %v669
        %v1114 = vunpack.c.l.b16 %v670
        %v1115 = vunpack.c.h.b16 %v670
        %v1116 = vunpack.c.l.b16 %v671
        %v1117 = vunpack.c.h.b16 %v671
        %v1118 = vunpack.c.l.b16 %v672
        %v1119 = vunpack.c.h.b16 %v672
        %v1120 = vunpack.c.l.b16 %v673
        %v1121 = vunpack.c.h.b16 %v673
        %v1122 = vunpack.c.l.b16 %v674
        %v1123 = vunpack.c.h.b16 %v674
        %v1124 = vunpack.c.l.b16 %v675
        %v1125 = vunpack.c.h.b16 %v675
        %v1126 = vunpack.c.l.b16 %v676
        %v1127 = vunpack.c.h.b16 %v676
        %v1128 = vunpack.c.l.b16 %v677
        %v1129 = vunpack.c.h.b16 %v677
        %v1130 = vunpack.c.l.b16 %v678
        %v1131 = vunpack.c.h.b16 %v678
        %v1132 = vunpack.c.l.b16 %v679
        %v1133 = vunpack.c.h.b16 %v679
        %v1134 = vunpack.c.l.b16 %v680
        %v1135 = vunpack.c.h.b16 %v680
        %v1136 = vunpack.c.l.b16 %v681
        %v1137 = vunpack.c.h.b16 %v681
        %v1138 = vunpack.c.l.b16 %v682
        %v1139 = vunpack.c.h.b16 %v682
        %v1140 = vunpack.c.l.b16 %v683
        %v1141 = vunpack.c.h.b16 %v683
        %v1142 = vunpack.c.l.b16 %v684
        %v1143 = vunpack.c.h.b16 %v684
        %v1144 = vunpack.c.l.b16 %v685
        %v1145 = vunpack.c.h.b16 %v685
        %v1146 = vunpack.c.l.b16 %v686
        %v1147 = vunpack.c.h.b16 %v686
        %v1148 = vunpack.c.l.b16 %v687
        %v1149 = vunpack.c.h.b16 %v687
        %v1150 = vunpack.c.l.b16 %v688
        %v1151 = vunpack.c.h.b16 %v688
        %v1152 = vunpack.c.l.b16 %v689
        %v1153 = vunpack.c.h.b16 %v689
        %v1154 = vunpack.c.l.b16 %v690
        %v1155 = vunpack.c.h.b16 %v690
        %v1156 = vunpack.c.l.b16 %v691
        %v1157 = vunpack.c.h.b16 %v691
        %v1158 = vunpack.c.l.b16 %v692
        %v1159 = vunpack.c.h.b16 %v692
        %v1160 = vunpack.c.l.b16 %v693
        %v1161 = vunpack.c.h.b16 %v693
        %v1162 = vunpack.c.l.b16 %v694
        %v1163 = vunpack.c.h.b16 %v694
        %v1164 = vunpack.c.l.b16 %v695
        %v1165 = vunpack.c.h.b16 %v695
        %v1166 = vunpack.c.l.b16 %v696
        %v1167 = vunpack.c.h.b16 %v696
        %v1168 = vunpack.c.l.b16 %v697
        %v1169 = vunpack.c.h.b16 %v697
        %v1170 = vunpack.c.l.b16 %v698
        %v1171 = vunpack.c.h.b16 %v698
        %v1172 = vunpack.c.l.b16 %v699
        %v1173 = vunpack.c.h.b16 %v699
        %v1174 = vunpack.c.l.b16 %v700
        %v1175 = vunpack.c.h.b16 %v700
        %v1176 = vunpack.c.l.b16 %v701
        %v1177 = vunpack.c.h.b16 %v701
        %v1178 = vunpack.c.l.b16 %v702
        %v1179 = vunpack.c.h.b16 %v702
        %v1180 = vunpack.c.l.b16 %v703
        %v1181 = vunpack.c.h.b16 %v703
        %v1182 = vunpack.c.l.b16 %v704
        %v1183 = vunpack.c.h.b16 %v704
        %v1184 = vunpack.c.l.b16 %v705
        %v1185 = vunpack.c.h.b16 %v705
        %v1186 = vunpack.c.l.b16 %v706
        %v1187 = vunpack.c.h.b16 %v706
        %v1188 = vunpack.c.l.b16 %v707
        %v1189 = vunpack.c.h.b16 %v707
        %v1190 = vunpack.c.l.b16 %v708
        %v1191 = vunpack.c.h.b16 %v708
        %v1192 = vunpack.c.l.b16 %v709
        %v1193 = vunpack.c.h.b16 %v709
        %v1194 = vunpack.c.l.b16 %v710
        %v1195 = vunpack.c.h.b16 %v710
        %v1196 = vunpack.c.l.b16 %v711
        %v1197 = vunpack.c.h.b16 %v711
        %v1198 = vunpack.c.l.b16 %v712
        %v1199 = vunpack.c.h.b16 %v712
        %v1200 = vunpack.c.l.b16 %v713
        %v1201 = vunpack.c.h.b16 %v713
        %v1202 = vunpack.c.l.b16 %v714
        %v1203 = vunpack.c.h.b16 %v714
        %v1204 = vunpack.c.l.b16 %v715
        %v1205 = vunpack.c.h.b16 %v715
        %v1206 = vunpack.c.l.b16 %v716
        %v1207 = vunpack.c.h.b16 %v716
        %v1208 = vunpack.c.l.b16 %v717
        %v1209 = vunpack.c.h.b16 %v717
        %v1210 = vunpack.c.l.b16 %v718
        %v1211 = vunpack.c.h.b16 %v718
        %v1212 = vunpack.c.l.b16 %v719
        %v1213 = vunpack.c.h.b16 %v719
        %v1214 = vunpack.c.l.b16 %v720
        %v1215 = vunpack.c.h.b16 %v720
        %v1216 = vunpack.c.l.b16 %v721
        %v1217 = vunpack.c.h.b16 %v721
        %v1218 = vunpack.c.l.b16 %v722
        %v1219 = vunpack.c.h.b16 %v722
        %v1220 = vunpack.c.l.b16 %v723
        %v1221 = vunpack.c.h.b16 %v723
        %v1222 = vunpack.c.l.b16 %v724
        %v1223 = vunpack.c.h.b16 %v724
        %v1224 = vunpack.c.l.b16 %v725
        %v1225 = vunpack.c.h.b16 %v725
        %v1226 = vunpack.c.l.b16 %v726
        %v1227 = vunpack.c.h.b16 %v726
        %v1228 = vunpack.c.l.b16 %v727
        %v1229 = vunpack.c.h.b16 %v727
        %v1230 = vunpack.c.l.b16 %v728
        %v1231 = vunpack.c.h.b16 %v728
        %v1232 = vunpack.c.l.b16 %v729
        %v1233 = vunpack.c.h.b16 %v729
        %v1234 = vunpack.c.l.b16 %v730
        %v1235 = vunpack.c.h.b16 %v730
        %v1236 = vunpack.c.l.b16 %v731
        %v1237 = vunpack.c.h.b16 %v731
        %v1238 = vunpack.c.l.b16 %v732
        %v1239 = vunpack.c.h.b16 %v732
        %v1240 = vunpack.c.l.b16 %v733
        %v1241 = vunpack.c.h.b16 %v733
        %v1242 = vunpack.c.l.b16 %v734
        %v1243 = vunpack.c.h.b16 %v734
        %v1244 = vunpack.c.l.b16 %v735
        %v1245 = vunpack.c.h.b16 %v735
        %v1246 = vunpack.c.l.b16 %v736
        %v1247 = vunpack.c.h.b16 %v736
        %v1248 = vunpack.c.l.b16 %v737
        %v1249 = vunpack.c.h.b16 %v737
        %v1250 = vunpack.c.l.b16 %v738
        %v1251 = vunpack.c.h.b16 %v738
        %v1252 = vunpack.c.l.b16 %v739
        %v1253 = vunpack.c.h.b16 %v739
        %v1254 = vunpack.c.l.b16 %v740
        %v1255 = vunpack.c.h.b16 %v740
        %v1256 = vunpack.c.l.b16 %v741
        %v1257 = vunpack.c.h.b16 %v741
        %v1258 = vunpack.c.l.b16 %v742
        %v1259 = vunpack.c.h.b16 %v742
        %v1260 = vunpack.c.l.b16 %v743
        %v1261 = vunpack.c.h.b16 %v743
        %v1262 = vunpack.c.l.b16 %v744
        %v1263 = vunpack.c.h.b16 %v744
        %v1264 = vunpack.c.l.b16 %v745
        %v1265 = vunpack.c.h.b16 %v745
        %v1266 = vunpack.c.l.b16 %v746
        %v1267 = vunpack.c.h.b16 %v746
        %v1268 = vunpack.c.l.b16 %v747
        %v1269 = vunpack.c.h.b16 %v747
        %v1270 = vunpack.c.l.b16 %v748
        %v1271 = vunpack.c.h.b16 %v748
        %v1272 = vunpack.c.l.b16 %v749
        %v1273 = vunpack.c.h.b16 %v749
        %v1274 = vunpack.c.l.b16 %v750
        %v1275 = vunpack.c.h.b16 %v750
        %v1276 = vunpack.c.l.b16 %v751
        %v1277 = vunpack.c.h.b16 %v751
        %v1278 = vunpack.c.l.b16 %v752
        %v1279 = vunpack.c.h.b16 %v752
        %v1280 = vunpack.c.l.b16 %v753
        %v1281 = vunpack.c.h.b16 %v753
        %v1282 = vunpack.c.l.b16 %v754
        %v1283 = vunpack.c.h.b16 %v754
        %v1284 = vunpack.c.l.b16 %v755
        %v1285 = vunpack.c.h.b16 %v755
        %v1286 = vunpack.c.l.b16 %v756
        %v1287 = vunpack.c.h.b16 %v756
        %v1288 = vunpack.c.l.b16 %v757
        %v1289 = vunpack.c.h.b16 %v757
        %v1290 = vunpack.c.l.b16 %v758
        %v1291 = vunpack.c.h.b16 %v758
        %v1292 = vunpack.c.l.b16 %v759
        %v1293 = vunpack.c.h.b16 %v759
        %v1294 = vunpack.c.l.b16 %v760
        %v1295 = vunpack.c.h.b16 %v760
        %v1296 = vunpack.c.l.b16 %v761
        %v1297 = vunpack.c.h.b16 %v761
        %v1298 = vunpack.c.l.b16 %v762
        %v1299 = vunpack.c.h.b16 %v762
        %v1300 = vunpack.c.l.b16 %v763
        %v1301 = vunpack.c.h.b16 %v763
        %v1302 = vunpack.c.l.b16 %v764
        %v1303 = vunpack.c.h.b16 %v764
        %v1304 = vunpack.c.l.b16 %v765
        %v1305 = vunpack.c.h.b16 %v765
        %v1306 = vunpack.c.l.b16 %v766
        %v1307 = vunpack.c.h.b16 %v766
        %v1308 = vunpack.c.l.b16 %v767
        %v1309 = vunpack.c.h.b16 %v767
        %v1310 = vunpack.c.l.b16 %v768
        %v1311 = vunpack.c.h.b16 %v768
        %v1312 = vunpack.c.l.b16 %v769
        %v1313 = vunpack.c.h.b16 %v769
        %v1314 = vunpack.c.l.b16 %v770
        %v1315 = vunpack.c.h.b16 %v770
        %v1316 = vunpack.c.l.b16 %v771
        %v1317 = vunpack.c.h.b16 %v771
        %v1318 = vunpack.c.l.b16 %v772
        %v1319 = vunpack.c.h.b16 %v772
        %v1320 = vunpack.c.l.b16 %v773
        %v1321 = vunpack.c.h.b16 %v773
        %v1322 = vunpack.c.l.b16 %v774
        %v1323 = vunpack.c.h.b16 %v774
        %v1324 = vunpack.c.l.b16 %v775
        %v1325 = vunpack.c.h.b16 %v775
        %v1326 = vunpack.c.l.b16 %v776
        %v1327 = vunpack.c.h.b16 %v776
        %v1328 = vunpack.c.l.b16 %v777
        %v1329 = vunpack.c.h.b16 %v777
        %v1330 = vunpack.c.l.b16 %v778
        %v1331 = vunpack.c.h.b16 %v778
        %v1332 = vunpack.c.l.b16 %v779
        %v1333 = vunpack.c.h.b16 %v779
        %v1334 = vunpack.c.l.b16 %v780
        %v1335 = vunpack.c.h.b16 %v780
        %v1336 = vunpack.c.l.b16 %v781
        %v1337 = vunpack.c.h.b16 %v781
        %v1338 = vunpack.c.l.b16 %v782
        %v1339 = vunpack.c.h.b16 %v782
        %v1340 = vunpack.c.l.b16 %v783
        %v1341 = vunpack.c.h.b16 %v783
        %v1342 = vunpack.c.l.b16 %v784
        %v1343 = vunpack.c.h.b16 %v784
        %v1344 = vunpack.c.l.b16 %v785
        %v1345 = vunpack.c.h.b16 %v785
        %v1346 = vunpack.c.l.b16 %v786
        %v1347 = vunpack.c.h.b16 %v786
        %v1348 = vunpack.c.l.b16 %v787
        %v1349 = vunpack.c.h.b16 %v787
        %v1350 = vunpack.c.l.b16 %v788
        %v1351 = vunpack.c.h.b16 %v788
        %v1352 = vunpack.c.l.b16 %v789
        %v1353 = vunpack.c.h.b16 %v789
        %v1354 = vunpack.c.l.b16 %v790
        %v1355 = vunpack.c.h.b16 %v790
        %v1356 = vunpack.c.l.b16 %v791
        %v1357 = vunpack.c.h.b16 %v791
        %v1358 = vunpack.c.l.b16 %v792
        %v1359 = vunpack.c.h.b16 %v792
        %v1360 = vunpack.c.l.b16 %v793
        %v1361 = vunpack.c.h.b16 %v793
        %v1362 = vunpack.c.l.b16 %v794
        %v1363 = vunpack.c.h.b16 %v794
        %v1364 = vunpack.c.l.b16 %v795
        %v1365 = vunpack.c.h.b16 %v795
        %v1366 = vunpack.c.l.b16 %v796
        %v1367 = vunpack.c.h.b16 %v796
        %v1368 = vunpack.c.l.b16 %v797
        %v1369 = vunpack.c.h.b16 %v797
        %v1370 = vunpack.c.l.b16 %v798
        %v1371 = vunpack.c.h.b16 %v798
        %v1372 = vunpack.c.l.b16 %v799
        %v1373 = vunpack.c.h.b16 %v799
        %v1374 = vunpack.c.l.b16 %v800
        %v1375 = vunpack.c.h.b16 %v800
        %v1376 = vunpack.c.l.b16 %v801
        %v1377 = vunpack.c.h.b16 %v801
        %v1378 = vunpack.c.l.b16 %v802
        %v1379 = vunpack.c.h.b16 %v802
        %v1380 = vunpack.c.l.b16 %v803
        %v1381 = vunpack.c.h.b16 %v803
        %v1382 = vunpack.c.l.b16 %v804
        %v1383 = vunpack.c.h.b16 %v804
        %v1384 = vunpack.c.l.b16 %v805
        %v1385 = vunpack.c.h.b16 %v805
        %v1386 = vpack.c.b16 %v1006, %v1002
        %v1387 = vpack.c.b16 %v1007, %v1003
        %v1388 = vpack.c.b16 %v1008, %v1004
        %v1389 = vpack.c.b16 %v1009, %v1005
        %v1390 = vpack.c.b16 %v1014, %v1010
        %v1391 = vpack.c.b16 %v1015, %v1011
        %v1392 = vpack.c.b16 %v1016, %v1012
        %v1393 = vpack.c.b16 %v1017, %v1013
        %v1394 = vpack.c.b16 %v1022, %v1018
        %v1395 = vpack.c.b16 %v1023, %v1019
        %v1396 = vpack.c.b16 %v1024, %v1020
        %v1397 = vpack.c.b16 %v1025, %v1021
        %v1398 = vpack.c.b16 %v1030, %v1026
        %v1399 = vpack.c.b16 %v1031, %v1027
        %v1400 = vpack.c.b16 %v1032, %v1028
        %v1401 = vpack.c.b16 %v1033, %v1029
        %v1402 = vpack.c.b16 %v1038, %v1034
        %v1403 = vpack.c.b16 %v1039, %v1035
        %v1404 = vpack.c.b16 %v1040, %v1036
        %v1405 = vpack.c.b16 %v1041, %v1037
        %v1406 = vpack.c.b16 %v1046, %v1042
        %v1407 = vpack.c.b16 %v1047, %v1043
        %v1408 = vpack.c.b16 %v1048, %v1044
        %v1409 = vpack.c.b16 %v1049, %v1045
        %v1410 = vpack.c.b16 %v1054, %v1050
        %v1411 = vpack.c.b16 %v1055, %v1051
        %v1412 = vpack.c.b16 %v1056, %v1052
        %v1413 = vpack.c.b16 %v1057, %v1053
        %v1414 = vpack.c.b16 %v1062, %v1058
        %v1415 = vpack.c.b16 %v1063, %v1059
        %v1416 = vpack.c.b16 %v1064, %v1060
        %v1417 = vpack.c.b16 %v1065, %v1061
        %v1418 = vpack.c.b16 %v1070, %v1066
        %v1419 = vpack.c.b16 %v1071, %v1067
        %v1420 = vpack.c.b16 %v1072, %v1068
        %v1421 = vpack.c.b16 %v1073, %v1069
        %v1422 = vpack.c.b16 %v1078, %v1074
        %v1423 = vpack.c.b16 %v1079, %v1075
        %v1424 = vpack.c.b16 %v1080, %v1076
        %v1425 = vpack.c.b16 %v1081, %v1077
        %v1426 = vpack.c.b16 %v1086, %v1082
        %v1427 = vpack.c.b16 %v1087, %v1083
        %v1428 = vpack.c.b16 %v1088, %v1084
        %v1429 = vpack.c.b16 %v1089, %v1085
        %v1430 = vpack.c.b16 %v1094, %v1090
        %v1431 = vpack.c.b16 %v1095, %v1091
        %v1432 = vpack.c.b16 %v1096, %v1092
        %v1433 = vpack.c.b16 %v1097, %v1093
        %v1434 = vpack.c.b16 %v1102, %v1098
        %v1435 = vpack.c.b16 %v1103, %v1099
        %v1436 = vpack.c.b16 %v1104, %v1100
        %v1437 = vpack.c.b16 %v1105, %v1101
        %v1438 = vpack.c.b16 %v1110, %v1106
        %v1439 = vpack.c.b16 %v1111, %v1107
        %v1440 = vpack.c.b16 %v1112, %v1108
        %v1441 = vpack.c.b16 %v1113, %v1109
        %v1442 = vpack.c.b16 %v1118, %v1114
        %v1443 = vpack.c.b16 %v1119, %v1115
        %v1444 = vpack.c.b16 %v1120, %v1116
        %v1445 = vpack.c.b16 %v1121, %v1117
        %v1446 = vpack.c.b16 %v1126, %v1122
        %v1447 = vpack.c.b16 %v1127, %v1123
        %v1448 = vpack.c.b16 %v1128, %v1124
        %v1449 = vpack.c.b16 %v1129, %v1125
        %v1450 = vpack.c.b16 %v1134, %v1130
        %v1451 = vpack.c.b16 %v1135, %v1131
        %v1452 = vpack.c.b16 %v1136, %v1132
        %v1453 = vpack.c.b16 %v1137, %v1133
        %v1454 = vpack.c.b16 %v1142, %v1138
        %v1455 = vpack.c.b16 %v1143, %v1139
        %v1456 = vpack.c.b16 %v1144, %v1140
        %v1457 = vpack.c.b16 %v1145, %v1141
        %v1458 = vpack.c.b16 %v1150, %v1146
        %v1459 = vpack.c.b16 %v1151, %v1147
        %v1460 = vpack.c.b16 %v1152, %v1148
        %v1461 = vpack.c.b16 %v1153, %v1149
        %v1462 = vpack.c.b16 %v1158, %v1154
        %v1463 = vpack.c.b16 %v1159, %v1155
        %v1464 = vpack.c.b16 %v1160, %v1156
        %v1465 = vpack.c.b16 %v1161, %v1157
        %v1466 = vpack.c.b16 %v1166, %v1162
        %v1467 = vpack.c.b16 %v1167, %v1163
        %v1468 = vpack.c.b16 %v1168, %v1164
        %v1469 = vpack.c.b16 %v1169, %v1165
        %v1470 = vpack.c.b16 %v1174, %v1170
        %v1471 = vpack.c.b16 %v1175, %v1171
        %v1472 = vpack.c.b16 %v1176, %v1172
        %v1473 = vpack.c.b16 %v1177, %v1173
        %v1474 = vpack.c.b16 %v1182, %v1178
        %v1475 = vpack.c.b16 %v1183, %v1179
        %v1476 = vpack.c.b16 %v1184, %v1180
        %v1477 = vpack.c.b16 %v1185, %v1181
        %v1478 = vpack.c.b16 %v1190, %v1186
        %v1479 = vpack.c.b16 %v1191, %v1187
        %v1480 = vpack.c.b16 %v1192, %v1188
        %v1481 = vpack.c.b16 %v1193, %v1189
        %v1482 = vpack.c.b16 %v1198, %v1194
        %v1483 = vpack.c.b16 %v1199, %v1195
        %v1484 = vpack.c.b16 %v1200, %v1196
        %v1485 = vpack.c.b16 %v1201, %v1197
        %v1486 = vpack.c.b16 %v1206, %v1202
        %v1487 = vpack.c.b16 %v1207, %v1203
        %v1488 = vpack.c.b16 %v1208, %v1204
        %v1489 = vpack.c.b16 %v1209, %v1205
        %v1490 = vpack.c.b16 %v1214, %v1210
        %v1491 = vpack.c.b16 %v1215, %v1211
        %v1492 = vpack.c.b16 %v1216, %v1212
        %v1493 = vpack.c.b16 %v1217, %v1213
        %v1494 = vpack.c.b16 %v1222, %v1218
        %v1495 = vpack.c.b16 %v1223, %v1219
        %v1496 = vpack.c.b16 %v1224, %v1220
        %v1497 = vpack.c.b16 %v1225, %v1221
        %v1498 = vpack.c.b16 %v1230, %v1226
        %v1499 = vpack.c.b16 %v1231, %v1227
        %v1500 = vpack.c.b16 %v1232, %v1228
        %v1501 = vpack.c.b16 %v1233, %v1229
        %v1502 = vpack.c.b16 %v1238, %v1234
        %v1503 = vpack.c.b16 %v1239, %v1235
        %v1504 = vpack.c.b16 %v1240, %v1236
        %v1505 = vpack.c.b16 %v1241, %v1237
        %v1506 = vpack.c.b16 %v1246, %v1242
        %v1507 = vpack.c.b16 %v1247, %v1243
        %v1508 = vpack.c.b16 %v1248, %v1244
        %v1509 = vpack.c.b16 %v1249, %v1245
        %v1510 = vpack.c.b16 %v1254, %v1250
        %v1511 = vpack.c.b16 %v1255, %v1251
        %v1512 = vpack.c.b16 %v1256, %v1252
        %v1513 = vpack.c.b16 %v1257, %v1253
        %v1514 = vpack.c.b16 %v1262, %v1258
        %v1515 = vpack.c.b16 %v1263, %v1259
        %v1516 = vpack.c.b16 %v1264, %v1260
        %v1517 = vpack.c.b16 %v1265, %v1261
        %v1518 = vpack.c.b16 %v1270, %v1266
        %v1519 = vpack.c.b16 %v1271, %v1267
        %v1520 = vpack.c.b16 %v1272, %v1268
        %v1521 = vpack.c.b16 %v1273, %v1269
        %v1522 = vpack.c.b16 %v1278, %v1274
        %v1523 = vpack.c.b16 %v1279, %v1275
        %v1524 = vpack.c.b16 %v1280, %v1276
        %v1525 = vpack.c.b16 %v1281, %v1277
        %v1526 = vpack.c.b16 %v1286, %v1282
        %v1527 = vpack.c.b16 %v1287, %v1283
        %v1528 = vpack.c.b16 %v1288, %v1284
        %v1529 = vpack.c.b16 %v1289, %v1285
        %v1530 = vpack.c.b16 %v1294, %v1290
        %v1531 = vpack.c.b16 %v1295, %v1291
        %v1532 = vpack.c.b16 %v1296, %v1292
        %v1533 = vpack.c.b16 %v1297, %v1293
        %v1534 = vpack.c.b16 %v1302, %v1298
        %v1535 = vpack.c.b16 %v1303, %v1299
        %v1536 = vpack.c.b16 %v1304, %v1300
        %v1537 = vpack.c.b16 %v1305, %v1301
        %v1538 = vpack.c.b16 %v1310, %v1306
        %v1539 = vpack.c.b16 %v1311, %v1307
        %v1540 = vpack.c.b16 %v1312, %v1308
        %v1541 = vpack.c.b16 %v1313, %v1309
        %v1542 = vpack.c.b16 %v1318, %v1314
        %v1543 = vpack.c.b16 %v1319, %v1315
        %v1544 = vpack.c.b16 %v1320, %v1316
        %v1545 = vpack.c.b16 %v1321, %v1317
        %v1546 = vpack.c.b16 %v1326, %v1322
        %v1547 = vpack.c.b16 %v1327, %v1323
        %v1548 = vpack.c.b16 %v1328, %v1324
        %v1549 = vpack.c.b16 %v1329, %v1325
        %v1550 = vpack.c.b16 %v1334, %v1330
        %v1551 = vpack.c.b16 %v1335, %v1331
        %v1552 = vpack.c.b16 %v1336, %v1332
        %v1553 = vpack.c.b16 %v1337, %v1333
        %v1554 = vpack.c.b16 %v1342, %v1338
        %v1555 = vpack.c.b16 %v1343, %v1339
        %v1556 = vpack.c.b16 %v1344, %v1340
        %v1557 = vpack.c.b16 %v1345, %v1341
        %v1558 = vpack.c.b16 %v1350, %v1346
        %v1559 = vpack.c.b16 %v1351, %v1347
        %v1560 = vpack.c.b16 %v1352, %v1348
        %v1561 = vpack.c.b16 %v1353, %v1349
        %v1562 = vpack.c.b16 %v1358, %v1354
        %v1563 = vpack.c.b16 %v1359, %v1355
        %v1564 = vpack.c.b16 %v1360, %v1356
        %v1565 = vpack.c.b16 %v1361, %v1357
        %v1566 = vpack.c.b16 %v1366, %v1362
        %v1567 = vpack.c.b16 %v1367, %v1363
        %v1568 = vpack.c.b16 %v1368, %v1364
        %v1569 = vpack.c.b16 %v1369, %v1365
        %v1570 = vpack.c.b16 %v1374, %v1370
        %v1571 = vpack.c.b16 %v1375, %v1371
        %v1572 = vpack.c.b16 %v1376, %v1372
        %v1573 = vpack.c.b16 %v1377, %v1373
        %v1574 = vpack.c.b16 %v1382, %v1378
        %v1575 = vpack.c.b16 %v1383, %v1379
        %v1576 = vpack.c.b16 %v1384, %v1380
        %v1577 = vpack.c.b16 %v1385, %v1381
        %1770 = vmatprep.subr.bf16.mxu0 %v1387
        %1771 = vmatpush1.bf16.msra.mxu0 %v1386
        %1772 = vmatprep.subr.bf16.mxu0 %v1391
        %1773 = vmatpush1.bf16.msra.mxu0 %v1390
        %1774 = vmatprep.subr.bf16.mxu0 %v1395
        %1775 = vmatpush1.bf16.msra.mxu0 %v1394
        %1776 = vmatprep.subr.bf16.mxu0 %v1399
        %1777 = vmatpush1.bf16.msra.mxu0 %v1398
        %1778 = vmatprep.subr.bf16.mxu0 %v1403
        %1779 = vmatpush1.bf16.msra.mxu0 %v1402
        %1780 = vmatprep.subr.bf16.mxu0 %v1407
        %1781 = vmatpush1.bf16.msra.mxu0 %v1406
        %1782 = vmatprep.subr.bf16.mxu0 %v1411
        %1783 = vmatpush1.bf16.msra.mxu0 %v1410
        %1784 = vmatprep.subr.bf16.mxu0 %v1415
        %1785 = vmatpush1.bf16.msra.mxu0 %v1414
        %1786 = vmatprep.subr.bf16.mxu0 %v1419
        %1787 = vmatpush1.bf16.msra.mxu0 %v1418
        %1788 = vmatprep.subr.bf16.mxu0 %v1423
        %1789 = vmatpush1.bf16.msra.mxu0 %v1422
        %1790 = vmatprep.subr.bf16.mxu0 %v1427
        %1791 = vmatpush1.bf16.msra.mxu0 %v1426
        %1792 = vmatprep.subr.bf16.mxu0 %v1431
        %1793 = vmatpush1.bf16.msra.mxu0 %v1430
        %1794 = vmatprep.subr.bf16.mxu0 %v1435
        %1795 = vmatpush1.bf16.msra.mxu0 %v1434
        %1796 = vmatprep.subr.bf16.mxu0 %v1439
        %1797 = vmatpush1.bf16.msra.mxu0 %v1438
        %1798 = vmatprep.subr.bf16.mxu0 %v1443
        %1799 = vmatpush1.bf16.msra.mxu0 %v1442
        %1800 = vmatprep.subr.bf16.mxu0 %v1447
        %1801 = vmatpush1.bf16.msra.mxu0 %v1446
        %1802 = vmatprep.mubr.bf16.mxu0 %v609
        %1803 = vmatmul.mubr.bf16.gmra.mrb[0].mxu0 %v608
        %v1804 = vpop.f32.mrb[0].mxu0
        %v1805 = vadd.f32 %v806, %v1804
        %v1806 = vpop.f32.mrb[0].mxu0
        %v1807 = vadd.f32 %v807, %v1806
        %v1808 = vpop.f32.mrb[0].mxu0
        %v1809 = vpop.f32.mrb[0].mxu0
        %1810 = vdwg.mxu0
        %1811 = vmatprep.subr.bf16.mxu0 %v1451
        %1812 = vmatpush1.bf16.msra.mxu0 %v1450
        %1813 = vmatprep.subr.bf16.mxu0 %v1455
        %1814 = vmatpush1.bf16.msra.mxu0 %v1454
        %1815 = vmatprep.subr.bf16.mxu0 %v1459
        %1816 = vmatpush1.bf16.msra.mxu0 %v1458
        %1817 = vmatprep.subr.bf16.mxu0 %v1463
        %1818 = vmatpush1.bf16.msra.mxu0 %v1462
        %1819 = vmatprep.subr.bf16.mxu0 %v1467
        %1820 = vmatpush1.bf16.msra.mxu0 %v1466
        %1821 = vmatprep.subr.bf16.mxu0 %v1471
        %1822 = vmatpush1.bf16.msra.mxu0 %v1470
        %1823 = vmatprep.subr.bf16.mxu0 %v1475
        %1824 = vmatpush1.bf16.msra.mxu0 %v1474
        %1825 = vmatprep.subr.bf16.mxu0 %v1479
        %1826 = vmatpush1.bf16.msra.mxu0 %v1478
        %1827 = vmatprep.subr.bf16.mxu0 %v1483
        %1828 = vmatpush1.bf16.msra.mxu0 %v1482
        %1829 = vmatprep.subr.bf16.mxu0 %v1487
        %1830 = vmatpush1.bf16.msra.mxu0 %v1486
        %1831 = vmatprep.subr.bf16.mxu0 %v1491
        %1832 = vmatpush1.bf16.msra.mxu0 %v1490
        %1833 = vmatprep.subr.bf16.mxu0 %v1495
        %1834 = vmatpush1.bf16.msra.mxu0 %v1494
        %1835 = vmatprep.subr.bf16.mxu0 %v1499
        %1836 = vmatpush1.bf16.msra.mxu0 %v1498
        %1837 = vmatprep.subr.bf16.mxu0 %v1503
        %1838 = vmatpush1.bf16.msra.mxu0 %v1502
        %1839 = vmatprep.subr.bf16.mxu0 %v1507
        %1840 = vmatpush1.bf16.msra.mxu0 %v1506
        %1841 = vmatprep.subr.bf16.mxu0 %v1511
        %1842 = vmatpush1.bf16.msra.mxu0 %v1510
        %1843 = vmatprep.mubr.bf16.mxu0 %v611
        %1844 = vmatmul.mubr.bf16.gmra.mrb[0].mxu0 %v610
        %v1845 = vpop.f32.mrb[0].mxu0
        %v1846 = vadd.f32 %v1805, %v1845
        %v1847 = vpop.f32.mrb[0].mxu0
        %v1848 = vadd.f32 %v1807, %v1847
        %v1849 = vpop.f32.mrb[0].mxu0
        %v1850 = vpop.f32.mrb[0].mxu0
        %1851 = vdwg.mxu0
        %1852 = vmatprep.subr.bf16.mxu0 %v1515
        %1853 = vmatpush1.bf16.msra.mxu0 %v1514
        %1854 = vmatprep.subr.bf16.mxu0 %v1519
        %1855 = vmatpush1.bf16.msra.mxu0 %v1518
        %1856 = vmatprep.subr.bf16.mxu0 %v1523
        %1857 = vmatpush1.bf16.msra.mxu0 %v1522
        %1858 = vmatprep.subr.bf16.mxu0 %v1527
        %1859 = vmatpush1.bf16.msra.mxu0 %v1526
        %1860 = vmatprep.subr.bf16.mxu0 %v1531
        %1861 = vmatpush1.bf16.msra.mxu0 %v1530
        %1862 = vmatprep.subr.bf16.mxu0 %v1535
        %1863 = vmatpush1.bf16.msra.mxu0 %v1534
        %1864 = vmatprep.subr.bf16.mxu0 %v1539
        %1865 = vmatpush1.bf16.msra.mxu0 %v1538
        %1866 = vmatprep.subr.bf16.mxu0 %v1543
        %1867 = vmatpush1.bf16.msra.mxu0 %v1542
        %1868 = vmatprep.subr.bf16.mxu0 %v1547
        %1869 = vmatpush1.bf16.msra.mxu0 %v1546
        %1870 = vmatprep.subr.bf16.mxu0 %v1551
        %1871 = vmatpush1.bf16.msra.mxu0 %v1550
        %1872 = vmatprep.subr.bf16.mxu0 %v1555
        %1873 = vmatpush1.bf16.msra.mxu0 %v1554
        %1874 = vmatprep.subr.bf16.mxu0 %v1559
        %1875 = vmatpush1.bf16.msra.mxu0 %v1558
        %1876 = vmatprep.subr.bf16.mxu0 %v1563
        %1877 = vmatpush1.bf16.msra.mxu0 %v1562
        %1878 = vmatprep.subr.bf16.mxu0 %v1567
        %1879 = vmatpush1.bf16.msra.mxu0 %v1566
        %1880 = vmatprep.subr.bf16.mxu0 %v1571
        %1881 = vmatpush1.bf16.msra.mxu0 %v1570
        %1882 = vmatprep.subr.bf16.mxu0 %v1575
        %1883 = vmatpush1.bf16.msra.mxu0 %v1574
        %1884 = vmatprep.mubr.bf16.mxu0 %v613
        %1885 = vmatmul.mubr.bf16.gmra.mrb[0].mxu0 %v612
        %v1886 = vpop.f32.mrb[0].mxu0
        %v1887 = vadd.f32 %v1846, %v1886
        %v1888 = vpop.f32.mrb[0].mxu0
        %v1889 = vadd.f32 %v1848, %v1888
        %v1890 = vpop.f32.mrb[0].mxu0
        %v1891 = vpop.f32.mrb[0].mxu0
        %1892 = vdwg.mxu0
        %1893 = vmatprep.subr.bf16.mxu0 %v1389
        %1894 = vmatpush1.bf16.msra.mxu0 %v1388
        %1895 = vmatprep.subr.bf16.mxu0 %v1393
        %1896 = vmatpush1.bf16.msra.mxu0 %v1392
        %1897 = vmatprep.subr.bf16.mxu0 %v1397
        %1898 = vmatpush1.bf16.msra.mxu0 %v1396
        %1899 = vmatprep.subr.bf16.mxu0 %v1401
        %1900 = vmatpush1.bf16.msra.mxu0 %v1400
        %1901 = vmatprep.subr.bf16.mxu0 %v1405
        %1902 = vmatpush1.bf16.msra.mxu0 %v1404
        %1903 = vmatprep.subr.bf16.mxu0 %v1409
        %1904 = vmatpush1.bf16.msra.mxu0 %v1408
        %1905 = vmatprep.subr.bf16.mxu0 %v1413
        %1906 = vmatpush1.bf16.msra.mxu0 %v1412
        %1907 = vmatprep.subr.bf16.mxu0 %v1417
        %1908 = vmatpush1.bf16.msra.mxu0 %v1416
        %1909 = vmatprep.subr.bf16.mxu0 %v1421
        %1910 = vmatpush1.bf16.msra.mxu0 %v1420
        %1911 = vmatprep.subr.bf16.mxu0 %v1425
        %1912 = vmatpush1.bf16.msra.mxu0 %v1424
        %1913 = vmatprep.subr.bf16.mxu0 %v1429
        %1914 = vmatpush1.bf16.msra.mxu0 %v1428
        %1915 = vmatprep.subr.bf16.mxu0 %v1433
        %1916 = vmatpush1.bf16.msra.mxu0 %v1432
        %1917 = vmatprep.subr.bf16.mxu0 %v1437
        %1918 = vmatpush1.bf16.msra.mxu0 %v1436
        %1919 = vmatprep.subr.bf16.mxu0 %v1441
        %1920 = vmatpush1.bf16.msra.mxu0 %v1440
        %1921 = vmatprep.subr.bf16.mxu0 %v1445
        %1922 = vmatpush1.bf16.msra.mxu0 %v1444
        %1923 = vmatprep.subr.bf16.mxu0 %v1449
        %1924 = vmatpush1.bf16.msra.mxu0 %v1448
        %1925 = vmatprep.mubr.bf16.mxu0 %v609
        %1926 = vmatmul.mubr.bf16.gmra.mrb[0].mxu0 %v608
        %v1927 = vpop.f32.mrb[0].mxu0
        %v1928 = vadd.f32 %v808, %v1927
        %v1929 = vpop.f32.mrb[0].mxu0
        %v1930 = vadd.f32 %v809, %v1929
        %v1931 = vpop.f32.mrb[0].mxu0
        %v1932 = vpop.f32.mrb[0].mxu0
        %1933 = vdwg.mxu0
        %1934 = vmatprep.subr.bf16.mxu0 %v1453
        %1935 = vmatpush1.bf16.msra.mxu0 %v1452
        %1936 = vmatprep.subr.bf16.mxu0 %v1457
        %1937 = vmatpush1.bf16.msra.mxu0 %v1456
        %1938 = vmatprep.subr.bf16.mxu0 %v1461
        %1939 = vmatpush1.bf16.msra.mxu0 %v1460
        %1940 = vmatprep.subr.bf16.mxu0 %v1465
        %1941 = vmatpush1.bf16.msra.mxu0 %v1464
        %1942 = vmatprep.subr.bf16.mxu0 %v1469
        %1943 = vmatpush1.bf16.msra.mxu0 %v1468
        %1944 = vmatprep.subr.bf16.mxu0 %v1473
        %1945 = vmatpush1.bf16.msra.mxu0 %v1472
        %1946 = vmatprep.subr.bf16.mxu0 %v1477
        %1947 = vmatpush1.bf16.msra.mxu0 %v1476
        %1948 = vmatprep.subr.bf16.mxu0 %v1481
        %1949 = vmatpush1.bf16.msra.mxu0 %v1480
        %1950 = vmatprep.subr.bf16.mxu0 %v1485
        %1951 = vmatpush1.bf16.msra.mxu0 %v1484
        %1952 = vmatprep.subr.bf16.mxu0 %v1489
        %1953 = vmatpush1.bf16.msra.mxu0 %v1488
        %1954 = vmatprep.subr.bf16.mxu0 %v1493
        %1955 = vmatpush1.bf16.msra.mxu0 %v1492
        %1956 = vmatprep.subr.bf16.mxu0 %v1497
        %1957 = vmatpush1.bf16.msra.mxu0 %v1496
        %1958 = vmatprep.subr.bf16.mxu0 %v1501
        %1959 = vmatpush1.bf16.msra.mxu0 %v1500
        %1960 = vmatprep.subr.bf16.mxu0 %v1505
        %1961 = vmatpush1.bf16.msra.mxu0 %v1504
        %1962 = vmatprep.subr.bf16.mxu0 %v1509
        %1963 = vmatpush1.bf16.msra.mxu0 %v1508
        %1964 = vmatprep.subr.bf16.mxu0 %v1513
        %1965 = vmatpush1.bf16.msra.mxu0 %v1512
        %1966 = vmatprep.mubr.bf16.mxu0 %v611
        %1967 = vmatmul.mubr.bf16.gmra.mrb[0].mxu0 %v610
        %v1968 = vpop.f32.mrb[0].mxu0
        %v1969 = vadd.f32 %v1928, %v1968
        %v1970 = vpop.f32.mrb[0].mxu0
        %v1971 = vadd.f32 %v1930, %v1970
        %v1972 = vpop.f32.mrb[0].mxu0
        %v1973 = vpop.f32.mrb[0].mxu0
        %1974 = vdwg.mxu0
        %1975 = vmatprep.subr.bf16.mxu0 %v1517
        %1976 = vmatpush1.bf16.msra.mxu0 %v1516
        %1977 = vmatprep.subr.bf16.mxu0 %v1521
        %1978 = vmatpush1.bf16.msra.mxu0 %v1520
        %1979 = vmatprep.subr.bf16.mxu0 %v1525
        %1980 = vmatpush1.bf16.msra.mxu0 %v1524
        %1981 = vmatprep.subr.bf16.mxu0 %v1529
        %1982 = vmatpush1.bf16.msra.mxu0 %v1528
        %1983 = vmatprep.subr.bf16.mxu0 %v1533
        %1984 = vmatpush1.bf16.msra.mxu0 %v1532
        %1985 = vmatprep.subr.bf16.mxu0 %v1537
        %1986 = vmatpush1.bf16.msra.mxu0 %v1536
        %1987 = vmatprep.subr.bf16.mxu0 %v1541
        %1988 = vmatpush1.bf16.msra.mxu0 %v1540
        %1989 = vmatprep.subr.bf16.mxu0 %v1545
        %1990 = vmatpush1.bf16.msra.mxu0 %v1544
        %1991 = vmatprep.subr.bf16.mxu0 %v1549
        %1992 = vmatpush1.bf16.msra.mxu0 %v1548
        %1993 = vmatprep.subr.bf16.mxu0 %v1553
        %1994 = vmatpush1.bf16.msra.mxu0 %v1552
        %1995 = vmatprep.subr.bf16.mxu0 %v1557
        %1996 = vmatpush1.bf16.msra.mxu0 %v1556
        %1997 = vmatprep.subr.bf16.mxu0 %v1561
        %1998 = vmatpush1.bf16.msra.mxu0 %v1560
        %1999 = vmatprep.subr.bf16.mxu0 %v1565
        %2000 = vmatpush1.bf16.msra.mxu0 %v1564
        %2001 = vmatprep.subr.bf16.mxu0 %v1569
        %2002 = vmatpush1.bf16.msra.mxu0 %v1568
        %2003 = vmatprep.subr.bf16.mxu0 %v1573
        %2004 = vmatpush1.bf16.msra.mxu0 %v1572
        %2005 = vmatprep.subr.bf16.mxu0 %v1577
        %2006 = vmatpush1.bf16.msra.mxu0 %v1576
        %2007 = vmatprep.mubr.bf16.mxu0 %v613
        %2008 = vmatmul.mubr.bf16.gmra.mrb[0].mxu0 %v612
        %v2009 = vpop.f32.mrb[0].mxu0
        %v2010 = vadd.f32 %v1969, %v2009
        %v2011 = vpop.f32.mrb[0].mxu0
        %v2012 = vadd.f32 %v1971, %v2011
        %v2013 = vpop.f32.mrb[0].mxu0
        %v2014 = vpop.f32.mrb[0].mxu0
        %2015 = vdwg.mxu0
        %vm2016 = vcmask 1044480
        %v2017 = vsel %vm2016, %v1887, 0.0
        %v2018 = vsel %vm2016, %v1889, 0.0
        %v2019 = vadd.f32 %v2017, %v2018
        %v2020 = vsel %vm2016, %v2010, 0.0
        %v2021 = vadd.f32 %v2019, %v2020
        %v2022 = vsel %vm2016, %v2012, 0.0
        %v2023 = vadd.f32 %v2021, %v2022
        %2024 = vadd.xlane.f32.xlu0 %v2023
        %v2025 = vpop.xlane.xlu0 %2024
        %v2026 = vrcp.pop 512.0
        %v2027 = vmul.f32 %v2025, %v2026
        %v2028 = vsub.f32 %v1887, %v2027
        %v2029 = vsub.f32 %v1889, %v2027
        %v2030 = vsub.f32 %v2010, %v2027
        %v2031 = vsub.f32 %v2012, %v2027
        %v2032 = vmul.f32 %v2028, %v2028
        %v2033 = vmul.f32 %v2029, %v2029
        %v2034 = vmul.f32 %v2030, %v2030
        %v2035 = vmul.f32 %v2031, %v2031
        %v2036 = vsel %vm2016, %v2032, 0.0
        %v2037 = vsel %vm2016, %v2033, 0.0
        %v2038 = vadd.f32 %v2036, %v2037
        %v2039 = vsel %vm2016, %v2034, 0.0
        %v2040 = vadd.f32 %v2038, %v2039
        %v2041 = vsel %vm2016, %v2035, 0.0
        %v2042 = vadd.f32 %v2040, %v2041
        %2043 = vadd.xlane.f32.xlu0 %v2042
        %v2044 = vpop.xlane.xlu0 %2043
        %v2045 = vmul.f32 %v2044, %v2026
        %v2046 = vadd.f32 %v2045, 1e-05
        %v2047 = vrsqrt.pop %v2046
        %v2048 = vmul.f32 %v2028, %v2047
        %v2049 = vmul.f32 %v2029, %v2047
        %v2050 = vmul.f32 %v2030, %v2047
        %v2051 = vmul.f32 %v2031, %v2047
        %v2053 = vlaneseq
        %v2054 = vshrl.u32 %v2053, 7
        %v2055 = vsub.s32 0, %v2054
        %v2056 = vrot.slane %v600, %v2055
        %v2057 = vlaneseq
        %v2058 = vshrl.u32 %v2057, 7
        %v2059 = vsub.s32 1, %v2058
        %v2060 = vrot.slane %v600, %v2059
        %v2061 = vlaneseq
        %v2062 = vshrl.u32 %v2061, 7
        %v2063 = vsub.s32 2, %v2062
        %v2064 = vrot.slane %v600, %v2063
        %v2065 = vlaneseq
        %v2066 = vshrl.u32 %v2065, 7
        %v2067 = vsub.s32 3, %v2066
        %v2068 = vrot.slane %v600, %v2067
        %v2073 = vmul.f32 %v2048, %v2056
        %v2074 = vmul.f32 %v2049, %v2060
        %v2075 = vmul.f32 %v2050, %v2064
        %v2076 = vmul.f32 %v2051, %v2068
        %v2078 = vlaneseq
        %v2079 = vshrl.u32 %v2078, 7
        %v2080 = vsub.s32 0, %v2079
        %v2081 = vrot.slane %v601, %v2080
        %v2082 = vlaneseq
        %v2083 = vshrl.u32 %v2082, 7
        %v2084 = vsub.s32 1, %v2083
        %v2085 = vrot.slane %v601, %v2084
        %v2086 = vlaneseq
        %v2087 = vshrl.u32 %v2086, 7
        %v2088 = vsub.s32 2, %v2087
        %v2089 = vrot.slane %v601, %v2088
        %v2090 = vlaneseq
        %v2091 = vshrl.u32 %v2090, 7
        %v2092 = vsub.s32 3, %v2091
        %v2093 = vrot.slane %v601, %v2092
        %v2098 = vadd.f32 %v2073, %v2081
        %v2099 = vadd.f32 %v2074, %v2085
        %v2100 = vadd.f32 %v2075, %v2089
        %v2101 = vadd.f32 %v2076, %v2093
        %v2102 = vpack.c.bf16 %v2098, %v2098
        %v2103 = vpack.c.bf16 %v2099, %v2099
        %v2104 = vpack.c.bf16 %v2100, %v2100
        %v2105 = vpack.c.bf16 %v2101, %v2101
        %v2106 = vld [vmem:[#allocation14] sm:$0xff]
        %v2107 = vld [vmem:[#allocation14 + $0x8] sm:$0xff]
        %v2108 = vld [vmem:[#allocation14 + $0x10] sm:$0xff]
        %v2109 = vld [vmem:[#allocation14 + $0x18] sm:$0xff]
        %v2110 = vld [vmem:[#allocation14 + $0x20] sm:$0xff]
        %v2111 = vld [vmem:[#allocation14 + $0x28] sm:$0xff]
        %v2112 = vld [vmem:[#allocation14 + $0x30] sm:$0xff]
        %v2113 = vld [vmem:[#allocation14 + $0x38] sm:$0xff]
        %v2114 = vld [vmem:[#allocation14 + $0x40] sm:$0xff]
        %v2115 = vld [vmem:[#allocation14 + $0x48] sm:$0xff]
        %v2116 = vld [vmem:[#allocation14 + $0x50] sm:$0xff]
        %v2117 = vld [vmem:[#allocation14 + $0x58] sm:$0xff]
        %v2118 = vld [vmem:[#allocation14 + $0x60] sm:$0xff]
        %v2119 = vld [vmem:[#allocation14 + $0x68] sm:$0xff]
        %v2120 = vld [vmem:[#allocation14 + $0x70] sm:$0xff]
        %v2121 = vld [vmem:[#allocation14 + $0x78] sm:$0xff]
        %v2122 = vld [vmem:[#allocation14 + $0x80] sm:$0xff]
        %v2123 = vld [vmem:[#allocation14 + $0x88] sm:$0xff]
        %v2124 = vld [vmem:[#allocation14 + $0x90] sm:$0xff]
        %v2125 = vld [vmem:[#allocation14 + $0x98] sm:$0xff]
        %v2126 = vld [vmem:[#allocation14 + $0xa0] sm:$0xff]
        %v2127 = vld [vmem:[#allocation14 + $0xa8] sm:$0xff]
        %v2128 = vld [vmem:[#allocation14 + $0xb0] sm:$0xff]
        %v2129 = vld [vmem:[#allocation14 + $0xb8] sm:$0xff]
        %v2130 = vld [vmem:[#allocation14 + $0xc0] sm:$0xff]
        %v2131 = vld [vmem:[#allocation14 + $0xc8] sm:$0xff]
        %v2132 = vld [vmem:[#allocation14 + $0xd0] sm:$0xff]
        %v2133 = vld [vmem:[#allocation14 + $0xd8] sm:$0xff]
        %v2134 = vld [vmem:[#allocation14 + $0xe0] sm:$0xff]
        %v2135 = vld [vmem:[#allocation14 + $0xe8] sm:$0xff]
        %v2136 = vld [vmem:[#allocation14 + $0xf0] sm:$0xff]
        %v2137 = vld [vmem:[#allocation14 + $0xf8] sm:$0xff]
        %v2138 = vld [vmem:[#allocation14 + $0x100] sm:$0xff]
        %v2139 = vld [vmem:[#allocation14 + $0x108] sm:$0xff]
        %v2140 = vld [vmem:[#allocation14 + $0x110] sm:$0xff]
        %v2141 = vld [vmem:[#allocation14 + $0x118] sm:$0xff]
        %v2142 = vld [vmem:[#allocation14 + $0x120] sm:$0xff]
        %v2143 = vld [vmem:[#allocation14 + $0x128] sm:$0xff]
        %v2144 = vld [vmem:[#allocation14 + $0x130] sm:$0xff]
        %v2145 = vld [vmem:[#allocation14 + $0x138] sm:$0xff]
        %v2146 = vld [vmem:[#allocation14 + $0x140] sm:$0xff]
        %v2147 = vld [vmem:[#allocation14 + $0x148] sm:$0xff]
        %v2148 = vld [vmem:[#allocation14 + $0x150] sm:$0xff]
        %v2149 = vld [vmem:[#allocation14 + $0x158] sm:$0xff]
        %v2150 = vld [vmem:[#allocation14 + $0x160] sm:$0xff]
        %v2151 = vld [vmem:[#allocation14 + $0x168] sm:$0xff]
        %v2152 = vld [vmem:[#allocation14 + $0x170] sm:$0xff]
        %v2153 = vld [vmem:[#allocation14 + $0x178] sm:$0xff]
        %v2154 = vld [vmem:[#allocation14 + $0x180] sm:$0xff]
        %v2155 = vld [vmem:[#allocation14 + $0x188] sm:$0xff]
        %v2156 = vld [vmem:[#allocation14 + $0x190] sm:$0xff]
        %v2157 = vld [vmem:[#allocation14 + $0x198] sm:$0xff]
        %v2158 = vld [vmem:[#allocation14 + $0x1a0] sm:$0xff]
        %v2159 = vld [vmem:[#allocation14 + $0x1a8] sm:$0xff]
        %v2160 = vld [vmem:[#allocation14 + $0x1b0] sm:$0xff]
        %v2161 = vld [vmem:[#allocation14 + $0x1b8] sm:$0xff]
        %v2162 = vld [vmem:[#allocation14 + $0x1c0] sm:$0xff]
        %v2163 = vld [vmem:[#allocation14 + $0x1c8] sm:$0xff]
        %v2164 = vld [vmem:[#allocation14 + $0x1d0] sm:$0xff]
        %v2165 = vld [vmem:[#allocation14 + $0x1d8] sm:$0xff]
        %v2166 = vld [vmem:[#allocation14 + $0x1e0] sm:$0xff]
        %v2167 = vld [vmem:[#allocation14 + $0x1e8] sm:$0xff]
        %v2168 = vld [vmem:[#allocation14 + $0x1f0] sm:$0xff]
        %v2169 = vld [vmem:[#allocation14 + $0x1f8] sm:$0xff]
        %v2170 = vld [vmem:[#allocation14 + $0x200] sm:$0xff]
        %v2171 = vld [vmem:[#allocation14 + $0x208] sm:$0xff]
        %v2172 = vld [vmem:[#allocation14 + $0x210] sm:$0xff]
        %v2173 = vld [vmem:[#allocation14 + $0x218] sm:$0xff]
        %v2174 = vld [vmem:[#allocation14 + $0x220] sm:$0xff]
        %v2175 = vld [vmem:[#allocation14 + $0x228] sm:$0xff]
        %v2176 = vld [vmem:[#allocation14 + $0x230] sm:$0xff]
        %v2177 = vld [vmem:[#allocation14 + $0x238] sm:$0xff]
        %v2178 = vld [vmem:[#allocation14 + $0x240] sm:$0xff]
        %v2179 = vld [vmem:[#allocation14 + $0x248] sm:$0xff]
        %v2180 = vld [vmem:[#allocation14 + $0x250] sm:$0xff]
        %v2181 = vld [vmem:[#allocation14 + $0x258] sm:$0xff]
        %v2182 = vld [vmem:[#allocation14 + $0x260] sm:$0xff]
        %v2183 = vld [vmem:[#allocation14 + $0x268] sm:$0xff]
        %v2184 = vld [vmem:[#allocation14 + $0x270] sm:$0xff]
        %v2185 = vld [vmem:[#allocation14 + $0x278] sm:$0xff]
        %v2186 = vld [vmem:[#allocation14 + $0x280] sm:$0xff]
        %v2187 = vld [vmem:[#allocation14 + $0x288] sm:$0xff]
        %v2188 = vld [vmem:[#allocation14 + $0x290] sm:$0xff]
        %v2189 = vld [vmem:[#allocation14 + $0x298] sm:$0xff]
        %v2190 = vld [vmem:[#allocation14 + $0x2a0] sm:$0xff]
        %v2191 = vld [vmem:[#allocation14 + $0x2a8] sm:$0xff]
        %v2192 = vld [vmem:[#allocation14 + $0x2b0] sm:$0xff]
        %v2193 = vld [vmem:[#allocation14 + $0x2b8] sm:$0xff]
        %v2194 = vld [vmem:[#allocation14 + $0x2c0] sm:$0xff]
        %v2195 = vld [vmem:[#allocation14 + $0x2c8] sm:$0xff]
        %v2196 = vld [vmem:[#allocation14 + $0x2d0] sm:$0xff]
        %v2197 = vld [vmem:[#allocation14 + $0x2d8] sm:$0xff]
        %v2198 = vld [vmem:[#allocation14 + $0x2e0] sm:$0xff]
        %v2199 = vld [vmem:[#allocation14 + $0x2e8] sm:$0xff]
        %v2200 = vld [vmem:[#allocation14 + $0x2f0] sm:$0xff]
        %v2201 = vld [vmem:[#allocation14 + $0x2f8] sm:$0xff]
        %v2202 = vld [vmem:[#allocation14 + $0x300] sm:$0xff]
        %v2203 = vld [vmem:[#allocation14 + $0x308] sm:$0xff]
        %v2204 = vld [vmem:[#allocation14 + $0x310] sm:$0xff]
        %v2205 = vld [vmem:[#allocation14 + $0x318] sm:$0xff]
        %v2206 = vld [vmem:[#allocation14 + $0x320] sm:$0xff]
        %v2207 = vld [vmem:[#allocation14 + $0x328] sm:$0xff]
        %v2208 = vld [vmem:[#allocation14 + $0x330] sm:$0xff]
        %v2209 = vld [vmem:[#allocation14 + $0x338] sm:$0xff]
        %v2210 = vld [vmem:[#allocation14 + $0x340] sm:$0xff]
        %v2211 = vld [vmem:[#allocation14 + $0x348] sm:$0xff]
        %v2212 = vld [vmem:[#allocation14 + $0x350] sm:$0xff]
        %v2213 = vld [vmem:[#allocation14 + $0x358] sm:$0xff]
        %v2214 = vld [vmem:[#allocation14 + $0x360] sm:$0xff]
        %v2215 = vld [vmem:[#allocation14 + $0x368] sm:$0xff]
        %v2216 = vld [vmem:[#allocation14 + $0x370] sm:$0xff]
        %v2217 = vld [vmem:[#allocation14 + $0x378] sm:$0xff]
        %v2218 = vld [vmem:[#allocation14 + $0x380] sm:$0xff]
        %v2219 = vld [vmem:[#allocation14 + $0x388] sm:$0xff]
        %v2220 = vld [vmem:[#allocation14 + $0x390] sm:$0xff]
        %v2221 = vld [vmem:[#allocation14 + $0x398] sm:$0xff]
        %v2222 = vld [vmem:[#allocation14 + $0x3a0] sm:$0xff]
        %v2223 = vld [vmem:[#allocation14 + $0x3a8] sm:$0xff]
        %v2224 = vld [vmem:[#allocation14 + $0x3b0] sm:$0xff]
        %v2225 = vld [vmem:[#allocation14 + $0x3b8] sm:$0xff]
        %v2226 = vld [vmem:[#allocation14 + $0x3c0] sm:$0xff]
        %v2227 = vld [vmem:[#allocation14 + $0x3c8] sm:$0xff]
        %v2228 = vld [vmem:[#allocation14 + $0x3d0] sm:$0xff]
        %v2229 = vld [vmem:[#allocation14 + $0x3d8] sm:$0xff]
        %v2230 = vld [vmem:[#allocation14 + $0x3e0] sm:$0xff]
        %v2231 = vld [vmem:[#allocation14 + $0x3e8] sm:$0xff]
        %v2232 = vld [vmem:[#allocation14 + $0x3f0] sm:$0xff]
        %v2233 = vld [vmem:[#allocation14 + $0x3f8] sm:$0xff]
        %v2234 = vld [vmem:[#allocation14 + $0x400] sm:$0xff]
        %v2235 = vld [vmem:[#allocation14 + $0x408] sm:$0xff]
        %v2236 = vld [vmem:[#allocation14 + $0x410] sm:$0xff]
        %v2237 = vld [vmem:[#allocation14 + $0x418] sm:$0xff]
        %v2238 = vld [vmem:[#allocation14 + $0x420] sm:$0xff]
        %v2239 = vld [vmem:[#allocation14 + $0x428] sm:$0xff]
        %v2240 = vld [vmem:[#allocation14 + $0x430] sm:$0xff]
        %v2241 = vld [vmem:[#allocation14 + $0x438] sm:$0xff]
        %v2242 = vld [vmem:[#allocation14 + $0x440] sm:$0xff]
        %v2243 = vld [vmem:[#allocation14 + $0x448] sm:$0xff]
        %v2244 = vld [vmem:[#allocation14 + $0x450] sm:$0xff]
        %v2245 = vld [vmem:[#allocation14 + $0x458] sm:$0xff]
        %v2246 = vld [vmem:[#allocation14 + $0x460] sm:$0xff]
        %v2247 = vld [vmem:[#allocation14 + $0x468] sm:$0xff]
        %v2248 = vld [vmem:[#allocation14 + $0x470] sm:$0xff]
        %v2249 = vld [vmem:[#allocation14 + $0x478] sm:$0xff]
        %v2250 = vld [vmem:[#allocation14 + $0x480] sm:$0xff]
        %v2251 = vld [vmem:[#allocation14 + $0x488] sm:$0xff]
        %v2252 = vld [vmem:[#allocation14 + $0x490] sm:$0xff]
        %v2253 = vld [vmem:[#allocation14 + $0x498] sm:$0xff]
        %v2254 = vld [vmem:[#allocation14 + $0x4a0] sm:$0xff]
        %v2255 = vld [vmem:[#allocation14 + $0x4a8] sm:$0xff]
        %v2256 = vld [vmem:[#allocation14 + $0x4b0] sm:$0xff]
        %v2257 = vld [vmem:[#allocation14 + $0x4b8] sm:$0xff]
        %v2258 = vld [vmem:[#allocation14 + $0x4c0] sm:$0xff]
        %v2259 = vld [vmem:[#allocation14 + $0x4c8] sm:$0xff]
        %v2260 = vld [vmem:[#allocation14 + $0x4d0] sm:$0xff]
        %v2261 = vld [vmem:[#allocation14 + $0x4d8] sm:$0xff]
        %v2262 = vld [vmem:[#allocation14 + $0x4e0] sm:$0xff]
        %v2263 = vld [vmem:[#allocation14 + $0x4e8] sm:$0xff]
        %v2264 = vld [vmem:[#allocation14 + $0x4f0] sm:$0xff]
        %v2265 = vld [vmem:[#allocation14 + $0x4f8] sm:$0xff]
        %v2266 = vld [vmem:[#allocation14 + $0x500] sm:$0xff]
        %v2267 = vld [vmem:[#allocation14 + $0x508] sm:$0xff]
        %v2268 = vld [vmem:[#allocation14 + $0x510] sm:$0xff]
        %v2269 = vld [vmem:[#allocation14 + $0x518] sm:$0xff]
        %v2270 = vld [vmem:[#allocation14 + $0x520] sm:$0xff]
        %v2271 = vld [vmem:[#allocation14 + $0x528] sm:$0xff]
        %v2272 = vld [vmem:[#allocation14 + $0x530] sm:$0xff]
        %v2273 = vld [vmem:[#allocation14 + $0x538] sm:$0xff]
        %v2274 = vld [vmem:[#allocation14 + $0x540] sm:$0xff]
        %v2275 = vld [vmem:[#allocation14 + $0x548] sm:$0xff]
        %v2276 = vld [vmem:[#allocation14 + $0x550] sm:$0xff]
        %v2277 = vld [vmem:[#allocation14 + $0x558] sm:$0xff]
        %v2278 = vld [vmem:[#allocation14 + $0x560] sm:$0xff]
        %v2279 = vld [vmem:[#allocation14 + $0x568] sm:$0xff]
        %v2280 = vld [vmem:[#allocation14 + $0x570] sm:$0xff]
        %v2281 = vld [vmem:[#allocation14 + $0x578] sm:$0xff]
        %v2282 = vld [vmem:[#allocation14 + $0x580] sm:$0xff]
        %v2283 = vld [vmem:[#allocation14 + $0x588] sm:$0xff]
        %v2284 = vld [vmem:[#allocation14 + $0x590] sm:$0xff]
        %v2285 = vld [vmem:[#allocation14 + $0x598] sm:$0xff]
        %v2286 = vld [vmem:[#allocation14 + $0x5a0] sm:$0xff]
        %v2287 = vld [vmem:[#allocation14 + $0x5a8] sm:$0xff]
        %v2288 = vld [vmem:[#allocation14 + $0x5b0] sm:$0xff]
        %v2289 = vld [vmem:[#allocation14 + $0x5b8] sm:$0xff]
        %v2290 = vld [vmem:[#allocation14 + $0x5c0] sm:$0xff]
        %v2291 = vld [vmem:[#allocation14 + $0x5c8] sm:$0xff]
        %v2292 = vld [vmem:[#allocation14 + $0x5d0] sm:$0xff]
        %v2293 = vld [vmem:[#allocation14 + $0x5d8] sm:$0xff]
        %v2294 = vld [vmem:[#allocation14 + $0x5e0] sm:$0xff]
        %v2295 = vld [vmem:[#allocation14 + $0x5e8] sm:$0xff]
        %v2296 = vld [vmem:[#allocation14 + $0x5f0] sm:$0xff]
        %v2297 = vld [vmem:[#allocation14 + $0x5f8] sm:$0xff]
        %v2298 = vld [vmem:[#allocation14 + $0x600] sm:$0xff]
        %v2299 = vld [vmem:[#allocation14 + $0x608] sm:$0xff]
        %v2300 = vld [vmem:[#allocation14 + $0x610] sm:$0xff]
        %v2301 = vld [vmem:[#allocation14 + $0x618] sm:$0xff]
        %v2302 = vld [vmem:[#allocation14 + $0x620] sm:$0xff]
        %v2303 = vld [vmem:[#allocation14 + $0x628] sm:$0xff]
        %v2304 = vld [vmem:[#allocation14 + $0x630] sm:$0xff]
        %v2305 = vld [vmem:[#allocation14 + $0x638] sm:$0xff]
        %v2306 = vld [vmem:[#allocation14 + $0x640] sm:$0xff]
        %v2307 = vld [vmem:[#allocation14 + $0x648] sm:$0xff]
        %v2308 = vld [vmem:[#allocation14 + $0x650] sm:$0xff]
        %v2309 = vld [vmem:[#allocation14 + $0x658] sm:$0xff]
        %v2310 = vld [vmem:[#allocation14 + $0x660] sm:$0xff]
        %v2311 = vld [vmem:[#allocation14 + $0x668] sm:$0xff]
        %v2312 = vld [vmem:[#allocation14 + $0x670] sm:$0xff]
        %v2313 = vld [vmem:[#allocation14 + $0x678] sm:$0xff]
        %v2314 = vld [vmem:[#allocation14 + $0x680] sm:$0xff]
        %v2315 = vld [vmem:[#allocation14 + $0x688] sm:$0xff]
        %v2316 = vld [vmem:[#allocation14 + $0x690] sm:$0xff]
        %v2317 = vld [vmem:[#allocation14 + $0x698] sm:$0xff]
        %v2318 = vld [vmem:[#allocation14 + $0x6a0] sm:$0xff]
        %v2319 = vld [vmem:[#allocation14 + $0x6a8] sm:$0xff]
        %v2320 = vld [vmem:[#allocation14 + $0x6b0] sm:$0xff]
        %v2321 = vld [vmem:[#allocation14 + $0x6b8] sm:$0xff]
        %v2322 = vld [vmem:[#allocation14 + $0x6c0] sm:$0xff]
        %v2323 = vld [vmem:[#allocation14 + $0x6c8] sm:$0xff]
        %v2324 = vld [vmem:[#allocation14 + $0x6d0] sm:$0xff]
        %v2325 = vld [vmem:[#allocation14 + $0x6d8] sm:$0xff]
        %v2326 = vld [vmem:[#allocation14 + $0x6e0] sm:$0xff]
        %v2327 = vld [vmem:[#allocation14 + $0x6e8] sm:$0xff]
        %v2328 = vld [vmem:[#allocation14 + $0x6f0] sm:$0xff]
        %v2329 = vld [vmem:[#allocation14 + $0x6f8] sm:$0xff]
        %v2330 = vld [vmem:[#allocation14 + $0x700] sm:$0xff]
        %v2331 = vld [vmem:[#allocation14 + $0x708] sm:$0xff]
        %v2332 = vld [vmem:[#allocation14 + $0x710] sm:$0xff]
        %v2333 = vld [vmem:[#allocation14 + $0x718] sm:$0xff]
        %v2334 = vld [vmem:[#allocation14 + $0x720] sm:$0xff]
        %v2335 = vld [vmem:[#allocation14 + $0x728] sm:$0xff]
        %v2336 = vld [vmem:[#allocation14 + $0x730] sm:$0xff]
        %v2337 = vld [vmem:[#allocation14 + $0x738] sm:$0xff]
        %v2338 = vld [vmem:[#allocation14 + $0x740] sm:$0xff]
        %v2339 = vld [vmem:[#allocation14 + $0x748] sm:$0xff]
        %v2340 = vld [vmem:[#allocation14 + $0x750] sm:$0xff]
        %v2341 = vld [vmem:[#allocation14 + $0x758] sm:$0xff]
        %v2342 = vld [vmem:[#allocation14 + $0x760] sm:$0xff]
        %v2343 = vld [vmem:[#allocation14 + $0x768] sm:$0xff]
        %v2344 = vld [vmem:[#allocation14 + $0x770] sm:$0xff]
        %v2345 = vld [vmem:[#allocation14 + $0x778] sm:$0xff]
        %v2346 = vld [vmem:[#allocation14 + $0x780] sm:$0xff]
        %v2347 = vld [vmem:[#allocation14 + $0x788] sm:$0xff]
        %v2348 = vld [vmem:[#allocation14 + $0x790] sm:$0xff]
        %v2349 = vld [vmem:[#allocation14 + $0x798] sm:$0xff]
        %v2350 = vld [vmem:[#allocation14 + $0x7a0] sm:$0xff]
        %v2351 = vld [vmem:[#allocation14 + $0x7a8] sm:$0xff]
        %v2352 = vld [vmem:[#allocation14 + $0x7b0] sm:$0xff]
        %v2353 = vld [vmem:[#allocation14 + $0x7b8] sm:$0xff]
        %v2354 = vld [vmem:[#allocation14 + $0x7c0] sm:$0xff]
        %v2355 = vld [vmem:[#allocation14 + $0x7c8] sm:$0xff]
        %v2356 = vld [vmem:[#allocation14 + $0x7d0] sm:$0xff]
        %v2357 = vld [vmem:[#allocation14 + $0x7d8] sm:$0xff]
        %v2358 = vld [vmem:[#allocation14 + $0x7e0] sm:$0xff]
        %v2359 = vld [vmem:[#allocation14 + $0x7e8] sm:$0xff]
        %v2360 = vld [vmem:[#allocation14 + $0x7f0] sm:$0xff]
        %v2361 = vld [vmem:[#allocation14 + $0x7f8] sm:$0xff]
        %v2362 = vld [vmem:[#allocation14 + $0x800] sm:$0xff]
        %v2363 = vld [vmem:[#allocation14 + $0x808] sm:$0xff]
        %v2364 = vld [vmem:[#allocation14 + $0x810] sm:$0xff]
        %v2365 = vld [vmem:[#allocation14 + $0x818] sm:$0xff]
        %v2366 = vld [vmem:[#allocation14 + $0x820] sm:$0xff]
        %v2367 = vld [vmem:[#allocation14 + $0x828] sm:$0xff]
        %v2368 = vld [vmem:[#allocation14 + $0x830] sm:$0xff]
        %v2369 = vld [vmem:[#allocation14 + $0x838] sm:$0xff]
        %v2370 = vld [vmem:[#allocation14 + $0x840] sm:$0xff]
        %v2371 = vld [vmem:[#allocation14 + $0x848] sm:$0xff]
        %v2372 = vld [vmem:[#allocation14 + $0x850] sm:$0xff]
        %v2373 = vld [vmem:[#allocation14 + $0x858] sm:$0xff]
        %v2374 = vld [vmem:[#allocation14 + $0x860] sm:$0xff]
        %v2375 = vld [vmem:[#allocation14 + $0x868] sm:$0xff]
        %v2376 = vld [vmem:[#allocation14 + $0x870] sm:$0xff]
        %v2377 = vld [vmem:[#allocation14 + $0x878] sm:$0xff]
        %v2378 = vld [vmem:[#allocation14 + $0x880] sm:$0xff]
        %v2379 = vld [vmem:[#allocation14 + $0x888] sm:$0xff]
        %v2380 = vld [vmem:[#allocation14 + $0x890] sm:$0xff]
        %v2381 = vld [vmem:[#allocation14 + $0x898] sm:$0xff]
        %v2382 = vld [vmem:[#allocation14 + $0x8a0] sm:$0xff]
        %v2383 = vld [vmem:[#allocation14 + $0x8a8] sm:$0xff]
        %v2384 = vld [vmem:[#allocation14 + $0x8b0] sm:$0xff]
        %v2385 = vld [vmem:[#allocation14 + $0x8b8] sm:$0xff]
        %v2386 = vld [vmem:[#allocation14 + $0x8c0] sm:$0xff]
        %v2387 = vld [vmem:[#allocation14 + $0x8c8] sm:$0xff]
        %v2388 = vld [vmem:[#allocation14 + $0x8d0] sm:$0xff]
        %v2389 = vld [vmem:[#allocation14 + $0x8d8] sm:$0xff]
        %v2390 = vld [vmem:[#allocation14 + $0x8e0] sm:$0xff]
        %v2391 = vld [vmem:[#allocation14 + $0x8e8] sm:$0xff]
        %v2392 = vld [vmem:[#allocation14 + $0x8f0] sm:$0xff]
        %v2393 = vld [vmem:[#allocation14 + $0x8f8] sm:$0xff]
        %v2394 = vld [vmem:[#allocation14 + $0x900] sm:$0xff]
        %v2395 = vld [vmem:[#allocation14 + $0x908] sm:$0xff]
        %v2396 = vld [vmem:[#allocation14 + $0x910] sm:$0xff]
        %v2397 = vld [vmem:[#allocation14 + $0x918] sm:$0xff]
        %v2398 = vld [vmem:[#allocation14 + $0x920] sm:$0xff]
        %v2399 = vld [vmem:[#allocation14 + $0x928] sm:$0xff]
        %v2400 = vld [vmem:[#allocation14 + $0x930] sm:$0xff]
        %v2401 = vld [vmem:[#allocation14 + $0x938] sm:$0xff]
        %v2402 = vld [vmem:[#allocation14 + $0x940] sm:$0xff]
        %v2403 = vld [vmem:[#allocation14 + $0x948] sm:$0xff]
        %v2404 = vld [vmem:[#allocation14 + $0x950] sm:$0xff]
        %v2405 = vld [vmem:[#allocation14 + $0x958] sm:$0xff]
        %v2406 = vld [vmem:[#allocation14 + $0x960] sm:$0xff]
        %v2407 = vld [vmem:[#allocation14 + $0x968] sm:$0xff]
        %v2408 = vld [vmem:[#allocation14 + $0x970] sm:$0xff]
        %v2409 = vld [vmem:[#allocation14 + $0x978] sm:$0xff]
        %v2410 = vld [vmem:[#allocation14 + $0x980] sm:$0xff]
        %v2411 = vld [vmem:[#allocation14 + $0x988] sm:$0xff]
        %v2412 = vld [vmem:[#allocation14 + $0x990] sm:$0xff]
        %v2413 = vld [vmem:[#allocation14 + $0x998] sm:$0xff]
        %v2414 = vld [vmem:[#allocation14 + $0x9a0] sm:$0xff]
        %v2415 = vld [vmem:[#allocation14 + $0x9a8] sm:$0xff]
        %v2416 = vld [vmem:[#allocation14 + $0x9b0] sm:$0xff]
        %v2417 = vld [vmem:[#allocation14 + $0x9b8] sm:$0xff]
        %v2418 = vld [vmem:[#allocation14 + $0x9c0] sm:$0xff]
        %v2419 = vld [vmem:[#allocation14 + $0x9c8] sm:$0xff]
        %v2420 = vld [vmem:[#allocation14 + $0x9d0] sm:$0xff]
        %v2421 = vld [vmem:[#allocation14 + $0x9d8] sm:$0xff]
        %v2422 = vld [vmem:[#allocation14 + $0x9e0] sm:$0xff]
        %v2423 = vld [vmem:[#allocation14 + $0x9e8] sm:$0xff]
        %v2424 = vld [vmem:[#allocation14 + $0x9f0] sm:$0xff]
        %v2425 = vld [vmem:[#allocation14 + $0x9f8] sm:$0xff]
        %v2426 = vld [vmem:[#allocation14 + $0xa00] sm:$0xff]
        %v2427 = vld [vmem:[#allocation14 + $0xa08] sm:$0xff]
        %v2428 = vld [vmem:[#allocation14 + $0xa10] sm:$0xff]
        %v2429 = vld [vmem:[#allocation14 + $0xa18] sm:$0xff]
        %v2430 = vld [vmem:[#allocation14 + $0xa20] sm:$0xff]
        %v2431 = vld [vmem:[#allocation14 + $0xa28] sm:$0xff]
        %v2432 = vld [vmem:[#allocation14 + $0xa30] sm:$0xff]
        %v2433 = vld [vmem:[#allocation14 + $0xa38] sm:$0xff]
        %v2434 = vld [vmem:[#allocation14 + $0xa40] sm:$0xff]
        %v2435 = vld [vmem:[#allocation14 + $0xa48] sm:$0xff]
        %v2436 = vld [vmem:[#allocation14 + $0xa50] sm:$0xff]
        %v2437 = vld [vmem:[#allocation14 + $0xa58] sm:$0xff]
        %v2438 = vld [vmem:[#allocation14 + $0xa60] sm:$0xff]
        %v2439 = vld [vmem:[#allocation14 + $0xa68] sm:$0xff]
        %v2440 = vld [vmem:[#allocation14 + $0xa70] sm:$0xff]
        %v2441 = vld [vmem:[#allocation14 + $0xa78] sm:$0xff]
        %v2442 = vld [vmem:[#allocation14 + $0xa80] sm:$0xff]
        %v2443 = vld [vmem:[#allocation14 + $0xa88] sm:$0xff]
        %v2444 = vld [vmem:[#allocation14 + $0xa90] sm:$0xff]
        %v2445 = vld [vmem:[#allocation14 + $0xa98] sm:$0xff]
        %v2446 = vld [vmem:[#allocation14 + $0xaa0] sm:$0xff]
        %v2447 = vld [vmem:[#allocation14 + $0xaa8] sm:$0xff]
        %v2448 = vld [vmem:[#allocation14 + $0xab0] sm:$0xff]
        %v2449 = vld [vmem:[#allocation14 + $0xab8] sm:$0xff]
        %v2450 = vld [vmem:[#allocation14 + $0xac0] sm:$0xff]
        %v2451 = vld [vmem:[#allocation14 + $0xac8] sm:$0xff]
        %v2452 = vld [vmem:[#allocation14 + $0xad0] sm:$0xff]
        %v2453 = vld [vmem:[#allocation14 + $0xad8] sm:$0xff]
        %v2454 = vld [vmem:[#allocation14 + $0xae0] sm:$0xff]
        %v2455 = vld [vmem:[#allocation14 + $0xae8] sm:$0xff]
        %v2456 = vld [vmem:[#allocation14 + $0xaf0] sm:$0xff]
        %v2457 = vld [vmem:[#allocation14 + $0xaf8] sm:$0xff]
        %v2458 = vld [vmem:[#allocation14 + $0xb00] sm:$0xff]
        %v2459 = vld [vmem:[#allocation14 + $0xb08] sm:$0xff]
        %v2460 = vld [vmem:[#allocation14 + $0xb10] sm:$0xff]
        %v2461 = vld [vmem:[#allocation14 + $0xb18] sm:$0xff]
        %v2462 = vld [vmem:[#allocation14 + $0xb20] sm:$0xff]
        %v2463 = vld [vmem:[#allocation14 + $0xb28] sm:$0xff]
        %v2464 = vld [vmem:[#allocation14 + $0xb30] sm:$0xff]
        %v2465 = vld [vmem:[#allocation14 + $0xb38] sm:$0xff]
        %v2466 = vld [vmem:[#allocation14 + $0xb40] sm:$0xff]
        %v2467 = vld [vmem:[#allocation14 + $0xb48] sm:$0xff]
        %v2468 = vld [vmem:[#allocation14 + $0xb50] sm:$0xff]
        %v2469 = vld [vmem:[#allocation14 + $0xb58] sm:$0xff]
        %v2470 = vld [vmem:[#allocation14 + $0xb60] sm:$0xff]
        %v2471 = vld [vmem:[#allocation14 + $0xb68] sm:$0xff]
        %v2472 = vld [vmem:[#allocation14 + $0xb70] sm:$0xff]
        %v2473 = vld [vmem:[#allocation14 + $0xb78] sm:$0xff]
        %v2474 = vld [vmem:[#allocation14 + $0xb80] sm:$0xff]
        %v2475 = vld [vmem:[#allocation14 + $0xb88] sm:$0xff]
        %v2476 = vld [vmem:[#allocation14 + $0xb90] sm:$0xff]
        %v2477 = vld [vmem:[#allocation14 + $0xb98] sm:$0xff]
        %v2478 = vld [vmem:[#allocation14 + $0xba0] sm:$0xff]
        %v2479 = vld [vmem:[#allocation14 + $0xba8] sm:$0xff]
        %v2480 = vld [vmem:[#allocation14 + $0xbb0] sm:$0xff]
        %v2481 = vld [vmem:[#allocation14 + $0xbb8] sm:$0xff]
        %v2482 = vld [vmem:[#allocation14 + $0xbc0] sm:$0xff]
        %v2483 = vld [vmem:[#allocation14 + $0xbc8] sm:$0xff]
        %v2484 = vld [vmem:[#allocation14 + $0xbd0] sm:$0xff]
        %v2485 = vld [vmem:[#allocation14 + $0xbd8] sm:$0xff]
        %v2486 = vld [vmem:[#allocation14 + $0xbe0] sm:$0xff]
        %v2487 = vld [vmem:[#allocation14 + $0xbe8] sm:$0xff]
        %v2488 = vld [vmem:[#allocation14 + $0xbf0] sm:$0xff]
        %v2489 = vld [vmem:[#allocation14 + $0xbf8] sm:$0xff]
        %v2490 = vld [vmem:[#allocation15] sm:$0xff]
        %v2491 = vld [vmem:[#allocation15 + $0x8] sm:$0xf]
        %v2494 = vlaneseq
        %v2495 = vshrl.u32 %v2494, 7
        %v2496 = vsub.s32 0, %v2495
        %v2497 = vrot.slane %v2490, %v2496
        %v2498 = vlaneseq
        %v2499 = vshrl.u32 %v2498, 7
        %v2500 = vsub.s32 1, %v2499
        %v2501 = vrot.slane %v2490, %v2500
        %v2502 = vlaneseq
        %v2503 = vshrl.u32 %v2502, 7
        %v2504 = vsub.s32 2, %v2503
        %v2505 = vrot.slane %v2490, %v2504
        %v2506 = vlaneseq
        %v2507 = vshrl.u32 %v2506, 7
        %v2508 = vsub.s32 3, %v2507
        %v2509 = vrot.slane %v2490, %v2508
        %v2510 = vlaneseq
        %v2511 = vshrl.u32 %v2510, 7
        %v2512 = vsub.s32 4, %v2511
        %v2513 = vrot.slane %v2490, %v2512
        %v2514 = vlaneseq
        %v2515 = vshrl.u32 %v2514, 7
        %v2516 = vsub.s32 5, %v2515
        %v2517 = vrot.slane %v2490, %v2516
        %v2518 = vlaneseq
        %v2519 = vshrl.u32 %v2518, 7
        %v2520 = vsub.s32 6, %v2519
        %v2521 = vrot.slane %v2490, %v2520
        %v2522 = vlaneseq
        %v2523 = vshrl.u32 %v2522, 7
        %v2524 = vsub.s32 7, %v2523
        %v2525 = vrot.slane %v2490, %v2524
        %v2526 = vlaneseq
        %v2527 = vshrl.u32 %v2526, 7
        %v2528 = vsub.s32 0, %v2527
        %v2529 = vrot.slane %v2491, %v2528
        %v2530 = vlaneseq
        %v2531 = vshrl.u32 %v2530, 7
        %v2532 = vsub.s32 1, %v2531
        %v2533 = vrot.slane %v2491, %v2532
        %v2534 = vlaneseq
        %v2535 = vshrl.u32 %v2534, 7
        %v2536 = vsub.s32 2, %v2535
        %v2537 = vrot.slane %v2491, %v2536
        %v2538 = vlaneseq
        %v2539 = vshrl.u32 %v2538, 7
        %v2540 = vsub.s32 3, %v2539
        %v2541 = vrot.slane %v2491, %v2540
        %v2938 = vunpack.c.l.b16 %v2106
        %v2939 = vunpack.c.h.b16 %v2106
        %v2940 = vunpack.c.l.b16 %v2107
        %v2941 = vunpack.c.h.b16 %v2107
        %v2942 = vunpack.c.l.b16 %v2108
        %v2943 = vunpack.c.h.b16 %v2108
        %v2944 = vunpack.c.l.b16 %v2109
        %v2945 = vunpack.c.h.b16 %v2109
        %v2946 = vunpack.c.l.b16 %v2110
        %v2947 = vunpack.c.h.b16 %v2110
        %v2948 = vunpack.c.l.b16 %v2111
        %v2949 = vunpack.c.h.b16 %v2111
        %v2950 = vunpack.c.l.b16 %v2112
        %v2951 = vunpack.c.h.b16 %v2112
        %v2952 = vunpack.c.l.b16 %v2113
        %v2953 = vunpack.c.h.b16 %v2113
        %v2954 = vunpack.c.l.b16 %v2114
        %v2955 = vunpack.c.h.b16 %v2114
        %v2956 = vunpack.c.l.b16 %v2115
        %v2957 = vunpack.c.h.b16 %v2115
        %v2958 = vunpack.c.l.b16 %v2116
        %v2959 = vunpack.c.h.b16 %v2116
        %v2960 = vunpack.c.l.b16 %v2117
        %v2961 = vunpack.c.h.b16 %v2117
        %v2962 = vunpack.c.l.b16 %v2118
        %v2963 = vunpack.c.h.b16 %v2118
        %v2964 = vunpack.c.l.b16 %v2119
        %v2965 = vunpack.c.h.b16 %v2119
        %v2966 = vunpack.c.l.b16 %v2120
        %v2967 = vunpack.c.h.b16 %v2120
        %v2968 = vunpack.c.l.b16 %v2121
        %v2969 = vunpack.c.h.b16 %v2121
        %v2970 = vunpack.c.l.b16 %v2122
        %v2971 = vunpack.c.h.b16 %v2122
        %v2972 = vunpack.c.l.b16 %v2123
        %v2973 = vunpack.c.h.b16 %v2123
        %v2974 = vunpack.c.l.b16 %v2124
        %v2975 = vunpack.c.h.b16 %v2124
        %v2976 = vunpack.c.l.b16 %v2125
        %v2977 = vunpack.c.h.b16 %v2125
        %v2978 = vunpack.c.l.b16 %v2126
        %v2979 = vunpack.c.h.b16 %v2126
        %v2980 = vunpack.c.l.b16 %v2127
        %v2981 = vunpack.c.h.b16 %v2127
        %v2982 = vunpack.c.l.b16 %v2128
        %v2983 = vunpack.c.h.b16 %v2128
        %v2984 = vunpack.c.l.b16 %v2129
        %v2985 = vunpack.c.h.b16 %v2129
        %v2986 = vunpack.c.l.b16 %v2130
        %v2987 = vunpack.c.h.b16 %v2130
        %v2988 = vunpack.c.l.b16 %v2131
        %v2989 = vunpack.c.h.b16 %v2131
        %v2990 = vunpack.c.l.b16 %v2132
        %v2991 = vunpack.c.h.b16 %v2132
        %v2992 = vunpack.c.l.b16 %v2133
        %v2993 = vunpack.c.h.b16 %v2133
        %v2994 = vunpack.c.l.b16 %v2134
        %v2995 = vunpack.c.h.b16 %v2134
        %v2996 = vunpack.c.l.b16 %v2135
        %v2997 = vunpack.c.h.b16 %v2135
        %v2998 = vunpack.c.l.b16 %v2136
        %v2999 = vunpack.c.h.b16 %v2136
        %v3000 = vunpack.c.l.b16 %v2137
        %v3001 = vunpack.c.h.b16 %v2137
        %v3002 = vunpack.c.l.b16 %v2138
        %v3003 = vunpack.c.h.b16 %v2138
        %v3004 = vunpack.c.l.b16 %v2139
        %v3005 = vunpack.c.h.b16 %v2139
        %v3006 = vunpack.c.l.b16 %v2140
        %v3007 = vunpack.c.h.b16 %v2140
        %v3008 = vunpack.c.l.b16 %v2141
        %v3009 = vunpack.c.h.b16 %v2141
        %v3010 = vunpack.c.l.b16 %v2142
        %v3011 = vunpack.c.h.b16 %v2142
        %v3012 = vunpack.c.l.b16 %v2143
        %v3013 = vunpack.c.h.b16 %v2143
        %v3014 = vunpack.c.l.b16 %v2144
        %v3015 = vunpack.c.h.b16 %v2144
        %v3016 = vunpack.c.l.b16 %v2145
        %v3017 = vunpack.c.h.b16 %v2145
        %v3018 = vunpack.c.l.b16 %v2146
        %v3019 = vunpack.c.h.b16 %v2146
        %v3020 = vunpack.c.l.b16 %v2147
        %v3021 = vunpack.c.h.b16 %v2147
        %v3022 = vunpack.c.l.b16 %v2148
        %v3023 = vunpack.c.h.b16 %v2148
        %v3024 = vunpack.c.l.b16 %v2149
        %v3025 = vunpack.c.h.b16 %v2149
        %v3026 = vunpack.c.l.b16 %v2150
        %v3027 = vunpack.c.h.b16 %v2150
        %v3028 = vunpack.c.l.b16 %v2151
        %v3029 = vunpack.c.h.b16 %v2151
        %v3030 = vunpack.c.l.b16 %v2152
        %v3031 = vunpack.c.h.b16 %v2152
        %v3032 = vunpack.c.l.b16 %v2153
        %v3033 = vunpack.c.h.b16 %v2153
        %v3034 = vunpack.c.l.b16 %v2154
        %v3035 = vunpack.c.h.b16 %v2154
        %v3036 = vunpack.c.l.b16 %v2155
        %v3037 = vunpack.c.h.b16 %v2155
        %v3038 = vunpack.c.l.b16 %v2156
        %v3039 = vunpack.c.h.b16 %v2156
        %v3040 = vunpack.c.l.b16 %v2157
        %v3041 = vunpack.c.h.b16 %v2157
        %v3042 = vunpack.c.l.b16 %v2158
        %v3043 = vunpack.c.h.b16 %v2158
        %v3044 = vunpack.c.l.b16 %v2159
        %v3045 = vunpack.c.h.b16 %v2159
        %v3046 = vunpack.c.l.b16 %v2160
        %v3047 = vunpack.c.h.b16 %v2160
        %v3048 = vunpack.c.l.b16 %v2161
        %v3049 = vunpack.c.h.b16 %v2161
        %v3050 = vunpack.c.l.b16 %v2162
        %v3051 = vunpack.c.h.b16 %v2162
        %v3052 = vunpack.c.l.b16 %v2163
        %v3053 = vunpack.c.h.b16 %v2163
        %v3054 = vunpack.c.l.b16 %v2164
        %v3055 = vunpack.c.h.b16 %v2164
        %v3056 = vunpack.c.l.b16 %v2165
        %v3057 = vunpack.c.h.b16 %v2165
        %v3058 = vunpack.c.l.b16 %v2166
        %v3059 = vunpack.c.h.b16 %v2166
        %v3060 = vunpack.c.l.b16 %v2167
        %v3061 = vunpack.c.h.b16 %v2167
        %v3062 = vunpack.c.l.b16 %v2168
        %v3063 = vunpack.c.h.b16 %v2168
        %v3064 = vunpack.c.l.b16 %v2169
        %v3065 = vunpack.c.h.b16 %v2169
        %v3066 = vunpack.c.l.b16 %v2170
        %v3067 = vunpack.c.h.b16 %v2170
        %v3068 = vunpack.c.l.b16 %v2171
        %v3069 = vunpack.c.h.b16 %v2171
        %v3070 = vunpack.c.l.b16 %v2172
        %v3071 = vunpack.c.h.b16 %v2172
        %v3072 = vunpack.c.l.b16 %v2173
        %v3073 = vunpack.c.h.b16 %v2173
        %v3074 = vunpack.c.l.b16 %v2174
        %v3075 = vunpack.c.h.b16 %v2174
        %v3076 = vunpack.c.l.b16 %v2175
        %v3077 = vunpack.c.h.b16 %v2175
        %v3078 = vunpack.c.l.b16 %v2176
        %v3079 = vunpack.c.h.b16 %v2176
        %v3080 = vunpack.c.l.b16 %v2177
        %v3081 = vunpack.c.h.b16 %v2177
        %v3082 = vunpack.c.l.b16 %v2178
        %v3083 = vunpack.c.h.b16 %v2178
        %v3084 = vunpack.c.l.b16 %v2179
        %v3085 = vunpack.c.h.b16 %v2179
        %v3086 = vunpack.c.l.b16 %v2180
        %v3087 = vunpack.c.h.b16 %v2180
        %v3088 = vunpack.c.l.b16 %v2181
        %v3089 = vunpack.c.h.b16 %v2181
        %v3090 = vunpack.c.l.b16 %v2182
        %v3091 = vunpack.c.h.b16 %v2182
        %v3092 = vunpack.c.l.b16 %v2183
        %v3093 = vunpack.c.h.b16 %v2183
        %v3094 = vunpack.c.l.b16 %v2184
        %v3095 = vunpack.c.h.b16 %v2184
        %v3096 = vunpack.c.l.b16 %v2185
        %v3097 = vunpack.c.h.b16 %v2185
        %v3098 = vunpack.c.l.b16 %v2186
        %v3099 = vunpack.c.h.b16 %v2186
        %v3100 = vunpack.c.l.b16 %v2187
        %v3101 = vunpack.c.h.b16 %v2187
        %v3102 = vunpack.c.l.b16 %v2188
        %v3103 = vunpack.c.h.b16 %v2188
        %v3104 = vunpack.c.l.b16 %v2189
        %v3105 = vunpack.c.h.b16 %v2189
        %v3106 = vunpack.c.l.b16 %v2190
        %v3107 = vunpack.c.h.b16 %v2190
        %v3108 = vunpack.c.l.b16 %v2191
        %v3109 = vunpack.c.h.b16 %v2191
        %v3110 = vunpack.c.l.b16 %v2192
        %v3111 = vunpack.c.h.b16 %v2192
        %v3112 = vunpack.c.l.b16 %v2193
        %v3113 = vunpack.c.h.b16 %v2193
        %v3114 = vunpack.c.l.b16 %v2194
        %v3115 = vunpack.c.h.b16 %v2194
        %v3116 = vunpack.c.l.b16 %v2195
        %v3117 = vunpack.c.h.b16 %v2195
        %v3118 = vunpack.c.l.b16 %v2196
        %v3119 = vunpack.c.h.b16 %v2196
        %v3120 = vunpack.c.l.b16 %v2197
        %v3121 = vunpack.c.h.b16 %v2197
        %v3122 = vunpack.c.l.b16 %v2198
        %v3123 = vunpack.c.h.b16 %v2198
        %v3124 = vunpack.c.l.b16 %v2199
        %v3125 = vunpack.c.h.b16 %v2199
        %v3126 = vunpack.c.l.b16 %v2200
        %v3127 = vunpack.c.h.b16 %v2200
        %v3128 = vunpack.c.l.b16 %v2201
        %v3129 = vunpack.c.h.b16 %v2201
        %v3130 = vunpack.c.l.b16 %v2202
        %v3131 = vunpack.c.h.b16 %v2202
        %v3132 = vunpack.c.l.b16 %v2203
        %v3133 = vunpack.c.h.b16 %v2203
        %v3134 = vunpack.c.l.b16 %v2204
        %v3135 = vunpack.c.h.b16 %v2204
        %v3136 = vunpack.c.l.b16 %v2205
        %v3137 = vunpack.c.h.b16 %v2205
        %v3138 = vunpack.c.l.b16 %v2206
        %v3139 = vunpack.c.h.b16 %v2206
        %v3140 = vunpack.c.l.b16 %v2207
        %v3141 = vunpack.c.h.b16 %v2207
        %v3142 = vunpack.c.l.b16 %v2208
        %v3143 = vunpack.c.h.b16 %v2208
        %v3144 = vunpack.c.l.b16 %v2209
        %v3145 = vunpack.c.h.b16 %v2209
        %v3146 = vunpack.c.l.b16 %v2210
        %v3147 = vunpack.c.h.b16 %v2210
        %v3148 = vunpack.c.l.b16 %v2211
        %v3149 = vunpack.c.h.b16 %v2211
        %v3150 = vunpack.c.l.b16 %v2212
        %v3151 = vunpack.c.h.b16 %v2212
        %v3152 = vunpack.c.l.b16 %v2213
        %v3153 = vunpack.c.h.b16 %v2213
        %v3154 = vunpack.c.l.b16 %v2214
        %v3155 = vunpack.c.h.b16 %v2214
        %v3156 = vunpack.c.l.b16 %v2215
        %v3157 = vunpack.c.h.b16 %v2215
        %v3158 = vunpack.c.l.b16 %v2216
        %v3159 = vunpack.c.h.b16 %v2216
        %v3160 = vunpack.c.l.b16 %v2217
        %v3161 = vunpack.c.h.b16 %v2217
        %v3162 = vunpack.c.l.b16 %v2218
        %v3163 = vunpack.c.h.b16 %v2218
        %v3164 = vunpack.c.l.b16 %v2219
        %v3165 = vunpack.c.h.b16 %v2219
        %v3166 = vunpack.c.l.b16 %v2220
        %v3167 = vunpack.c.h.b16 %v2220
        %v3168 = vunpack.c.l.b16 %v2221
        %v3169 = vunpack.c.h.b16 %v2221
        %v3170 = vunpack.c.l.b16 %v2222
        %v3171 = vunpack.c.h.b16 %v2222
        %v3172 = vunpack.c.l.b16 %v2223
        %v3173 = vunpack.c.h.b16 %v2223
        %v3174 = vunpack.c.l.b16 %v2224
        %v3175 = vunpack.c.h.b16 %v2224
        %v3176 = vunpack.c.l.b16 %v2225
        %v3177 = vunpack.c.h.b16 %v2225
        %v3178 = vunpack.c.l.b16 %v2226
        %v3179 = vunpack.c.h.b16 %v2226
        %v3180 = vunpack.c.l.b16 %v2227
        %v3181 = vunpack.c.h.b16 %v2227
        %v3182 = vunpack.c.l.b16 %v2228
        %v3183 = vunpack.c.h.b16 %v2228
        %v3184 = vunpack.c.l.b16 %v2229
        %v3185 = vunpack.c.h.b16 %v2229
        %v3186 = vunpack.c.l.b16 %v2230
        %v3187 = vunpack.c.h.b16 %v2230
        %v3188 = vunpack.c.l.b16 %v2231
        %v3189 = vunpack.c.h.b16 %v2231
        %v3190 = vunpack.c.l.b16 %v2232
        %v3191 = vunpack.c.h.b16 %v2232
        %v3192 = vunpack.c.l.b16 %v2233
        %v3193 = vunpack.c.h.b16 %v2233
        %v3194 = vunpack.c.l.b16 %v2234
        %v3195 = vunpack.c.h.b16 %v2234
        %v3196 = vunpack.c.l.b16 %v2235
        %v3197 = vunpack.c.h.b16 %v2235
        %v3198 = vunpack.c.l.b16 %v2236
        %v3199 = vunpack.c.h.b16 %v2236
        %v3200 = vunpack.c.l.b16 %v2237
        %v3201 = vunpack.c.h.b16 %v2237
        %v3202 = vunpack.c.l.b16 %v2238
        %v3203 = vunpack.c.h.b16 %v2238
        %v3204 = vunpack.c.l.b16 %v2239
        %v3205 = vunpack.c.h.b16 %v2239
        %v3206 = vunpack.c.l.b16 %v2240
        %v3207 = vunpack.c.h.b16 %v2240
        %v3208 = vunpack.c.l.b16 %v2241
        %v3209 = vunpack.c.h.b16 %v2241
        %v3210 = vunpack.c.l.b16 %v2242
        %v3211 = vunpack.c.h.b16 %v2242
        %v3212 = vunpack.c.l.b16 %v2243
        %v3213 = vunpack.c.h.b16 %v2243
        %v3214 = vunpack.c.l.b16 %v2244
        %v3215 = vunpack.c.h.b16 %v2244
        %v3216 = vunpack.c.l.b16 %v2245
        %v3217 = vunpack.c.h.b16 %v2245
        %v3218 = vunpack.c.l.b16 %v2246
        %v3219 = vunpack.c.h.b16 %v2246
        %v3220 = vunpack.c.l.b16 %v2247
        %v3221 = vunpack.c.h.b16 %v2247
        %v3222 = vunpack.c.l.b16 %v2248
        %v3223 = vunpack.c.h.b16 %v2248
        %v3224 = vunpack.c.l.b16 %v2249
        %v3225 = vunpack.c.h.b16 %v2249
        %v3226 = vunpack.c.l.b16 %v2250
        %v3227 = vunpack.c.h.b16 %v2250
        %v3228 = vunpack.c.l.b16 %v2251
        %v3229 = vunpack.c.h.b16 %v2251
        %v3230 = vunpack.c.l.b16 %v2252
        %v3231 = vunpack.c.h.b16 %v2252
        %v3232 = vunpack.c.l.b16 %v2253
        %v3233 = vunpack.c.h.b16 %v2253
        %v3234 = vunpack.c.l.b16 %v2254
        %v3235 = vunpack.c.h.b16 %v2254
        %v3236 = vunpack.c.l.b16 %v2255
        %v3237 = vunpack.c.h.b16 %v2255
        %v3238 = vunpack.c.l.b16 %v2256
        %v3239 = vunpack.c.h.b16 %v2256
        %v3240 = vunpack.c.l.b16 %v2257
        %v3241 = vunpack.c.h.b16 %v2257
        %v3242 = vunpack.c.l.b16 %v2258
        %v3243 = vunpack.c.h.b16 %v2258
        %v3244 = vunpack.c.l.b16 %v2259
        %v3245 = vunpack.c.h.b16 %v2259
        %v3246 = vunpack.c.l.b16 %v2260
        %v3247 = vunpack.c.h.b16 %v2260
        %v3248 = vunpack.c.l.b16 %v2261
        %v3249 = vunpack.c.h.b16 %v2261
        %v3250 = vunpack.c.l.b16 %v2262
        %v3251 = vunpack.c.h.b16 %v2262
        %v3252 = vunpack.c.l.b16 %v2263
        %v3253 = vunpack.c.h.b16 %v2263
        %v3254 = vunpack.c.l.b16 %v2264
        %v3255 = vunpack.c.h.b16 %v2264
        %v3256 = vunpack.c.l.b16 %v2265
        %v3257 = vunpack.c.h.b16 %v2265
        %v3258 = vunpack.c.l.b16 %v2266
        %v3259 = vunpack.c.h.b16 %v2266
        %v3260 = vunpack.c.l.b16 %v2267
        %v3261 = vunpack.c.h.b16 %v2267
        %v3262 = vunpack.c.l.b16 %v2268
        %v3263 = vunpack.c.h.b16 %v2268
        %v3264 = vunpack.c.l.b16 %v2269
        %v3265 = vunpack.c.h.b16 %v2269
        %v3266 = vunpack.c.l.b16 %v2270
        %v3267 = vunpack.c.h.b16 %v2270
        %v3268 = vunpack.c.l.b16 %v2271
        %v3269 = vunpack.c.h.b16 %v2271
        %v3270 = vunpack.c.l.b16 %v2272
        %v3271 = vunpack.c.h.b16 %v2272
        %v3272 = vunpack.c.l.b16 %v2273
        %v3273 = vunpack.c.h.b16 %v2273
        %v3274 = vunpack.c.l.b16 %v2274
        %v3275 = vunpack.c.h.b16 %v2274
        %v3276 = vunpack.c.l.b16 %v2275
        %v3277 = vunpack.c.h.b16 %v2275
        %v3278 = vunpack.c.l.b16 %v2276
        %v3279 = vunpack.c.h.b16 %v2276
        %v3280 = vunpack.c.l.b16 %v2277
        %v3281 = vunpack.c.h.b16 %v2277
        %v3282 = vunpack.c.l.b16 %v2278
        %v3283 = vunpack.c.h.b16 %v2278
        %v3284 = vunpack.c.l.b16 %v2279
        %v3285 = vunpack.c.h.b16 %v2279
        %v3286 = vunpack.c.l.b16 %v2280
        %v3287 = vunpack.c.h.b16 %v2280
        %v3288 = vunpack.c.l.b16 %v2281
        %v3289 = vunpack.c.h.b16 %v2281
        %v3290 = vunpack.c.l.b16 %v2282
        %v3291 = vunpack.c.h.b16 %v2282
        %v3292 = vunpack.c.l.b16 %v2283
        %v3293 = vunpack.c.h.b16 %v2283
        %v3294 = vunpack.c.l.b16 %v2284
        %v3295 = vunpack.c.h.b16 %v2284
        %v3296 = vunpack.c.l.b16 %v2285
        %v3297 = vunpack.c.h.b16 %v2285
        %v3298 = vunpack.c.l.b16 %v2286
        %v3299 = vunpack.c.h.b16 %v2286
        %v3300 = vunpack.c.l.b16 %v2287
        %v3301 = vunpack.c.h.b16 %v2287
        %v3302 = vunpack.c.l.b16 %v2288
        %v3303 = vunpack.c.h.b16 %v2288
        %v3304 = vunpack.c.l.b16 %v2289
        %v3305 = vunpack.c.h.b16 %v2289
        %v3306 = vunpack.c.l.b16 %v2290
        %v3307 = vunpack.c.h.b16 %v2290
        %v3308 = vunpack.c.l.b16 %v2291
        %v3309 = vunpack.c.h.b16 %v2291
        %v3310 = vunpack.c.l.b16 %v2292
        %v3311 = vunpack.c.h.b16 %v2292
        %v3312 = vunpack.c.l.b16 %v2293
        %v3313 = vunpack.c.h.b16 %v2293
        %v3314 = vunpack.c.l.b16 %v2294
        %v3315 = vunpack.c.h.b16 %v2294
        %v3316 = vunpack.c.l.b16 %v2295
        %v3317 = vunpack.c.h.b16 %v2295
        %v3318 = vunpack.c.l.b16 %v2296
        %v3319 = vunpack.c.h.b16 %v2296
        %v3320 = vunpack.c.l.b16 %v2297
        %v3321 = vunpack.c.h.b16 %v2297
        %v3322 = vunpack.c.l.b16 %v2298
        %v3323 = vunpack.c.h.b16 %v2298
        %v3324 = vunpack.c.l.b16 %v2299
        %v3325 = vunpack.c.h.b16 %v2299
        %v3326 = vunpack.c.l.b16 %v2300
        %v3327 = vunpack.c.h.b16 %v2300
        %v3328 = vunpack.c.l.b16 %v2301
        %v3329 = vunpack.c.h.b16 %v2301
        %v3330 = vunpack.c.l.b16 %v2302
        %v3331 = vunpack.c.h.b16 %v2302
        %v3332 = vunpack.c.l.b16 %v2303
        %v3333 = vunpack.c.h.b16 %v2303
        %v3334 = vunpack.c.l.b16 %v2304
        %v3335 = vunpack.c.h.b16 %v2304
        %v3336 = vunpack.c.l.b16 %v2305
        %v3337 = vunpack.c.h.b16 %v2305
        %v3338 = vunpack.c.l.b16 %v2306
        %v3339 = vunpack.c.h.b16 %v2306
        %v3340 = vunpack.c.l.b16 %v2307
        %v3341 = vunpack.c.h.b16 %v2307
        %v3342 = vunpack.c.l.b16 %v2308
        %v3343 = vunpack.c.h.b16 %v2308
        %v3344 = vunpack.c.l.b16 %v2309
        %v3345 = vunpack.c.h.b16 %v2309
        %v3346 = vunpack.c.l.b16 %v2310
        %v3347 = vunpack.c.h.b16 %v2310
        %v3348 = vunpack.c.l.b16 %v2311
        %v3349 = vunpack.c.h.b16 %v2311
        %v3350 = vunpack.c.l.b16 %v2312
        %v3351 = vunpack.c.h.b16 %v2312
        %v3352 = vunpack.c.l.b16 %v2313
        %v3353 = vunpack.c.h.b16 %v2313
        %v3354 = vunpack.c.l.b16 %v2314
        %v3355 = vunpack.c.h.b16 %v2314
        %v3356 = vunpack.c.l.b16 %v2315
        %v3357 = vunpack.c.h.b16 %v2315
        %v3358 = vunpack.c.l.b16 %v2316
        %v3359 = vunpack.c.h.b16 %v2316
        %v3360 = vunpack.c.l.b16 %v2317
        %v3361 = vunpack.c.h.b16 %v2317
        %v3362 = vunpack.c.l.b16 %v2318
        %v3363 = vunpack.c.h.b16 %v2318
        %v3364 = vunpack.c.l.b16 %v2319
        %v3365 = vunpack.c.h.b16 %v2319
        %v3366 = vunpack.c.l.b16 %v2320
        %v3367 = vunpack.c.h.b16 %v2320
        %v3368 = vunpack.c.l.b16 %v2321
        %v3369 = vunpack.c.h.b16 %v2321
        %v3370 = vunpack.c.l.b16 %v2322
        %v3371 = vunpack.c.h.b16 %v2322
        %v3372 = vunpack.c.l.b16 %v2323
        %v3373 = vunpack.c.h.b16 %v2323
        %v3374 = vunpack.c.l.b16 %v2324
        %v3375 = vunpack.c.h.b16 %v2324
        %v3376 = vunpack.c.l.b16 %v2325
        %v3377 = vunpack.c.h.b16 %v2325
        %v3378 = vunpack.c.l.b16 %v2326
        %v3379 = vunpack.c.h.b16 %v2326
        %v3380 = vunpack.c.l.b16 %v2327
        %v3381 = vunpack.c.h.b16 %v2327
        %v3382 = vunpack.c.l.b16 %v2328
        %v3383 = vunpack.c.h.b16 %v2328
        %v3384 = vunpack.c.l.b16 %v2329
        %v3385 = vunpack.c.h.b16 %v2329
        %v3386 = vunpack.c.l.b16 %v2330
        %v3387 = vunpack.c.h.b16 %v2330
        %v3388 = vunpack.c.l.b16 %v2331
        %v3389 = vunpack.c.h.b16 %v2331
        %v3390 = vunpack.c.l.b16 %v2332
        %v3391 = vunpack.c.h.b16 %v2332
        %v3392 = vunpack.c.l.b16 %v2333
        %v3393 = vunpack.c.h.b16 %v2333
        %v3394 = vunpack.c.l.b16 %v2334
        %v3395 = vunpack.c.h.b16 %v2334
        %v3396 = vunpack.c.l.b16 %v2335
        %v3397 = vunpack.c.h.b16 %v2335
        %v3398 = vunpack.c.l.b16 %v2336
        %v3399 = vunpack.c.h.b16 %v2336
        %v3400 = vunpack.c.l.b16 %v2337
        %v3401 = vunpack.c.h.b16 %v2337
        %v3402 = vunpack.c.l.b16 %v2338
        %v3403 = vunpack.c.h.b16 %v2338
        %v3404 = vunpack.c.l.b16 %v2339
        %v3405 = vunpack.c.h.b16 %v2339
        %v3406 = vunpack.c.l.b16 %v2340
        %v3407 = vunpack.c.h.b16 %v2340
        %v3408 = vunpack.c.l.b16 %v2341
        %v3409 = vunpack.c.h.b16 %v2341
        %v3410 = vunpack.c.l.b16 %v2342
        %v3411 = vunpack.c.h.b16 %v2342
        %v3412 = vunpack.c.l.b16 %v2343
        %v3413 = vunpack.c.h.b16 %v2343
        %v3414 = vunpack.c.l.b16 %v2344
        %v3415 = vunpack.c.h.b16 %v2344
        %v3416 = vunpack.c.l.b16 %v2345
        %v3417 = vunpack.c.h.b16 %v2345
        %v3418 = vunpack.c.l.b16 %v2346
        %v3419 = vunpack.c.h.b16 %v2346
        %v3420 = vunpack.c.l.b16 %v2347
        %v3421 = vunpack.c.h.b16 %v2347
        %v3422 = vunpack.c.l.b16 %v2348
        %v3423 = vunpack.c.h.b16 %v2348
        %v3424 = vunpack.c.l.b16 %v2349
        %v3425 = vunpack.c.h.b16 %v2349
        %v3426 = vunpack.c.l.b16 %v2350
        %v3427 = vunpack.c.h.b16 %v2350
        %v3428 = vunpack.c.l.b16 %v2351
        %v3429 = vunpack.c.h.b16 %v2351
        %v3430 = vunpack.c.l.b16 %v2352
        %v3431 = vunpack.c.h.b16 %v2352
        %v3432 = vunpack.c.l.b16 %v2353
        %v3433 = vunpack.c.h.b16 %v2353
        %v3434 = vunpack.c.l.b16 %v2354
        %v3435 = vunpack.c.h.b16 %v2354
        %v3436 = vunpack.c.l.b16 %v2355
        %v3437 = vunpack.c.h.b16 %v2355
        %v3438 = vunpack.c.l.b16 %v2356
        %v3439 = vunpack.c.h.b16 %v2356
        %v3440 = vunpack.c.l.b16 %v2357
        %v3441 = vunpack.c.h.b16 %v2357
        %v3442 = vunpack.c.l.b16 %v2358
        %v3443 = vunpack.c.h.b16 %v2358
        %v3444 = vunpack.c.l.b16 %v2359
        %v3445 = vunpack.c.h.b16 %v2359
        %v3446 = vunpack.c.l.b16 %v2360
        %v3447 = vunpack.c.h.b16 %v2360
        %v3448 = vunpack.c.l.b16 %v2361
        %v3449 = vunpack.c.h.b16 %v2361
        %v3450 = vunpack.c.l.b16 %v2362
        %v3451 = vunpack.c.h.b16 %v2362
        %v3452 = vunpack.c.l.b16 %v2363
        %v3453 = vunpack.c.h.b16 %v2363
        %v3454 = vunpack.c.l.b16 %v2364
        %v3455 = vunpack.c.h.b16 %v2364
        %v3456 = vunpack.c.l.b16 %v2365
        %v3457 = vunpack.c.h.b16 %v2365
        %v3458 = vunpack.c.l.b16 %v2366
        %v3459 = vunpack.c.h.b16 %v2366
        %v3460 = vunpack.c.l.b16 %v2367
        %v3461 = vunpack.c.h.b16 %v2367
        %v3462 = vunpack.c.l.b16 %v2368
        %v3463 = vunpack.c.h.b16 %v2368
        %v3464 = vunpack.c.l.b16 %v2369
        %v3465 = vunpack.c.h.b16 %v2369
        %v3466 = vunpack.c.l.b16 %v2370
        %v3467 = vunpack.c.h.b16 %v2370
        %v3468 = vunpack.c.l.b16 %v2371
        %v3469 = vunpack.c.h.b16 %v2371
        %v3470 = vunpack.c.l.b16 %v2372
        %v3471 = vunpack.c.h.b16 %v2372
        %v3472 = vunpack.c.l.b16 %v2373
        %v3473 = vunpack.c.h.b16 %v2373
        %v3474 = vunpack.c.l.b16 %v2374
        %v3475 = vunpack.c.h.b16 %v2374
        %v3476 = vunpack.c.l.b16 %v2375
        %v3477 = vunpack.c.h.b16 %v2375
        %v3478 = vunpack.c.l.b16 %v2376
        %v3479 = vunpack.c.h.b16 %v2376
        %v3480 = vunpack.c.l.b16 %v2377
        %v3481 = vunpack.c.h.b16 %v2377
        %v3482 = vunpack.c.l.b16 %v2378
        %v3483 = vunpack.c.h.b16 %v2378
        %v3484 = vunpack.c.l.b16 %v2379
        %v3485 = vunpack.c.h.b16 %v2379
        %v3486 = vunpack.c.l.b16 %v2380
        %v3487 = vunpack.c.h.b16 %v2380
        %v3488 = vunpack.c.l.b16 %v2381
        %v3489 = vunpack.c.h.b16 %v2381
        %v3490 = vunpack.c.l.b16 %v2382
        %v3491 = vunpack.c.h.b16 %v2382
        %v3492 = vunpack.c.l.b16 %v2383
        %v3493 = vunpack.c.h.b16 %v2383
        %v3494 = vunpack.c.l.b16 %v2384
        %v3495 = vunpack.c.h.b16 %v2384
        %v3496 = vunpack.c.l.b16 %v2385
        %v3497 = vunpack.c.h.b16 %v2385
        %v3498 = vunpack.c.l.b16 %v2386
        %v3499 = vunpack.c.h.b16 %v2386
        %v3500 = vunpack.c.l.b16 %v2387
        %v3501 = vunpack.c.h.b16 %v2387
        %v3502 = vunpack.c.l.b16 %v2388
        %v3503 = vunpack.c.h.b16 %v2388
        %v3504 = vunpack.c.l.b16 %v2389
        %v3505 = vunpack.c.h.b16 %v2389
        %v3506 = vunpack.c.l.b16 %v2390
        %v3507 = vunpack.c.h.b16 %v2390
        %v3508 = vunpack.c.l.b16 %v2391
        %v3509 = vunpack.c.h.b16 %v2391
        %v3510 = vunpack.c.l.b16 %v2392
        %v3511 = vunpack.c.h.b16 %v2392
        %v3512 = vunpack.c.l.b16 %v2393
        %v3513 = vunpack.c.h.b16 %v2393
        %v3514 = vunpack.c.l.b16 %v2394
        %v3515 = vunpack.c.h.b16 %v2394
        %v3516 = vunpack.c.l.b16 %v2395
        %v3517 = vunpack.c.h.b16 %v2395
        %v3518 = vunpack.c.l.b16 %v2396
        %v3519 = vunpack.c.h.b16 %v2396
        %v3520 = vunpack.c.l.b16 %v2397
        %v3521 = vunpack.c.h.b16 %v2397
        %v3522 = vunpack.c.l.b16 %v2398
        %v3523 = vunpack.c.h.b16 %v2398
        %v3524 = vunpack.c.l.b16 %v2399
        %v3525 = vunpack.c.h.b16 %v2399
        %v3526 = vunpack.c.l.b16 %v2400
        %v3527 = vunpack.c.h.b16 %v2400
        %v3528 = vunpack.c.l.b16 %v2401
        %v3529 = vunpack.c.h.b16 %v2401
        %v3530 = vunpack.c.l.b16 %v2402
        %v3531 = vunpack.c.h.b16 %v2402
        %v3532 = vunpack.c.l.b16 %v2403
        %v3533 = vunpack.c.h.b16 %v2403
        %v3534 = vunpack.c.l.b16 %v2404
        %v3535 = vunpack.c.h.b16 %v2404
        %v3536 = vunpack.c.l.b16 %v2405
        %v3537 = vunpack.c.h.b16 %v2405
        %v3538 = vunpack.c.l.b16 %v2406
        %v3539 = vunpack.c.h.b16 %v2406
        %v3540 = vunpack.c.l.b16 %v2407
        %v3541 = vunpack.c.h.b16 %v2407
        %v3542 = vunpack.c.l.b16 %v2408
        %v3543 = vunpack.c.h.b16 %v2408
        %v3544 = vunpack.c.l.b16 %v2409
        %v3545 = vunpack.c.h.b16 %v2409
        %v3546 = vunpack.c.l.b16 %v2410
        %v3547 = vunpack.c.h.b16 %v2410
        %v3548 = vunpack.c.l.b16 %v2411
        %v3549 = vunpack.c.h.b16 %v2411
        %v3550 = vunpack.c.l.b16 %v2412
        %v3551 = vunpack.c.h.b16 %v2412
        %v3552 = vunpack.c.l.b16 %v2413
        %v3553 = vunpack.c.h.b16 %v2413
        %v3554 = vunpack.c.l.b16 %v2414
        %v3555 = vunpack.c.h.b16 %v2414
        %v3556 = vunpack.c.l.b16 %v2415
        %v3557 = vunpack.c.h.b16 %v2415
        %v3558 = vunpack.c.l.b16 %v2416
        %v3559 = vunpack.c.h.b16 %v2416
        %v3560 = vunpack.c.l.b16 %v2417
        %v3561 = vunpack.c.h.b16 %v2417
        %v3562 = vunpack.c.l.b16 %v2418
        %v3563 = vunpack.c.h.b16 %v2418
        %v3564 = vunpack.c.l.b16 %v2419
        %v3565 = vunpack.c.h.b16 %v2419
        %v3566 = vunpack.c.l.b16 %v2420
        %v3567 = vunpack.c.h.b16 %v2420
        %v3568 = vunpack.c.l.b16 %v2421
        %v3569 = vunpack.c.h.b16 %v2421
        %v3570 = vunpack.c.l.b16 %v2422
        %v3571 = vunpack.c.h.b16 %v2422
        %v3572 = vunpack.c.l.b16 %v2423
        %v3573 = vunpack.c.h.b16 %v2423
        %v3574 = vunpack.c.l.b16 %v2424
        %v3575 = vunpack.c.h.b16 %v2424
        %v3576 = vunpack.c.l.b16 %v2425
        %v3577 = vunpack.c.h.b16 %v2425
        %v3578 = vunpack.c.l.b16 %v2426
        %v3579 = vunpack.c.h.b16 %v2426
        %v3580 = vunpack.c.l.b16 %v2427
        %v3581 = vunpack.c.h.b16 %v2427
        %v3582 = vunpack.c.l.b16 %v2428
        %v3583 = vunpack.c.h.b16 %v2428
        %v3584 = vunpack.c.l.b16 %v2429
        %v3585 = vunpack.c.h.b16 %v2429
        %v3586 = vunpack.c.l.b16 %v2430
        %v3587 = vunpack.c.h.b16 %v2430
        %v3588 = vunpack.c.l.b16 %v2431
        %v3589 = vunpack.c.h.b16 %v2431
        %v3590 = vunpack.c.l.b16 %v2432
        %v3591 = vunpack.c.h.b16 %v2432
        %v3592 = vunpack.c.l.b16 %v2433
        %v3593 = vunpack.c.h.b16 %v2433
        %v3594 = vunpack.c.l.b16 %v2434
        %v3595 = vunpack.c.h.b16 %v2434
        %v3596 = vunpack.c.l.b16 %v2435
        %v3597 = vunpack.c.h.b16 %v2435
        %v3598 = vunpack.c.l.b16 %v2436
        %v3599 = vunpack.c.h.b16 %v2436
        %v3600 = vunpack.c.l.b16 %v2437
        %v3601 = vunpack.c.h.b16 %v2437
        %v3602 = vunpack.c.l.b16 %v2438
        %v3603 = vunpack.c.h.b16 %v2438
        %v3604 = vunpack.c.l.b16 %v2439
        %v3605 = vunpack.c.h.b16 %v2439
        %v3606 = vunpack.c.l.b16 %v2440
        %v3607 = vunpack.c.h.b16 %v2440
        %v3608 = vunpack.c.l.b16 %v2441
        %v3609 = vunpack.c.h.b16 %v2441
        %v3610 = vunpack.c.l.b16 %v2442
        %v3611 = vunpack.c.h.b16 %v2442
        %v3612 = vunpack.c.l.b16 %v2443
        %v3613 = vunpack.c.h.b16 %v2443
        %v3614 = vunpack.c.l.b16 %v2444
        %v3615 = vunpack.c.h.b16 %v2444
        %v3616 = vunpack.c.l.b16 %v2445
        %v3617 = vunpack.c.h.b16 %v2445
        %v3618 = vunpack.c.l.b16 %v2446
        %v3619 = vunpack.c.h.b16 %v2446
        %v3620 = vunpack.c.l.b16 %v2447
        %v3621 = vunpack.c.h.b16 %v2447
        %v3622 = vunpack.c.l.b16 %v2448
        %v3623 = vunpack.c.h.b16 %v2448
        %v3624 = vunpack.c.l.b16 %v2449
        %v3625 = vunpack.c.h.b16 %v2449
        %v3626 = vunpack.c.l.b16 %v2450
        %v3627 = vunpack.c.h.b16 %v2450
        %v3628 = vunpack.c.l.b16 %v2451
        %v3629 = vunpack.c.h.b16 %v2451
        %v3630 = vunpack.c.l.b16 %v2452
        %v3631 = vunpack.c.h.b16 %v2452
        %v3632 = vunpack.c.l.b16 %v2453
        %v3633 = vunpack.c.h.b16 %v2453
        %v3634 = vunpack.c.l.b16 %v2454
        %v3635 = vunpack.c.h.b16 %v2454
        %v3636 = vunpack.c.l.b16 %v2455
        %v3637 = vunpack.c.h.b16 %v2455
        %v3638 = vunpack.c.l.b16 %v2456
        %v3639 = vunpack.c.h.b16 %v2456
        %v3640 = vunpack.c.l.b16 %v2457
        %v3641 = vunpack.c.h.b16 %v2457
        %v3642 = vunpack.c.l.b16 %v2458
        %v3643 = vunpack.c.h.b16 %v2458
        %v3644 = vunpack.c.l.b16 %v2459
        %v3645 = vunpack.c.h.b16 %v2459
        %v3646 = vunpack.c.l.b16 %v2460
        %v3647 = vunpack.c.h.b16 %v2460
        %v3648 = vunpack.c.l.b16 %v2461
        %v3649 = vunpack.c.h.b16 %v2461
        %v3650 = vunpack.c.l.b16 %v2462
        %v3651 = vunpack.c.h.b16 %v2462
        %v3652 = vunpack.c.l.b16 %v2463
        %v3653 = vunpack.c.h.b16 %v2463
        %v3654 = vunpack.c.l.b16 %v2464
        %v3655 = vunpack.c.h.b16 %v2464
        %v3656 = vunpack.c.l.b16 %v2465
        %v3657 = vunpack.c.h.b16 %v2465
        %v3658 = vunpack.c.l.b16 %v2466
        %v3659 = vunpack.c.h.b16 %v2466
        %v3660 = vunpack.c.l.b16 %v2467
        %v3661 = vunpack.c.h.b16 %v2467
        %v3662 = vunpack.c.l.b16 %v2468
        %v3663 = vunpack.c.h.b16 %v2468
        %v3664 = vunpack.c.l.b16 %v2469
        %v3665 = vunpack.c.h.b16 %v2469
        %v3666 = vunpack.c.l.b16 %v2470
        %v3667 = vunpack.c.h.b16 %v2470
        %v3668 = vunpack.c.l.b16 %v2471
        %v3669 = vunpack.c.h.b16 %v2471
        %v3670 = vunpack.c.l.b16 %v2472
        %v3671 = vunpack.c.h.b16 %v2472
        %v3672 = vunpack.c.l.b16 %v2473
        %v3673 = vunpack.c.h.b16 %v2473
        %v3674 = vunpack.c.l.b16 %v2474
        %v3675 = vunpack.c.h.b16 %v2474
        %v3676 = vunpack.c.l.b16 %v2475
        %v3677 = vunpack.c.h.b16 %v2475
        %v3678 = vunpack.c.l.b16 %v2476
        %v3679 = vunpack.c.h.b16 %v2476
        %v3680 = vunpack.c.l.b16 %v2477
        %v3681 = vunpack.c.h.b16 %v2477
        %v3682 = vunpack.c.l.b16 %v2478
        %v3683 = vunpack.c.h.b16 %v2478
        %v3684 = vunpack.c.l.b16 %v2479
        %v3685 = vunpack.c.h.b16 %v2479
        %v3686 = vunpack.c.l.b16 %v2480
        %v3687 = vunpack.c.h.b16 %v2480
        %v3688 = vunpack.c.l.b16 %v2481
        %v3689 = vunpack.c.h.b16 %v2481
        %v3690 = vunpack.c.l.b16 %v2482
        %v3691 = vunpack.c.h.b16 %v2482
        %v3692 = vunpack.c.l.b16 %v2483
        %v3693 = vunpack.c.h.b16 %v2483
        %v3694 = vunpack.c.l.b16 %v2484
        %v3695 = vunpack.c.h.b16 %v2484
        %v3696 = vunpack.c.l.b16 %v2485
        %v3697 = vunpack.c.h.b16 %v2485
        %v3698 = vunpack.c.l.b16 %v2486
        %v3699 = vunpack.c.h.b16 %v2486
        %v3700 = vunpack.c.l.b16 %v2487
        %v3701 = vunpack.c.h.b16 %v2487
        %v3702 = vunpack.c.l.b16 %v2488
        %v3703 = vunpack.c.h.b16 %v2488
        %v3704 = vunpack.c.l.b16 %v2489
        %v3705 = vunpack.c.h.b16 %v2489
        %v3706 = vpack.c.b16 %v2950, %v2938
        %v3707 = vpack.c.b16 %v2951, %v2939
        %v3708 = vpack.c.b16 %v2952, %v2940
        %v3709 = vpack.c.b16 %v2953, %v2941
        %v3710 = vpack.c.b16 %v2954, %v2942
        %v3711 = vpack.c.b16 %v2955, %v2943
        %v3712 = vpack.c.b16 %v2956, %v2944
        %v3713 = vpack.c.b16 %v2957, %v2945
        %v3714 = vpack.c.b16 %v2958, %v2946
        %v3715 = vpack.c.b16 %v2959, %v2947
        %v3716 = vpack.c.b16 %v2960, %v2948
        %v3717 = vpack.c.b16 %v2961, %v2949
        %v3718 = vpack.c.b16 %v2974, %v2962
        %v3719 = vpack.c.b16 %v2975, %v2963
        %v3720 = vpack.c.b16 %v2976, %v2964
        %v3721 = vpack.c.b16 %v2977, %v2965
        %v3722 = vpack.c.b16 %v2978, %v2966
        %v3723 = vpack.c.b16 %v2979, %v2967
        %v3724 = vpack.c.b16 %v2980, %v2968
        %v3725 = vpack.c.b16 %v2981, %v2969
        %v3726 = vpack.c.b16 %v2982, %v2970
        %v3727 = vpack.c.b16 %v2983, %v2971
        %v3728 = vpack.c.b16 %v2984, %v2972
        %v3729 = vpack.c.b16 %v2985, %v2973
        %v3730 = vpack.c.b16 %v2998, %v2986
        %v3731 = vpack.c.b16 %v2999, %v2987
        %v3732 = vpack.c.b16 %v3000, %v2988
        %v3733 = vpack.c.b16 %v3001, %v2989
        %v3734 = vpack.c.b16 %v3002, %v2990
        %v3735 = vpack.c.b16 %v3003, %v2991
        %v3736 = vpack.c.b16 %v3004, %v2992
        %v3737 = vpack.c.b16 %v3005, %v2993
        %v3738 = vpack.c.b16 %v3006, %v2994
        %v3739 = vpack.c.b16 %v3007, %v2995
        %v3740 = vpack.c.b16 %v3008, %v2996
        %v3741 = vpack.c.b16 %v3009, %v2997
        %v3742 = vpack.c.b16 %v3022, %v3010
        %v3743 = vpack.c.b16 %v3023, %v3011
        %v3744 = vpack.c.b16 %v3024, %v3012
        %v3745 = vpack.c.b16 %v3025, %v3013
        %v3746 = vpack.c.b16 %v3026, %v3014
        %v3747 = vpack.c.b16 %v3027, %v3015
        %v3748 = vpack.c.b16 %v3028, %v3016
        %v3749 = vpack.c.b16 %v3029, %v3017
        %v3750 = vpack.c.b16 %v3030, %v3018
        %v3751 = vpack.c.b16 %v3031, %v3019
        %v3752 = vpack.c.b16 %v3032, %v3020
        %v3753 = vpack.c.b16 %v3033, %v3021
        %v3754 = vpack.c.b16 %v3046, %v3034
        %v3755 = vpack.c.b16 %v3047, %v3035
        %v3756 = vpack.c.b16 %v3048, %v3036
        %v3757 = vpack.c.b16 %v3049, %v3037
        %v3758 = vpack.c.b16 %v3050, %v3038
        %v3759 = vpack.c.b16 %v3051, %v3039
        %v3760 = vpack.c.b16 %v3052, %v3040
        %v3761 = vpack.c.b16 %v3053, %v3041
        %v3762 = vpack.c.b16 %v3054, %v3042
        %v3763 = vpack.c.b16 %v3055, %v3043
        %v3764 = vpack.c.b16 %v3056, %v3044
        %v3765 = vpack.c.b16 %v3057, %v3045
        %v3766 = vpack.c.b16 %v3070, %v3058
        %v3767 = vpack.c.b16 %v3071, %v3059
        %v3768 = vpack.c.b16 %v3072, %v3060
        %v3769 = vpack.c.b16 %v3073, %v3061
        %v3770 = vpack.c.b16 %v3074, %v3062
        %v3771 = vpack.c.b16 %v3075, %v3063
        %v3772 = vpack.c.b16 %v3076, %v3064
        %v3773 = vpack.c.b16 %v3077, %v3065
        %v3774 = vpack.c.b16 %v3078, %v3066
        %v3775 = vpack.c.b16 %v3079, %v3067
        %v3776 = vpack.c.b16 %v3080, %v3068
        %v3777 = vpack.c.b16 %v3081, %v3069
        %v3778 = vpack.c.b16 %v3094, %v3082
        %v3779 = vpack.c.b16 %v3095, %v3083
        %v3780 = vpack.c.b16 %v3096, %v3084
        %v3781 = vpack.c.b16 %v3097, %v3085
        %v3782 = vpack.c.b16 %v3098, %v3086
        %v3783 = vpack.c.b16 %v3099, %v3087
        %v3784 = vpack.c.b16 %v3100, %v3088
        %v3785 = vpack.c.b16 %v3101, %v3089
        %v3786 = vpack.c.b16 %v3102, %v3090
        %v3787 = vpack.c.b16 %v3103, %v3091
        %v3788 = vpack.c.b16 %v3104, %v3092
        %v3789 = vpack.c.b16 %v3105, %v3093
        %v3790 = vpack.c.b16 %v3118, %v3106
        %v3791 = vpack.c.b16 %v3119, %v3107
        %v3792 = vpack.c.b16 %v3120, %v3108
        %v3793 = vpack.c.b16 %v3121, %v3109
        %v3794 = vpack.c.b16 %v3122, %v3110
        %v3795 = vpack.c.b16 %v3123, %v3111
        %v3796 = vpack.c.b16 %v3124, %v3112
        %v3797 = vpack.c.b16 %v3125, %v3113
        %v3798 = vpack.c.b16 %v3126, %v3114
        %v3799 = vpack.c.b16 %v3127, %v3115
        %v3800 = vpack.c.b16 %v3128, %v3116
        %v3801 = vpack.c.b16 %v3129, %v3117
        %v3802 = vpack.c.b16 %v3142, %v3130
        %v3803 = vpack.c.b16 %v3143, %v3131
        %v3804 = vpack.c.b16 %v3144, %v3132
        %v3805 = vpack.c.b16 %v3145, %v3133
        %v3806 = vpack.c.b16 %v3146, %v3134
        %v3807 = vpack.c.b16 %v3147, %v3135
        %v3808 = vpack.c.b16 %v3148, %v3136
        %v3809 = vpack.c.b16 %v3149, %v3137
        %v3810 = vpack.c.b16 %v3150, %v3138
        %v3811 = vpack.c.b16 %v3151, %v3139
        %v3812 = vpack.c.b16 %v3152, %v3140
        %v3813 = vpack.c.b16 %v3153, %v3141
        %v3814 = vpack.c.b16 %v3166, %v3154
        %v3815 = vpack.c.b16 %v3167, %v3155
        %v3816 = vpack.c.b16 %v3168, %v3156
        %v3817 = vpack.c.b16 %v3169, %v3157
        %v3818 = vpack.c.b16 %v3170, %v3158
        %v3819 = vpack.c.b16 %v3171, %v3159
        %v3820 = vpack.c.b16 %v3172, %v3160
        %v3821 = vpack.c.b16 %v3173, %v3161
        %v3822 = vpack.c.b16 %v3174, %v3162
        %v3823 = vpack.c.b16 %v3175, %v3163
        %v3824 = vpack.c.b16 %v3176, %v3164
        %v3825 = vpack.c.b16 %v3177, %v3165
        %v3826 = vpack.c.b16 %v3190, %v3178
        %v3827 = vpack.c.b16 %v3191, %v3179
        %v3828 = vpack.c.b16 %v3192, %v3180
        %v3829 = vpack.c.b16 %v3193, %v3181
        %v3830 = vpack.c.b16 %v3194, %v3182
        %v3831 = vpack.c.b16 %v3195, %v3183
        %v3832 = vpack.c.b16 %v3196, %v3184
        %v3833 = vpack.c.b16 %v3197, %v3185
        %v3834 = vpack.c.b16 %v3198, %v3186
        %v3835 = vpack.c.b16 %v3199, %v3187
        %v3836 = vpack.c.b16 %v3200, %v3188
        %v3837 = vpack.c.b16 %v3201, %v3189
        %v3838 = vpack.c.b16 %v3214, %v3202
        %v3839 = vpack.c.b16 %v3215, %v3203
        %v3840 = vpack.c.b16 %v3216, %v3204
        %v3841 = vpack.c.b16 %v3217, %v3205
        %v3842 = vpack.c.b16 %v3218, %v3206
        %v3843 = vpack.c.b16 %v3219, %v3207
        %v3844 = vpack.c.b16 %v3220, %v3208
        %v3845 = vpack.c.b16 %v3221, %v3209
        %v3846 = vpack.c.b16 %v3222, %v3210
        %v3847 = vpack.c.b16 %v3223, %v3211
        %v3848 = vpack.c.b16 %v3224, %v3212
        %v3849 = vpack.c.b16 %v3225, %v3213
        %v3850 = vpack.c.b16 %v3238, %v3226
        %v3851 = vpack.c.b16 %v3239, %v3227
        %v3852 = vpack.c.b16 %v3240, %v3228
        %v3853 = vpack.c.b16 %v3241, %v3229
        %v3854 = vpack.c.b16 %v3242, %v3230
        %v3855 = vpack.c.b16 %v3243, %v3231
        %v3856 = vpack.c.b16 %v3244, %v3232
        %v3857 = vpack.c.b16 %v3245, %v3233
        %v3858 = vpack.c.b16 %v3246, %v3234
        %v3859 = vpack.c.b16 %v3247, %v3235
        %v3860 = vpack.c.b16 %v3248, %v3236
        %v3861 = vpack.c.b16 %v3249, %v3237
        %v3862 = vpack.c.b16 %v3262, %v3250
        %v3863 = vpack.c.b16 %v3263, %v3251
        %v3864 = vpack.c.b16 %v3264, %v3252
        %v3865 = vpack.c.b16 %v3265, %v3253
        %v3866 = vpack.c.b16 %v3266, %v3254
        %v3867 = vpack.c.b16 %v3267, %v3255
        %v3868 = vpack.c.b16 %v3268, %v3256
        %v3869 = vpack.c.b16 %v3269, %v3257
        %v3870 = vpack.c.b16 %v3270, %v3258
        %v3871 = vpack.c.b16 %v3271, %v3259
        %v3872 = vpack.c.b16 %v3272, %v3260
        %v3873 = vpack.c.b16 %v3273, %v3261
        %v3874 = vpack.c.b16 %v3286, %v3274
        %v3875 = vpack.c.b16 %v3287, %v3275
        %v3876 = vpack.c.b16 %v3288, %v3276
        %v3877 = vpack.c.b16 %v3289, %v3277
        %v3878 = vpack.c.b16 %v3290, %v3278
        %v3879 = vpack.c.b16 %v3291, %v3279
        %v3880 = vpack.c.b16 %v3292, %v3280
        %v3881 = vpack.c.b16 %v3293, %v3281
        %v3882 = vpack.c.b16 %v3294, %v3282
        %v3883 = vpack.c.b16 %v3295, %v3283
        %v3884 = vpack.c.b16 %v3296, %v3284
        %v3885 = vpack.c.b16 %v3297, %v3285
        %v3886 = vpack.c.b16 %v3310, %v3298
        %v3887 = vpack.c.b16 %v3311, %v3299
        %v3888 = vpack.c.b16 %v3312, %v3300
        %v3889 = vpack.c.b16 %v3313, %v3301
        %v3890 = vpack.c.b16 %v3314, %v3302
        %v3891 = vpack.c.b16 %v3315, %v3303
        %v3892 = vpack.c.b16 %v3316, %v3304
        %v3893 = vpack.c.b16 %v3317, %v3305
        %v3894 = vpack.c.b16 %v3318, %v3306
        %v3895 = vpack.c.b16 %v3319, %v3307
        %v3896 = vpack.c.b16 %v3320, %v3308
        %v3897 = vpack.c.b16 %v3321, %v3309
        %v3898 = vpack.c.b16 %v3334, %v3322
        %v3899 = vpack.c.b16 %v3335, %v3323
        %v3900 = vpack.c.b16 %v3336, %v3324
        %v3901 = vpack.c.b16 %v3337, %v3325
        %v3902 = vpack.c.b16 %v3338, %v3326
        %v3903 = vpack.c.b16 %v3339, %v3327
        %v3904 = vpack.c.b16 %v3340, %v3328
        %v3905 = vpack.c.b16 %v3341, %v3329
        %v3906 = vpack.c.b16 %v3342, %v3330
        %v3907 = vpack.c.b16 %v3343, %v3331
        %v3908 = vpack.c.b16 %v3344, %v3332
        %v3909 = vpack.c.b16 %v3345, %v3333
        %v3910 = vpack.c.b16 %v3358, %v3346
        %v3911 = vpack.c.b16 %v3359, %v3347
        %v3912 = vpack.c.b16 %v3360, %v3348
        %v3913 = vpack.c.b16 %v3361, %v3349
        %v3914 = vpack.c.b16 %v3362, %v3350
        %v3915 = vpack.c.b16 %v3363, %v3351
        %v3916 = vpack.c.b16 %v3364, %v3352
        %v3917 = vpack.c.b16 %v3365, %v3353
        %v3918 = vpack.c.b16 %v3366, %v3354
        %v3919 = vpack.c.b16 %v3367, %v3355
        %v3920 = vpack.c.b16 %v3368, %v3356
        %v3921 = vpack.c.b16 %v3369, %v3357
        %v3922 = vpack.c.b16 %v3382, %v3370
        %v3923 = vpack.c.b16 %v3383, %v3371
        %v3924 = vpack.c.b16 %v3384, %v3372
        %v3925 = vpack.c.b16 %v3385, %v3373
        %v3926 = vpack.c.b16 %v3386, %v3374
        %v3927 = vpack.c.b16 %v3387, %v3375
        %v3928 = vpack.c.b16 %v3388, %v3376
        %v3929 = vpack.c.b16 %v3389, %v3377
        %v3930 = vpack.c.b16 %v3390, %v3378
        %v3931 = vpack.c.b16 %v3391, %v3379
        %v3932 = vpack.c.b16 %v3392, %v3380
        %v3933 = vpack.c.b16 %v3393, %v3381
        %v3934 = vpack.c.b16 %v3406, %v3394
        %v3935 = vpack.c.b16 %v3407, %v3395
        %v3936 = vpack.c.b16 %v3408, %v3396
        %v3937 = vpack.c.b16 %v3409, %v3397
        %v3938 = vpack.c.b16 %v3410, %v3398
        %v3939 = vpack.c.b16 %v3411, %v3399
        %v3940 = vpack.c.b16 %v3412, %v3400
        %v3941 = vpack.c.b16 %v3413, %v3401
        %v3942 = vpack.c.b16 %v3414, %v3402
        %v3943 = vpack.c.b16 %v3415, %v3403
        %v3944 = vpack.c.b16 %v3416, %v3404
        %v3945 = vpack.c.b16 %v3417, %v3405
        %v3946 = vpack.c.b16 %v3430, %v3418
        %v3947 = vpack.c.b16 %v3431, %v3419
        %v3948 = vpack.c.b16 %v3432, %v3420
        %v3949 = vpack.c.b16 %v3433, %v3421
        %v3950 = vpack.c.b16 %v3434, %v3422
        %v3951 = vpack.c.b16 %v3435, %v3423
        %v3952 = vpack.c.b16 %v3436, %v3424
        %v3953 = vpack.c.b16 %v3437, %v3425
        %v3954 = vpack.c.b16 %v3438, %v3426
        %v3955 = vpack.c.b16 %v3439, %v3427
        %v3956 = vpack.c.b16 %v3440, %v3428
        %v3957 = vpack.c.b16 %v3441, %v3429
        %v3958 = vpack.c.b16 %v3454, %v3442
        %v3959 = vpack.c.b16 %v3455, %v3443
        %v3960 = vpack.c.b16 %v3456, %v3444
        %v3961 = vpack.c.b16 %v3457, %v3445
        %v3962 = vpack.c.b16 %v3458, %v3446
        %v3963 = vpack.c.b16 %v3459, %v3447
        %v3964 = vpack.c.b16 %v3460, %v3448
        %v3965 = vpack.c.b16 %v3461, %v3449
        %v3966 = vpack.c.b16 %v3462, %v3450
        %v3967 = vpack.c.b16 %v3463, %v3451
        %v3968 = vpack.c.b16 %v3464, %v3452
        %v3969 = vpack.c.b16 %v3465, %v3453
        %v3970 = vpack.c.b16 %v3478, %v3466
        %v3971 = vpack.c.b16 %v3479, %v3467
        %v3972 = vpack.c.b16 %v3480, %v3468
        %v3973 = vpack.c.b16 %v3481, %v3469
        %v3974 = vpack.c.b16 %v3482, %v3470
        %v3975 = vpack.c.b16 %v3483, %v3471
        %v3976 = vpack.c.b16 %v3484, %v3472
        %v3977 = vpack.c.b16 %v3485, %v3473
        %v3978 = vpack.c.b16 %v3486, %v3474
        %v3979 = vpack.c.b16 %v3487, %v3475
        %v3980 = vpack.c.b16 %v3488, %v3476
        %v3981 = vpack.c.b16 %v3489, %v3477
        %v3982 = vpack.c.b16 %v3502, %v3490
        %v3983 = vpack.c.b16 %v3503, %v3491
        %v3984 = vpack.c.b16 %v3504, %v3492
        %v3985 = vpack.c.b16 %v3505, %v3493
        %v3986 = vpack.c.b16 %v3506, %v3494
        %v3987 = vpack.c.b16 %v3507, %v3495
        %v3988 = vpack.c.b16 %v3508, %v3496
        %v3989 = vpack.c.b16 %v3509, %v3497
        %v3990 = vpack.c.b16 %v3510, %v3498
        %v3991 = vpack.c.b16 %v3511, %v3499
        %v3992 = vpack.c.b16 %v3512, %v3500
        %v3993 = vpack.c.b16 %v3513, %v3501
        %v3994 = vpack.c.b16 %v3526, %v3514
        %v3995 = vpack.c.b16 %v3527, %v3515
        %v3996 = vpack.c.b16 %v3528, %v3516
        %v3997 = vpack.c.b16 %v3529, %v3517
        %v3998 = vpack.c.b16 %v3530, %v3518
        %v3999 = vpack.c.b16 %v3531, %v3519
        %v4000 = vpack.c.b16 %v3532, %v3520
        %v4001 = vpack.c.b16 %v3533, %v3521
        %v4002 = vpack.c.b16 %v3534, %v3522
        %v4003 = vpack.c.b16 %v3535, %v3523
        %v4004 = vpack.c.b16 %v3536, %v3524
        %v4005 = vpack.c.b16 %v3537, %v3525
        %v4006 = vpack.c.b16 %v3550, %v3538
        %v4007 = vpack.c.b16 %v3551, %v3539
        %v4008 = vpack.c.b16 %v3552, %v3540
        %v4009 = vpack.c.b16 %v3553, %v3541
        %v4010 = vpack.c.b16 %v3554, %v3542
        %v4011 = vpack.c.b16 %v3555, %v3543
        %v4012 = vpack.c.b16 %v3556, %v3544
        %v4013 = vpack.c.b16 %v3557, %v3545
        %v4014 = vpack.c.b16 %v3558, %v3546
        %v4015 = vpack.c.b16 %v3559, %v3547
        %v4016 = vpack.c.b16 %v3560, %v3548
        %v4017 = vpack.c.b16 %v3561, %v3549
        %v4018 = vpack.c.b16 %v3574, %v3562
        %v4019 = vpack.c.b16 %v3575, %v3563
        %v4020 = vpack.c.b16 %v3576, %v3564
        %v4021 = vpack.c.b16 %v3577, %v3565
        %v4022 = vpack.c.b16 %v3578, %v3566
        %v4023 = vpack.c.b16 %v3579, %v3567
        %v4024 = vpack.c.b16 %v3580, %v3568
        %v4025 = vpack.c.b16 %v3581, %v3569
        %v4026 = vpack.c.b16 %v3582, %v3570
        %v4027 = vpack.c.b16 %v3583, %v3571
        %v4028 = vpack.c.b16 %v3584, %v3572
        %v4029 = vpack.c.b16 %v3585, %v3573
        %v4030 = vpack.c.b16 %v3598, %v3586
        %v4031 = vpack.c.b16 %v3599, %v3587
        %v4032 = vpack.c.b16 %v3600, %v3588
        %v4033 = vpack.c.b16 %v3601, %v3589
        %v4034 = vpack.c.b16 %v3602, %v3590
        %v4035 = vpack.c.b16 %v3603, %v3591
        %v4036 = vpack.c.b16 %v3604, %v3592
        %v4037 = vpack.c.b16 %v3605, %v3593
        %v4038 = vpack.c.b16 %v3606, %v3594
        %v4039 = vpack.c.b16 %v3607, %v3595
        %v4040 = vpack.c.b16 %v3608, %v3596
        %v4041 = vpack.c.b16 %v3609, %v3597
        %v4042 = vpack.c.b16 %v3622, %v3610
        %v4043 = vpack.c.b16 %v3623, %v3611
        %v4044 = vpack.c.b16 %v3624, %v3612
        %v4045 = vpack.c.b16 %v3625, %v3613
        %v4046 = vpack.c.b16 %v3626, %v3614
        %v4047 = vpack.c.b16 %v3627, %v3615
        %v4048 = vpack.c.b16 %v3628, %v3616
        %v4049 = vpack.c.b16 %v3629, %v3617
        %v4050 = vpack.c.b16 %v3630, %v3618
        %v4051 = vpack.c.b16 %v3631, %v3619
        %v4052 = vpack.c.b16 %v3632, %v3620
        %v4053 = vpack.c.b16 %v3633, %v3621
        %v4054 = vpack.c.b16 %v3646, %v3634
        %v4055 = vpack.c.b16 %v3647, %v3635
        %v4056 = vpack.c.b16 %v3648, %v3636
        %v4057 = vpack.c.b16 %v3649, %v3637
        %v4058 = vpack.c.b16 %v3650, %v3638
        %v4059 = vpack.c.b16 %v3651, %v3639
        %v4060 = vpack.c.b16 %v3652, %v3640
        %v4061 = vpack.c.b16 %v3653, %v3641
        %v4062 = vpack.c.b16 %v3654, %v3642
        %v4063 = vpack.c.b16 %v3655, %v3643
        %v4064 = vpack.c.b16 %v3656, %v3644
        %v4065 = vpack.c.b16 %v3657, %v3645
        %v4066 = vpack.c.b16 %v3670, %v3658
        %v4067 = vpack.c.b16 %v3671, %v3659
        %v4068 = vpack.c.b16 %v3672, %v3660
        %v4069 = vpack.c.b16 %v3673, %v3661
        %v4070 = vpack.c.b16 %v3674, %v3662
        %v4071 = vpack.c.b16 %v3675, %v3663
        %v4072 = vpack.c.b16 %v3676, %v3664
        %v4073 = vpack.c.b16 %v3677, %v3665
        %v4074 = vpack.c.b16 %v3678, %v3666
        %v4075 = vpack.c.b16 %v3679, %v3667
        %v4076 = vpack.c.b16 %v3680, %v3668
        %v4077 = vpack.c.b16 %v3681, %v3669
        %v4078 = vpack.c.b16 %v3694, %v3682
        %v4079 = vpack.c.b16 %v3695, %v3683
        %v4080 = vpack.c.b16 %v3696, %v3684
        %v4081 = vpack.c.b16 %v3697, %v3685
        %v4082 = vpack.c.b16 %v3698, %v3686
        %v4083 = vpack.c.b16 %v3699, %v3687
        %v4084 = vpack.c.b16 %v3700, %v3688
        %v4085 = vpack.c.b16 %v3701, %v3689
        %v4086 = vpack.c.b16 %v3702, %v3690
        %v4087 = vpack.c.b16 %v3703, %v3691
        %v4088 = vpack.c.b16 %v3704, %v3692
        %v4089 = vpack.c.b16 %v3705, %v3693
        %4474 = vmatprep.subr.bf16.mxu0 %v3707
        %4475 = vmatpush1.bf16.msra.mxu0 %v3706
        %4476 = vmatprep.subr.bf16.mxu0 %v3719
        %4477 = vmatpush1.bf16.msra.mxu0 %v3718
        %4478 = vmatprep.subr.bf16.mxu0 %v3731
        %4479 = vmatpush1.bf16.msra.mxu0 %v3730
        %4480 = vmatprep.subr.bf16.mxu0 %v3743
        %4481 = vmatpush1.bf16.msra.mxu0 %v3742
        %4482 = vmatprep.subr.bf16.mxu0 %v3755
        %4483 = vmatpush1.bf16.msra.mxu0 %v3754
        %4484 = vmatprep.subr.bf16.mxu0 %v3767
        %4485 = vmatpush1.bf16.msra.mxu0 %v3766
        %4486 = vmatprep.subr.bf16.mxu0 %v3779
        %4487 = vmatpush1.bf16.msra.mxu0 %v3778
        %4488 = vmatprep.subr.bf16.mxu0 %v3791
        %4489 = vmatpush1.bf16.msra.mxu0 %v3790
        %4490 = vmatprep.subr.bf16.mxu0 %v3803
        %4491 = vmatpush1.bf16.msra.mxu0 %v3802
        %4492 = vmatprep.subr.bf16.mxu0 %v3815
        %4493 = vmatpush1.bf16.msra.mxu0 %v3814
        %4494 = vmatprep.subr.bf16.mxu0 %v3827
        %4495 = vmatpush1.bf16.msra.mxu0 %v3826
        %4496 = vmatprep.subr.bf16.mxu0 %v3839
        %4497 = vmatpush1.bf16.msra.mxu0 %v3838
        %4498 = vmatprep.subr.bf16.mxu0 %v3851
        %4499 = vmatpush1.bf16.msra.mxu0 %v3850
        %4500 = vmatprep.subr.bf16.mxu0 %v3863
        %4501 = vmatpush1.bf16.msra.mxu0 %v3862
        %4502 = vmatprep.subr.bf16.mxu0 %v3875
        %4503 = vmatpush1.bf16.msra.mxu0 %v3874
        %4504 = vmatprep.subr.bf16.mxu0 %v3887
        %4505 = vmatpush1.bf16.msra.mxu0 %v3886
        %4506 = vmatprep.mubr.bf16.mxu0 %v2103
        %4507 = vmatmul.mubr.bf16.gmra.mrb[0].mxu0 %v2102
        %v4508 = vpop.f32.mrb[0].mxu0
        %v4509 = vadd.f32 %v2497, %v4508
        %v4510 = vpop.f32.mrb[0].mxu0
        %v4511 = vadd.f32 %v2501, %v4510
        %v4512 = vpop.f32.mrb[0].mxu0
        %v4513 = vpop.f32.mrb[0].mxu0
        %4514 = vdwg.mxu0
        %4515 = vmatprep.subr.bf16.mxu0 %v3899
        %4516 = vmatpush1.bf16.msra.mxu0 %v3898
        %4517 = vmatprep.subr.bf16.mxu0 %v3911
        %4518 = vmatpush1.bf16.msra.mxu0 %v3910
        %4519 = vmatprep.subr.bf16.mxu0 %v3923
        %4520 = vmatpush1.bf16.msra.mxu0 %v3922
        %4521 = vmatprep.subr.bf16.mxu0 %v3935
        %4522 = vmatpush1.bf16.msra.mxu0 %v3934
        %4523 = vmatprep.subr.bf16.mxu0 %v3947
        %4524 = vmatpush1.bf16.msra.mxu0 %v3946
        %4525 = vmatprep.subr.bf16.mxu0 %v3959
        %4526 = vmatpush1.bf16.msra.mxu0 %v3958
        %4527 = vmatprep.subr.bf16.mxu0 %v3971
        %4528 = vmatpush1.bf16.msra.mxu0 %v3970
        %4529 = vmatprep.subr.bf16.mxu0 %v3983
        %4530 = vmatpush1.bf16.msra.mxu0 %v3982
        %4531 = vmatprep.subr.bf16.mxu0 %v3995
        %4532 = vmatpush1.bf16.msra.mxu0 %v3994
        %4533 = vmatprep.subr.bf16.mxu0 %v4007
        %4534 = vmatpush1.bf16.msra.mxu0 %v4006
        %4535 = vmatprep.subr.bf16.mxu0 %v4019
        %4536 = vmatpush1.bf16.msra.mxu0 %v4018
        %4537 = vmatprep.subr.bf16.mxu0 %v4031
        %4538 = vmatpush1.bf16.msra.mxu0 %v4030
        %4539 = vmatprep.subr.bf16.mxu0 %v4043
        %4540 = vmatpush1.bf16.msra.mxu0 %v4042
        %4541 = vmatprep.subr.bf16.mxu0 %v4055
        %4542 = vmatpush1.bf16.msra.mxu0 %v4054
        %4543 = vmatprep.subr.bf16.mxu0 %v4067
        %4544 = vmatpush1.bf16.msra.mxu0 %v4066
        %4545 = vmatprep.subr.bf16.mxu0 %v4079
        %4546 = vmatpush1.bf16.msra.mxu0 %v4078
        %4547 = vmatprep.mubr.bf16.mxu0 %v2105
        %4548 = vmatmul.mubr.bf16.gmra.mrb[0].mxu0 %v2104
        %v4549 = vpop.f32.mrb[0].mxu0
        %v4550 = vadd.f32 %v4509, %v4549
        %v4551 = vpop.f32.mrb[0].mxu0
        %v4552 = vadd.f32 %v4511, %v4551
        %v4553 = vpop.f32.mrb[0].mxu0
        %v4554 = vpop.f32.mrb[0].mxu0
        %4555 = vdwg.mxu0
        %4556 = vmatprep.subr.bf16.mxu0 %v3709
        %4557 = vmatpush1.bf16.msra.mxu0 %v3708
        %4558 = vmatprep.subr.bf16.mxu0 %v3721
        %4559 = vmatpush1.bf16.msra.mxu0 %v3720
        %4560 = vmatprep.subr.bf16.mxu0 %v3733
        %4561 = vmatpush1.bf16.msra.mxu0 %v3732
        %4562 = vmatprep.subr.bf16.mxu0 %v3745
        %4563 = vmatpush1.bf16.msra.mxu0 %v3744
        %4564 = vmatprep.subr.bf16.mxu0 %v3757
        %4565 = vmatpush1.bf16.msra.mxu0 %v3756
        %4566 = vmatprep.subr.bf16.mxu0 %v3769
        %4567 = vmatpush1.bf16.msra.mxu0 %v3768
        %4568 = vmatprep.subr.bf16.mxu0 %v3781
        %4569 = vmatpush1.bf16.msra.mxu0 %v3780
        %4570 = vmatprep.subr.bf16.mxu0 %v3793
        %4571 = vmatpush1.bf16.msra.mxu0 %v3792
        %4572 = vmatprep.subr.bf16.mxu0 %v3805
        %4573 = vmatpush1.bf16.msra.mxu0 %v3804
        %4574 = vmatprep.subr.bf16.mxu0 %v3817
        %4575 = vmatpush1.bf16.msra.mxu0 %v3816
        %4576 = vmatprep.subr.bf16.mxu0 %v3829
        %4577 = vmatpush1.bf16.msra.mxu0 %v3828
        %4578 = vmatprep.subr.bf16.mxu0 %v3841
        %4579 = vmatpush1.bf16.msra.mxu0 %v3840
        %4580 = vmatprep.subr.bf16.mxu0 %v3853
        %4581 = vmatpush1.bf16.msra.mxu0 %v3852
        %4582 = vmatprep.subr.bf16.mxu0 %v3865
        %4583 = vmatpush1.bf16.msra.mxu0 %v3864
        %4584 = vmatprep.subr.bf16.mxu0 %v3877
        %4585 = vmatpush1.bf16.msra.mxu0 %v3876
        %4586 = vmatprep.subr.bf16.mxu0 %v3889
        %4587 = vmatpush1.bf16.msra.mxu0 %v3888
        %4588 = vmatprep.mubr.bf16.mxu0 %v2103
        %4589 = vmatmul.mubr.bf16.gmra.mrb[0].mxu0 %v2102
        %v4590 = vpop.f32.mrb[0].mxu0
        %v4591 = vadd.f32 %v2505, %v4590
        %v4592 = vpop.f32.mrb[0].mxu0
        %v4593 = vadd.f32 %v2509, %v4592
        %v4594 = vpop.f32.mrb[0].mxu0
        %v4595 = vpop.f32.mrb[0].mxu0
        %4596 = vdwg.mxu0
        %4597 = vmatprep.subr.bf16.mxu0 %v3901
        %4598 = vmatpush1.bf16.msra.mxu0 %v3900
        %4599 = vmatprep.subr.bf16.mxu0 %v3913
        %4600 = vmatpush1.bf16.msra.mxu0 %v3912
        %4601 = vmatprep.subr.bf16.mxu0 %v3925
        %4602 = vmatpush1.bf16.msra.mxu0 %v3924
        %4603 = vmatprep.subr.bf16.mxu0 %v3937
        %4604 = vmatpush1.bf16.msra.mxu0 %v3936
        %4605 = vmatprep.subr.bf16.mxu0 %v3949
        %4606 = vmatpush1.bf16.msra.mxu0 %v3948
        %4607 = vmatprep.subr.bf16.mxu0 %v3961
        %4608 = vmatpush1.bf16.msra.mxu0 %v3960
        %4609 = vmatprep.subr.bf16.mxu0 %v3973
        %4610 = vmatpush1.bf16.msra.mxu0 %v3972
        %4611 = vmatprep.subr.bf16.mxu0 %v3985
        %4612 = vmatpush1.bf16.msra.mxu0 %v3984
        %4613 = vmatprep.subr.bf16.mxu0 %v3997
        %4614 = vmatpush1.bf16.msra.mxu0 %v3996
        %4615 = vmatprep.subr.bf16.mxu0 %v4009
        %4616 = vmatpush1.bf16.msra.mxu0 %v4008
        %4617 = vmatprep.subr.bf16.mxu0 %v4021
        %4618 = vmatpush1.bf16.msra.mxu0 %v4020
        %4619 = vmatprep.subr.bf16.mxu0 %v4033
        %4620 = vmatpush1.bf16.msra.mxu0 %v4032
        %4621 = vmatprep.subr.bf16.mxu0 %v4045
        %4622 = vmatpush1.bf16.msra.mxu0 %v4044
        %4623 = vmatprep.subr.bf16.mxu0 %v4057
        %4624 = vmatpush1.bf16.msra.mxu0 %v4056
        %4625 = vmatprep.subr.bf16.mxu0 %v4069
        %4626 = vmatpush1.bf16.msra.mxu0 %v4068
        %4627 = vmatprep.subr.bf16.mxu0 %v4081
        %4628 = vmatpush1.bf16.msra.mxu0 %v4080
        %4629 = vmatprep.mubr.bf16.mxu0 %v2105
        %4630 = vmatmul.mubr.bf16.gmra.mrb[0].mxu0 %v2104
        %v4631 = vpop.f32.mrb[0].mxu0
        %v4632 = vadd.f32 %v4591, %v4631
        %v4633 = vpop.f32.mrb[0].mxu0
        %v4634 = vadd.f32 %v4593, %v4633
        %v4635 = vpop.f32.mrb[0].mxu0
        %v4636 = vpop.f32.mrb[0].mxu0
        %4637 = vdwg.mxu0
        %4638 = vmatprep.subr.bf16.mxu0 %v3711
        %4639 = vmatpush1.bf16.msra.mxu0 %v3710
        %4640 = vmatprep.subr.bf16.mxu0 %v3723
        %4641 = vmatpush1.bf16.msra.mxu0 %v3722
        %4642 = vmatprep.subr.bf16.mxu0 %v3735
        %4643 = vmatpush1.bf16.msra.mxu0 %v3734
        %4644 = vmatprep.subr.bf16.mxu0 %v3747
        %4645 = vmatpush1.bf16.msra.mxu0 %v3746
        %4646 = vmatprep.subr.bf16.mxu0 %v3759
        %4647 = vmatpush1.bf16.msra.mxu0 %v3758
        %4648 = vmatprep.subr.bf16.mxu0 %v3771
        %4649 = vmatpush1.bf16.msra.mxu0 %v3770
        %4650 = vmatprep.subr.bf16.mxu0 %v3783
        %4651 = vmatpush1.bf16.msra.mxu0 %v3782
        %4652 = vmatprep.subr.bf16.mxu0 %v3795
        %4653 = vmatpush1.bf16.msra.mxu0 %v3794
        %4654 = vmatprep.subr.bf16.mxu0 %v3807
        %4655 = vmatpush1.bf16.msra.mxu0 %v3806
        %4656 = vmatprep.subr.bf16.mxu0 %v3819
        %4657 = vmatpush1.bf16.msra.mxu0 %v3818
        %4658 = vmatprep.subr.bf16.mxu0 %v3831
        %4659 = vmatpush1.bf16.msra.mxu0 %v3830
        %4660 = vmatprep.subr.bf16.mxu0 %v3843
        %4661 = vmatpush1.bf16.msra.mxu0 %v3842
        %4662 = vmatprep.subr.bf16.mxu0 %v3855
        %4663 = vmatpush1.bf16.msra.mxu0 %v3854
        %4664 = vmatprep.subr.bf16.mxu0 %v3867
        %4665 = vmatpush1.bf16.msra.mxu0 %v3866
        %4666 = vmatprep.subr.bf16.mxu0 %v3879
        %4667 = vmatpush1.bf16.msra.mxu0 %v3878
        %4668 = vmatprep.subr.bf16.mxu0 %v3891
        %4669 = vmatpush1.bf16.msra.mxu0 %v3890
        %4670 = vmatprep.mubr.bf16.mxu0 %v2103
        %4671 = vmatmul.mubr.bf16.gmra.mrb[0].mxu0 %v2102
        %v4672 = vpop.f32.mrb[0].mxu0
        %v4673 = vadd.f32 %v2513, %v4672
        %v4674 = vpop.f32.mrb[0].mxu0
        %v4675 = vadd.f32 %v2517, %v4674
        %v4676 = vpop.f32.mrb[0].mxu0
        %v4677 = vpop.f32.mrb[0].mxu0
        %4678 = vdwg.mxu0
        %4679 = vmatprep.subr.bf16.mxu0 %v3903
        %4680 = vmatpush1.bf16.msra.mxu0 %v3902
        %4681 = vmatprep.subr.bf16.mxu0 %v3915
        %4682 = vmatpush1.bf16.msra.mxu0 %v3914
        %4683 = vmatprep.subr.bf16.mxu0 %v3927
        %4684 = vmatpush1.bf16.msra.mxu0 %v3926
        %4685 = vmatprep.subr.bf16.mxu0 %v3939
        %4686 = vmatpush1.bf16.msra.mxu0 %v3938
        %4687 = vmatprep.subr.bf16.mxu0 %v3951
        %4688 = vmatpush1.bf16.msra.mxu0 %v3950
        %4689 = vmatprep.subr.bf16.mxu0 %v3963
        %4690 = vmatpush1.bf16.msra.mxu0 %v3962
        %4691 = vmatprep.subr.bf16.mxu0 %v3975
        %4692 = vmatpush1.bf16.msra.mxu0 %v3974
        %4693 = vmatprep.subr.bf16.mxu0 %v3987
        %4694 = vmatpush1.bf16.msra.mxu0 %v3986
        %4695 = vmatprep.subr.bf16.mxu0 %v3999
        %4696 = vmatpush1.bf16.msra.mxu0 %v3998
        %4697 = vmatprep.subr.bf16.mxu0 %v4011
        %4698 = vmatpush1.bf16.msra.mxu0 %v4010
        %4699 = vmatprep.subr.bf16.mxu0 %v4023
        %4700 = vmatpush1.bf16.msra.mxu0 %v4022
        %4701 = vmatprep.subr.bf16.mxu0 %v4035
        %4702 = vmatpush1.bf16.msra.mxu0 %v4034
        %4703 = vmatprep.subr.bf16.mxu0 %v4047
        %4704 = vmatpush1.bf16.msra.mxu0 %v4046
        %4705 = vmatprep.subr.bf16.mxu0 %v4059
        %4706 = vmatpush1.bf16.msra.mxu0 %v4058
        %4707 = vmatprep.subr.bf16.mxu0 %v4071
        %4708 = vmatpush1.bf16.msra.mxu0 %v4070
        %4709 = vmatprep.subr.bf16.mxu0 %v4083
        %4710 = vmatpush1.bf16.msra.mxu0 %v4082
        %4711 = vmatprep.mubr.bf16.mxu0 %v2105
        %4712 = vmatmul.mubr.bf16.gmra.mrb[0].mxu0 %v2104
        %v4713 = vpop.f32.mrb[0].mxu0
        %v4714 = vadd.f32 %v4673, %v4713
        %v4715 = vpop.f32.mrb[0].mxu0
        %v4716 = vadd.f32 %v4675, %v4715
        %v4717 = vpop.f32.mrb[0].mxu0
        %v4718 = vpop.f32.mrb[0].mxu0
        %4719 = vdwg.mxu0
        %4720 = vmatprep.subr.bf16.mxu0 %v3713
        %4721 = vmatpush1.bf16.msra.mxu0 %v3712
        %4722 = vmatprep.subr.bf16.mxu0 %v3725
        %4723 = vmatpush1.bf16.msra.mxu0 %v3724
        %4724 = vmatprep.subr.bf16.mxu0 %v3737
        %4725 = vmatpush1.bf16.msra.mxu0 %v3736
        %4726 = vmatprep.subr.bf16.mxu0 %v3749
        %4727 = vmatpush1.bf16.msra.mxu0 %v3748
        %4728 = vmatprep.subr.bf16.mxu0 %v3761
        %4729 = vmatpush1.bf16.msra.mxu0 %v3760
        %4730 = vmatprep.subr.bf16.mxu0 %v3773
        %4731 = vmatpush1.bf16.msra.mxu0 %v3772
        %4732 = vmatprep.subr.bf16.mxu0 %v3785
        %4733 = vmatpush1.bf16.msra.mxu0 %v3784
        %4734 = vmatprep.subr.bf16.mxu0 %v3797
        %4735 = vmatpush1.bf16.msra.mxu0 %v3796
        %4736 = vmatprep.subr.bf16.mxu0 %v3809
        %4737 = vmatpush1.bf16.msra.mxu0 %v3808
        %4738 = vmatprep.subr.bf16.mxu0 %v3821
        %4739 = vmatpush1.bf16.msra.mxu0 %v3820
        %4740 = vmatprep.subr.bf16.mxu0 %v3833
        %4741 = vmatpush1.bf16.msra.mxu0 %v3832
        %4742 = vmatprep.subr.bf16.mxu0 %v3845
        %4743 = vmatpush1.bf16.msra.mxu0 %v3844
        %4744 = vmatprep.subr.bf16.mxu0 %v3857
        %4745 = vmatpush1.bf16.msra.mxu0 %v3856
        %4746 = vmatprep.subr.bf16.mxu0 %v3869
        %4747 = vmatpush1.bf16.msra.mxu0 %v3868
        %4748 = vmatprep.subr.bf16.mxu0 %v3881
        %4749 = vmatpush1.bf16.msra.mxu0 %v3880
        %4750 = vmatprep.subr.bf16.mxu0 %v3893
        %4751 = vmatpush1.bf16.msra.mxu0 %v3892
        %4752 = vmatprep.mubr.bf16.mxu0 %v2103
        %4753 = vmatmul.mubr.bf16.gmra.mrb[0].mxu0 %v2102
        %v4754 = vpop.f32.mrb[0].mxu0
        %v4755 = vadd.f32 %v2521, %v4754
        %v4756 = vpop.f32.mrb[0].mxu0
        %v4757 = vadd.f32 %v2525, %v4756
        %v4758 = vpop.f32.mrb[0].mxu0
        %v4759 = vpop.f32.mrb[0].mxu0
        %4760 = vdwg.mxu0
        %4761 = vmatprep.subr.bf16.mxu0 %v3905
        %4762 = vmatpush1.bf16.msra.mxu0 %v3904
        %4763 = vmatprep.subr.bf16.mxu0 %v3917
        %4764 = vmatpush1.bf16.msra.mxu0 %v3916
        %4765 = vmatprep.subr.bf16.mxu0 %v3929
        %4766 = vmatpush1.bf16.msra.mxu0 %v3928
        %4767 = vmatprep.subr.bf16.mxu0 %v3941
        %4768 = vmatpush1.bf16.msra.mxu0 %v3940
        %4769 = vmatprep.subr.bf16.mxu0 %v3953
        %4770 = vmatpush1.bf16.msra.mxu0 %v3952
        %4771 = vmatprep.subr.bf16.mxu0 %v3965
        %4772 = vmatpush1.bf16.msra.mxu0 %v3964
        %4773 = vmatprep.subr.bf16.mxu0 %v3977
        %4774 = vmatpush1.bf16.msra.mxu0 %v3976
        %4775 = vmatprep.subr.bf16.mxu0 %v3989
        %4776 = vmatpush1.bf16.msra.mxu0 %v3988
        %4777 = vmatprep.subr.bf16.mxu0 %v4001
        %4778 = vmatpush1.bf16.msra.mxu0 %v4000
        %4779 = vmatprep.subr.bf16.mxu0 %v4013
        %4780 = vmatpush1.bf16.msra.mxu0 %v4012
        %4781 = vmatprep.subr.bf16.mxu0 %v4025
        %4782 = vmatpush1.bf16.msra.mxu0 %v4024
        %4783 = vmatprep.subr.bf16.mxu0 %v4037
        %4784 = vmatpush1.bf16.msra.mxu0 %v4036
        %4785 = vmatprep.subr.bf16.mxu0 %v4049
        %4786 = vmatpush1.bf16.msra.mxu0 %v4048
        %4787 = vmatprep.subr.bf16.mxu0 %v4061
        %4788 = vmatpush1.bf16.msra.mxu0 %v4060
        %4789 = vmatprep.subr.bf16.mxu0 %v4073
        %4790 = vmatpush1.bf16.msra.mxu0 %v4072
        %4791 = vmatprep.subr.bf16.mxu0 %v4085
        %4792 = vmatpush1.bf16.msra.mxu0 %v4084
        %4793 = vmatprep.mubr.bf16.mxu0 %v2105
        %4794 = vmatmul.mubr.bf16.gmra.mrb[0].mxu0 %v2104
        %v4795 = vpop.f32.mrb[0].mxu0
        %v4796 = vadd.f32 %v4755, %v4795
        %v4797 = vpop.f32.mrb[0].mxu0
        %v4798 = vadd.f32 %v4757, %v4797
        %v4799 = vpop.f32.mrb[0].mxu0
        %v4800 = vpop.f32.mrb[0].mxu0
        %4801 = vdwg.mxu0
        %4802 = vmatprep.subr.bf16.mxu0 %v3715
        %4803 = vmatpush1.bf16.msra.mxu0 %v3714
        %4804 = vmatprep.subr.bf16.mxu0 %v3727
        %4805 = vmatpush1.bf16.msra.mxu0 %v3726
        %4806 = vmatprep.subr.bf16.mxu0 %v3739
        %4807 = vmatpush1.bf16.msra.mxu0 %v3738
        %4808 = vmatprep.subr.bf16.mxu0 %v3751
        %4809 = vmatpush1.bf16.msra.mxu0 %v3750
        %4810 = vmatprep.subr.bf16.mxu0 %v3763
        %4811 = vmatpush1.bf16.msra.mxu0 %v3762
        %4812 = vmatprep.subr.bf16.mxu0 %v3775
        %4813 = vmatpush1.bf16.msra.mxu0 %v3774
        %4814 = vmatprep.subr.bf16.mxu0 %v3787
        %4815 = vmatpush1.bf16.msra.mxu0 %v3786
        %4816 = vmatprep.subr.bf16.mxu0 %v3799
        %4817 = vmatpush1.bf16.msra.mxu0 %v3798
        %4818 = vmatprep.subr.bf16.mxu0 %v3811
        %4819 = vmatpush1.bf16.msra.mxu0 %v3810
        %4820 = vmatprep.subr.bf16.mxu0 %v3823
        %4821 = vmatpush1.bf16.msra.mxu0 %v3822
        %4822 = vmatprep.subr.bf16.mxu0 %v3835
        %4823 = vmatpush1.bf16.msra.mxu0 %v3834
        %4824 = vmatprep.subr.bf16.mxu0 %v3847
        %4825 = vmatpush1.bf16.msra.mxu0 %v3846
        %4826 = vmatprep.subr.bf16.mxu0 %v3859
        %4827 = vmatpush1.bf16.msra.mxu0 %v3858
        %4828 = vmatprep.subr.bf16.mxu0 %v3871
        %4829 = vmatpush1.bf16.msra.mxu0 %v3870
        %4830 = vmatprep.subr.bf16.mxu0 %v3883
        %4831 = vmatpush1.bf16.msra.mxu0 %v3882
        %4832 = vmatprep.subr.bf16.mxu0 %v3895
        %4833 = vmatpush1.bf16.msra.mxu0 %v3894
        %4834 = vmatprep.mubr.bf16.mxu0 %v2103
        %4835 = vmatmul.mubr.bf16.gmra.mrb[0].mxu0 %v2102
        %v4836 = vpop.f32.mrb[0].mxu0
        %v4837 = vadd.f32 %v2529, %v4836
        %v4838 = vpop.f32.mrb[0].mxu0
        %v4839 = vadd.f32 %v2533, %v4838
        %v4840 = vpop.f32.mrb[0].mxu0
        %v4841 = vpop.f32.mrb[0].mxu0
        %4842 = vdwg.mxu0
        %4843 = vmatprep.subr.bf16.mxu0 %v3907
        %4844 = vmatpush1.bf16.msra.mxu0 %v3906
        %4845 = vmatprep.subr.bf16.mxu0 %v3919
        %4846 = vmatpush1.bf16.msra.mxu0 %v3918
        %4847 = vmatprep.subr.bf16.mxu0 %v3931
        %4848 = vmatpush1.bf16.msra.mxu0 %v3930
        %4849 = vmatprep.subr.bf16.mxu0 %v3943
        %4850 = vmatpush1.bf16.msra.mxu0 %v3942
        %4851 = vmatprep.subr.bf16.mxu0 %v3955
        %4852 = vmatpush1.bf16.msra.mxu0 %v3954
        %4853 = vmatprep.subr.bf16.mxu0 %v3967
        %4854 = vmatpush1.bf16.msra.mxu0 %v3966
        %4855 = vmatprep.subr.bf16.mxu0 %v3979
        %4856 = vmatpush1.bf16.msra.mxu0 %v3978
        %4857 = vmatprep.subr.bf16.mxu0 %v3991
        %4858 = vmatpush1.bf16.msra.mxu0 %v3990
        %4859 = vmatprep.subr.bf16.mxu0 %v4003
        %4860 = vmatpush1.bf16.msra.mxu0 %v4002
        %4861 = vmatprep.subr.bf16.mxu0 %v4015
        %4862 = vmatpush1.bf16.msra.mxu0 %v4014
        %4863 = vmatprep.subr.bf16.mxu0 %v4027
        %4864 = vmatpush1.bf16.msra.mxu0 %v4026
        %4865 = vmatprep.subr.bf16.mxu0 %v4039
        %4866 = vmatpush1.bf16.msra.mxu0 %v4038
        %4867 = vmatprep.subr.bf16.mxu0 %v4051
        %4868 = vmatpush1.bf16.msra.mxu0 %v4050
        %4869 = vmatprep.subr.bf16.mxu0 %v4063
        %4870 = vmatpush1.bf16.msra.mxu0 %v4062
        %4871 = vmatprep.subr.bf16.mxu0 %v4075
        %4872 = vmatpush1.bf16.msra.mxu0 %v4074
        %4873 = vmatprep.subr.bf16.mxu0 %v4087
        %4874 = vmatpush1.bf16.msra.mxu0 %v4086
        %4875 = vmatprep.mubr.bf16.mxu0 %v2105
        %4876 = vmatmul.mubr.bf16.gmra.mrb[0].mxu0 %v2104
        %v4877 = vpop.f32.mrb[0].mxu0
        %v4878 = vadd.f32 %v4837, %v4877
        %v4879 = vpop.f32.mrb[0].mxu0
        %v4880 = vadd.f32 %v4839, %v4879
        %v4881 = vpop.f32.mrb[0].mxu0
        %v4882 = vpop.f32.mrb[0].mxu0
        %4883 = vdwg.mxu0
        %4884 = vmatprep.subr.bf16.mxu0 %v3717
        %4885 = vmatpush1.bf16.msra.mxu0 %v3716
        %4886 = vmatprep.subr.bf16.mxu0 %v3729
        %4887 = vmatpush1.bf16.msra.mxu0 %v3728
        %4888 = vmatprep.subr.bf16.mxu0 %v3741
        %4889 = vmatpush1.bf16.msra.mxu0 %v3740
        %4890 = vmatprep.subr.bf16.mxu0 %v3753
        %4891 = vmatpush1.bf16.msra.mxu0 %v3752
        %4892 = vmatprep.subr.bf16.mxu0 %v3765
        %4893 = vmatpush1.bf16.msra.mxu0 %v3764
        %4894 = vmatprep.subr.bf16.mxu0 %v3777
        %4895 = vmatpush1.bf16.msra.mxu0 %v3776
        %4896 = vmatprep.subr.bf16.mxu0 %v3789
        %4897 = vmatpush1.bf16.msra.mxu0 %v3788
        %4898 = vmatprep.subr.bf16.mxu0 %v3801
        %4899 = vmatpush1.bf16.msra.mxu0 %v3800
        %4900 = vmatprep.subr.bf16.mxu0 %v3813
        %4901 = vmatpush1.bf16.msra.mxu0 %v3812
        %4902 = vmatprep.subr.bf16.mxu0 %v3825
        %4903 = vmatpush1.bf16.msra.mxu0 %v3824
        %4904 = vmatprep.subr.bf16.mxu0 %v3837
        %4905 = vmatpush1.bf16.msra.mxu0 %v3836
        %4906 = vmatprep.subr.bf16.mxu0 %v3849
        %4907 = vmatpush1.bf16.msra.mxu0 %v3848
        %4908 = vmatprep.subr.bf16.mxu0 %v3861
        %4909 = vmatpush1.bf16.msra.mxu0 %v3860
        %4910 = vmatprep.subr.bf16.mxu0 %v3873
        %4911 = vmatpush1.bf16.msra.mxu0 %v3872
        %4912 = vmatprep.subr.bf16.mxu0 %v3885
        %4913 = vmatpush1.bf16.msra.mxu0 %v3884
        %4914 = vmatprep.subr.bf16.mxu0 %v3897
        %4915 = vmatpush1.bf16.msra.mxu0 %v3896
        %4916 = vmatprep.mubr.bf16.mxu0 %v2103
        %4917 = vmatmul.mubr.bf16.gmra.mrb[0].mxu0 %v2102
        %v4918 = vpop.f32.mrb[0].mxu0
        %v4919 = vadd.f32 %v2537, %v4918
        %v4920 = vpop.f32.mrb[0].mxu0
        %v4921 = vadd.f32 %v2541, %v4920
        %v4922 = vpop.f32.mrb[0].mxu0
        %v4923 = vpop.f32.mrb[0].mxu0
        %4924 = vdwg.mxu0
        %4925 = vmatprep.subr.bf16.mxu0 %v3909
        %4926 = vmatpush1.bf16.msra.mxu0 %v3908
        %4927 = vmatprep.subr.bf16.mxu0 %v3921
        %4928 = vmatpush1.bf16.msra.mxu0 %v3920
        %4929 = vmatprep.subr.bf16.mxu0 %v3933
        %4930 = vmatpush1.bf16.msra.mxu0 %v3932
        %4931 = vmatprep.subr.bf16.mxu0 %v3945
        %4932 = vmatpush1.bf16.msra.mxu0 %v3944
        %4933 = vmatprep.subr.bf16.mxu0 %v3957
        %4934 = vmatpush1.bf16.msra.mxu0 %v3956
        %4935 = vmatprep.subr.bf16.mxu0 %v3969
        %4936 = vmatpush1.bf16.msra.mxu0 %v3968
        %4937 = vmatprep.subr.bf16.mxu0 %v3981
        %4938 = vmatpush1.bf16.msra.mxu0 %v3980
        %4939 = vmatprep.subr.bf16.mxu0 %v3993
        %4940 = vmatpush1.bf16.msra.mxu0 %v3992
        %4941 = vmatprep.subr.bf16.mxu0 %v4005
        %4942 = vmatpush1.bf16.msra.mxu0 %v4004
        %4943 = vmatprep.subr.bf16.mxu0 %v4017
        %4944 = vmatpush1.bf16.msra.mxu0 %v4016
        %4945 = vmatprep.subr.bf16.mxu0 %v4029
        %4946 = vmatpush1.bf16.msra.mxu0 %v4028
        %4947 = vmatprep.subr.bf16.mxu0 %v4041
        %4948 = vmatpush1.bf16.msra.mxu0 %v4040
        %4949 = vmatprep.subr.bf16.mxu0 %v4053
        %4950 = vmatpush1.bf16.msra.mxu0 %v4052
        %4951 = vmatprep.subr.bf16.mxu0 %v4065
        %4952 = vmatpush1.bf16.msra.mxu0 %v4064
        %4953 = vmatprep.subr.bf16.mxu0 %v4077
        %4954 = vmatpush1.bf16.msra.mxu0 %v4076
        %4955 = vmatprep.subr.bf16.mxu0 %v4089
        %4956 = vmatpush1.bf16.msra.mxu0 %v4088
        %4957 = vmatprep.mubr.bf16.mxu0 %v2105
        %4958 = vmatmul.mubr.bf16.gmra.mrb[0].mxu0 %v2104
        %v4959 = vpop.f32.mrb[0].mxu0
        %v4960 = vadd.f32 %v4919, %v4959
        %v4961 = vpop.f32.mrb[0].mxu0
        %v4962 = vadd.f32 %v4921, %v4961
        %v4963 = vpop.f32.mrb[0].mxu0
        %v4964 = vpop.f32.mrb[0].mxu0
        %4965 = vdwg.mxu0
        %v4966 = vmul.f32 %v4550, 0.125
        %v4967 = vmul.f32 %v4552, 0.125
        %v4968 = vmul.f32 %v4632, 0.125
        %v4969 = vmul.f32 %v4634, 0.125
        %vm4970 = vcmask 520192
        %4971 = vst.msk [vmem:[#allocation2] sm:$0x1f] %vm4970, %v4966
        %4972 = vst.msk [vmem:[#allocation3] sm:$0x1f] %vm4970, %v4714
        %4973 = vst.msk [vmem:[#allocation4] sm:$0x1f] %vm4970, %v4878
        %4975 = vrot.lane.b32.xlu0 %v4966, 64
        %v4976 = vpop.permute.xlu0 %4975
        %s4978 = scalar_lea.vmem [#allocation2], 8
        %4979 = vst.msk [vmem:[%s4978] sm:$0x1f] %vm4970, %v4976
        %4981 = vrot.lane.b32.xlu0 %v4714, 64
        %v4982 = vpop.permute.xlu0 %4981
        %s4984 = scalar_lea.vmem [#allocation3], 8
        %4985 = vst.msk [vmem:[%s4984] sm:$0x1f] %vm4970, %v4982
        %4987 = vrot.lane.b32.xlu0 %v4878, 64
        %v4988 = vpop.permute.xlu0 %4987
        %s4990 = scalar_lea.vmem [#allocation4], 8
        %4991 = vst.msk [vmem:[%s4990] sm:$0x1f] %vm4970, %v4988
        %s4992 = scalar_lea.vmem [#allocation2], 16
        %4993 = vst.msk [vmem:[%s4992] sm:$0x1f] %vm4970, %v4967
        %s4994 = scalar_lea.vmem [#allocation3], 16
        %4995 = vst.msk [vmem:[%s4994] sm:$0x1f] %vm4970, %v4716
        %s4996 = scalar_lea.vmem [#allocation4], 16
        %4997 = vst.msk [vmem:[%s4996] sm:$0x1f] %vm4970, %v4880
        %4999 = vrot.lane.b32.xlu0 %v4967, 64
        %v5000 = vpop.permute.xlu0 %4999
        %s5002 = scalar_lea.vmem [#allocation2], 24
        %5003 = vst.msk [vmem:[%s5002] sm:$0x1f] %vm4970, %v5000
        %5005 = vrot.lane.b32.xlu0 %v4716, 64
        %v5006 = vpop.permute.xlu0 %5005
        %s5008 = scalar_lea.vmem [#allocation3], 24
        %5009 = vst.msk [vmem:[%s5008] sm:$0x1f] %vm4970, %v5006
        %5011 = vrot.lane.b32.xlu0 %v4880, 64
        %v5012 = vpop.permute.xlu0 %5011
        %s5014 = scalar_lea.vmem [#allocation4], 24
        %5015 = vst.msk [vmem:[%s5014] sm:$0x1f] %vm4970, %v5012
        %s5016 = scalar_lea.vmem [#allocation2], 32
        %5017 = vst.msk [vmem:[%s5016] sm:$0x1f] %vm4970, %v4968
        %s5018 = scalar_lea.vmem [#allocation3], 32
        %5019 = vst.msk [vmem:[%s5018] sm:$0x1f] %vm4970, %v4796
        %s5020 = scalar_lea.vmem [#allocation4], 32
        %5021 = vst.msk [vmem:[%s5020] sm:$0x1f] %vm4970, %v4960
        %5023 = vrot.lane.b32.xlu0 %v4968, 64
        %v5024 = vpop.permute.xlu0 %5023
        %s5026 = scalar_lea.vmem [#allocation2], 40
        %5027 = vst.msk [vmem:[%s5026] sm:$0x1f] %vm4970, %v5024
        %5029 = vrot.lane.b32.xlu0 %v4796, 64
        %v5030 = vpop.permute.xlu0 %5029
        %s5032 = scalar_lea.vmem [#allocation3], 40
        %5033 = vst.msk [vmem:[%s5032] sm:$0x1f] %vm4970, %v5030
        %5035 = vrot.lane.b32.xlu0 %v4960, 64
        %v5036 = vpop.permute.xlu0 %5035
        %s5038 = scalar_lea.vmem [#allocation4], 40
        %5039 = vst.msk [vmem:[%s5038] sm:$0x1f] %vm4970, %v5036
        %s5040 = scalar_lea.vmem [#allocation2], 48
        %5041 = vst.msk [vmem:[%s5040] sm:$0x1f] %vm4970, %v4969
        %s5042 = scalar_lea.vmem [#allocation3], 48
        %5043 = vst.msk [vmem:[%s5042] sm:$0x1f] %vm4970, %v4798
        %s5044 = scalar_lea.vmem [#allocation4], 48
        %5045 = vst.msk [vmem:[%s5044] sm:$0x1f] %vm4970, %v4962
        %5047 = vrot.lane.b32.xlu0 %v4969, 64
        %v5048 = vpop.permute.xlu0 %5047
        %s5050 = scalar_lea.vmem [#allocation2], 56
        %5051 = vst.msk [vmem:[%s5050] sm:$0x1f] %vm4970, %v5048
        %5053 = vrot.lane.b32.xlu0 %v4798, 64
        %v5054 = vpop.permute.xlu0 %5053
        %s5056 = scalar_lea.vmem [#allocation3], 56
        %5057 = vst.msk [vmem:[%s5056] sm:$0x1f] %vm4970, %v5054
        %5059 = vrot.lane.b32.xlu0 %v4962, 64
        %v5060 = vpop.permute.xlu0 %5059
        %s5062 = scalar_lea.vmem [#allocation4], 56
        %5063 = vst.msk [vmem:[%s5062] sm:$0x1f] %vm4970, %v5060
        %v5064 = vld [vmem:[#allocation2] sm:$0x1f]
        %v5065 = vld [vmem:[#allocation2 + $0x8] sm:$0x1f]
        %v5066 = vld [vmem:[#allocation2 + $0x10] sm:$0x1f]
        %v5067 = vld [vmem:[#allocation2 + $0x18] sm:$0x1f]
        %v5068 = vld [vmem:[#allocation2 + $0x20] sm:$0x1f]
        %v5069 = vld [vmem:[#allocation2 + $0x28] sm:$0x1f]
        %v5070 = vld [vmem:[#allocation2 + $0x30] sm:$0x1f]
        %v5071 = vld [vmem:[#allocation2 + $0x38] sm:$0x1f]
        %v5072 = vld [vmem:[#allocation3] sm:$0x1f]
        %v5073 = vld [vmem:[#allocation3 + $0x8] sm:$0x1f]
        %v5074 = vld [vmem:[#allocation3 + $0x10] sm:$0x1f]
        %v5075 = vld [vmem:[#allocation3 + $0x18] sm:$0x1f]
        %v5076 = vld [vmem:[#allocation3 + $0x20] sm:$0x1f]
        %v5077 = vld [vmem:[#allocation3 + $0x28] sm:$0x1f]
        %v5078 = vld [vmem:[#allocation3 + $0x30] sm:$0x1f]
        %v5079 = vld [vmem:[#allocation3 + $0x38] sm:$0x1f]
        %v5080 = vld [vmem:[#allocation4] sm:$0x1f]
        %v5081 = vld [vmem:[#allocation4 + $0x8] sm:$0x1f]
        %v5082 = vld [vmem:[#allocation4 + $0x10] sm:$0x1f]
        %v5083 = vld [vmem:[#allocation4 + $0x18] sm:$0x1f]
        %v5084 = vld [vmem:[#allocation4 + $0x20] sm:$0x1f]
        %v5085 = vld [vmem:[#allocation4 + $0x28] sm:$0x1f]
        %v5086 = vld [vmem:[#allocation4 + $0x30] sm:$0x1f]
        %v5087 = vld [vmem:[#allocation4 + $0x38] sm:$0x1f]
        %vm5088 = vcmask 523264
        %v5090 = vsel %vm5088, %v5064, 0
        %v5093 = vsel %vm5088, %v5072, 0
        %5095 = vmatprep.subr.mxu0 0.0
        %5096 = vmatpush1.xpose.msra.mxu0 %v5093
        %5097 = vmatprep.subr.mxu0 0.0
        %5098 = vmatpush1.xpose.msra.mxu0 0.0
        %5099 = vmatprep.subr.mxu0 0.0
        %5100 = vmatpush1.xpose.msra.mxu0 0.0
        %5101 = vmatprep.subr.mxu0 0.0
        %5102 = vmatpush1.xpose.msra.mxu0 0.0
        %5103 = vmatprep.subr.mxu0 0.0
        %5104 = vmatpush1.xpose.msra.mxu0 0.0
        %5105 = vmatprep.subr.mxu0 0.0
        %5106 = vmatpush1.xpose.msra.mxu0 0.0
        %5107 = vmatprep.subr.mxu0 0.0
        %5108 = vmatpush1.xpose.msra.mxu0 0.0
        %5109 = vmatprep.subr.mxu0 0.0
        %5110 = vmatpush1.xpose.msra.mxu0 0.0
        %5111 = vmatprep.subr.mxu0 0.0
        %5112 = vmatpush1.xpose.msra.mxu0 0.0
        %5113 = vmatprep.subr.mxu0 0.0
        %5114 = vmatpush1.xpose.msra.mxu0 0.0
        %5115 = vmatprep.subr.mxu0 0.0
        %5116 = vmatpush1.xpose.msra.mxu0 0.0
        %5117 = vmatprep.subr.mxu0 0.0
        %5118 = vmatpush1.xpose.msra.mxu0 0.0
        %5119 = vmatprep.subr.mxu0 0.0
        %5120 = vmatpush1.xpose.msra.mxu0 0.0
        %5121 = vmatprep.subr.mxu0 0.0
        %5122 = vmatpush1.xpose.msra.mxu0 0.0
        %5123 = vmatprep.subr.mxu0 0.0
        %5124 = vmatpush1.xpose.msra.mxu0 0.0
        %5125 = vmatprep.subr.mxu0 0.0
        %5126 = vmatpush1.xpose.msra.mxu0 0.0
        %5127 = vmatprep.subr.mxu0 0.0
        %5128 = vmatpush1.xpose.msra.mxu0 0.0
        %5129 = vmatprep.subr.mxu0 0.0
        %5130 = vmatpush1.xpose.msra.mxu0 0.0
        %5131 = vmatprep.subr.mxu0 0.0
        %5132 = vmatpush1.xpose.msra.mxu0 0.0
        %5133 = vmatprep.subr.mxu0 0.0
        %5134 = vmatpush1.xpose.msra.mxu0 0.0
        %5135 = vmatprep.subr.mxu0 0.0
        %5136 = vmatpush1.xpose.msra.mxu0 0.0
        %5137 = vmatprep.subr.mxu0 0.0
        %5138 = vmatpush1.xpose.msra.mxu0 0.0
        %5139 = vmatprep.subr.mxu0 0.0
        %5140 = vmatpush1.xpose.msra.mxu0 0.0
        %5141 = vmatprep.subr.mxu0 0.0
        %5142 = vmatpush1.xpose.msra.mxu0 0.0
        %5143 = vmatprep.subr.mxu0 0.0
        %5144 = vmatpush1.xpose.msra.mxu0 0.0
        %5145 = vmatprep.subr.mxu0 0.0
        %5146 = vmatpush1.xpose.msra.mxu0 0.0
        %5147 = vmatprep.subr.mxu0 0.0
        %5148 = vmatpush1.xpose.msra.mxu0 0.0
        %5149 = vmatprep.subr.mxu0 0.0
        %5150 = vmatpush1.xpose.msra.mxu0 0.0
        %5151 = vmatprep.subr.mxu0 0.0
        %5152 = vmatpush1.xpose.msra.mxu0 0.0
        %5153 = vmatprep.subr.mxu0 0.0
        %5154 = vmatpush1.xpose.msra.mxu0 0.0
        %5155 = vmatprep.subr.mxu0 0.0
        %5156 = vmatpush1.xpose.msra.mxu0 0.0
        %5157 = vmatprep.subr.mxu0 0.0
        %5158 = vmatpush1.xpose.msra.mxu0 0.0
        %5159 = vmatprep.mubr.f32.mxu0 0.0
        %5160 = vmatmul.mubr.f32.gmra.mrb[0].mxu0 %v5090
        %v5161 = vpop.f32.mrb[0].mxu0
        %v5162 = vadd.f32 0.0, %v5161
        %v5163 = vpop.f32.mrb[0].mxu0
        %5164 = vdwg.mxu0
        %v5166 = vsel %vm5088, %v5065, 0
        %v5169 = vsel %vm5088, %v5073, 0
        %5171 = vmatprep.subr.mxu0 0.0
        %5172 = vmatpush1.xpose.msra.mxu0 %v5169
        %5173 = vmatprep.subr.mxu0 0.0
        %5174 = vmatpush1.xpose.msra.mxu0 0.0
        %5175 = vmatprep.subr.mxu0 0.0
        %5176 = vmatpush1.xpose.msra.mxu0 0.0
        %5177 = vmatprep.subr.mxu0 0.0
        %5178 = vmatpush1.xpose.msra.mxu0 0.0
        %5179 = vmatprep.subr.mxu0 0.0
        %5180 = vmatpush1.xpose.msra.mxu0 0.0
        %5181 = vmatprep.subr.mxu0 0.0
        %5182 = vmatpush1.xpose.msra.mxu0 0.0
        %5183 = vmatprep.subr.mxu0 0.0
        %5184 = vmatpush1.xpose.msra.mxu0 0.0
        %5185 = vmatprep.subr.mxu0 0.0
        %5186 = vmatpush1.xpose.msra.mxu0 0.0
        %5187 = vmatprep.subr.mxu0 0.0
        %5188 = vmatpush1.xpose.msra.mxu0 0.0
        %5189 = vmatprep.subr.mxu0 0.0
        %5190 = vmatpush1.xpose.msra.mxu0 0.0
        %5191 = vmatprep.subr.mxu0 0.0
        %5192 = vmatpush1.xpose.msra.mxu0 0.0
        %5193 = vmatprep.subr.mxu0 0.0
        %5194 = vmatpush1.xpose.msra.mxu0 0.0
        %5195 = vmatprep.subr.mxu0 0.0
        %5196 = vmatpush1.xpose.msra.mxu0 0.0
        %5197 = vmatprep.subr.mxu0 0.0
        %5198 = vmatpush1.xpose.msra.mxu0 0.0
        %5199 = vmatprep.subr.mxu0 0.0
        %5200 = vmatpush1.xpose.msra.mxu0 0.0
        %5201 = vmatprep.subr.mxu0 0.0
        %5202 = vmatpush1.xpose.msra.mxu0 0.0
        %5203 = vmatprep.subr.mxu0 0.0
        %5204 = vmatpush1.xpose.msra.mxu0 0.0
        %5205 = vmatprep.subr.mxu0 0.0
        %5206 = vmatpush1.xpose.msra.mxu0 0.0
        %5207 = vmatprep.subr.mxu0 0.0
        %5208 = vmatpush1.xpose.msra.mxu0 0.0
        %5209 = vmatprep.subr.mxu0 0.0
        %5210 = vmatpush1.xpose.msra.mxu0 0.0
        %5211 = vmatprep.subr.mxu0 0.0
        %5212 = vmatpush1.xpose.msra.mxu0 0.0
        %5213 = vmatprep.subr.mxu0 0.0
        %5214 = vmatpush1.xpose.msra.mxu0 0.0
        %5215 = vmatprep.subr.mxu0 0.0
        %5216 = vmatpush1.xpose.msra.mxu0 0.0
        %5217 = vmatprep.subr.mxu0 0.0
        %5218 = vmatpush1.xpose.msra.mxu0 0.0
        %5219 = vmatprep.subr.mxu0 0.0
        %5220 = vmatpush1.xpose.msra.mxu0 0.0
        %5221 = vmatprep.subr.mxu0 0.0
        %5222 = vmatpush1.xpose.msra.mxu0 0.0
        %5223 = vmatprep.subr.mxu0 0.0
        %5224 = vmatpush1.xpose.msra.mxu0 0.0
        %5225 = vmatprep.subr.mxu0 0.0
        %5226 = vmatpush1.xpose.msra.mxu0 0.0
        %5227 = vmatprep.subr.mxu0 0.0
        %5228 = vmatpush1.xpose.msra.mxu0 0.0
        %5229 = vmatprep.subr.mxu0 0.0
        %5230 = vmatpush1.xpose.msra.mxu0 0.0
        %5231 = vmatprep.subr.mxu0 0.0
        %5232 = vmatpush1.xpose.msra.mxu0 0.0
        %5233 = vmatprep.subr.mxu0 0.0
        %5234 = vmatpush1.xpose.msra.mxu0 0.0
        %5235 = vmatprep.mubr.f32.mxu0 0.0
        %5236 = vmatmul.mubr.f32.gmra.mrb[0].mxu0 %v5166
        %v5237 = vpop.f32.mrb[0].mxu0
        %v5238 = vadd.f32 0.0, %v5237
        %v5239 = vpop.f32.mrb[0].mxu0
        %5240 = vdwg.mxu0
        %v5242 = vsel %vm5088, %v5066, 0
        %v5245 = vsel %vm5088, %v5074, 0
        %5247 = vmatprep.subr.mxu0 0.0
        %5248 = vmatpush1.xpose.msra.mxu0 %v5245
        %5249 = vmatprep.subr.mxu0 0.0
        %5250 = vmatpush1.xpose.msra.mxu0 0.0
        %5251 = vmatprep.subr.mxu0 0.0
        %5252 = vmatpush1.xpose.msra.mxu0 0.0
        %5253 = vmatprep.subr.mxu0 0.0
        %5254 = vmatpush1.xpose.msra.mxu0 0.0
        %5255 = vmatprep.subr.mxu0 0.0
        %5256 = vmatpush1.xpose.msra.mxu0 0.0
        %5257 = vmatprep.subr.mxu0 0.0
        %5258 = vmatpush1.xpose.msra.mxu0 0.0
        %5259 = vmatprep.subr.mxu0 0.0
        %5260 = vmatpush1.xpose.msra.mxu0 0.0
        %5261 = vmatprep.subr.mxu0 0.0
        %5262 = vmatpush1.xpose.msra.mxu0 0.0
        %5263 = vmatprep.subr.mxu0 0.0
        %5264 = vmatpush1.xpose.msra.mxu0 0.0
        %5265 = vmatprep.subr.mxu0 0.0
        %5266 = vmatpush1.xpose.msra.mxu0 0.0
        %5267 = vmatprep.subr.mxu0 0.0
        %5268 = vmatpush1.xpose.msra.mxu0 0.0
        %5269 = vmatprep.subr.mxu0 0.0
        %5270 = vmatpush1.xpose.msra.mxu0 0.0
        %5271 = vmatprep.subr.mxu0 0.0
        %5272 = vmatpush1.xpose.msra.mxu0 0.0
        %5273 = vmatprep.subr.mxu0 0.0
        %5274 = vmatpush1.xpose.msra.mxu0 0.0
        %5275 = vmatprep.subr.mxu0 0.0
        %5276 = vmatpush1.xpose.msra.mxu0 0.0
        %5277 = vmatprep.subr.mxu0 0.0
        %5278 = vmatpush1.xpose.msra.mxu0 0.0
        %5279 = vmatprep.subr.mxu0 0.0
        %5280 = vmatpush1.xpose.msra.mxu0 0.0
        %5281 = vmatprep.subr.mxu0 0.0
        %5282 = vmatpush1.xpose.msra.mxu0 0.0
        %5283 = vmatprep.subr.mxu0 0.0
        %5284 = vmatpush1.xpose.msra.mxu0 0.0
        %5285 = vmatprep.subr.mxu0 0.0
        %5286 = vmatpush1.xpose.msra.mxu0 0.0
        %5287 = vmatprep.subr.mxu0 0.0
        %5288 = vmatpush1.xpose.msra.mxu0 0.0
        %5289 = vmatprep.subr.mxu0 0.0
        %5290 = vmatpush1.xpose.msra.mxu0 0.0
        %5291 = vmatprep.subr.mxu0 0.0
        %5292 = vmatpush1.xpose.msra.mxu0 0.0
        %5293 = vmatprep.subr.mxu0 0.0
        %5294 = vmatpush1.xpose.msra.mxu0 0.0
        %5295 = vmatprep.subr.mxu0 0.0
        %5296 = vmatpush1.xpose.msra.mxu0 0.0
        %5297 = vmatprep.subr.mxu0 0.0
        %5298 = vmatpush1.xpose.msra.mxu0 0.0
        %5299 = vmatprep.subr.mxu0 0.0
        %5300 = vmatpush1.xpose.msra.mxu0 0.0
        %5301 = vmatprep.subr.mxu0 0.0
        %5302 = vmatpush1.xpose.msra.mxu0 0.0
        %5303 = vmatprep.subr.mxu0 0.0
        %5304 = vmatpush1.xpose.msra.mxu0 0.0
        %5305 = vmatprep.subr.mxu0 0.0
        %5306 = vmatpush1.xpose.msra.mxu0 0.0
        %5307 = vmatprep.subr.mxu0 0.0
        %5308 = vmatpush1.xpose.msra.mxu0 0.0
        %5309 = vmatprep.subr.mxu0 0.0
        %5310 = vmatpush1.xpose.msra.mxu0 0.0
        %5311 = vmatprep.mubr.f32.mxu0 0.0
        %5312 = vmatmul.mubr.f32.gmra.mrb[0].mxu0 %v5242
        %v5313 = vpop.f32.mrb[0].mxu0
        %v5314 = vadd.f32 0.0, %v5313
        %v5315 = vpop.f32.mrb[0].mxu0
        %5316 = vdwg.mxu0
        %v5318 = vsel %vm5088, %v5067, 0
        %v5321 = vsel %vm5088, %v5075, 0
        %5323 = vmatprep.subr.mxu0 0.0
        %5324 = vmatpush1.xpose.msra.mxu0 %v5321
        %5325 = vmatprep.subr.mxu0 0.0
        %5326 = vmatpush1.xpose.msra.mxu0 0.0
        %5327 = vmatprep.subr.mxu0 0.0
        %5328 = vmatpush1.xpose.msra.mxu0 0.0
        %5329 = vmatprep.subr.mxu0 0.0
        %5330 = vmatpush1.xpose.msra.mxu0 0.0
        %5331 = vmatprep.subr.mxu0 0.0
        %5332 = vmatpush1.xpose.msra.mxu0 0.0
        %5333 = vmatprep.subr.mxu0 0.0
        %5334 = vmatpush1.xpose.msra.mxu0 0.0
        %5335 = vmatprep.subr.mxu0 0.0
        %5336 = vmatpush1.xpose.msra.mxu0 0.0
        %5337 = vmatprep.subr.mxu0 0.0
        %5338 = vmatpush1.xpose.msra.mxu0 0.0
        %5339 = vmatprep.subr.mxu0 0.0
        %5340 = vmatpush1.xpose.msra.mxu0 0.0
        %5341 = vmatprep.subr.mxu0 0.0
        %5342 = vmatpush1.xpose.msra.mxu0 0.0
        %5343 = vmatprep.subr.mxu0 0.0
        %5344 = vmatpush1.xpose.msra.mxu0 0.0
        %5345 = vmatprep.subr.mxu0 0.0
        %5346 = vmatpush1.xpose.msra.mxu0 0.0
        %5347 = vmatprep.subr.mxu0 0.0
        %5348 = vmatpush1.xpose.msra.mxu0 0.0
        %5349 = vmatprep.subr.mxu0 0.0
        %5350 = vmatpush1.xpose.msra.mxu0 0.0
        %5351 = vmatprep.subr.mxu0 0.0
        %5352 = vmatpush1.xpose.msra.mxu0 0.0
        %5353 = vmatprep.subr.mxu0 0.0
        %5354 = vmatpush1.xpose.msra.mxu0 0.0
        %5355 = vmatprep.subr.mxu0 0.0
        %5356 = vmatpush1.xpose.msra.mxu0 0.0
        %5357 = vmatprep.subr.mxu0 0.0
        %5358 = vmatpush1.xpose.msra.mxu0 0.0
        %5359 = vmatprep.subr.mxu0 0.0
        %5360 = vmatpush1.xpose.msra.mxu0 0.0
        %5361 = vmatprep.subr.mxu0 0.0
        %5362 = vmatpush1.xpose.msra.mxu0 0.0
        %5363 = vmatprep.subr.mxu0 0.0
        %5364 = vmatpush1.xpose.msra.mxu0 0.0
        %5365 = vmatprep.subr.mxu0 0.0
        %5366 = vmatpush1.xpose.msra.mxu0 0.0
        %5367 = vmatprep.subr.mxu0 0.0
        %5368 = vmatpush1.xpose.msra.mxu0 0.0
        %5369 = vmatprep.subr.mxu0 0.0
        %5370 = vmatpush1.xpose.msra.mxu0 0.0
        %5371 = vmatprep.subr.mxu0 0.0
        %5372 = vmatpush1.xpose.msra.mxu0 0.0
        %5373 = vmatprep.subr.mxu0 0.0
        %5374 = vmatpush1.xpose.msra.mxu0 0.0
        %5375 = vmatprep.subr.mxu0 0.0
        %5376 = vmatpush1.xpose.msra.mxu0 0.0
        %5377 = vmatprep.subr.mxu0 0.0
        %5378 = vmatpush1.xpose.msra.mxu0 0.0
        %5379 = vmatprep.subr.mxu0 0.0
        %5380 = vmatpush1.xpose.msra.mxu0 0.0
        %5381 = vmatprep.subr.mxu0 0.0
        %5382 = vmatpush1.xpose.msra.mxu0 0.0
        %5383 = vmatprep.subr.mxu0 0.0
        %5384 = vmatpush1.xpose.msra.mxu0 0.0
        %5385 = vmatprep.subr.mxu0 0.0
        %5386 = vmatpush1.xpose.msra.mxu0 0.0
        %5387 = vmatprep.mubr.f32.mxu0 0.0
        %5388 = vmatmul.mubr.f32.gmra.mrb[0].mxu0 %v5318
        %v5389 = vpop.f32.mrb[0].mxu0
        %v5390 = vadd.f32 0.0, %v5389
        %v5391 = vpop.f32.mrb[0].mxu0
        %5392 = vdwg.mxu0
        %v5394 = vsel %vm5088, %v5068, 0
        %v5397 = vsel %vm5088, %v5076, 0
        %5399 = vmatprep.subr.mxu0 0.0
        %5400 = vmatpush1.xpose.msra.mxu0 %v5397
        %5401 = vmatprep.subr.mxu0 0.0
        %5402 = vmatpush1.xpose.msra.mxu0 0.0
        %5403 = vmatprep.subr.mxu0 0.0
        %5404 = vmatpush1.xpose.msra.mxu0 0.0
        %5405 = vmatprep.subr.mxu0 0.0
        %5406 = vmatpush1.xpose.msra.mxu0 0.0
        %5407 = vmatprep.subr.mxu0 0.0
        %5408 = vmatpush1.xpose.msra.mxu0 0.0
        %5409 = vmatprep.subr.mxu0 0.0
        %5410 = vmatpush1.xpose.msra.mxu0 0.0
        %5411 = vmatprep.subr.mxu0 0.0
        %5412 = vmatpush1.xpose.msra.mxu0 0.0
        %5413 = vmatprep.subr.mxu0 0.0
        %5414 = vmatpush1.xpose.msra.mxu0 0.0
        %5415 = vmatprep.subr.mxu0 0.0
        %5416 = vmatpush1.xpose.msra.mxu0 0.0
        %5417 = vmatprep.subr.mxu0 0.0
        %5418 = vmatpush1.xpose.msra.mxu0 0.0
        %5419 = vmatprep.subr.mxu0 0.0
        %5420 = vmatpush1.xpose.msra.mxu0 0.0
        %5421 = vmatprep.subr.mxu0 0.0
        %5422 = vmatpush1.xpose.msra.mxu0 0.0
        %5423 = vmatprep.subr.mxu0 0.0
        %5424 = vmatpush1.xpose.msra.mxu0 0.0
        %5425 = vmatprep.subr.mxu0 0.0
        %5426 = vmatpush1.xpose.msra.mxu0 0.0
        %5427 = vmatprep.subr.mxu0 0.0
        %5428 = vmatpush1.xpose.msra.mxu0 0.0
        %5429 = vmatprep.subr.mxu0 0.0
        %5430 = vmatpush1.xpose.msra.mxu0 0.0
        %5431 = vmatprep.subr.mxu0 0.0
        %5432 = vmatpush1.xpose.msra.mxu0 0.0
        %5433 = vmatprep.subr.mxu0 0.0
        %5434 = vmatpush1.xpose.msra.mxu0 0.0
        %5435 = vmatprep.subr.mxu0 0.0
        %5436 = vmatpush1.xpose.msra.mxu0 0.0
        %5437 = vmatprep.subr.mxu0 0.0
        %5438 = vmatpush1.xpose.msra.mxu0 0.0
        %5439 = vmatprep.subr.mxu0 0.0
        %5440 = vmatpush1.xpose.msra.mxu0 0.0
        %5441 = vmatprep.subr.mxu0 0.0
        %5442 = vmatpush1.xpose.msra.mxu0 0.0
        %5443 = vmatprep.subr.mxu0 0.0
        %5444 = vmatpush1.xpose.msra.mxu0 0.0
        %5445 = vmatprep.subr.mxu0 0.0
        %5446 = vmatpush1.xpose.msra.mxu0 0.0
        %5447 = vmatprep.subr.mxu0 0.0
        %5448 = vmatpush1.xpose.msra.mxu0 0.0
        %5449 = vmatprep.subr.mxu0 0.0
        %5450 = vmatpush1.xpose.msra.mxu0 0.0
        %5451 = vmatprep.subr.mxu0 0.0
        %5452 = vmatpush1.xpose.msra.mxu0 0.0
        %5453 = vmatprep.subr.mxu0 0.0
        %5454 = vmatpush1.xpose.msra.mxu0 0.0
        %5455 = vmatprep.subr.mxu0 0.0
        %5456 = vmatpush1.xpose.msra.mxu0 0.0
        %5457 = vmatprep.subr.mxu0 0.0
        %5458 = vmatpush1.xpose.msra.mxu0 0.0
        %5459 = vmatprep.subr.mxu0 0.0
        %5460 = vmatpush1.xpose.msra.mxu0 0.0
        %5461 = vmatprep.subr.mxu0 0.0
        %5462 = vmatpush1.xpose.msra.mxu0 0.0
        %5463 = vmatprep.mubr.f32.mxu0 0.0
        %5464 = vmatmul.mubr.f32.gmra.mrb[0].mxu0 %v5394
        %v5465 = vpop.f32.mrb[0].mxu0
        %v5466 = vadd.f32 0.0, %v5465
        %v5467 = vpop.f32.mrb[0].mxu0
        %5468 = vdwg.mxu0
        %v5470 = vsel %vm5088, %v5069, 0
        %v5473 = vsel %vm5088, %v5077, 0
        %5475 = vmatprep.subr.mxu0 0.0
        %5476 = vmatpush1.xpose.msra.mxu0 %v5473
        %5477 = vmatprep.subr.mxu0 0.0
        %5478 = vmatpush1.xpose.msra.mxu0 0.0
        %5479 = vmatprep.subr.mxu0 0.0
        %5480 = vmatpush1.xpose.msra.mxu0 0.0
        %5481 = vmatprep.subr.mxu0 0.0
        %5482 = vmatpush1.xpose.msra.mxu0 0.0
        %5483 = vmatprep.subr.mxu0 0.0
        %5484 = vmatpush1.xpose.msra.mxu0 0.0
        %5485 = vmatprep.subr.mxu0 0.0
        %5486 = vmatpush1.xpose.msra.mxu0 0.0
        %5487 = vmatprep.subr.mxu0 0.0
        %5488 = vmatpush1.xpose.msra.mxu0 0.0
        %5489 = vmatprep.subr.mxu0 0.0
        %5490 = vmatpush1.xpose.msra.mxu0 0.0
        %5491 = vmatprep.subr.mxu0 0.0
        %5492 = vmatpush1.xpose.msra.mxu0 0.0
        %5493 = vmatprep.subr.mxu0 0.0
        %5494 = vmatpush1.xpose.msra.mxu0 0.0
        %5495 = vmatprep.subr.mxu0 0.0
        %5496 = vmatpush1.xpose.msra.mxu0 0.0
        %5497 = vmatprep.subr.mxu0 0.0
        %5498 = vmatpush1.xpose.msra.mxu0 0.0
        %5499 = vmatprep.subr.mxu0 0.0
        %5500 = vmatpush1.xpose.msra.mxu0 0.0
        %5501 = vmatprep.subr.mxu0 0.0
        %5502 = vmatpush1.xpose.msra.mxu0 0.0
        %5503 = vmatprep.subr.mxu0 0.0
        %5504 = vmatpush1.xpose.msra.mxu0 0.0
        %5505 = vmatprep.subr.mxu0 0.0
        %5506 = vmatpush1.xpose.msra.mxu0 0.0
        %5507 = vmatprep.subr.mxu0 0.0
        %5508 = vmatpush1.xpose.msra.mxu0 0.0
        %5509 = vmatprep.subr.mxu0 0.0
        %5510 = vmatpush1.xpose.msra.mxu0 0.0
        %5511 = vmatprep.subr.mxu0 0.0
        %5512 = vmatpush1.xpose.msra.mxu0 0.0
        %5513 = vmatprep.subr.mxu0 0.0
        %5514 = vmatpush1.xpose.msra.mxu0 0.0
        %5515 = vmatprep.subr.mxu0 0.0
        %5516 = vmatpush1.xpose.msra.mxu0 0.0
        %5517 = vmatprep.subr.mxu0 0.0
        %5518 = vmatpush1.xpose.msra.mxu0 0.0
        %5519 = vmatprep.subr.mxu0 0.0
        %5520 = vmatpush1.xpose.msra.mxu0 0.0
        %5521 = vmatprep.subr.mxu0 0.0
        %5522 = vmatpush1.xpose.msra.mxu0 0.0
        %5523 = vmatprep.subr.mxu0 0.0
        %5524 = vmatpush1.xpose.msra.mxu0 0.0
        %5525 = vmatprep.subr.mxu0 0.0
        %5526 = vmatpush1.xpose.msra.mxu0 0.0
        %5527 = vmatprep.subr.mxu0 0.0
        %5528 = vmatpush1.xpose.msra.mxu0 0.0
        %5529 = vmatprep.subr.mxu0 0.0
        %5530 = vmatpush1.xpose.msra.mxu0 0.0
        %5531 = vmatprep.subr.mxu0 0.0
        %5532 = vmatpush1.xpose.msra.mxu0 0.0
        %5533 = vmatprep.subr.mxu0 0.0
        %5534 = vmatpush1.xpose.msra.mxu0 0.0
        %5535 = vmatprep.subr.mxu0 0.0
        %5536 = vmatpush1.xpose.msra.mxu0 0.0
        %5537 = vmatprep.subr.mxu0 0.0
        %5538 = vmatpush1.xpose.msra.mxu0 0.0
        %5539 = vmatprep.mubr.f32.mxu0 0.0
        %5540 = vmatmul.mubr.f32.gmra.mrb[0].mxu0 %v5470
        %v5541 = vpop.f32.mrb[0].mxu0
        %v5542 = vadd.f32 0.0, %v5541
        %v5543 = vpop.f32.mrb[0].mxu0
        %5544 = vdwg.mxu0
        %v5546 = vsel %vm5088, %v5070, 0
        %v5549 = vsel %vm5088, %v5078, 0
        %5551 = vmatprep.subr.mxu0 0.0
        %5552 = vmatpush1.xpose.msra.mxu0 %v5549
        %5553 = vmatprep.subr.mxu0 0.0
        %5554 = vmatpush1.xpose.msra.mxu0 0.0
        %5555 = vmatprep.subr.mxu0 0.0
        %5556 = vmatpush1.xpose.msra.mxu0 0.0
        %5557 = vmatprep.subr.mxu0 0.0
        %5558 = vmatpush1.xpose.msra.mxu0 0.0
        %5559 = vmatprep.subr.mxu0 0.0
        %5560 = vmatpush1.xpose.msra.mxu0 0.0
        %5561 = vmatprep.subr.mxu0 0.0
        %5562 = vmatpush1.xpose.msra.mxu0 0.0
        %5563 = vmatprep.subr.mxu0 0.0
        %5564 = vmatpush1.xpose.msra.mxu0 0.0
        %5565 = vmatprep.subr.mxu0 0.0
        %5566 = vmatpush1.xpose.msra.mxu0 0.0
        %5567 = vmatprep.subr.mxu0 0.0
        %5568 = vmatpush1.xpose.msra.mxu0 0.0
        %5569 = vmatprep.subr.mxu0 0.0
        %5570 = vmatpush1.xpose.msra.mxu0 0.0
        %5571 = vmatprep.subr.mxu0 0.0
        %5572 = vmatpush1.xpose.msra.mxu0 0.0
        %5573 = vmatprep.subr.mxu0 0.0
        %5574 = vmatpush1.xpose.msra.mxu0 0.0
        %5575 = vmatprep.subr.mxu0 0.0
        %5576 = vmatpush1.xpose.msra.mxu0 0.0
        %5577 = vmatprep.subr.mxu0 0.0
        %5578 = vmatpush1.xpose.msra.mxu0 0.0
        %5579 = vmatprep.subr.mxu0 0.0
        %5580 = vmatpush1.xpose.msra.mxu0 0.0
        %5581 = vmatprep.subr.mxu0 0.0
        %5582 = vmatpush1.xpose.msra.mxu0 0.0
        %5583 = vmatprep.subr.mxu0 0.0
        %5584 = vmatpush1.xpose.msra.mxu0 0.0
        %5585 = vmatprep.subr.mxu0 0.0
        %5586 = vmatpush1.xpose.msra.mxu0 0.0
        %5587 = vmatprep.subr.mxu0 0.0
        %5588 = vmatpush1.xpose.msra.mxu0 0.0
        %5589 = vmatprep.subr.mxu0 0.0
        %5590 = vmatpush1.xpose.msra.mxu0 0.0
        %5591 = vmatprep.subr.mxu0 0.0
        %5592 = vmatpush1.xpose.msra.mxu0 0.0
        %5593 = vmatprep.subr.mxu0 0.0
        %5594 = vmatpush1.xpose.msra.mxu0 0.0
        %5595 = vmatprep.subr.mxu0 0.0
        %5596 = vmatpush1.xpose.msra.mxu0 0.0
        %5597 = vmatprep.subr.mxu0 0.0
        %5598 = vmatpush1.xpose.msra.mxu0 0.0
        %5599 = vmatprep.subr.mxu0 0.0
        %5600 = vmatpush1.xpose.msra.mxu0 0.0
        %5601 = vmatprep.subr.mxu0 0.0
        %5602 = vmatpush1.xpose.msra.mxu0 0.0
        %5603 = vmatprep.subr.mxu0 0.0
        %5604 = vmatpush1.xpose.msra.mxu0 0.0
        %5605 = vmatprep.subr.mxu0 0.0
        %5606 = vmatpush1.xpose.msra.mxu0 0.0
        %5607 = vmatprep.subr.mxu0 0.0
        %5608 = vmatpush1.xpose.msra.mxu0 0.0
        %5609 = vmatprep.subr.mxu0 0.0
        %5610 = vmatpush1.xpose.msra.mxu0 0.0
        %5611 = vmatprep.subr.mxu0 0.0
        %5612 = vmatpush1.xpose.msra.mxu0 0.0
        %5613 = vmatprep.subr.mxu0 0.0
        %5614 = vmatpush1.xpose.msra.mxu0 0.0
        %5615 = vmatprep.mubr.f32.mxu0 0.0
        %5616 = vmatmul.mubr.f32.gmra.mrb[0].mxu0 %v5546
        %v5617 = vpop.f32.mrb[0].mxu0
        %v5618 = vadd.f32 0.0, %v5617
        %v5619 = vpop.f32.mrb[0].mxu0
        %5620 = vdwg.mxu0
        %v5622 = vsel %vm5088, %v5071, 0
        %v5625 = vsel %vm5088, %v5079, 0
        %5627 = vmatprep.subr.mxu0 0.0
        %5628 = vmatpush1.xpose.msra.mxu0 %v5625
        %5629 = vmatprep.subr.mxu0 0.0
        %5630 = vmatpush1.xpose.msra.mxu0 0.0
        %5631 = vmatprep.subr.mxu0 0.0
        %5632 = vmatpush1.xpose.msra.mxu0 0.0
        %5633 = vmatprep.subr.mxu0 0.0
        %5634 = vmatpush1.xpose.msra.mxu0 0.0
        %5635 = vmatprep.subr.mxu0 0.0
        %5636 = vmatpush1.xpose.msra.mxu0 0.0
        %5637 = vmatprep.subr.mxu0 0.0
        %5638 = vmatpush1.xpose.msra.mxu0 0.0
        %5639 = vmatprep.subr.mxu0 0.0
        %5640 = vmatpush1.xpose.msra.mxu0 0.0
        %5641 = vmatprep.subr.mxu0 0.0
        %5642 = vmatpush1.xpose.msra.mxu0 0.0
        %5643 = vmatprep.subr.mxu0 0.0
        %5644 = vmatpush1.xpose.msra.mxu0 0.0
        %5645 = vmatprep.subr.mxu0 0.0
        %5646 = vmatpush1.xpose.msra.mxu0 0.0
        %5647 = vmatprep.subr.mxu0 0.0
        %5648 = vmatpush1.xpose.msra.mxu0 0.0
        %5649 = vmatprep.subr.mxu0 0.0
        %5650 = vmatpush1.xpose.msra.mxu0 0.0
        %5651 = vmatprep.subr.mxu0 0.0
        %5652 = vmatpush1.xpose.msra.mxu0 0.0
        %5653 = vmatprep.subr.mxu0 0.0
        %5654 = vmatpush1.xpose.msra.mxu0 0.0
        %5655 = vmatprep.subr.mxu0 0.0
        %5656 = vmatpush1.xpose.msra.mxu0 0.0
        %5657 = vmatprep.subr.mxu0 0.0
        %5658 = vmatpush1.xpose.msra.mxu0 0.0
        %5659 = vmatprep.subr.mxu0 0.0
        %5660 = vmatpush1.xpose.msra.mxu0 0.0
        %5661 = vmatprep.subr.mxu0 0.0
        %5662 = vmatpush1.xpose.msra.mxu0 0.0
        %5663 = vmatprep.subr.mxu0 0.0
        %5664 = vmatpush1.xpose.msra.mxu0 0.0
        %5665 = vmatprep.subr.mxu0 0.0
        %5666 = vmatpush1.xpose.msra.mxu0 0.0
        %5667 = vmatprep.subr.mxu0 0.0
        %5668 = vmatpush1.xpose.msra.mxu0 0.0
        %5669 = vmatprep.subr.mxu0 0.0
        %5670 = vmatpush1.xpose.msra.mxu0 0.0
        %5671 = vmatprep.subr.mxu0 0.0
        %5672 = vmatpush1.xpose.msra.mxu0 0.0
        %5673 = vmatprep.subr.mxu0 0.0
        %5674 = vmatpush1.xpose.msra.mxu0 0.0
        %5675 = vmatprep.subr.mxu0 0.0
        %5676 = vmatpush1.xpose.msra.mxu0 0.0
        %5677 = vmatprep.subr.mxu0 0.0
        %5678 = vmatpush1.xpose.msra.mxu0 0.0
        %5679 = vmatprep.subr.mxu0 0.0
        %5680 = vmatpush1.xpose.msra.mxu0 0.0
        %5681 = vmatprep.subr.mxu0 0.0
        %5682 = vmatpush1.xpose.msra.mxu0 0.0
        %5683 = vmatprep.subr.mxu0 0.0
        %5684 = vmatpush1.xpose.msra.mxu0 0.0
        %5685 = vmatprep.subr.mxu0 0.0
        %5686 = vmatpush1.xpose.msra.mxu0 0.0
        %5687 = vmatprep.subr.mxu0 0.0
        %5688 = vmatpush1.xpose.msra.mxu0 0.0
        %5689 = vmatprep.subr.mxu0 0.0
        %5690 = vmatpush1.xpose.msra.mxu0 0.0
        %5691 = vmatprep.mubr.f32.mxu0 0.0
        %5692 = vmatmul.mubr.f32.gmra.mrb[0].mxu0 %v5622
        %v5693 = vpop.f32.mrb[0].mxu0
        %v5694 = vadd.f32 0.0, %v5693
        %v5695 = vpop.f32.mrb[0].mxu0
        %5696 = vdwg.mxu0
        %vm5697 = vcmask 36864
        %v5698 = vsel %vm5697, %v5162, -inf
        %5699 = vmax.xlane.f32.xlu0 %v5698
        %v5700 = vpop.xlane.xlu0 %5699
        %v5701 = vsel %vm5697, %v5238, -inf
        %5702 = vmax.xlane.f32.xlu0 %v5701
        %v5703 = vpop.xlane.xlu0 %5702
        %v5704 = vsel %vm5697, %v5314, -inf
        %5705 = vmax.xlane.f32.xlu0 %v5704
        %v5706 = vpop.xlane.xlu0 %5705
        %v5707 = vsel %vm5697, %v5390, -inf
        %5708 = vmax.xlane.f32.xlu0 %v5707
        %v5709 = vpop.xlane.xlu0 %5708
        %v5710 = vsel %vm5697, %v5466, -inf
        %5711 = vmax.xlane.f32.xlu0 %v5710
        %v5712 = vpop.xlane.xlu0 %5711
        %v5713 = vsel %vm5697, %v5542, -inf
        %5714 = vmax.xlane.f32.xlu0 %v5713
        %v5715 = vpop.xlane.xlu0 %5714
        %v5716 = vsel %vm5697, %v5618, -inf
        %5717 = vmax.xlane.f32.xlu0 %v5716
        %v5718 = vpop.xlane.xlu0 %5717
        %v5719 = vsel %vm5697, %v5694, -inf
        %5720 = vmax.xlane.f32.xlu0 %v5719
        %v5721 = vpop.xlane.xlu0 %5720
        %v5722 = vsub.f32 %v5162, %v5700
        %v5723 = vsub.f32 %v5238, %v5703
        %v5724 = vsub.f32 %v5314, %v5706
        %v5725 = vsub.f32 %v5390, %v5709
        %v5726 = vsub.f32 %v5466, %v5712
        %v5727 = vsub.f32 %v5542, %v5715
        %v5728 = vsub.f32 %v5618, %v5718
        %v5729 = vsub.f32 %v5694, %v5721
        %v5730 = vmul.f32 %v5722, 1.442695
        %v5731 = vpow.pop %v5730
        %v5732 = vmul.f32 %v5723, 1.442695
        %v5733 = vpow.pop %v5732
        %v5734 = vmul.f32 %v5724, 1.442695
        %v5735 = vpow.pop %v5734
        %v5736 = vmul.f32 %v5725, 1.442695
        %v5737 = vpow.pop %v5736
        %v5738 = vmul.f32 %v5726, 1.442695
        %v5739 = vpow.pop %v5738
        %v5740 = vmul.f32 %v5727, 1.442695
        %v5741 = vpow.pop %v5740
        %v5742 = vmul.f32 %v5728, 1.442695
        %v5743 = vpow.pop %v5742
        %v5744 = vmul.f32 %v5729, 1.442695
        %v5745 = vpow.pop %v5744
        %v5746 = vsel %vm5697, %v5731, 0.0
        %5747 = vadd.xlane.f32.xlu0 %v5746
        %v5748 = vpop.xlane.xlu0 %5747
        %v5749 = vsel %vm5697, %v5733, 0.0
        %5750 = vadd.xlane.f32.xlu0 %v5749
        %v5751 = vpop.xlane.xlu0 %5750
        %v5752 = vsel %vm5697, %v5735, 0.0
        %5753 = vadd.xlane.f32.xlu0 %v5752
        %v5754 = vpop.xlane.xlu0 %5753
        %v5755 = vsel %vm5697, %v5737, 0.0
        %5756 = vadd.xlane.f32.xlu0 %v5755
        %v5757 = vpop.xlane.xlu0 %5756
        %v5758 = vsel %vm5697, %v5739, 0.0
        %5759 = vadd.xlane.f32.xlu0 %v5758
        %v5760 = vpop.xlane.xlu0 %5759
        %v5761 = vsel %vm5697, %v5741, 0.0
        %5762 = vadd.xlane.f32.xlu0 %v5761
        %v5763 = vpop.xlane.xlu0 %5762
        %v5764 = vsel %vm5697, %v5743, 0.0
        %5765 = vadd.xlane.f32.xlu0 %v5764
        %v5766 = vpop.xlane.xlu0 %5765
        %v5767 = vsel %vm5697, %v5745, 0.0
        %5768 = vadd.xlane.f32.xlu0 %v5767
        %v5769 = vpop.xlane.xlu0 %5768
        %v5770 = vrcp.pop %v5748
        %v5771 = vrcp.pop %v5751
        %v5772 = vrcp.pop %v5754
        %v5773 = vrcp.pop %v5757
        %v5774 = vrcp.pop %v5760
        %v5775 = vrcp.pop %v5763
        %v5776 = vrcp.pop %v5766
        %v5777 = vrcp.pop %v5769
        %v5778 = vmul.f32 %v5731, %v5770
        %v5779 = vmul.f32 %v5733, %v5771
        %v5780 = vmul.f32 %v5735, %v5772
        %v5781 = vmul.f32 %v5737, %v5773
        %v5782 = vmul.f32 %v5739, %v5774
        %v5783 = vmul.f32 %v5741, %v5775
        %v5784 = vmul.f32 %v5743, %v5776
        %v5785 = vmul.f32 %v5745, %v5777
        %vm5786 = vcmask 39936
        %v5788 = vsel %vm5786, %v5778, 0
        %v5791 = vsel %vm2016, %v5080, 0
        %5793 = vmatprep.subr.mxu0 0.0
        %5794 = vmatpush1.msra.mxu0 %v5791
        %5795 = vmatprep.subr.mxu0 0.0
        %5796 = vmatpush1.msra.mxu0 0.0
        %5797 = vmatprep.subr.mxu0 0.0
        %5798 = vmatpush1.msra.mxu0 0.0
        %5799 = vmatprep.subr.mxu0 0.0
        %5800 = vmatpush1.msra.mxu0 0.0
        %5801 = vmatprep.subr.mxu0 0.0
        %5802 = vmatpush1.msra.mxu0 0.0
        %5803 = vmatprep.subr.mxu0 0.0
        %5804 = vmatpush1.msra.mxu0 0.0
        %5805 = vmatprep.subr.mxu0 0.0
        %5806 = vmatpush1.msra.mxu0 0.0
        %5807 = vmatprep.subr.mxu0 0.0
        %5808 = vmatpush1.msra.mxu0 0.0
        %5809 = vmatprep.subr.mxu0 0.0
        %5810 = vmatpush1.msra.mxu0 0.0
        %5811 = vmatprep.subr.mxu0 0.0
        %5812 = vmatpush1.msra.mxu0 0.0
        %5813 = vmatprep.subr.mxu0 0.0
        %5814 = vmatpush1.msra.mxu0 0.0
        %5815 = vmatprep.subr.mxu0 0.0
        %5816 = vmatpush1.msra.mxu0 0.0
        %5817 = vmatprep.subr.mxu0 0.0
        %5818 = vmatpush1.msra.mxu0 0.0
        %5819 = vmatprep.subr.mxu0 0.0
        %5820 = vmatpush1.msra.mxu0 0.0
        %5821 = vmatprep.subr.mxu0 0.0
        %5822 = vmatpush1.msra.mxu0 0.0
        %5823 = vmatprep.subr.mxu0 0.0
        %5824 = vmatpush1.msra.mxu0 0.0
        %5825 = vmatprep.subr.mxu0 0.0
        %5826 = vmatpush1.msra.mxu0 0.0
        %5827 = vmatprep.subr.mxu0 0.0
        %5828 = vmatpush1.msra.mxu0 0.0
        %5829 = vmatprep.subr.mxu0 0.0
        %5830 = vmatpush1.msra.mxu0 0.0
        %5831 = vmatprep.subr.mxu0 0.0
        %5832 = vmatpush1.msra.mxu0 0.0
        %5833 = vmatprep.subr.mxu0 0.0
        %5834 = vmatpush1.msra.mxu0 0.0
        %5835 = vmatprep.subr.mxu0 0.0
        %5836 = vmatpush1.msra.mxu0 0.0
        %5837 = vmatprep.subr.mxu0 0.0
        %5838 = vmatpush1.msra.mxu0 0.0
        %5839 = vmatprep.subr.mxu0 0.0
        %5840 = vmatpush1.msra.mxu0 0.0
        %5841 = vmatprep.subr.mxu0 0.0
        %5842 = vmatpush1.msra.mxu0 0.0
        %5843 = vmatprep.subr.mxu0 0.0
        %5844 = vmatpush1.msra.mxu0 0.0
        %5845 = vmatprep.subr.mxu0 0.0
        %5846 = vmatpush1.msra.mxu0 0.0
        %5847 = vmatprep.subr.mxu0 0.0
        %5848 = vmatpush1.msra.mxu0 0.0
        %5849 = vmatprep.subr.mxu0 0.0
        %5850 = vmatpush1.msra.mxu0 0.0
        %5851 = vmatprep.subr.mxu0 0.0
        %5852 = vmatpush1.msra.mxu0 0.0
        %5853 = vmatprep.subr.mxu0 0.0
        %5854 = vmatpush1.msra.mxu0 0.0
        %5855 = vmatprep.subr.mxu0 0.0
        %5856 = vmatpush1.msra.mxu0 0.0
        %5857 = vmatprep.mubr.f32.mxu0 0.0
        %5858 = vmatmul.mubr.f32.gmra.mrb[0].mxu0 %v5788
        %v5859 = vpop.f32.mrb[0].mxu0
        %v5860 = vadd.f32 0.0, %v5859
        %v5861 = vpop.f32.mrb[0].mxu0
        %5862 = vdwg.mxu0
        %v5864 = vsel %vm5786, %v5779, 0
        %v5867 = vsel %vm2016, %v5081, 0
        %5869 = vmatprep.subr.mxu0 0.0
        %5870 = vmatpush1.msra.mxu0 %v5867
        %5871 = vmatprep.subr.mxu0 0.0
        %5872 = vmatpush1.msra.mxu0 0.0
        %5873 = vmatprep.subr.mxu0 0.0
        %5874 = vmatpush1.msra.mxu0 0.0
        %5875 = vmatprep.subr.mxu0 0.0
        %5876 = vmatpush1.msra.mxu0 0.0
        %5877 = vmatprep.subr.mxu0 0.0
        %5878 = vmatpush1.msra.mxu0 0.0
        %5879 = vmatprep.subr.mxu0 0.0
        %5880 = vmatpush1.msra.mxu0 0.0
        %5881 = vmatprep.subr.mxu0 0.0
        %5882 = vmatpush1.msra.mxu0 0.0
        %5883 = vmatprep.subr.mxu0 0.0
        %5884 = vmatpush1.msra.mxu0 0.0
        %5885 = vmatprep.subr.mxu0 0.0
        %5886 = vmatpush1.msra.mxu0 0.0
        %5887 = vmatprep.subr.mxu0 0.0
        %5888 = vmatpush1.msra.mxu0 0.0
        %5889 = vmatprep.subr.mxu0 0.0
        %5890 = vmatpush1.msra.mxu0 0.0
        %5891 = vmatprep.subr.mxu0 0.0
        %5892 = vmatpush1.msra.mxu0 0.0
        %5893 = vmatprep.subr.mxu0 0.0
        %5894 = vmatpush1.msra.mxu0 0.0
        %5895 = vmatprep.subr.mxu0 0.0
        %5896 = vmatpush1.msra.mxu0 0.0
        %5897 = vmatprep.subr.mxu0 0.0
        %5898 = vmatpush1.msra.mxu0 0.0
        %5899 = vmatprep.subr.mxu0 0.0
        %5900 = vmatpush1.msra.mxu0 0.0
        %5901 = vmatprep.subr.mxu0 0.0
        %5902 = vmatpush1.msra.mxu0 0.0
        %5903 = vmatprep.subr.mxu0 0.0
        %5904 = vmatpush1.msra.mxu0 0.0
        %5905 = vmatprep.subr.mxu0 0.0
        %5906 = vmatpush1.msra.mxu0 0.0
        %5907 = vmatprep.subr.mxu0 0.0
        %5908 = vmatpush1.msra.mxu0 0.0
        %5909 = vmatprep.subr.mxu0 0.0
        %5910 = vmatpush1.msra.mxu0 0.0
        %5911 = vmatprep.subr.mxu0 0.0
        %5912 = vmatpush1.msra.mxu0 0.0
        %5913 = vmatprep.subr.mxu0 0.0
        %5914 = vmatpush1.msra.mxu0 0.0
        %5915 = vmatprep.subr.mxu0 0.0
        %5916 = vmatpush1.msra.mxu0 0.0
        %5917 = vmatprep.subr.mxu0 0.0
        %5918 = vmatpush1.msra.mxu0 0.0
        %5919 = vmatprep.subr.mxu0 0.0
        %5920 = vmatpush1.msra.mxu0 0.0
        %5921 = vmatprep.subr.mxu0 0.0
        %5922 = vmatpush1.msra.mxu0 0.0
        %5923 = vmatprep.subr.mxu0 0.0
        %5924 = vmatpush1.msra.mxu0 0.0
        %5925 = vmatprep.subr.mxu0 0.0
        %5926 = vmatpush1.msra.mxu0 0.0
        %5927 = vmatprep.subr.mxu0 0.0
        %5928 = vmatpush1.msra.mxu0 0.0
        %5929 = vmatprep.subr.mxu0 0.0
        %5930 = vmatpush1.msra.mxu0 0.0
        %5931 = vmatprep.subr.mxu0 0.0
        %5932 = vmatpush1.msra.mxu0 0.0
        %5933 = vmatprep.mubr.f32.mxu0 0.0
        %5934 = vmatmul.mubr.f32.gmra.mrb[0].mxu0 %v5864
        %v5935 = vpop.f32.mrb[0].mxu0
        %v5936 = vadd.f32 0.0, %v5935
        %v5937 = vpop.f32.mrb[0].mxu0
        %5938 = vdwg.mxu0
        %v5940 = vsel %vm5786, %v5780, 0
        %v5943 = vsel %vm2016, %v5082, 0
        %5945 = vmatprep.subr.mxu0 0.0
        %5946 = vmatpush1.msra.mxu0 %v5943
        %5947 = vmatprep.subr.mxu0 0.0
        %5948 = vmatpush1.msra.mxu0 0.0
        %5949 = vmatprep.subr.mxu0 0.0
        %5950 = vmatpush1.msra.mxu0 0.0
        %5951 = vmatprep.subr.mxu0 0.0
        %5952 = vmatpush1.msra.mxu0 0.0
        %5953 = vmatprep.subr.mxu0 0.0
        %5954 = vmatpush1.msra.mxu0 0.0
        %5955 = vmatprep.subr.mxu0 0.0
        %5956 = vmatpush1.msra.mxu0 0.0
        %5957 = vmatprep.subr.mxu0 0.0
        %5958 = vmatpush1.msra.mxu0 0.0
        %5959 = vmatprep.subr.mxu0 0.0
        %5960 = vmatpush1.msra.mxu0 0.0
        %5961 = vmatprep.subr.mxu0 0.0
        %5962 = vmatpush1.msra.mxu0 0.0
        %5963 = vmatprep.subr.mxu0 0.0
        %5964 = vmatpush1.msra.mxu0 0.0
        %5965 = vmatprep.subr.mxu0 0.0
        %5966 = vmatpush1.msra.mxu0 0.0
        %5967 = vmatprep.subr.mxu0 0.0
        %5968 = vmatpush1.msra.mxu0 0.0
        %5969 = vmatprep.subr.mxu0 0.0
        %5970 = vmatpush1.msra.mxu0 0.0
        %5971 = vmatprep.subr.mxu0 0.0
        %5972 = vmatpush1.msra.mxu0 0.0
        %5973 = vmatprep.subr.mxu0 0.0
        %5974 = vmatpush1.msra.mxu0 0.0
        %5975 = vmatprep.subr.mxu0 0.0
        %5976 = vmatpush1.msra.mxu0 0.0
        %5977 = vmatprep.subr.mxu0 0.0
        %5978 = vmatpush1.msra.mxu0 0.0
        %5979 = vmatprep.subr.mxu0 0.0
        %5980 = vmatpush1.msra.mxu0 0.0
        %5981 = vmatprep.subr.mxu0 0.0
        %5982 = vmatpush1.msra.mxu0 0.0
        %5983 = vmatprep.subr.mxu0 0.0
        %5984 = vmatpush1.msra.mxu0 0.0
        %5985 = vmatprep.subr.mxu0 0.0
        %5986 = vmatpush1.msra.mxu0 0.0
        %5987 = vmatprep.subr.mxu0 0.0
        %5988 = vmatpush1.msra.mxu0 0.0
        %5989 = vmatprep.subr.mxu0 0.0
        %5990 = vmatpush1.msra.mxu0 0.0
        %5991 = vmatprep.subr.mxu0 0.0
        %5992 = vmatpush1.msra.mxu0 0.0
        %5993 = vmatprep.subr.mxu0 0.0
        %5994 = vmatpush1.msra.mxu0 0.0
        %5995 = vmatprep.subr.mxu0 0.0
        %5996 = vmatpush1.msra.mxu0 0.0
        %5997 = vmatprep.subr.mxu0 0.0
        %5998 = vmatpush1.msra.mxu0 0.0
        %5999 = vmatprep.subr.mxu0 0.0
        %6000 = vmatpush1.msra.mxu0 0.0
        %6001 = vmatprep.subr.mxu0 0.0
        %6002 = vmatpush1.msra.mxu0 0.0
        %6003 = vmatprep.subr.mxu0 0.0
        %6004 = vmatpush1.msra.mxu0 0.0
        %6005 = vmatprep.subr.mxu0 0.0
        %6006 = vmatpush1.msra.mxu0 0.0
        %6007 = vmatprep.subr.mxu0 0.0
        %6008 = vmatpush1.msra.mxu0 0.0
        %6009 = vmatprep.mubr.f32.mxu0 0.0
        %6010 = vmatmul.mubr.f32.gmra.mrb[0].mxu0 %v5940
        %v6011 = vpop.f32.mrb[0].mxu0
        %v6012 = vadd.f32 0.0, %v6011
        %v6013 = vpop.f32.mrb[0].mxu0
        %6014 = vdwg.mxu0
        %v6016 = vsel %vm5786, %v5781, 0
        %v6019 = vsel %vm2016, %v5083, 0
        %6021 = vmatprep.subr.mxu0 0.0
        %6022 = vmatpush1.msra.mxu0 %v6019
        %6023 = vmatprep.subr.mxu0 0.0
        %6024 = vmatpush1.msra.mxu0 0.0
        %6025 = vmatprep.subr.mxu0 0.0
        %6026 = vmatpush1.msra.mxu0 0.0
        %6027 = vmatprep.subr.mxu0 0.0
        %6028 = vmatpush1.msra.mxu0 0.0
        %6029 = vmatprep.subr.mxu0 0.0
        %6030 = vmatpush1.msra.mxu0 0.0
        %6031 = vmatprep.subr.mxu0 0.0
        %6032 = vmatpush1.msra.mxu0 0.0
        %6033 = vmatprep.subr.mxu0 0.0
        %6034 = vmatpush1.msra.mxu0 0.0
        %6035 = vmatprep.subr.mxu0 0.0
        %6036 = vmatpush1.msra.mxu0 0.0
        %6037 = vmatprep.subr.mxu0 0.0
        %6038 = vmatpush1.msra.mxu0 0.0
        %6039 = vmatprep.subr.mxu0 0.0
        %6040 = vmatpush1.msra.mxu0 0.0
        %6041 = vmatprep.subr.mxu0 0.0
        %6042 = vmatpush1.msra.mxu0 0.0
        %6043 = vmatprep.subr.mxu0 0.0
        %6044 = vmatpush1.msra.mxu0 0.0
        %6045 = vmatprep.subr.mxu0 0.0
        %6046 = vmatpush1.msra.mxu0 0.0
        %6047 = vmatprep.subr.mxu0 0.0
        %6048 = vmatpush1.msra.mxu0 0.0
        %6049 = vmatprep.subr.mxu0 0.0
        %6050 = vmatpush1.msra.mxu0 0.0
        %6051 = vmatprep.subr.mxu0 0.0
        %6052 = vmatpush1.msra.mxu0 0.0
        %6053 = vmatprep.subr.mxu0 0.0
        %6054 = vmatpush1.msra.mxu0 0.0
        %6055 = vmatprep.subr.mxu0 0.0
        %6056 = vmatpush1.msra.mxu0 0.0
        %6057 = vmatprep.subr.mxu0 0.0
        %6058 = vmatpush1.msra.mxu0 0.0
        %6059 = vmatprep.subr.mxu0 0.0
        %6060 = vmatpush1.msra.mxu0 0.0
        %6061 = vmatprep.subr.mxu0 0.0
        %6062 = vmatpush1.msra.mxu0 0.0
        %6063 = vmatprep.subr.mxu0 0.0
        %6064 = vmatpush1.msra.mxu0 0.0
        %6065 = vmatprep.subr.mxu0 0.0
        %6066 = vmatpush1.msra.mxu0 0.0
        %6067 = vmatprep.subr.mxu0 0.0
        %6068 = vmatpush1.msra.mxu0 0.0
        %6069 = vmatprep.subr.mxu0 0.0
        %6070 = vmatpush1.msra.mxu0 0.0
        %6071 = vmatprep.subr.mxu0 0.0
        %6072 = vmatpush1.msra.mxu0 0.0
        %6073 = vmatprep.subr.mxu0 0.0
        %6074 = vmatpush1.msra.mxu0 0.0
        %6075 = vmatprep.subr.mxu0 0.0
        %6076 = vmatpush1.msra.mxu0 0.0
        %6077 = vmatprep.subr.mxu0 0.0
        %6078 = vmatpush1.msra.mxu0 0.0
        %6079 = vmatprep.subr.mxu0 0.0
        %6080 = vmatpush1.msra.mxu0 0.0
        %6081 = vmatprep.subr.mxu0 0.0
        %6082 = vmatpush1.msra.mxu0 0.0
        %6083 = vmatprep.subr.mxu0 0.0
        %6084 = vmatpush1.msra.mxu0 0.0
        %6085 = vmatprep.mubr.f32.mxu0 0.0
        %6086 = vmatmul.mubr.f32.gmra.mrb[0].mxu0 %v6016
        %v6087 = vpop.f32.mrb[0].mxu0
        %v6088 = vadd.f32 0.0, %v6087
        %v6089 = vpop.f32.mrb[0].mxu0
        %6090 = vdwg.mxu0
        %v6092 = vsel %vm5786, %v5782, 0
        %v6095 = vsel %vm2016, %v5084, 0
        %6097 = vmatprep.subr.mxu0 0.0
        %6098 = vmatpush1.msra.mxu0 %v6095
        %6099 = vmatprep.subr.mxu0 0.0
        %6100 = vmatpush1.msra.mxu0 0.0
        %6101 = vmatprep.subr.mxu0 0.0
        %6102 = vmatpush1.msra.mxu0 0.0
        %6103 = vmatprep.subr.mxu0 0.0
        %6104 = vmatpush1.msra.mxu0 0.0
        %6105 = vmatprep.subr.mxu0 0.0
        %6106 = vmatpush1.msra.mxu0 0.0
        %6107 = vmatprep.subr.mxu0 0.0
        %6108 = vmatpush1.msra.mxu0 0.0
        %6109 = vmatprep.subr.mxu0 0.0
        %6110 = vmatpush1.msra.mxu0 0.0
        %6111 = vmatprep.subr.mxu0 0.0
        %6112 = vmatpush1.msra.mxu0 0.0
        %6113 = vmatprep.subr.mxu0 0.0
        %6114 = vmatpush1.msra.mxu0 0.0
        %6115 = vmatprep.subr.mxu0 0.0
        %6116 = vmatpush1.msra.mxu0 0.0
        %6117 = vmatprep.subr.mxu0 0.0
        %6118 = vmatpush1.msra.mxu0 0.0
        %6119 = vmatprep.subr.mxu0 0.0
        %6120 = vmatpush1.msra.mxu0 0.0
        %6121 = vmatprep.subr.mxu0 0.0
        %6122 = vmatpush1.msra.mxu0 0.0
        %6123 = vmatprep.subr.mxu0 0.0
        %6124 = vmatpush1.msra.mxu0 0.0
        %6125 = vmatprep.subr.mxu0 0.0
        %6126 = vmatpush1.msra.mxu0 0.0
        %6127 = vmatprep.subr.mxu0 0.0
        %6128 = vmatpush1.msra.mxu0 0.0
        %6129 = vmatprep.subr.mxu0 0.0
        %6130 = vmatpush1.msra.mxu0 0.0
        %6131 = vmatprep.subr.mxu0 0.0
        %6132 = vmatpush1.msra.mxu0 0.0
        %6133 = vmatprep.subr.mxu0 0.0
        %6134 = vmatpush1.msra.mxu0 0.0
        %6135 = vmatprep.subr.mxu0 0.0
        %6136 = vmatpush1.msra.mxu0 0.0
        %6137 = vmatprep.subr.mxu0 0.0
        %6138 = vmatpush1.msra.mxu0 0.0
        %6139 = vmatprep.subr.mxu0 0.0
        %6140 = vmatpush1.msra.mxu0 0.0
        %6141 = vmatprep.subr.mxu0 0.0
        %6142 = vmatpush1.msra.mxu0 0.0
        %6143 = vmatprep.subr.mxu0 0.0
        %6144 = vmatpush1.msra.mxu0 0.0
        %6145 = vmatprep.subr.mxu0 0.0
        %6146 = vmatpush1.msra.mxu0 0.0
        %6147 = vmatprep.subr.mxu0 0.0
        %6148 = vmatpush1.msra.mxu0 0.0
        %6149 = vmatprep.subr.mxu0 0.0
        %6150 = vmatpush1.msra.mxu0 0.0
        %6151 = vmatprep.subr.mxu0 0.0
        %6152 = vmatpush1.msra.mxu0 0.0
        %6153 = vmatprep.subr.mxu0 0.0
        %6154 = vmatpush1.msra.mxu0 0.0
        %6155 = vmatprep.subr.mxu0 0.0
        %6156 = vmatpush1.msra.mxu0 0.0
        %6157 = vmatprep.subr.mxu0 0.0
        %6158 = vmatpush1.msra.mxu0 0.0
        %6159 = vmatprep.subr.mxu0 0.0
        %6160 = vmatpush1.msra.mxu0 0.0
        %6161 = vmatprep.mubr.f32.mxu0 0.0
        %6162 = vmatmul.mubr.f32.gmra.mrb[0].mxu0 %v6092
        %v6163 = vpop.f32.mrb[0].mxu0
        %v6164 = vadd.f32 0.0, %v6163
        %v6165 = vpop.f32.mrb[0].mxu0
        %6166 = vdwg.mxu0
        %v6168 = vsel %vm5786, %v5783, 0
        %v6171 = vsel %vm2016, %v5085, 0
        %6173 = vmatprep.subr.mxu0 0.0
        %6174 = vmatpush1.msra.mxu0 %v6171
        %6175 = vmatprep.subr.mxu0 0.0
        %6176 = vmatpush1.msra.mxu0 0.0
        %6177 = vmatprep.subr.mxu0 0.0
        %6178 = vmatpush1.msra.mxu0 0.0
        %6179 = vmatprep.subr.mxu0 0.0
        %6180 = vmatpush1.msra.mxu0 0.0
        %6181 = vmatprep.subr.mxu0 0.0
        %6182 = vmatpush1.msra.mxu0 0.0
        %6183 = vmatprep.subr.mxu0 0.0
        %6184 = vmatpush1.msra.mxu0 0.0
        %6185 = vmatprep.subr.mxu0 0.0
        %6186 = vmatpush1.msra.mxu0 0.0
        %6187 = vmatprep.subr.mxu0 0.0
        %6188 = vmatpush1.msra.mxu0 0.0
        %6189 = vmatprep.subr.mxu0 0.0
        %6190 = vmatpush1.msra.mxu0 0.0
        %6191 = vmatprep.subr.mxu0 0.0
        %6192 = vmatpush1.msra.mxu0 0.0
        %6193 = vmatprep.subr.mxu0 0.0
        %6194 = vmatpush1.msra.mxu0 0.0
        %6195 = vmatprep.subr.mxu0 0.0
        %6196 = vmatpush1.msra.mxu0 0.0
        %6197 = vmatprep.subr.mxu0 0.0
        %6198 = vmatpush1.msra.mxu0 0.0
        %6199 = vmatprep.subr.mxu0 0.0
        %6200 = vmatpush1.msra.mxu0 0.0
        %6201 = vmatprep.subr.mxu0 0.0
        %6202 = vmatpush1.msra.mxu0 0.0
        %6203 = vmatprep.subr.mxu0 0.0
        %6204 = vmatpush1.msra.mxu0 0.0
        %6205 = vmatprep.subr.mxu0 0.0
        %6206 = vmatpush1.msra.mxu0 0.0
        %6207 = vmatprep.subr.mxu0 0.0
        %6208 = vmatpush1.msra.mxu0 0.0
        %6209 = vmatprep.subr.mxu0 0.0
        %6210 = vmatpush1.msra.mxu0 0.0
        %6211 = vmatprep.subr.mxu0 0.0
        %6212 = vmatpush1.msra.mxu0 0.0
        %6213 = vmatprep.subr.mxu0 0.0
        %6214 = vmatpush1.msra.mxu0 0.0
        %6215 = vmatprep.subr.mxu0 0.0
        %6216 = vmatpush1.msra.mxu0 0.0
        %6217 = vmatprep.subr.mxu0 0.0
        %6218 = vmatpush1.msra.mxu0 0.0
        %6219 = vmatprep.subr.mxu0 0.0
        %6220 = vmatpush1.msra.mxu0 0.0
        %6221 = vmatprep.subr.mxu0 0.0
        %6222 = vmatpush1.msra.mxu0 0.0
        %6223 = vmatprep.subr.mxu0 0.0
        %6224 = vmatpush1.msra.mxu0 0.0
        %6225 = vmatprep.subr.mxu0 0.0
        %6226 = vmatpush1.msra.mxu0 0.0
        %6227 = vmatprep.subr.mxu0 0.0
        %6228 = vmatpush1.msra.mxu0 0.0
        %6229 = vmatprep.subr.mxu0 0.0
        %6230 = vmatpush1.msra.mxu0 0.0
        %6231 = vmatprep.subr.mxu0 0.0
        %6232 = vmatpush1.msra.mxu0 0.0
        %6233 = vmatprep.subr.mxu0 0.0
        %6234 = vmatpush1.msra.mxu0 0.0
        %6235 = vmatprep.subr.mxu0 0.0
        %6236 = vmatpush1.msra.mxu0 0.0
        %6237 = vmatprep.mubr.f32.mxu0 0.0
        %6238 = vmatmul.mubr.f32.gmra.mrb[0].mxu0 %v6168
        %v6239 = vpop.f32.mrb[0].mxu0
        %v6240 = vadd.f32 0.0, %v6239
        %v6241 = vpop.f32.mrb[0].mxu0
        %6242 = vdwg.mxu0
        %v6244 = vsel %vm5786, %v5784, 0
        %v6247 = vsel %vm2016, %v5086, 0
        %6249 = vmatprep.subr.mxu0 0.0
        %6250 = vmatpush1.msra.mxu0 %v6247
        %6251 = vmatprep.subr.mxu0 0.0
        %6252 = vmatpush1.msra.mxu0 0.0
        %6253 = vmatprep.subr.mxu0 0.0
        %6254 = vmatpush1.msra.mxu0 0.0
        %6255 = vmatprep.subr.mxu0 0.0
        %6256 = vmatpush1.msra.mxu0 0.0
        %6257 = vmatprep.subr.mxu0 0.0
        %6258 = vmatpush1.msra.mxu0 0.0
        %6259 = vmatprep.subr.mxu0 0.0
        %6260 = vmatpush1.msra.mxu0 0.0
        %6261 = vmatprep.subr.mxu0 0.0
        %6262 = vmatpush1.msra.mxu0 0.0
        %6263 = vmatprep.subr.mxu0 0.0
        %6264 = vmatpush1.msra.mxu0 0.0
        %6265 = vmatprep.subr.mxu0 0.0
        %6266 = vmatpush1.msra.mxu0 0.0
        %6267 = vmatprep.subr.mxu0 0.0
        %6268 = vmatpush1.msra.mxu0 0.0
        %6269 = vmatprep.subr.mxu0 0.0
        %6270 = vmatpush1.msra.mxu0 0.0
        %6271 = vmatprep.subr.mxu0 0.0
        %6272 = vmatpush1.msra.mxu0 0.0
        %6273 = vmatprep.subr.mxu0 0.0
        %6274 = vmatpush1.msra.mxu0 0.0
        %6275 = vmatprep.subr.mxu0 0.0
        %6276 = vmatpush1.msra.mxu0 0.0
        %6277 = vmatprep.subr.mxu0 0.0
        %6278 = vmatpush1.msra.mxu0 0.0
        %6279 = vmatprep.subr.mxu0 0.0
        %6280 = vmatpush1.msra.mxu0 0.0
        %6281 = vmatprep.subr.mxu0 0.0
        %6282 = vmatpush1.msra.mxu0 0.0
        %6283 = vmatprep.subr.mxu0 0.0
        %6284 = vmatpush1.msra.mxu0 0.0
        %6285 = vmatprep.subr.mxu0 0.0
        %6286 = vmatpush1.msra.mxu0 0.0
        %6287 = vmatprep.subr.mxu0 0.0
        %6288 = vmatpush1.msra.mxu0 0.0
        %6289 = vmatprep.subr.mxu0 0.0
        %6290 = vmatpush1.msra.mxu0 0.0
        %6291 = vmatprep.subr.mxu0 0.0
        %6292 = vmatpush1.msra.mxu0 0.0
        %6293 = vmatprep.subr.mxu0 0.0
        %6294 = vmatpush1.msra.mxu0 0.0
        %6295 = vmatprep.subr.mxu0 0.0
        %6296 = vmatpush1.msra.mxu0 0.0
        %6297 = vmatprep.subr.mxu0 0.0
        %6298 = vmatpush1.msra.mxu0 0.0
        %6299 = vmatprep.subr.mxu0 0.0
        %6300 = vmatpush1.msra.mxu0 0.0
        %6301 = vmatprep.subr.mxu0 0.0
        %6302 = vmatpush1.msra.mxu0 0.0
        %6303 = vmatprep.subr.mxu0 0.0
        %6304 = vmatpush1.msra.mxu0 0.0
        %6305 = vmatprep.subr.mxu0 0.0
        %6306 = vmatpush1.msra.mxu0 0.0
        %6307 = vmatprep.subr.mxu0 0.0
        %6308 = vmatpush1.msra.mxu0 0.0
        %6309 = vmatprep.subr.mxu0 0.0
        %6310 = vmatpush1.msra.mxu0 0.0
        %6311 = vmatprep.subr.mxu0 0.0
        %6312 = vmatpush1.msra.mxu0 0.0
        %6313 = vmatprep.mubr.f32.mxu0 0.0
        %6314 = vmatmul.mubr.f32.gmra.mrb[0].mxu0 %v6244
        %v6315 = vpop.f32.mrb[0].mxu0
        %v6316 = vadd.f32 0.0, %v6315
        %v6317 = vpop.f32.mrb[0].mxu0
        %6318 = vdwg.mxu0
        %v6320 = vsel %vm5786, %v5785, 0
        %v6323 = vsel %vm2016, %v5087, 0
        %6325 = vmatprep.subr.mxu0 0.0
        %6326 = vmatpush1.msra.mxu0 %v6323
        %6327 = vmatprep.subr.mxu0 0.0
        %6328 = vmatpush1.msra.mxu0 0.0
        %6329 = vmatprep.subr.mxu0 0.0
        %6330 = vmatpush1.msra.mxu0 0.0
        %6331 = vmatprep.subr.mxu0 0.0
        %6332 = vmatpush1.msra.mxu0 0.0
        %6333 = vmatprep.subr.mxu0 0.0
        %6334 = vmatpush1.msra.mxu0 0.0
        %6335 = vmatprep.subr.mxu0 0.0
        %6336 = vmatpush1.msra.mxu0 0.0
        %6337 = vmatprep.subr.mxu0 0.0
        %6338 = vmatpush1.msra.mxu0 0.0
        %6339 = vmatprep.subr.mxu0 0.0
        %6340 = vmatpush1.msra.mxu0 0.0
        %6341 = vmatprep.subr.mxu0 0.0
        %6342 = vmatpush1.msra.mxu0 0.0
        %6343 = vmatprep.subr.mxu0 0.0
        %6344 = vmatpush1.msra.mxu0 0.0
        %6345 = vmatprep.subr.mxu0 0.0
        %6346 = vmatpush1.msra.mxu0 0.0
        %6347 = vmatprep.subr.mxu0 0.0
        %6348 = vmatpush1.msra.mxu0 0.0
        %6349 = vmatprep.subr.mxu0 0.0
        %6350 = vmatpush1.msra.mxu0 0.0
        %6351 = vmatprep.subr.mxu0 0.0
        %6352 = vmatpush1.msra.mxu0 0.0
        %6353 = vmatprep.subr.mxu0 0.0
        %6354 = vmatpush1.msra.mxu0 0.0
        %6355 = vmatprep.subr.mxu0 0.0
        %6356 = vmatpush1.msra.mxu0 0.0
        %6357 = vmatprep.subr.mxu0 0.0
        %6358 = vmatpush1.msra.mxu0 0.0
        %6359 = vmatprep.subr.mxu0 0.0
        %6360 = vmatpush1.msra.mxu0 0.0
        %6361 = vmatprep.subr.mxu0 0.0
        %6362 = vmatpush1.msra.mxu0 0.0
        %6363 = vmatprep.subr.mxu0 0.0
        %6364 = vmatpush1.msra.mxu0 0.0
        %6365 = vmatprep.subr.mxu0 0.0
        %6366 = vmatpush1.msra.mxu0 0.0
        %6367 = vmatprep.subr.mxu0 0.0
        %6368 = vmatpush1.msra.mxu0 0.0
        %6369 = vmatprep.subr.mxu0 0.0
        %6370 = vmatpush1.msra.mxu0 0.0
        %6371 = vmatprep.subr.mxu0 0.0
        %6372 = vmatpush1.msra.mxu0 0.0
        %6373 = vmatprep.subr.mxu0 0.0
        %6374 = vmatpush1.msra.mxu0 0.0
        %6375 = vmatprep.subr.mxu0 0.0
        %6376 = vmatpush1.msra.mxu0 0.0
        %6377 = vmatprep.subr.mxu0 0.0
        %6378 = vmatpush1.msra.mxu0 0.0
        %6379 = vmatprep.subr.mxu0 0.0
        %6380 = vmatpush1.msra.mxu0 0.0
        %6381 = vmatprep.subr.mxu0 0.0
        %6382 = vmatpush1.msra.mxu0 0.0
        %6383 = vmatprep.subr.mxu0 0.0
        %6384 = vmatpush1.msra.mxu0 0.0
        %6385 = vmatprep.subr.mxu0 0.0
        %6386 = vmatpush1.msra.mxu0 0.0
        %6387 = vmatprep.subr.mxu0 0.0
        %6388 = vmatpush1.msra.mxu0 0.0
        %6389 = vmatprep.mubr.f32.mxu0 0.0
        %6390 = vmatmul.mubr.f32.gmra.mrb[0].mxu0 %v6320
        %v6391 = vpop.f32.mrb[0].mxu0
        %v6392 = vadd.f32 0.0, %v6391
        %v6393 = vpop.f32.mrb[0].mxu0
        %6394 = vdwg.mxu0
        %6395 = vst.msk [vmem:[#allocation5] sm:$0x1f] %vm4970, %v5860
        %6397 = vrot.lane.b32.xlu0 %v5936, 64
        %v6398 = vpop.permute.xlu0 %6397
        %vm6400 = vcmask 1044992
        %6401 = vst.msk [vmem:[#allocation5] sm:$0x1f] %vm6400, %v6398
        %6402 = vst.msk [vmem:[#allocation5 + $0x8] sm:$0x1f] %vm4970, %v6012
        %6404 = vrot.lane.b32.xlu0 %v6088, 64
        %v6405 = vpop.permute.xlu0 %6404
        %6407 = vst.msk [vmem:[#allocation5 + $0x8] sm:$0x1f] %vm6400, %v6405
        %6408 = vst.msk [vmem:[#allocation5 + $0x10] sm:$0x1f] %vm4970, %v6164
        %6410 = vrot.lane.b32.xlu0 %v6240, 64
        %v6411 = vpop.permute.xlu0 %6410
        %6413 = vst.msk [vmem:[#allocation5 + $0x10] sm:$0x1f] %vm6400, %v6411
        %6414 = vst.msk [vmem:[#allocation5 + $0x18] sm:$0x1f] %vm4970, %v6316
        %6416 = vrot.lane.b32.xlu0 %v6392, 64
        %v6417 = vpop.permute.xlu0 %6416
        %6419 = vst.msk [vmem:[#allocation5 + $0x18] sm:$0x1f] %vm6400, %v6417
        %v6420 = vld [vmem:[#allocation5] sm:$0x1f]
        %v6421 = vld [vmem:[#allocation5 + $0x8] sm:$0x1f]
        %v6422 = vld [vmem:[#allocation5 + $0x10] sm:$0x1f]
        %v6423 = vld [vmem:[#allocation5 + $0x18] sm:$0x1f]
        %v6424 = vpack.c.bf16 %v6420, %v6420
        %v6425 = vpack.c.bf16 %v6421, %v6421
        %v6426 = vpack.c.bf16 %v6422, %v6422
        %v6427 = vpack.c.bf16 %v6423, %v6423
        %v6428 = vld [vmem:[#allocation17] sm:$0xff]
        %v6429 = vld [vmem:[#allocation17 + $0x8] sm:$0xff]
        %v6430 = vld [vmem:[#allocation17 + $0x10] sm:$0xff]
        %v6431 = vld [vmem:[#allocation17 + $0x18] sm:$0xff]
        %v6432 = vld [vmem:[#allocation17 + $0x20] sm:$0xff]
        %v6433 = vld [vmem:[#allocation17 + $0x28] sm:$0xff]
        %v6434 = vld [vmem:[#allocation17 + $0x30] sm:$0xff]
        %v6435 = vld [vmem:[#allocation17 + $0x38] sm:$0xff]
        %v6436 = vld [vmem:[#allocation17 + $0x40] sm:$0xff]
        %v6437 = vld [vmem:[#allocation17 + $0x48] sm:$0xff]
        %v6438 = vld [vmem:[#allocation17 + $0x50] sm:$0xff]
        %v6439 = vld [vmem:[#allocation17 + $0x58] sm:$0xff]
        %v6440 = vld [vmem:[#allocation17 + $0x60] sm:$0xff]
        %v6441 = vld [vmem:[#allocation17 + $0x68] sm:$0xff]
        %v6442 = vld [vmem:[#allocation17 + $0x70] sm:$0xff]
        %v6443 = vld [vmem:[#allocation17 + $0x78] sm:$0xff]
        %v6444 = vld [vmem:[#allocation17 + $0x80] sm:$0xff]
        %v6445 = vld [vmem:[#allocation17 + $0x88] sm:$0xff]
        %v6446 = vld [vmem:[#allocation17 + $0x90] sm:$0xff]
        %v6447 = vld [vmem:[#allocation17 + $0x98] sm:$0xff]
        %v6448 = vld [vmem:[#allocation17 + $0xa0] sm:$0xff]
        %v6449 = vld [vmem:[#allocation17 + $0xa8] sm:$0xff]
        %v6450 = vld [vmem:[#allocation17 + $0xb0] sm:$0xff]
        %v6451 = vld [vmem:[#allocation17 + $0xb8] sm:$0xff]
        %v6452 = vld [vmem:[#allocation17 + $0xc0] sm:$0xff]
        %v6453 = vld [vmem:[#allocation17 + $0xc8] sm:$0xff]
        %v6454 = vld [vmem:[#allocation17 + $0xd0] sm:$0xff]
        %v6455 = vld [vmem:[#allocation17 + $0xd8] sm:$0xff]
        %v6456 = vld [vmem:[#allocation17 + $0xe0] sm:$0xff]
        %v6457 = vld [vmem:[#allocation17 + $0xe8] sm:$0xff]
        %v6458 = vld [vmem:[#allocation17 + $0xf0] sm:$0xff]
        %v6459 = vld [vmem:[#allocation17 + $0xf8] sm:$0xff]
        %v6460 = vld [vmem:[#allocation17 + $0x100] sm:$0xff]
        %v6461 = vld [vmem:[#allocation17 + $0x108] sm:$0xff]
        %v6462 = vld [vmem:[#allocation17 + $0x110] sm:$0xff]
        %v6463 = vld [vmem:[#allocation17 + $0x118] sm:$0xff]
        %v6464 = vld [vmem:[#allocation17 + $0x120] sm:$0xff]
        %v6465 = vld [vmem:[#allocation17 + $0x128] sm:$0xff]
        %v6466 = vld [vmem:[#allocation17 + $0x130] sm:$0xff]
        %v6467 = vld [vmem:[#allocation17 + $0x138] sm:$0xff]
        %v6468 = vld [vmem:[#allocation17 + $0x140] sm:$0xff]
        %v6469 = vld [vmem:[#allocation17 + $0x148] sm:$0xff]
        %v6470 = vld [vmem:[#allocation17 + $0x150] sm:$0xff]
        %v6471 = vld [vmem:[#allocation17 + $0x158] sm:$0xff]
        %v6472 = vld [vmem:[#allocation17 + $0x160] sm:$0xff]
        %v6473 = vld [vmem:[#allocation17 + $0x168] sm:$0xff]
        %v6474 = vld [vmem:[#allocation17 + $0x170] sm:$0xff]
        %v6475 = vld [vmem:[#allocation17 + $0x178] sm:$0xff]
        %v6476 = vld [vmem:[#allocation17 + $0x180] sm:$0xff]
        %v6477 = vld [vmem:[#allocation17 + $0x188] sm:$0xff]
        %v6478 = vld [vmem:[#allocation17 + $0x190] sm:$0xff]
        %v6479 = vld [vmem:[#allocation17 + $0x198] sm:$0xff]
        %v6480 = vld [vmem:[#allocation17 + $0x1a0] sm:$0xff]
        %v6481 = vld [vmem:[#allocation17 + $0x1a8] sm:$0xff]
        %v6482 = vld [vmem:[#allocation17 + $0x1b0] sm:$0xff]
        %v6483 = vld [vmem:[#allocation17 + $0x1b8] sm:$0xff]
        %v6484 = vld [vmem:[#allocation17 + $0x1c0] sm:$0xff]
        %v6485 = vld [vmem:[#allocation17 + $0x1c8] sm:$0xff]
        %v6486 = vld [vmem:[#allocation17 + $0x1d0] sm:$0xff]
        %v6487 = vld [vmem:[#allocation17 + $0x1d8] sm:$0xff]
        %v6488 = vld [vmem:[#allocation17 + $0x1e0] sm:$0xff]
        %v6489 = vld [vmem:[#allocation17 + $0x1e8] sm:$0xff]
        %v6490 = vld [vmem:[#allocation17 + $0x1f0] sm:$0xff]
        %v6491 = vld [vmem:[#allocation17 + $0x1f8] sm:$0xff]
        %v6492 = vld [vmem:[#allocation17 + $0x200] sm:$0xff]
        %v6493 = vld [vmem:[#allocation17 + $0x208] sm:$0xff]
        %v6494 = vld [vmem:[#allocation17 + $0x210] sm:$0xff]
        %v6495 = vld [vmem:[#allocation17 + $0x218] sm:$0xff]
        %v6496 = vld [vmem:[#allocation17 + $0x220] sm:$0xff]
        %v6497 = vld [vmem:[#allocation17 + $0x228] sm:$0xff]
        %v6498 = vld [vmem:[#allocation17 + $0x230] sm:$0xff]
        %v6499 = vld [vmem:[#allocation17 + $0x238] sm:$0xff]
        %v6500 = vld [vmem:[#allocation17 + $0x240] sm:$0xff]
        %v6501 = vld [vmem:[#allocation17 + $0x248] sm:$0xff]
        %v6502 = vld [vmem:[#allocation17 + $0x250] sm:$0xff]
        %v6503 = vld [vmem:[#allocation17 + $0x258] sm:$0xff]
        %v6504 = vld [vmem:[#allocation17 + $0x260] sm:$0xff]
        %v6505 = vld [vmem:[#allocation17 + $0x268] sm:$0xff]
        %v6506 = vld [vmem:[#allocation17 + $0x270] sm:$0xff]
        %v6507 = vld [vmem:[#allocation17 + $0x278] sm:$0xff]
        %v6508 = vld [vmem:[#allocation17 + $0x280] sm:$0xff]
        %v6509 = vld [vmem:[#allocation17 + $0x288] sm:$0xff]
        %v6510 = vld [vmem:[#allocation17 + $0x290] sm:$0xff]
        %v6511 = vld [vmem:[#allocation17 + $0x298] sm:$0xff]
        %v6512 = vld [vmem:[#allocation17 + $0x2a0] sm:$0xff]
        %v6513 = vld [vmem:[#allocation17 + $0x2a8] sm:$0xff]
        %v6514 = vld [vmem:[#allocation17 + $0x2b0] sm:$0xff]
        %v6515 = vld [vmem:[#allocation17 + $0x2b8] sm:$0xff]
        %v6516 = vld [vmem:[#allocation17 + $0x2c0] sm:$0xff]
        %v6517 = vld [vmem:[#allocation17 + $0x2c8] sm:$0xff]
        %v6518 = vld [vmem:[#allocation17 + $0x2d0] sm:$0xff]
        %v6519 = vld [vmem:[#allocation17 + $0x2d8] sm:$0xff]
        %v6520 = vld [vmem:[#allocation17 + $0x2e0] sm:$0xff]
        %v6521 = vld [vmem:[#allocation17 + $0x2e8] sm:$0xff]
        %v6522 = vld [vmem:[#allocation17 + $0x2f0] sm:$0xff]
        %v6523 = vld [vmem:[#allocation17 + $0x2f8] sm:$0xff]
        %v6524 = vld [vmem:[#allocation17 + $0x300] sm:$0xff]
        %v6525 = vld [vmem:[#allocation17 + $0x308] sm:$0xff]
        %v6526 = vld [vmem:[#allocation17 + $0x310] sm:$0xff]
        %v6527 = vld [vmem:[#allocation17 + $0x318] sm:$0xff]
        %v6528 = vld [vmem:[#allocation17 + $0x320] sm:$0xff]
        %v6529 = vld [vmem:[#allocation17 + $0x328] sm:$0xff]
        %v6530 = vld [vmem:[#allocation17 + $0x330] sm:$0xff]
        %v6531 = vld [vmem:[#allocation17 + $0x338] sm:$0xff]
        %v6532 = vld [vmem:[#allocation17 + $0x340] sm:$0xff]
        %v6533 = vld [vmem:[#allocation17 + $0x348] sm:$0xff]
        %v6534 = vld [vmem:[#allocation17 + $0x350] sm:$0xff]
        %v6535 = vld [vmem:[#allocation17 + $0x358] sm:$0xff]
        %v6536 = vld [vmem:[#allocation17 + $0x360] sm:$0xff]
        %v6537 = vld [vmem:[#allocation17 + $0x368] sm:$0xff]
        %v6538 = vld [vmem:[#allocation17 + $0x370] sm:$0xff]
        %v6539 = vld [vmem:[#allocation17 + $0x378] sm:$0xff]
        %v6540 = vld [vmem:[#allocation17 + $0x380] sm:$0xff]
        %v6541 = vld [vmem:[#allocation17 + $0x388] sm:$0xff]
        %v6542 = vld [vmem:[#allocation17 + $0x390] sm:$0xff]
        %v6543 = vld [vmem:[#allocation17 + $0x398] sm:$0xff]
        %v6544 = vld [vmem:[#allocation17 + $0x3a0] sm:$0xff]
        %v6545 = vld [vmem:[#allocation17 + $0x3a8] sm:$0xff]
        %v6546 = vld [vmem:[#allocation17 + $0x3b0] sm:$0xff]
        %v6547 = vld [vmem:[#allocation17 + $0x3b8] sm:$0xff]
        %v6548 = vld [vmem:[#allocation17 + $0x3c0] sm:$0xff]
        %v6549 = vld [vmem:[#allocation17 + $0x3c8] sm:$0xff]
        %v6550 = vld [vmem:[#allocation17 + $0x3d0] sm:$0xff]
        %v6551 = vld [vmem:[#allocation17 + $0x3d8] sm:$0xff]
        %v6552 = vld [vmem:[#allocation17 + $0x3e0] sm:$0xff]
        %v6553 = vld [vmem:[#allocation17 + $0x3e8] sm:$0xff]
        %v6554 = vld [vmem:[#allocation17 + $0x3f0] sm:$0xff]
        %v6555 = vld [vmem:[#allocation17 + $0x3f8] sm:$0xff]
        %v6556 = vld [vmem:[#allocation18] sm:$0xf]
        %v6558 = vlaneseq
        %v6559 = vshrl.u32 %v6558, 7
        %v6560 = vsub.s32 0, %v6559
        %v6561 = vrot.slane %v6556, %v6560
        %v6562 = vlaneseq
        %v6563 = vshrl.u32 %v6562, 7
        %v6564 = vsub.s32 1, %v6563
        %v6565 = vrot.slane %v6556, %v6564
        %v6566 = vlaneseq
        %v6567 = vshrl.u32 %v6566, 7
        %v6568 = vsub.s32 2, %v6567
        %v6569 = vrot.slane %v6556, %v6568
        %v6570 = vlaneseq
        %v6571 = vshrl.u32 %v6570, 7
        %v6572 = vsub.s32 3, %v6571
        %v6573 = vrot.slane %v6556, %v6572
        %v6706 = vunpack.c.l.b16 %v6428
        %v6707 = vunpack.c.h.b16 %v6428
        %v6708 = vunpack.c.l.b16 %v6429
        %v6709 = vunpack.c.h.b16 %v6429
        %v6710 = vunpack.c.l.b16 %v6430
        %v6711 = vunpack.c.h.b16 %v6430
        %v6712 = vunpack.c.l.b16 %v6431
        %v6713 = vunpack.c.h.b16 %v6431
        %v6714 = vunpack.c.l.b16 %v6432
        %v6715 = vunpack.c.h.b16 %v6432
        %v6716 = vunpack.c.l.b16 %v6433
        %v6717 = vunpack.c.h.b16 %v6433
        %v6718 = vunpack.c.l.b16 %v6434
        %v6719 = vunpack.c.h.b16 %v6434
        %v6720 = vunpack.c.l.b16 %v6435
        %v6721 = vunpack.c.h.b16 %v6435
        %v6722 = vunpack.c.l.b16 %v6436
        %v6723 = vunpack.c.h.b16 %v6436
        %v6724 = vunpack.c.l.b16 %v6437
        %v6725 = vunpack.c.h.b16 %v6437
        %v6726 = vunpack.c.l.b16 %v6438
        %v6727 = vunpack.c.h.b16 %v6438
        %v6728 = vunpack.c.l.b16 %v6439
        %v6729 = vunpack.c.h.b16 %v6439
        %v6730 = vunpack.c.l.b16 %v6440
        %v6731 = vunpack.c.h.b16 %v6440
        %v6732 = vunpack.c.l.b16 %v6441
        %v6733 = vunpack.c.h.b16 %v6441
        %v6734 = vunpack.c.l.b16 %v6442
        %v6735 = vunpack.c.h.b16 %v6442
        %v6736 = vunpack.c.l.b16 %v6443
        %v6737 = vunpack.c.h.b16 %v6443
        %v6738 = vunpack.c.l.b16 %v6444
        %v6739 = vunpack.c.h.b16 %v6444
        %v6740 = vunpack.c.l.b16 %v6445
        %v6741 = vunpack.c.h.b16 %v6445
        %v6742 = vunpack.c.l.b16 %v6446
        %v6743 = vunpack.c.h.b16 %v6446
        %v6744 = vunpack.c.l.b16 %v6447
        %v6745 = vunpack.c.h.b16 %v6447
        %v6746 = vunpack.c.l.b16 %v6448
        %v6747 = vunpack.c.h.b16 %v6448
        %v6748 = vunpack.c.l.b16 %v6449
        %v6749 = vunpack.c.h.b16 %v6449
        %v6750 = vunpack.c.l.b16 %v6450
        %v6751 = vunpack.c.h.b16 %v6450
        %v6752 = vunpack.c.l.b16 %v6451
        %v6753 = vunpack.c.h.b16 %v6451
        %v6754 = vunpack.c.l.b16 %v6452
        %v6755 = vunpack.c.h.b16 %v6452
        %v6756 = vunpack.c.l.b16 %v6453
        %v6757 = vunpack.c.h.b16 %v6453
        %v6758 = vunpack.c.l.b16 %v6454
        %v6759 = vunpack.c.h.b16 %v6454
        %v6760 = vunpack.c.l.b16 %v6455
        %v6761 = vunpack.c.h.b16 %v6455
        %v6762 = vunpack.c.l.b16 %v6456
        %v6763 = vunpack.c.h.b16 %v6456
        %v6764 = vunpack.c.l.b16 %v6457
        %v6765 = vunpack.c.h.b16 %v6457
        %v6766 = vunpack.c.l.b16 %v6458
        %v6767 = vunpack.c.h.b16 %v6458
        %v6768 = vunpack.c.l.b16 %v6459
        %v6769 = vunpack.c.h.b16 %v6459
        %v6770 = vunpack.c.l.b16 %v6460
        %v6771 = vunpack.c.h.b16 %v6460
        %v6772 = vunpack.c.l.b16 %v6461
        %v6773 = vunpack.c.h.b16 %v6461
        %v6774 = vunpack.c.l.b16 %v6462
        %v6775 = vunpack.c.h.b16 %v6462
        %v6776 = vunpack.c.l.b16 %v6463
        %v6777 = vunpack.c.h.b16 %v6463
        %v6778 = vunpack.c.l.b16 %v6464
        %v6779 = vunpack.c.h.b16 %v6464
        %v6780 = vunpack.c.l.b16 %v6465
        %v6781 = vunpack.c.h.b16 %v6465
        %v6782 = vunpack.c.l.b16 %v6466
        %v6783 = vunpack.c.h.b16 %v6466
        %v6784 = vunpack.c.l.b16 %v6467
        %v6785 = vunpack.c.h.b16 %v6467
        %v6786 = vunpack.c.l.b16 %v6468
        %v6787 = vunpack.c.h.b16 %v6468
        %v6788 = vunpack.c.l.b16 %v6469
        %v6789 = vunpack.c.h.b16 %v6469
        %v6790 = vunpack.c.l.b16 %v6470
        %v6791 = vunpack.c.h.b16 %v6470
        %v6792 = vunpack.c.l.b16 %v6471
        %v6793 = vunpack.c.h.b16 %v6471
        %v6794 = vunpack.c.l.b16 %v6472
        %v6795 = vunpack.c.h.b16 %v6472
        %v6796 = vunpack.c.l.b16 %v6473
        %v6797 = vunpack.c.h.b16 %v6473
        %v6798 = vunpack.c.l.b16 %v6474
        %v6799 = vunpack.c.h.b16 %v6474
        %v6800 = vunpack.c.l.b16 %v6475
        %v6801 = vunpack.c.h.b16 %v6475
        %v6802 = vunpack.c.l.b16 %v6476
        %v6803 = vunpack.c.h.b16 %v6476
        %v6804 = vunpack.c.l.b16 %v6477
        %v6805 = vunpack.c.h.b16 %v6477
        %v6806 = vunpack.c.l.b16 %v6478
        %v6807 = vunpack.c.h.b16 %v6478
        %v6808 = vunpack.c.l.b16 %v6479
        %v6809 = vunpack.c.h.b16 %v6479
        %v6810 = vunpack.c.l.b16 %v6480
        %v6811 = vunpack.c.h.b16 %v6480
        %v6812 = vunpack.c.l.b16 %v6481
        %v6813 = vunpack.c.h.b16 %v6481
        %v6814 = vunpack.c.l.b16 %v6482
        %v6815 = vunpack.c.h.b16 %v6482
        %v6816 = vunpack.c.l.b16 %v6483
        %v6817 = vunpack.c.h.b16 %v6483
        %v6818 = vunpack.c.l.b16 %v6484
        %v6819 = vunpack.c.h.b16 %v6484
        %v6820 = vunpack.c.l.b16 %v6485
        %v6821 = vunpack.c.h.b16 %v6485
        %v6822 = vunpack.c.l.b16 %v6486
        %v6823 = vunpack.c.h.b16 %v6486
        %v6824 = vunpack.c.l.b16 %v6487
        %v6825 = vunpack.c.h.b16 %v6487
        %v6826 = vunpack.c.l.b16 %v6488
        %v6827 = vunpack.c.h.b16 %v6488
        %v6828 = vunpack.c.l.b16 %v6489
        %v6829 = vunpack.c.h.b16 %v6489
        %v6830 = vunpack.c.l.b16 %v6490
        %v6831 = vunpack.c.h.b16 %v6490
        %v6832 = vunpack.c.l.b16 %v6491
        %v6833 = vunpack.c.h.b16 %v6491
        %v6834 = vunpack.c.l.b16 %v6492
        %v6835 = vunpack.c.h.b16 %v6492
        %v6836 = vunpack.c.l.b16 %v6493
        %v6837 = vunpack.c.h.b16 %v6493
        %v6838 = vunpack.c.l.b16 %v6494
        %v6839 = vunpack.c.h.b16 %v6494
        %v6840 = vunpack.c.l.b16 %v6495
        %v6841 = vunpack.c.h.b16 %v6495
        %v6842 = vunpack.c.l.b16 %v6496
        %v6843 = vunpack.c.h.b16 %v6496
        %v6844 = vunpack.c.l.b16 %v6497
        %v6845 = vunpack.c.h.b16 %v6497
        %v6846 = vunpack.c.l.b16 %v6498
        %v6847 = vunpack.c.h.b16 %v6498
        %v6848 = vunpack.c.l.b16 %v6499
        %v6849 = vunpack.c.h.b16 %v6499
        %v6850 = vunpack.c.l.b16 %v6500
        %v6851 = vunpack.c.h.b16 %v6500
        %v6852 = vunpack.c.l.b16 %v6501
        %v6853 = vunpack.c.h.b16 %v6501
        %v6854 = vunpack.c.l.b16 %v6502
        %v6855 = vunpack.c.h.b16 %v6502
        %v6856 = vunpack.c.l.b16 %v6503
        %v6857 = vunpack.c.h.b16 %v6503
        %v6858 = vunpack.c.l.b16 %v6504
        %v6859 = vunpack.c.h.b16 %v6504
        %v6860 = vunpack.c.l.b16 %v6505
        %v6861 = vunpack.c.h.b16 %v6505
        %v6862 = vunpack.c.l.b16 %v6506
        %v6863 = vunpack.c.h.b16 %v6506
        %v6864 = vunpack.c.l.b16 %v6507
        %v6865 = vunpack.c.h.b16 %v6507
        %v6866 = vunpack.c.l.b16 %v6508
        %v6867 = vunpack.c.h.b16 %v6508
        %v6868 = vunpack.c.l.b16 %v6509
        %v6869 = vunpack.c.h.b16 %v6509
        %v6870 = vunpack.c.l.b16 %v6510
        %v6871 = vunpack.c.h.b16 %v6510
        %v6872 = vunpack.c.l.b16 %v6511
        %v6873 = vunpack.c.h.b16 %v6511
        %v6874 = vunpack.c.l.b16 %v6512
        %v6875 = vunpack.c.h.b16 %v6512
        %v6876 = vunpack.c.l.b16 %v6513
        %v6877 = vunpack.c.h.b16 %v6513
        %v6878 = vunpack.c.l.b16 %v6514
        %v6879 = vunpack.c.h.b16 %v6514
        %v6880 = vunpack.c.l.b16 %v6515
        %v6881 = vunpack.c.h.b16 %v6515
        %v6882 = vunpack.c.l.b16 %v6516
        %v6883 = vunpack.c.h.b16 %v6516
        %v6884 = vunpack.c.l.b16 %v6517
        %v6885 = vunpack.c.h.b16 %v6517
        %v6886 = vunpack.c.l.b16 %v6518
        %v6887 = vunpack.c.h.b16 %v6518
        %v6888 = vunpack.c.l.b16 %v6519
        %v6889 = vunpack.c.h.b16 %v6519
        %v6890 = vunpack.c.l.b16 %v6520
        %v6891 = vunpack.c.h.b16 %v6520
        %v6892 = vunpack.c.l.b16 %v6521
        %v6893 = vunpack.c.h.b16 %v6521
        %v6894 = vunpack.c.l.b16 %v6522
        %v6895 = vunpack.c.h.b16 %v6522
        %v6896 = vunpack.c.l.b16 %v6523
        %v6897 = vunpack.c.h.b16 %v6523
        %v6898 = vunpack.c.l.b16 %v6524
        %v6899 = vunpack.c.h.b16 %v6524
        %v6900 = vunpack.c.l.b16 %v6525
        %v6901 = vunpack.c.h.b16 %v6525
        %v6902 = vunpack.c.l.b16 %v6526
        %v6903 = vunpack.c.h.b16 %v6526
        %v6904 = vunpack.c.l.b16 %v6527
        %v6905 = vunpack.c.h.b16 %v6527
        %v6906 = vunpack.c.l.b16 %v6528
        %v6907 = vunpack.c.h.b16 %v6528
        %v6908 = vunpack.c.l.b16 %v6529
        %v6909 = vunpack.c.h.b16 %v6529
        %v6910 = vunpack.c.l.b16 %v6530
        %v6911 = vunpack.c.h.b16 %v6530
        %v6912 = vunpack.c.l.b16 %v6531
        %v6913 = vunpack.c.h.b16 %v6531
        %v6914 = vunpack.c.l.b16 %v6532
        %v6915 = vunpack.c.h.b16 %v6532
        %v6916 = vunpack.c.l.b16 %v6533
        %v6917 = vunpack.c.h.b16 %v6533
        %v6918 = vunpack.c.l.b16 %v6534
        %v6919 = vunpack.c.h.b16 %v6534
        %v6920 = vunpack.c.l.b16 %v6535
        %v6921 = vunpack.c.h.b16 %v6535
        %v6922 = vunpack.c.l.b16 %v6536
        %v6923 = vunpack.c.h.b16 %v6536
        %v6924 = vunpack.c.l.b16 %v6537
        %v6925 = vunpack.c.h.b16 %v6537
        %v6926 = vunpack.c.l.b16 %v6538
        %v6927 = vunpack.c.h.b16 %v6538
        %v6928 = vunpack.c.l.b16 %v6539
        %v6929 = vunpack.c.h.b16 %v6539
        %v6930 = vunpack.c.l.b16 %v6540
        %v6931 = vunpack.c.h.b16 %v6540
        %v6932 = vunpack.c.l.b16 %v6541
        %v6933 = vunpack.c.h.b16 %v6541
        %v6934 = vunpack.c.l.b16 %v6542
        %v6935 = vunpack.c.h.b16 %v6542
        %v6936 = vunpack.c.l.b16 %v6543
        %v6937 = vunpack.c.h.b16 %v6543
        %v6938 = vunpack.c.l.b16 %v6544
        %v6939 = vunpack.c.h.b16 %v6544
        %v6940 = vunpack.c.l.b16 %v6545
        %v6941 = vunpack.c.h.b16 %v6545
        %v6942 = vunpack.c.l.b16 %v6546
        %v6943 = vunpack.c.h.b16 %v6546
        %v6944 = vunpack.c.l.b16 %v6547
        %v6945 = vunpack.c.h.b16 %v6547
        %v6946 = vunpack.c.l.b16 %v6548
        %v6947 = vunpack.c.h.b16 %v6548
        %v6948 = vunpack.c.l.b16 %v6549
        %v6949 = vunpack.c.h.b16 %v6549
        %v6950 = vunpack.c.l.b16 %v6550
        %v6951 = vunpack.c.h.b16 %v6550
        %v6952 = vunpack.c.l.b16 %v6551
        %v6953 = vunpack.c.h.b16 %v6551
        %v6954 = vunpack.c.l.b16 %v6552
        %v6955 = vunpack.c.h.b16 %v6552
        %v6956 = vunpack.c.l.b16 %v6553
        %v6957 = vunpack.c.h.b16 %v6553
        %v6958 = vunpack.c.l.b16 %v6554
        %v6959 = vunpack.c.h.b16 %v6554
        %v6960 = vunpack.c.l.b16 %v6555
        %v6961 = vunpack.c.h.b16 %v6555
        %v6962 = vpack.c.b16 %v6710, %v6706
        %v6963 = vpack.c.b16 %v6711, %v6707
        %v6964 = vpack.c.b16 %v6712, %v6708
        %v6965 = vpack.c.b16 %v6713, %v6709
        %v6966 = vpack.c.b16 %v6718, %v6714
        %v6967 = vpack.c.b16 %v6719, %v6715
        %v6968 = vpack.c.b16 %v6720, %v6716
        %v6969 = vpack.c.b16 %v6721, %v6717
        %v6970 = vpack.c.b16 %v6726, %v6722
        %v6971 = vpack.c.b16 %v6727, %v6723
        %v6972 = vpack.c.b16 %v6728, %v6724
        %v6973 = vpack.c.b16 %v6729, %v6725
        %v6974 = vpack.c.b16 %v6734, %v6730
        %v6975 = vpack.c.b16 %v6735, %v6731
        %v6976 = vpack.c.b16 %v6736, %v6732
        %v6977 = vpack.c.b16 %v6737, %v6733
        %v6978 = vpack.c.b16 %v6742, %v6738
        %v6979 = vpack.c.b16 %v6743, %v6739
        %v6980 = vpack.c.b16 %v6744, %v6740
        %v6981 = vpack.c.b16 %v6745, %v6741
        %v6982 = vpack.c.b16 %v6750, %v6746
        %v6983 = vpack.c.b16 %v6751, %v6747
        %v6984 = vpack.c.b16 %v6752, %v6748
        %v6985 = vpack.c.b16 %v6753, %v6749
        %v6986 = vpack.c.b16 %v6758, %v6754
        %v6987 = vpack.c.b16 %v6759, %v6755
        %v6988 = vpack.c.b16 %v6760, %v6756
        %v6989 = vpack.c.b16 %v6761, %v6757
        %v6990 = vpack.c.b16 %v6766, %v6762
        %v6991 = vpack.c.b16 %v6767, %v6763
        %v6992 = vpack.c.b16 %v6768, %v6764
        %v6993 = vpack.c.b16 %v6769, %v6765
        %v6994 = vpack.c.b16 %v6774, %v6770
        %v6995 = vpack.c.b16 %v6775, %v6771
        %v6996 = vpack.c.b16 %v6776, %v6772
        %v6997 = vpack.c.b16 %v6777, %v6773
        %v6998 = vpack.c.b16 %v6782, %v6778
        %v6999 = vpack.c.b16 %v6783, %v6779
        %v7000 = vpack.c.b16 %v6784, %v6780
        %v7001 = vpack.c.b16 %v6785, %v6781
        %v7002 = vpack.c.b16 %v6790, %v6786
        %v7003 = vpack.c.b16 %v6791, %v6787
        %v7004 = vpack.c.b16 %v6792, %v6788
        %v7005 = vpack.c.b16 %v6793, %v6789
        %v7006 = vpack.c.b16 %v6798, %v6794
        %v7007 = vpack.c.b16 %v6799, %v6795
        %v7008 = vpack.c.b16 %v6800, %v6796
        %v7009 = vpack.c.b16 %v6801, %v6797
        %v7010 = vpack.c.b16 %v6806, %v6802
        %v7011 = vpack.c.b16 %v6807, %v6803
        %v7012 = vpack.c.b16 %v6808, %v6804
        %v7013 = vpack.c.b16 %v6809, %v6805
        %v7014 = vpack.c.b16 %v6814, %v6810
        %v7015 = vpack.c.b16 %v6815, %v6811
        %v7016 = vpack.c.b16 %v6816, %v6812
        %v7017 = vpack.c.b16 %v6817, %v6813
        %v7018 = vpack.c.b16 %v6822, %v6818
        %v7019 = vpack.c.b16 %v6823, %v6819
        %v7020 = vpack.c.b16 %v6824, %v6820
        %v7021 = vpack.c.b16 %v6825, %v6821
        %v7022 = vpack.c.b16 %v6830, %v6826
        %v7023 = vpack.c.b16 %v6831, %v6827
        %v7024 = vpack.c.b16 %v6832, %v6828
        %v7025 = vpack.c.b16 %v6833, %v6829
        %v7026 = vpack.c.b16 %v6838, %v6834
        %v7027 = vpack.c.b16 %v6839, %v6835
        %v7028 = vpack.c.b16 %v6840, %v6836
        %v7029 = vpack.c.b16 %v6841, %v6837
        %v7030 = vpack.c.b16 %v6846, %v6842
        %v7031 = vpack.c.b16 %v6847, %v6843
        %v7032 = vpack.c.b16 %v6848, %v6844
        %v7033 = vpack.c.b16 %v6849, %v6845
        %v7034 = vpack.c.b16 %v6854, %v6850
        %v7035 = vpack.c.b16 %v6855, %v6851
        %v7036 = vpack.c.b16 %v6856, %v6852
        %v7037 = vpack.c.b16 %v6857, %v6853
        %v7038 = vpack.c.b16 %v6862, %v6858
        %v7039 = vpack.c.b16 %v6863, %v6859
        %v7040 = vpack.c.b16 %v6864, %v6860
        %v7041 = vpack.c.b16 %v6865, %v6861
        %v7042 = vpack.c.b16 %v6870, %v6866
        %v7043 = vpack.c.b16 %v6871, %v6867
        %v7044 = vpack.c.b16 %v6872, %v6868
        %v7045 = vpack.c.b16 %v6873, %v6869
        %v7046 = vpack.c.b16 %v6878, %v6874
        %v7047 = vpack.c.b16 %v6879, %v6875
        %v7048 = vpack.c.b16 %v6880, %v6876
        %v7049 = vpack.c.b16 %v6881, %v6877
        %v7050 = vpack.c.b16 %v6886, %v6882
        %v7051 = vpack.c.b16 %v6887, %v6883
        %v7052 = vpack.c.b16 %v6888, %v6884
        %v7053 = vpack.c.b16 %v6889, %v6885
        %v7054 = vpack.c.b16 %v6894, %v6890
        %v7055 = vpack.c.b16 %v6895, %v6891
        %v7056 = vpack.c.b16 %v6896, %v6892
        %v7057 = vpack.c.b16 %v6897, %v6893
        %v7058 = vpack.c.b16 %v6902, %v6898
        %v7059 = vpack.c.b16 %v6903, %v6899
        %v7060 = vpack.c.b16 %v6904, %v6900
        %v7061 = vpack.c.b16 %v6905, %v6901
        %v7062 = vpack.c.b16 %v6910, %v6906
        %v7063 = vpack.c.b16 %v6911, %v6907
        %v7064 = vpack.c.b16 %v6912, %v6908
        %v7065 = vpack.c.b16 %v6913, %v6909
        %v7066 = vpack.c.b16 %v6918, %v6914
        %v7067 = vpack.c.b16 %v6919, %v6915
        %v7068 = vpack.c.b16 %v6920, %v6916
        %v7069 = vpack.c.b16 %v6921, %v6917
        %v7070 = vpack.c.b16 %v6926, %v6922
        %v7071 = vpack.c.b16 %v6927, %v6923
        %v7072 = vpack.c.b16 %v6928, %v6924
        %v7073 = vpack.c.b16 %v6929, %v6925
        %v7074 = vpack.c.b16 %v6934, %v6930
        %v7075 = vpack.c.b16 %v6935, %v6931
        %v7076 = vpack.c.b16 %v6936, %v6932
        %v7077 = vpack.c.b16 %v6937, %v6933
        %v7078 = vpack.c.b16 %v6942, %v6938
        %v7079 = vpack.c.b16 %v6943, %v6939
        %v7080 = vpack.c.b16 %v6944, %v6940
        %v7081 = vpack.c.b16 %v6945, %v6941
        %v7082 = vpack.c.b16 %v6950, %v6946
        %v7083 = vpack.c.b16 %v6951, %v6947
        %v7084 = vpack.c.b16 %v6952, %v6948
        %v7085 = vpack.c.b16 %v6953, %v6949
        %v7086 = vpack.c.b16 %v6958, %v6954
        %v7087 = vpack.c.b16 %v6959, %v6955
        %v7088 = vpack.c.b16 %v6960, %v6956
        %v7089 = vpack.c.b16 %v6961, %v6957
        %7218 = vmatprep.subr.bf16.mxu0 %v6963
        %7219 = vmatpush1.bf16.msra.mxu0 %v6962
        %7220 = vmatprep.subr.bf16.mxu0 %v6967
        %7221 = vmatpush1.bf16.msra.mxu0 %v6966
        %7222 = vmatprep.subr.bf16.mxu0 %v6971
        %7223 = vmatpush1.bf16.msra.mxu0 %v6970
        %7224 = vmatprep.subr.bf16.mxu0 %v6975
        %7225 = vmatpush1.bf16.msra.mxu0 %v6974
        %7226 = vmatprep.subr.bf16.mxu0 %v6979
        %7227 = vmatpush1.bf16.msra.mxu0 %v6978
        %7228 = vmatprep.subr.bf16.mxu0 %v6983
        %7229 = vmatpush1.bf16.msra.mxu0 %v6982
        %7230 = vmatprep.subr.bf16.mxu0 %v6987
        %7231 = vmatpush1.bf16.msra.mxu0 %v6986
        %7232 = vmatprep.subr.bf16.mxu0 %v6991
        %7233 = vmatpush1.bf16.msra.mxu0 %v6990
        %7234 = vmatprep.subr.bf16.mxu0 %v6995
        %7235 = vmatpush1.bf16.msra.mxu0 %v6994
        %7236 = vmatprep.subr.bf16.mxu0 %v6999
        %7237 = vmatpush1.bf16.msra.mxu0 %v6998
        %7238 = vmatprep.subr.bf16.mxu0 %v7003
        %7239 = vmatpush1.bf16.msra.mxu0 %v7002
        %7240 = vmatprep.subr.bf16.mxu0 %v7007
        %7241 = vmatpush1.bf16.msra.mxu0 %v7006
        %7242 = vmatprep.subr.bf16.mxu0 %v7011
        %7243 = vmatpush1.bf16.msra.mxu0 %v7010
        %7244 = vmatprep.subr.bf16.mxu0 %v7015
        %7245 = vmatpush1.bf16.msra.mxu0 %v7014
        %7246 = vmatprep.subr.bf16.mxu0 %v7019
        %7247 = vmatpush1.bf16.msra.mxu0 %v7018
        %7248 = vmatprep.subr.bf16.mxu0 %v7023
        %7249 = vmatpush1.bf16.msra.mxu0 %v7022
        %7250 = vmatprep.mubr.bf16.mxu0 %v6425
        %7251 = vmatmul.mubr.bf16.gmra.mrb[0].mxu0 %v6424
        %v7252 = vpop.f32.mrb[0].mxu0
        %v7253 = vadd.f32 %v6561, %v7252
        %v7254 = vpop.f32.mrb[0].mxu0
        %v7255 = vadd.f32 %v6565, %v7254
        %v7256 = vpop.f32.mrb[0].mxu0
        %v7257 = vpop.f32.mrb[0].mxu0
        %7258 = vdwg.mxu0
        %7259 = vmatprep.subr.bf16.mxu0 %v7027
        %7260 = vmatpush1.bf16.msra.mxu0 %v7026
        %7261 = vmatprep.subr.bf16.mxu0 %v7031
        %7262 = vmatpush1.bf16.msra.mxu0 %v7030
        %7263 = vmatprep.subr.bf16.mxu0 %v7035
        %7264 = vmatpush1.bf16.msra.mxu0 %v7034
        %7265 = vmatprep.subr.bf16.mxu0 %v7039
        %7266 = vmatpush1.bf16.msra.mxu0 %v7038
        %7267 = vmatprep.subr.bf16.mxu0 %v7043
        %7268 = vmatpush1.bf16.msra.mxu0 %v7042
        %7269 = vmatprep.subr.bf16.mxu0 %v7047
        %7270 = vmatpush1.bf16.msra.mxu0 %v7046
        %7271 = vmatprep.subr.bf16.mxu0 %v7051
        %7272 = vmatpush1.bf16.msra.mxu0 %v7050
        %7273 = vmatprep.subr.bf16.mxu0 %v7055
        %7274 = vmatpush1.bf16.msra.mxu0 %v7054
        %7275 = vmatprep.subr.bf16.mxu0 %v7059
        %7276 = vmatpush1.bf16.msra.mxu0 %v7058
        %7277 = vmatprep.subr.bf16.mxu0 %v7063
        %7278 = vmatpush1.bf16.msra.mxu0 %v7062
        %7279 = vmatprep.subr.bf16.mxu0 %v7067
        %7280 = vmatpush1.bf16.msra.mxu0 %v7066
        %7281 = vmatprep.subr.bf16.mxu0 %v7071
        %7282 = vmatpush1.bf16.msra.mxu0 %v7070
        %7283 = vmatprep.subr.bf16.mxu0 %v7075
        %7284 = vmatpush1.bf16.msra.mxu0 %v7074
        %7285 = vmatprep.subr.bf16.mxu0 %v7079
        %7286 = vmatpush1.bf16.msra.mxu0 %v7078
        %7287 = vmatprep.subr.bf16.mxu0 %v7083
        %7288 = vmatpush1.bf16.msra.mxu0 %v7082
        %7289 = vmatprep.subr.bf16.mxu0 %v7087
        %7290 = vmatpush1.bf16.msra.mxu0 %v7086
        %7291 = vmatprep.mubr.bf16.mxu0 %v6427
        %7292 = vmatmul.mubr.bf16.gmra.mrb[0].mxu0 %v6426
        %v7293 = vpop.f32.mrb[0].mxu0
        %v7294 = vadd.f32 %v7253, %v7293
        %v7295 = vpop.f32.mrb[0].mxu0
        %v7296 = vadd.f32 %v7255, %v7295
        %v7297 = vpop.f32.mrb[0].mxu0
        %v7298 = vpop.f32.mrb[0].mxu0
        %7299 = vdwg.mxu0
        %7300 = vmatprep.subr.bf16.mxu0 %v6965
        %7301 = vmatpush1.bf16.msra.mxu0 %v6964
        %7302 = vmatprep.subr.bf16.mxu0 %v6969
        %7303 = vmatpush1.bf16.msra.mxu0 %v6968
        %7304 = vmatprep.subr.bf16.mxu0 %v6973
        %7305 = vmatpush1.bf16.msra.mxu0 %v6972
        %7306 = vmatprep.subr.bf16.mxu0 %v6977
        %7307 = vmatpush1.bf16.msra.mxu0 %v6976
        %7308 = vmatprep.subr.bf16.mxu0 %v6981
        %7309 = vmatpush1.bf16.msra.mxu0 %v6980
        %7310 = vmatprep.subr.bf16.mxu0 %v6985
        %7311 = vmatpush1.bf16.msra.mxu0 %v6984
        %7312 = vmatprep.subr.bf16.mxu0 %v6989
        %7313 = vmatpush1.bf16.msra.mxu0 %v6988
        %7314 = vmatprep.subr.bf16.mxu0 %v6993
        %7315 = vmatpush1.bf16.msra.mxu0 %v6992
        %7316 = vmatprep.subr.bf16.mxu0 %v6997
        %7317 = vmatpush1.bf16.msra.mxu0 %v6996
        %7318 = vmatprep.subr.bf16.mxu0 %v7001
        %7319 = vmatpush1.bf16.msra.mxu0 %v7000
        %7320 = vmatprep.subr.bf16.mxu0 %v7005
        %7321 = vmatpush1.bf16.msra.mxu0 %v7004
        %7322 = vmatprep.subr.bf16.mxu0 %v7009
        %7323 = vmatpush1.bf16.msra.mxu0 %v7008
        %7324 = vmatprep.subr.bf16.mxu0 %v7013
        %7325 = vmatpush1.bf16.msra.mxu0 %v7012
        %7326 = vmatprep.subr.bf16.mxu0 %v7017
        %7327 = vmatpush1.bf16.msra.mxu0 %v7016
        %7328 = vmatprep.subr.bf16.mxu0 %v7021
        %7329 = vmatpush1.bf16.msra.mxu0 %v7020
        %7330 = vmatprep.subr.bf16.mxu0 %v7025
        %7331 = vmatpush1.bf16.msra.mxu0 %v7024
        %7332 = vmatprep.mubr.bf16.mxu0 %v6425
        %7333 = vmatmul.mubr.bf16.gmra.mrb[0].mxu0 %v6424
        %v7334 = vpop.f32.mrb[0].mxu0
        %v7335 = vadd.f32 %v6569, %v7334
        %v7336 = vpop.f32.mrb[0].mxu0
        %v7337 = vadd.f32 %v6573, %v7336
        %v7338 = vpop.f32.mrb[0].mxu0
        %v7339 = vpop.f32.mrb[0].mxu0
        %7340 = vdwg.mxu0
        %7341 = vmatprep.subr.bf16.mxu0 %v7029
        %7342 = vmatpush1.bf16.msra.mxu0 %v7028
        %7343 = vmatprep.subr.bf16.mxu0 %v7033
        %7344 = vmatpush1.bf16.msra.mxu0 %v7032
        %7345 = vmatprep.subr.bf16.mxu0 %v7037
        %7346 = vmatpush1.bf16.msra.mxu0 %v7036
        %7347 = vmatprep.subr.bf16.mxu0 %v7041
        %7348 = vmatpush1.bf16.msra.mxu0 %v7040
        %7349 = vmatprep.subr.bf16.mxu0 %v7045
        %7350 = vmatpush1.bf16.msra.mxu0 %v7044
        %7351 = vmatprep.subr.bf16.mxu0 %v7049
        %7352 = vmatpush1.bf16.msra.mxu0 %v7048
        %7353 = vmatprep.subr.bf16.mxu0 %v7053
        %7354 = vmatpush1.bf16.msra.mxu0 %v7052
        %7355 = vmatprep.subr.bf16.mxu0 %v7057
        %7356 = vmatpush1.bf16.msra.mxu0 %v7056
        %7357 = vmatprep.subr.bf16.mxu0 %v7061
        %7358 = vmatpush1.bf16.msra.mxu0 %v7060
        %7359 = vmatprep.subr.bf16.mxu0 %v7065
        %7360 = vmatpush1.bf16.msra.mxu0 %v7064
        %7361 = vmatprep.subr.bf16.mxu0 %v7069
        %7362 = vmatpush1.bf16.msra.mxu0 %v7068
        %7363 = vmatprep.subr.bf16.mxu0 %v7073
        %7364 = vmatpush1.bf16.msra.mxu0 %v7072
        %7365 = vmatprep.subr.bf16.mxu0 %v7077
        %7366 = vmatpush1.bf16.msra.mxu0 %v7076
        %7367 = vmatprep.subr.bf16.mxu0 %v7081
        %7368 = vmatpush1.bf16.msra.mxu0 %v7080
        %7369 = vmatprep.subr.bf16.mxu0 %v7085
        %7370 = vmatpush1.bf16.msra.mxu0 %v7084
        %7371 = vmatprep.subr.bf16.mxu0 %v7089
        %7372 = vmatpush1.bf16.msra.mxu0 %v7088
        %7373 = vmatprep.mubr.bf16.mxu0 %v6427
        %7374 = vmatmul.mubr.bf16.gmra.mrb[0].mxu0 %v6426
        %v7375 = vpop.f32.mrb[0].mxu0
        %v7376 = vadd.f32 %v7335, %v7375
        %v7377 = vpop.f32.mrb[0].mxu0
        %v7378 = vadd.f32 %v7337, %v7377
        %v7379 = vpop.f32.mrb[0].mxu0
        %v7380 = vpop.f32.mrb[0].mxu0
        %7381 = vdwg.mxu0
        %v7382 = vadd.f32 %v7294, %v1887
        %v7383 = vadd.f32 %v7296, %v1889
        %v7384 = vadd.f32 %v7376, %v2010
        %v7385 = vadd.f32 %v7378, %v2012
        %v7386 = vpack.c.bf16 %v7382, %v7382
        %v7387 = vpack.c.bf16 %v7383, %v7383
        %v7388 = vpack.c.bf16 %v7384, %v7384
        %v7389 = vpack.c.bf16 %v7385, %v7385
        %v7390 = vld [vmem:[#allocation20] sm:$0xff]
        %v7391 = vld [vmem:[#allocation20 + $0x8] sm:$0xff]
        %v7392 = vld [vmem:[#allocation20 + $0x10] sm:$0xff]
        %v7393 = vld [vmem:[#allocation20 + $0x18] sm:$0xff]
        %v7394 = vld [vmem:[#allocation20 + $0x20] sm:$0xff]
        %v7395 = vld [vmem:[#allocation20 + $0x28] sm:$0xff]
        %v7396 = vld [vmem:[#allocation20 + $0x30] sm:$0xff]
        %v7397 = vld [vmem:[#allocation20 + $0x38] sm:$0xff]
        %v7398 = vld [vmem:[#allocation20 + $0x40] sm:$0xff]
        %v7399 = vld [vmem:[#allocation20 + $0x48] sm:$0xff]
        %v7400 = vld [vmem:[#allocation20 + $0x50] sm:$0xff]
        %v7401 = vld [vmem:[#allocation20 + $0x58] sm:$0xff]
        %v7402 = vld [vmem:[#allocation20 + $0x60] sm:$0xff]
        %v7403 = vld [vmem:[#allocation20 + $0x68] sm:$0xff]
        %v7404 = vld [vmem:[#allocation20 + $0x70] sm:$0xff]
        %v7405 = vld [vmem:[#allocation20 + $0x78] sm:$0xff]
        %v7406 = vld [vmem:[#allocation20 + $0x80] sm:$0xff]
        %v7407 = vld [vmem:[#allocation20 + $0x88] sm:$0xff]
        %v7408 = vld [vmem:[#allocation20 + $0x90] sm:$0xff]
        %v7409 = vld [vmem:[#allocation20 + $0x98] sm:$0xff]
        %v7410 = vld [vmem:[#allocation20 + $0xa0] sm:$0xff]
        %v7411 = vld [vmem:[#allocation20 + $0xa8] sm:$0xff]
        %v7412 = vld [vmem:[#allocation20 + $0xb0] sm:$0xff]
        %v7413 = vld [vmem:[#allocation20 + $0xb8] sm:$0xff]
        %v7414 = vld [vmem:[#allocation20 + $0xc0] sm:$0xff]
        %v7415 = vld [vmem:[#allocation20 + $0xc8] sm:$0xff]
        %v7416 = vld [vmem:[#allocation20 + $0xd0] sm:$0xff]
        %v7417 = vld [vmem:[#allocation20 + $0xd8] sm:$0xff]
        %v7418 = vld [vmem:[#allocation20 + $0xe0] sm:$0xff]
        %v7419 = vld [vmem:[#allocation20 + $0xe8] sm:$0xff]
        %v7420 = vld [vmem:[#allocation20 + $0xf0] sm:$0xff]
        %v7421 = vld [vmem:[#allocation20 + $0xf8] sm:$0xff]
        %v7422 = vld [vmem:[#allocation20 + $0x100] sm:$0xff]
        %v7423 = vld [vmem:[#allocation20 + $0x108] sm:$0xff]
        %v7424 = vld [vmem:[#allocation20 + $0x110] sm:$0xff]
        %v7425 = vld [vmem:[#allocation20 + $0x118] sm:$0xff]
        %v7426 = vld [vmem:[#allocation20 + $0x120] sm:$0xff]
        %v7427 = vld [vmem:[#allocation20 + $0x128] sm:$0xff]
        %v7428 = vld [vmem:[#allocation20 + $0x130] sm:$0xff]
        %v7429 = vld [vmem:[#allocation20 + $0x138] sm:$0xff]
        %v7430 = vld [vmem:[#allocation20 + $0x140] sm:$0xff]
        %v7431 = vld [vmem:[#allocation20 + $0x148] sm:$0xff]
        %v7432 = vld [vmem:[#allocation20 + $0x150] sm:$0xff]
        %v7433 = vld [vmem:[#allocation20 + $0x158] sm:$0xff]
        %v7434 = vld [vmem:[#allocation20 + $0x160] sm:$0xff]
        %v7435 = vld [vmem:[#allocation20 + $0x168] sm:$0xff]
        %v7436 = vld [vmem:[#allocation20 + $0x170] sm:$0xff]
        %v7437 = vld [vmem:[#allocation20 + $0x178] sm:$0xff]
        %v7438 = vld [vmem:[#allocation20 + $0x180] sm:$0xff]
        %v7439 = vld [vmem:[#allocation20 + $0x188] sm:$0xff]
        %v7440 = vld [vmem:[#allocation20 + $0x190] sm:$0xff]
        %v7441 = vld [vmem:[#allocation20 + $0x198] sm:$0xff]
        %v7442 = vld [vmem:[#allocation20 + $0x1a0] sm:$0xff]
        %v7443 = vld [vmem:[#allocation20 + $0x1a8] sm:$0xff]
        %v7444 = vld [vmem:[#allocation20 + $0x1b0] sm:$0xff]
        %v7445 = vld [vmem:[#allocation20 + $0x1b8] sm:$0xff]
        %v7446 = vld [vmem:[#allocation20 + $0x1c0] sm:$0xff]
        %v7447 = vld [vmem:[#allocation20 + $0x1c8] sm:$0xff]
        %v7448 = vld [vmem:[#allocation20 + $0x1d0] sm:$0xff]
        %v7449 = vld [vmem:[#allocation20 + $0x1d8] sm:$0xff]
        %v7450 = vld [vmem:[#allocation20 + $0x1e0] sm:$0xff]
        %v7451 = vld [vmem:[#allocation20 + $0x1e8] sm:$0xff]
        %v7452 = vld [vmem:[#allocation20 + $0x1f0] sm:$0xff]
        %v7453 = vld [vmem:[#allocation20 + $0x1f8] sm:$0xff]
        %v7454 = vld [vmem:[#allocation20 + $0x200] sm:$0xff]
        %v7455 = vld [vmem:[#allocation20 + $0x208] sm:$0xff]
        %v7456 = vld [vmem:[#allocation20 + $0x210] sm:$0xff]
        %v7457 = vld [vmem:[#allocation20 + $0x218] sm:$0xff]
        %v7458 = vld [vmem:[#allocation20 + $0x220] sm:$0xff]
        %v7459 = vld [vmem:[#allocation20 + $0x228] sm:$0xff]
        %v7460 = vld [vmem:[#allocation20 + $0x230] sm:$0xff]
        %v7461 = vld [vmem:[#allocation20 + $0x238] sm:$0xff]
        %v7462 = vld [vmem:[#allocation20 + $0x240] sm:$0xff]
        %v7463 = vld [vmem:[#allocation20 + $0x248] sm:$0xff]
        %v7464 = vld [vmem:[#allocation20 + $0x250] sm:$0xff]
        %v7465 = vld [vmem:[#allocation20 + $0x258] sm:$0xff]
        %v7466 = vld [vmem:[#allocation20 + $0x260] sm:$0xff]
        %v7467 = vld [vmem:[#allocation20 + $0x268] sm:$0xff]
        %v7468 = vld [vmem:[#allocation20 + $0x270] sm:$0xff]
        %v7469 = vld [vmem:[#allocation20 + $0x278] sm:$0xff]
        %v7470 = vld [vmem:[#allocation20 + $0x280] sm:$0xff]
        %v7471 = vld [vmem:[#allocation20 + $0x288] sm:$0xff]
        %v7472 = vld [vmem:[#allocation20 + $0x290] sm:$0xff]
        %v7473 = vld [vmem:[#allocation20 + $0x298] sm:$0xff]
        %v7474 = vld [vmem:[#allocation20 + $0x2a0] sm:$0xff]
        %v7475 = vld [vmem:[#allocation20 + $0x2a8] sm:$0xff]
        %v7476 = vld [vmem:[#allocation20 + $0x2b0] sm:$0xff]
        %v7477 = vld [vmem:[#allocation20 + $0x2b8] sm:$0xff]
        %v7478 = vld [vmem:[#allocation20 + $0x2c0] sm:$0xff]
        %v7479 = vld [vmem:[#allocation20 + $0x2c8] sm:$0xff]
        %v7480 = vld [vmem:[#allocation20 + $0x2d0] sm:$0xff]
        %v7481 = vld [vmem:[#allocation20 + $0x2d8] sm:$0xff]
        %v7482 = vld [vmem:[#allocation20 + $0x2e0] sm:$0xff]
        %v7483 = vld [vmem:[#allocation20 + $0x2e8] sm:$0xff]
        %v7484 = vld [vmem:[#allocation20 + $0x2f0] sm:$0xff]
        %v7485 = vld [vmem:[#allocation20 + $0x2f8] sm:$0xff]
        %v7486 = vld [vmem:[#allocation20 + $0x300] sm:$0xff]
        %v7487 = vld [vmem:[#allocation20 + $0x308] sm:$0xff]
        %v7488 = vld [vmem:[#allocation20 + $0x310] sm:$0xff]
        %v7489 = vld [vmem:[#allocation20 + $0x318] sm:$0xff]
        %v7490 = vld [vmem:[#allocation20 + $0x320] sm:$0xff]
        %v7491 = vld [vmem:[#allocation20 + $0x328] sm:$0xff]
        %v7492 = vld [vmem:[#allocation20 + $0x330] sm:$0xff]
        %v7493 = vld [vmem:[#allocation20 + $0x338] sm:$0xff]
        %v7494 = vld [vmem:[#allocation20 + $0x340] sm:$0xff]
        %v7495 = vld [vmem:[#allocation20 + $0x348] sm:$0xff]
        %v7496 = vld [vmem:[#allocation20 + $0x350] sm:$0xff]
        %v7497 = vld [vmem:[#allocation20 + $0x358] sm:$0xff]
        %v7498 = vld [vmem:[#allocation20 + $0x360] sm:$0xff]
        %v7499 = vld [vmem:[#allocation20 + $0x368] sm:$0xff]
        %v7500 = vld [vmem:[#allocation20 + $0x370] sm:$0xff]
        %v7501 = vld [vmem:[#allocation20 + $0x378] sm:$0xff]
        %v7502 = vld [vmem:[#allocation20 + $0x380] sm:$0xff]
        %v7503 = vld [vmem:[#allocation20 + $0x388] sm:$0xff]
        %v7504 = vld [vmem:[#allocation20 + $0x390] sm:$0xff]
        %v7505 = vld [vmem:[#allocation20 + $0x398] sm:$0xff]
        %v7506 = vld [vmem:[#allocation20 + $0x3a0] sm:$0xff]
        %v7507 = vld [vmem:[#allocation20 + $0x3a8] sm:$0xff]
        %v7508 = vld [vmem:[#allocation20 + $0x3b0] sm:$0xff]
        %v7509 = vld [vmem:[#allocation20 + $0x3b8] sm:$0xff]
        %v7510 = vld [vmem:[#allocation20 + $0x3c0] sm:$0xff]
        %v7511 = vld [vmem:[#allocation20 + $0x3c8] sm:$0xff]
        %v7512 = vld [vmem:[#allocation20 + $0x3d0] sm:$0xff]
        %v7513 = vld [vmem:[#allocation20 + $0x3d8] sm:$0xff]
        %v7514 = vld [vmem:[#allocation20 + $0x3e0] sm:$0xff]
        %v7515 = vld [vmem:[#allocation20 + $0x3e8] sm:$0xff]
        %v7516 = vld [vmem:[#allocation20 + $0x3f0] sm:$0xff]
        %v7517 = vld [vmem:[#allocation20 + $0x3f8] sm:$0xff]
        %v7518 = vld [vmem:[#allocation21] sm:$0xf]
        %v7520 = vlaneseq
        %v7521 = vshrl.u32 %v7520, 7
        %v7522 = vsub.s32 0, %v7521
        %v7523 = vrot.slane %v7518, %v7522
        %v7524 = vlaneseq
        %v7525 = vshrl.u32 %v7524, 7
        %v7526 = vsub.s32 1, %v7525
        %v7527 = vrot.slane %v7518, %v7526
        %v7528 = vlaneseq
        %v7529 = vshrl.u32 %v7528, 7
        %v7530 = vsub.s32 2, %v7529
        %v7531 = vrot.slane %v7518, %v7530
        %v7532 = vlaneseq
        %v7533 = vshrl.u32 %v7532, 7
        %v7534 = vsub.s32 3, %v7533
        %v7535 = vrot.slane %v7518, %v7534
        %v7668 = vunpack.c.l.b16 %v7390
        %v7669 = vunpack.c.h.b16 %v7390
        %v7670 = vunpack.c.l.b16 %v7391
        %v7671 = vunpack.c.h.b16 %v7391
        %v7672 = vunpack.c.l.b16 %v7392
        %v7673 = vunpack.c.h.b16 %v7392
        %v7674 = vunpack.c.l.b16 %v7393
        %v7675 = vunpack.c.h.b16 %v7393
        %v7676 = vunpack.c.l.b16 %v7394
        %v7677 = vunpack.c.h.b16 %v7394
        %v7678 = vunpack.c.l.b16 %v7395
        %v7679 = vunpack.c.h.b16 %v7395
        %v7680 = vunpack.c.l.b16 %v7396
        %v7681 = vunpack.c.h.b16 %v7396
        %v7682 = vunpack.c.l.b16 %v7397
        %v7683 = vunpack.c.h.b16 %v7397
        %v7684 = vunpack.c.l.b16 %v7398
        %v7685 = vunpack.c.h.b16 %v7398
        %v7686 = vunpack.c.l.b16 %v7399
        %v7687 = vunpack.c.h.b16 %v7399
        %v7688 = vunpack.c.l.b16 %v7400
        %v7689 = vunpack.c.h.b16 %v7400
        %v7690 = vunpack.c.l.b16 %v7401
        %v7691 = vunpack.c.h.b16 %v7401
        %v7692 = vunpack.c.l.b16 %v7402
        %v7693 = vunpack.c.h.b16 %v7402
        %v7694 = vunpack.c.l.b16 %v7403
        %v7695 = vunpack.c.h.b16 %v7403
        %v7696 = vunpack.c.l.b16 %v7404
        %v7697 = vunpack.c.h.b16 %v7404
        %v7698 = vunpack.c.l.b16 %v7405
        %v7699 = vunpack.c.h.b16 %v7405
        %v7700 = vunpack.c.l.b16 %v7406
        %v7701 = vunpack.c.h.b16 %v7406
        %v7702 = vunpack.c.l.b16 %v7407
        %v7703 = vunpack.c.h.b16 %v7407
        %v7704 = vunpack.c.l.b16 %v7408
        %v7705 = vunpack.c.h.b16 %v7408
        %v7706 = vunpack.c.l.b16 %v7409
        %v7707 = vunpack.c.h.b16 %v7409
        %v7708 = vunpack.c.l.b16 %v7410
        %v7709 = vunpack.c.h.b16 %v7410
        %v7710 = vunpack.c.l.b16 %v7411
        %v7711 = vunpack.c.h.b16 %v7411
        %v7712 = vunpack.c.l.b16 %v7412
        %v7713 = vunpack.c.h.b16 %v7412
        %v7714 = vunpack.c.l.b16 %v7413
        %v7715 = vunpack.c.h.b16 %v7413
        %v7716 = vunpack.c.l.b16 %v7414
        %v7717 = vunpack.c.h.b16 %v7414
        %v7718 = vunpack.c.l.b16 %v7415
        %v7719 = vunpack.c.h.b16 %v7415
        %v7720 = vunpack.c.l.b16 %v7416
        %v7721 = vunpack.c.h.b16 %v7416
        %v7722 = vunpack.c.l.b16 %v7417
        %v7723 = vunpack.c.h.b16 %v7417
        %v7724 = vunpack.c.l.b16 %v7418
        %v7725 = vunpack.c.h.b16 %v7418
        %v7726 = vunpack.c.l.b16 %v7419
        %v7727 = vunpack.c.h.b16 %v7419
        %v7728 = vunpack.c.l.b16 %v7420
        %v7729 = vunpack.c.h.b16 %v7420
        %v7730 = vunpack.c.l.b16 %v7421
        %v7731 = vunpack.c.h.b16 %v7421
        %v7732 = vunpack.c.l.b16 %v7422
        %v7733 = vunpack.c.h.b16 %v7422
        %v7734 = vunpack.c.l.b16 %v7423
        %v7735 = vunpack.c.h.b16 %v7423
        %v7736 = vunpack.c.l.b16 %v7424
        %v7737 = vunpack.c.h.b16 %v7424
        %v7738 = vunpack.c.l.b16 %v7425
        %v7739 = vunpack.c.h.b16 %v7425
        %v7740 = vunpack.c.l.b16 %v7426
        %v7741 = vunpack.c.h.b16 %v7426
        %v7742 = vunpack.c.l.b16 %v7427
        %v7743 = vunpack.c.h.b16 %v7427
        %v7744 = vunpack.c.l.b16 %v7428
        %v7745 = vunpack.c.h.b16 %v7428
        %v7746 = vunpack.c.l.b16 %v7429
        %v7747 = vunpack.c.h.b16 %v7429
        %v7748 = vunpack.c.l.b16 %v7430
        %v7749 = vunpack.c.h.b16 %v7430
        %v7750 = vunpack.c.l.b16 %v7431
        %v7751 = vunpack.c.h.b16 %v7431
        %v7752 = vunpack.c.l.b16 %v7432
        %v7753 = vunpack.c.h.b16 %v7432
        %v7754 = vunpack.c.l.b16 %v7433
        %v7755 = vunpack.c.h.b16 %v7433
        %v7756 = vunpack.c.l.b16 %v7434
        %v7757 = vunpack.c.h.b16 %v7434
        %v7758 = vunpack.c.l.b16 %v7435
        %v7759 = vunpack.c.h.b16 %v7435
        %v7760 = vunpack.c.l.b16 %v7436
        %v7761 = vunpack.c.h.b16 %v7436
        %v7762 = vunpack.c.l.b16 %v7437
        %v7763 = vunpack.c.h.b16 %v7437
        %v7764 = vunpack.c.l.b16 %v7438
        %v7765 = vunpack.c.h.b16 %v7438
        %v7766 = vunpack.c.l.b16 %v7439
        %v7767 = vunpack.c.h.b16 %v7439
        %v7768 = vunpack.c.l.b16 %v7440
        %v7769 = vunpack.c.h.b16 %v7440
        %v7770 = vunpack.c.l.b16 %v7441
        %v7771 = vunpack.c.h.b16 %v7441
        %v7772 = vunpack.c.l.b16 %v7442
        %v7773 = vunpack.c.h.b16 %v7442
        %v7774 = vunpack.c.l.b16 %v7443
        %v7775 = vunpack.c.h.b16 %v7443
        %v7776 = vunpack.c.l.b16 %v7444
        %v7777 = vunpack.c.h.b16 %v7444
        %v7778 = vunpack.c.l.b16 %v7445
        %v7779 = vunpack.c.h.b16 %v7445
        %v7780 = vunpack.c.l.b16 %v7446
        %v7781 = vunpack.c.h.b16 %v7446
        %v7782 = vunpack.c.l.b16 %v7447
        %v7783 = vunpack.c.h.b16 %v7447
        %v7784 = vunpack.c.l.b16 %v7448
        %v7785 = vunpack.c.h.b16 %v7448
        %v7786 = vunpack.c.l.b16 %v7449
        %v7787 = vunpack.c.h.b16 %v7449
        %v7788 = vunpack.c.l.b16 %v7450
        %v7789 = vunpack.c.h.b16 %v7450
        %v7790 = vunpack.c.l.b16 %v7451
        %v7791 = vunpack.c.h.b16 %v7451
        %v7792 = vunpack.c.l.b16 %v7452
        %v7793 = vunpack.c.h.b16 %v7452
        %v7794 = vunpack.c.l.b16 %v7453
        %v7795 = vunpack.c.h.b16 %v7453
        %v7796 = vunpack.c.l.b16 %v7454
        %v7797 = vunpack.c.h.b16 %v7454
        %v7798 = vunpack.c.l.b16 %v7455
        %v7799 = vunpack.c.h.b16 %v7455
        %v7800 = vunpack.c.l.b16 %v7456
        %v7801 = vunpack.c.h.b16 %v7456
        %v7802 = vunpack.c.l.b16 %v7457
        %v7803 = vunpack.c.h.b16 %v7457
        %v7804 = vunpack.c.l.b16 %v7458
        %v7805 = vunpack.c.h.b16 %v7458
        %v7806 = vunpack.c.l.b16 %v7459
        %v7807 = vunpack.c.h.b16 %v7459
        %v7808 = vunpack.c.l.b16 %v7460
        %v7809 = vunpack.c.h.b16 %v7460
        %v7810 = vunpack.c.l.b16 %v7461
        %v7811 = vunpack.c.h.b16 %v7461
        %v7812 = vunpack.c.l.b16 %v7462
        %v7813 = vunpack.c.h.b16 %v7462
        %v7814 = vunpack.c.l.b16 %v7463
        %v7815 = vunpack.c.h.b16 %v7463
        %v7816 = vunpack.c.l.b16 %v7464
        %v7817 = vunpack.c.h.b16 %v7464
        %v7818 = vunpack.c.l.b16 %v7465
        %v7819 = vunpack.c.h.b16 %v7465
        %v7820 = vunpack.c.l.b16 %v7466
        %v7821 = vunpack.c.h.b16 %v7466
        %v7822 = vunpack.c.l.b16 %v7467
        %v7823 = vunpack.c.h.b16 %v7467
        %v7824 = vunpack.c.l.b16 %v7468
        %v7825 = vunpack.c.h.b16 %v7468
        %v7826 = vunpack.c.l.b16 %v7469
        %v7827 = vunpack.c.h.b16 %v7469
        %v7828 = vunpack.c.l.b16 %v7470
        %v7829 = vunpack.c.h.b16 %v7470
        %v7830 = vunpack.c.l.b16 %v7471
        %v7831 = vunpack.c.h.b16 %v7471
        %v7832 = vunpack.c.l.b16 %v7472
        %v7833 = vunpack.c.h.b16 %v7472
        %v7834 = vunpack.c.l.b16 %v7473
        %v7835 = vunpack.c.h.b16 %v7473
        %v7836 = vunpack.c.l.b16 %v7474
        %v7837 = vunpack.c.h.b16 %v7474
        %v7838 = vunpack.c.l.b16 %v7475
        %v7839 = vunpack.c.h.b16 %v7475
        %v7840 = vunpack.c.l.b16 %v7476
        %v7841 = vunpack.c.h.b16 %v7476
        %v7842 = vunpack.c.l.b16 %v7477
        %v7843 = vunpack.c.h.b16 %v7477
        %v7844 = vunpack.c.l.b16 %v7478
        %v7845 = vunpack.c.h.b16 %v7478
        %v7846 = vunpack.c.l.b16 %v7479
        %v7847 = vunpack.c.h.b16 %v7479
        %v7848 = vunpack.c.l.b16 %v7480
        %v7849 = vunpack.c.h.b16 %v7480
        %v7850 = vunpack.c.l.b16 %v7481
        %v7851 = vunpack.c.h.b16 %v7481
        %v7852 = vunpack.c.l.b16 %v7482
        %v7853 = vunpack.c.h.b16 %v7482
        %v7854 = vunpack.c.l.b16 %v7483
        %v7855 = vunpack.c.h.b16 %v7483
        %v7856 = vunpack.c.l.b16 %v7484
        %v7857 = vunpack.c.h.b16 %v7484
        %v7858 = vunpack.c.l.b16 %v7485
        %v7859 = vunpack.c.h.b16 %v7485
        %v7860 = vunpack.c.l.b16 %v7486
        %v7861 = vunpack.c.h.b16 %v7486
        %v7862 = vunpack.c.l.b16 %v7487
        %v7863 = vunpack.c.h.b16 %v7487
        %v7864 = vunpack.c.l.b16 %v7488
        %v7865 = vunpack.c.h.b16 %v7488
        %v7866 = vunpack.c.l.b16 %v7489
        %v7867 = vunpack.c.h.b16 %v7489
        %v7868 = vunpack.c.l.b16 %v7490
        %v7869 = vunpack.c.h.b16 %v7490
        %v7870 = vunpack.c.l.b16 %v7491
        %v7871 = vunpack.c.h.b16 %v7491
        %v7872 = vunpack.c.l.b16 %v7492
        %v7873 = vunpack.c.h.b16 %v7492
        %v7874 = vunpack.c.l.b16 %v7493
        %v7875 = vunpack.c.h.b16 %v7493
        %v7876 = vunpack.c.l.b16 %v7494
        %v7877 = vunpack.c.h.b16 %v7494
        %v7878 = vunpack.c.l.b16 %v7495
        %v7879 = vunpack.c.h.b16 %v7495
        %v7880 = vunpack.c.l.b16 %v7496
        %v7881 = vunpack.c.h.b16 %v7496
        %v7882 = vunpack.c.l.b16 %v7497
        %v7883 = vunpack.c.h.b16 %v7497
        %v7884 = vunpack.c.l.b16 %v7498
        %v7885 = vunpack.c.h.b16 %v7498
        %v7886 = vunpack.c.l.b16 %v7499
        %v7887 = vunpack.c.h.b16 %v7499
        %v7888 = vunpack.c.l.b16 %v7500
        %v7889 = vunpack.c.h.b16 %v7500
        %v7890 = vunpack.c.l.b16 %v7501
        %v7891 = vunpack.c.h.b16 %v7501
        %v7892 = vunpack.c.l.b16 %v7502
        %v7893 = vunpack.c.h.b16 %v7502
        %v7894 = vunpack.c.l.b16 %v7503
        %v7895 = vunpack.c.h.b16 %v7503
        %v7896 = vunpack.c.l.b16 %v7504
        %v7897 = vunpack.c.h.b16 %v7504
        %v7898 = vunpack.c.l.b16 %v7505
        %v7899 = vunpack.c.h.b16 %v7505
        %v7900 = vunpack.c.l.b16 %v7506
        %v7901 = vunpack.c.h.b16 %v7506
        %v7902 = vunpack.c.l.b16 %v7507
        %v7903 = vunpack.c.h.b16 %v7507
        %v7904 = vunpack.c.l.b16 %v7508
        %v7905 = vunpack.c.h.b16 %v7508
        %v7906 = vunpack.c.l.b16 %v7509
        %v7907 = vunpack.c.h.b16 %v7509
        %v7908 = vunpack.c.l.b16 %v7510
        %v7909 = vunpack.c.h.b16 %v7510
        %v7910 = vunpack.c.l.b16 %v7511
        %v7911 = vunpack.c.h.b16 %v7511
        %v7912 = vunpack.c.l.b16 %v7512
        %v7913 = vunpack.c.h.b16 %v7512
        %v7914 = vunpack.c.l.b16 %v7513
        %v7915 = vunpack.c.h.b16 %v7513
        %v7916 = vunpack.c.l.b16 %v7514
        %v7917 = vunpack.c.h.b16 %v7514
        %v7918 = vunpack.c.l.b16 %v7515
        %v7919 = vunpack.c.h.b16 %v7515
        %v7920 = vunpack.c.l.b16 %v7516
        %v7921 = vunpack.c.h.b16 %v7516
        %v7922 = vunpack.c.l.b16 %v7517
        %v7923 = vunpack.c.h.b16 %v7517
        %v7924 = vpack.c.b16 %v7672, %v7668
        %v7925 = vpack.c.b16 %v7673, %v7669
        %v7926 = vpack.c.b16 %v7674, %v7670
        %v7927 = vpack.c.b16 %v7675, %v7671
        %v7928 = vpack.c.b16 %v7680, %v7676
        %v7929 = vpack.c.b16 %v7681, %v7677
        %v7930 = vpack.c.b16 %v7682, %v7678
        %v7931 = vpack.c.b16 %v7683, %v7679
        %v7932 = vpack.c.b16 %v7688, %v7684
        %v7933 = vpack.c.b16 %v7689, %v7685
        %v7934 = vpack.c.b16 %v7690, %v7686
        %v7935 = vpack.c.b16 %v7691, %v7687
        %v7936 = vpack.c.b16 %v7696, %v7692
        %v7937 = vpack.c.b16 %v7697, %v7693
        %v7938 = vpack.c.b16 %v7698, %v7694
        %v7939 = vpack.c.b16 %v7699, %v7695
        %v7940 = vpack.c.b16 %v7704, %v7700
        %v7941 = vpack.c.b16 %v7705, %v7701
        %v7942 = vpack.c.b16 %v7706, %v7702
        %v7943 = vpack.c.b16 %v7707, %v7703
        %v7944 = vpack.c.b16 %v7712, %v7708
        %v7945 = vpack.c.b16 %v7713, %v7709
        %v7946 = vpack.c.b16 %v7714, %v7710
        %v7947 = vpack.c.b16 %v7715, %v7711
        %v7948 = vpack.c.b16 %v7720, %v7716
        %v7949 = vpack.c.b16 %v7721, %v7717
        %v7950 = vpack.c.b16 %v7722, %v7718
        %v7951 = vpack.c.b16 %v7723, %v7719
        %v7952 = vpack.c.b16 %v7728, %v7724
        %v7953 = vpack.c.b16 %v7729, %v7725
        %v7954 = vpack.c.b16 %v7730, %v7726
        %v7955 = vpack.c.b16 %v7731, %v7727
        %v7956 = vpack.c.b16 %v7736, %v7732
        %v7957 = vpack.c.b16 %v7737, %v7733
        %v7958 = vpack.c.b16 %v7738, %v7734
        %v7959 = vpack.c.b16 %v7739, %v7735
        %v7960 = vpack.c.b16 %v7744, %v7740
        %v7961 = vpack.c.b16 %v7745, %v7741
        %v7962 = vpack.c.b16 %v7746, %v7742
        %v7963 = vpack.c.b16 %v7747, %v7743
        %v7964 = vpack.c.b16 %v7752, %v7748
        %v7965 = vpack.c.b16 %v7753, %v7749
        %v7966 = vpack.c.b16 %v7754, %v7750
        %v7967 = vpack.c.b16 %v7755, %v7751
        %v7968 = vpack.c.b16 %v7760, %v7756
        %v7969 = vpack.c.b16 %v7761, %v7757
        %v7970 = vpack.c.b16 %v7762, %v7758
        %v7971 = vpack.c.b16 %v7763, %v7759
        %v7972 = vpack.c.b16 %v7768, %v7764
        %v7973 = vpack.c.b16 %v7769, %v7765
        %v7974 = vpack.c.b16 %v7770, %v7766
        %v7975 = vpack.c.b16 %v7771, %v7767
        %v7976 = vpack.c.b16 %v7776, %v7772
        %v7977 = vpack.c.b16 %v7777, %v7773
        %v7978 = vpack.c.b16 %v7778, %v7774
        %v7979 = vpack.c.b16 %v7779, %v7775
        %v7980 = vpack.c.b16 %v7784, %v7780
        %v7981 = vpack.c.b16 %v7785, %v7781
        %v7982 = vpack.c.b16 %v7786, %v7782
        %v7983 = vpack.c.b16 %v7787, %v7783
        %v7984 = vpack.c.b16 %v7792, %v7788
        %v7985 = vpack.c.b16 %v7793, %v7789
        %v7986 = vpack.c.b16 %v7794, %v7790
        %v7987 = vpack.c.b16 %v7795, %v7791
        %v7988 = vpack.c.b16 %v7800, %v7796
        %v7989 = vpack.c.b16 %v7801, %v7797
        %v7990 = vpack.c.b16 %v7802, %v7798
        %v7991 = vpack.c.b16 %v7803, %v7799
        %v7992 = vpack.c.b16 %v7808, %v7804
        %v7993 = vpack.c.b16 %v7809, %v7805
        %v7994 = vpack.c.b16 %v7810, %v7806
        %v7995 = vpack.c.b16 %v7811, %v7807
        %v7996 = vpack.c.b16 %v7816, %v7812
        %v7997 = vpack.c.b16 %v7817, %v7813
        %v7998 = vpack.c.b16 %v7818, %v7814
        %v7999 = vpack.c.b16 %v7819, %v7815
        %v8000 = vpack.c.b16 %v7824, %v7820
        %v8001 = vpack.c.b16 %v7825, %v7821
        %v8002 = vpack.c.b16 %v7826, %v7822
        %v8003 = vpack.c.b16 %v7827, %v7823
        %v8004 = vpack.c.b16 %v7832, %v7828
        %v8005 = vpack.c.b16 %v7833, %v7829
        %v8006 = vpack.c.b16 %v7834, %v7830
        %v8007 = vpack.c.b16 %v7835, %v7831
        %v8008 = vpack.c.b16 %v7840, %v7836
        %v8009 = vpack.c.b16 %v7841, %v7837
        %v8010 = vpack.c.b16 %v7842, %v7838
        %v8011 = vpack.c.b16 %v7843, %v7839
        %v8012 = vpack.c.b16 %v7848, %v7844
        %v8013 = vpack.c.b16 %v7849, %v7845
        %v8014 = vpack.c.b16 %v7850, %v7846
        %v8015 = vpack.c.b16 %v7851, %v7847
        %v8016 = vpack.c.b16 %v7856, %v7852
        %v8017 = vpack.c.b16 %v7857, %v7853
        %v8018 = vpack.c.b16 %v7858, %v7854
        %v8019 = vpack.c.b16 %v7859, %v7855
        %v8020 = vpack.c.b16 %v7864, %v7860
        %v8021 = vpack.c.b16 %v7865, %v7861
        %v8022 = vpack.c.b16 %v7866, %v7862
        %v8023 = vpack.c.b16 %v7867, %v7863
        %v8024 = vpack.c.b16 %v7872, %v7868
        %v8025 = vpack.c.b16 %v7873, %v7869
        %v8026 = vpack.c.b16 %v7874, %v7870
        %v8027 = vpack.c.b16 %v7875, %v7871
        %v8028 = vpack.c.b16 %v7880, %v7876
        %v8029 = vpack.c.b16 %v7881, %v7877
        %v8030 = vpack.c.b16 %v7882, %v7878
        %v8031 = vpack.c.b16 %v7883, %v7879
        %v8032 = vpack.c.b16 %v7888, %v7884
        %v8033 = vpack.c.b16 %v7889, %v7885
        %v8034 = vpack.c.b16 %v7890, %v7886
        %v8035 = vpack.c.b16 %v7891, %v7887
        %v8036 = vpack.c.b16 %v7896, %v7892
        %v8037 = vpack.c.b16 %v7897, %v7893
        %v8038 = vpack.c.b16 %v7898, %v7894
        %v8039 = vpack.c.b16 %v7899, %v7895
        %v8040 = vpack.c.b16 %v7904, %v7900
        %v8041 = vpack.c.b16 %v7905, %v7901
        %v8042 = vpack.c.b16 %v7906, %v7902
        %v8043 = vpack.c.b16 %v7907, %v7903
        %v8044 = vpack.c.b16 %v7912, %v7908
        %v8045 = vpack.c.b16 %v7913, %v7909
        %v8046 = vpack.c.b16 %v7914, %v7910
        %v8047 = vpack.c.b16 %v7915, %v7911
        %v8048 = vpack.c.b16 %v7920, %v7916
        %v8049 = vpack.c.b16 %v7921, %v7917
        %v8050 = vpack.c.b16 %v7922, %v7918
        %v8051 = vpack.c.b16 %v7923, %v7919
        %8180 = vmatprep.subr.bf16.mxu0 %v7925
        %8181 = vmatpush1.bf16.msra.mxu0 %v7924
        %8182 = vmatprep.subr.bf16.mxu0 %v7929
        %8183 = vmatpush1.bf16.msra.mxu0 %v7928
        %8184 = vmatprep.subr.bf16.mxu0 %v7933
        %8185 = vmatpush1.bf16.msra.mxu0 %v7932
        %8186 = vmatprep.subr.bf16.mxu0 %v7937
        %8187 = vmatpush1.bf16.msra.mxu0 %v7936
        %8188 = vmatprep.subr.bf16.mxu0 %v7941
        %8189 = vmatpush1.bf16.msra.mxu0 %v7940
        %8190 = vmatprep.subr.bf16.mxu0 %v7945
        %8191 = vmatpush1.bf16.msra.mxu0 %v7944
        %8192 = vmatprep.subr.bf16.mxu0 %v7949
        %8193 = vmatpush1.bf16.msra.mxu0 %v7948
        %8194 = vmatprep.subr.bf16.mxu0 %v7953
        %8195 = vmatpush1.bf16.msra.mxu0 %v7952
        %8196 = vmatprep.subr.bf16.mxu0 %v7957
        %8197 = vmatpush1.bf16.msra.mxu0 %v7956
        %8198 = vmatprep.subr.bf16.mxu0 %v7961
        %8199 = vmatpush1.bf16.msra.mxu0 %v7960
        %8200 = vmatprep.subr.bf16.mxu0 %v7965
        %8201 = vmatpush1.bf16.msra.mxu0 %v7964
        %8202 = vmatprep.subr.bf16.mxu0 %v7969
        %8203 = vmatpush1.bf16.msra.mxu0 %v7968
        %8204 = vmatprep.subr.bf16.mxu0 %v7973
        %8205 = vmatpush1.bf16.msra.mxu0 %v7972
        %8206 = vmatprep.subr.bf16.mxu0 %v7977
        %8207 = vmatpush1.bf16.msra.mxu0 %v7976
        %8208 = vmatprep.subr.bf16.mxu0 %v7981
        %8209 = vmatpush1.bf16.msra.mxu0 %v7980
        %8210 = vmatprep.subr.bf16.mxu0 %v7985
        %8211 = vmatpush1.bf16.msra.mxu0 %v7984
        %8212 = vmatprep.mubr.bf16.mxu0 %v7387
        %8213 = vmatmul.mubr.bf16.gmra.mrb[0].mxu0 %v7386
        %v8214 = vpop.f32.mrb[0].mxu0
        %v8215 = vadd.f32 %v7523, %v8214
        %v8216 = vpop.f32.mrb[0].mxu0
        %v8217 = vadd.f32 %v7527, %v8216
        %v8218 = vpop.f32.mrb[0].mxu0
        %v8219 = vpop.f32.mrb[0].mxu0
        %8220 = vdwg.mxu0
        %8221 = vmatprep.subr.bf16.mxu0 %v7989
        %8222 = vmatpush1.bf16.msra.mxu0 %v7988
        %8223 = vmatprep.subr.bf16.mxu0 %v7993
        %8224 = vmatpush1.bf16.msra.mxu0 %v7992
        %8225 = vmatprep.subr.bf16.mxu0 %v7997
        %8226 = vmatpush1.bf16.msra.mxu0 %v7996
        %8227 = vmatprep.subr.bf16.mxu0 %v8001
        %8228 = vmatpush1.bf16.msra.mxu0 %v8000
        %8229 = vmatprep.subr.bf16.mxu0 %v8005
        %8230 = vmatpush1.bf16.msra.mxu0 %v8004
        %8231 = vmatprep.subr.bf16.mxu0 %v8009
        %8232 = vmatpush1.bf16.msra.mxu0 %v8008
        %8233 = vmatprep.subr.bf16.mxu0 %v8013
        %8234 = vmatpush1.bf16.msra.mxu0 %v8012
        %8235 = vmatprep.subr.bf16.mxu0 %v8017
        %8236 = vmatpush1.bf16.msra.mxu0 %v8016
        %8237 = vmatprep.subr.bf16.mxu0 %v8021
        %8238 = vmatpush1.bf16.msra.mxu0 %v8020
        %8239 = vmatprep.subr.bf16.mxu0 %v8025
        %8240 = vmatpush1.bf16.msra.mxu0 %v8024
        %8241 = vmatprep.subr.bf16.mxu0 %v8029
        %8242 = vmatpush1.bf16.msra.mxu0 %v8028
        %8243 = vmatprep.subr.bf16.mxu0 %v8033
        %8244 = vmatpush1.bf16.msra.mxu0 %v8032
        %8245 = vmatprep.subr.bf16.mxu0 %v8037
        %8246 = vmatpush1.bf16.msra.mxu0 %v8036
        %8247 = vmatprep.subr.bf16.mxu0 %v8041
        %8248 = vmatpush1.bf16.msra.mxu0 %v8040
        %8249 = vmatprep.subr.bf16.mxu0 %v8045
        %8250 = vmatpush1.bf16.msra.mxu0 %v8044
        %8251 = vmatprep.subr.bf16.mxu0 %v8049
        %8252 = vmatpush1.bf16.msra.mxu0 %v8048
        %8253 = vmatprep.mubr.bf16.mxu0 %v7389
        %8254 = vmatmul.mubr.bf16.gmra.mrb[0].mxu0 %v7388
        %v8255 = vpop.f32.mrb[0].mxu0
        %v8256 = vadd.f32 %v8215, %v8255
        %v8257 = vpop.f32.mrb[0].mxu0
        %v8258 = vadd.f32 %v8217, %v8257
        %v8259 = vpop.f32.mrb[0].mxu0
        %v8260 = vpop.f32.mrb[0].mxu0
        %8261 = vdwg.mxu0
        %8262 = vmatprep.subr.bf16.mxu0 %v7927
        %8263 = vmatpush1.bf16.msra.mxu0 %v7926
        %8264 = vmatprep.subr.bf16.mxu0 %v7931
        %8265 = vmatpush1.bf16.msra.mxu0 %v7930
        %8266 = vmatprep.subr.bf16.mxu0 %v7935
        %8267 = vmatpush1.bf16.msra.mxu0 %v7934
        %8268 = vmatprep.subr.bf16.mxu0 %v7939
        %8269 = vmatpush1.bf16.msra.mxu0 %v7938
        %8270 = vmatprep.subr.bf16.mxu0 %v7943
        %8271 = vmatpush1.bf16.msra.mxu0 %v7942
        %8272 = vmatprep.subr.bf16.mxu0 %v7947
        %8273 = vmatpush1.bf16.msra.mxu0 %v7946
        %8274 = vmatprep.subr.bf16.mxu0 %v7951
        %8275 = vmatpush1.bf16.msra.mxu0 %v7950
        %8276 = vmatprep.subr.bf16.mxu0 %v7955
        %8277 = vmatpush1.bf16.msra.mxu0 %v7954
        %8278 = vmatprep.subr.bf16.mxu0 %v7959
        %8279 = vmatpush1.bf16.msra.mxu0 %v7958
        %8280 = vmatprep.subr.bf16.mxu0 %v7963
        %8281 = vmatpush1.bf16.msra.mxu0 %v7962
        %8282 = vmatprep.subr.bf16.mxu0 %v7967
        %8283 = vmatpush1.bf16.msra.mxu0 %v7966
        %8284 = vmatprep.subr.bf16.mxu0 %v7971
        %8285 = vmatpush1.bf16.msra.mxu0 %v7970
        %8286 = vmatprep.subr.bf16.mxu0 %v7975
        %8287 = vmatpush1.bf16.msra.mxu0 %v7974
        %8288 = vmatprep.subr.bf16.mxu0 %v7979
        %8289 = vmatpush1.bf16.msra.mxu0 %v7978
        %8290 = vmatprep.subr.bf16.mxu0 %v7983
        %8291 = vmatpush1.bf16.msra.mxu0 %v7982
        %8292 = vmatprep.subr.bf16.mxu0 %v7987
        %8293 = vmatpush1.bf16.msra.mxu0 %v7986
        %8294 = vmatprep.mubr.bf16.mxu0 %v7387
        %8295 = vmatmul.mubr.bf16.gmra.mrb[0].mxu0 %v7386
        %v8296 = vpop.f32.mrb[0].mxu0
        %v8297 = vadd.f32 %v7531, %v8296
        %v8298 = vpop.f32.mrb[0].mxu0
        %v8299 = vadd.f32 %v7535, %v8298
        %v8300 = vpop.f32.mrb[0].mxu0
        %v8301 = vpop.f32.mrb[0].mxu0
        %8302 = vdwg.mxu0
        %8303 = vmatprep.subr.bf16.mxu0 %v7991
        %8304 = vmatpush1.bf16.msra.mxu0 %v7990
        %8305 = vmatprep.subr.bf16.mxu0 %v7995
        %8306 = vmatpush1.bf16.msra.mxu0 %v7994
        %8307 = vmatprep.subr.bf16.mxu0 %v7999
        %8308 = vmatpush1.bf16.msra.mxu0 %v7998
        %8309 = vmatprep.subr.bf16.mxu0 %v8003
        %8310 = vmatpush1.bf16.msra.mxu0 %v8002
        %8311 = vmatprep.subr.bf16.mxu0 %v8007
        %8312 = vmatpush1.bf16.msra.mxu0 %v8006
        %8313 = vmatprep.subr.bf16.mxu0 %v8011
        %8314 = vmatpush1.bf16.msra.mxu0 %v8010
        %8315 = vmatprep.subr.bf16.mxu0 %v8015
        %8316 = vmatpush1.bf16.msra.mxu0 %v8014
        %8317 = vmatprep.subr.bf16.mxu0 %v8019
        %8318 = vmatpush1.bf16.msra.mxu0 %v8018
        %8319 = vmatprep.subr.bf16.mxu0 %v8023
        %8320 = vmatpush1.bf16.msra.mxu0 %v8022
        %8321 = vmatprep.subr.bf16.mxu0 %v8027
        %8322 = vmatpush1.bf16.msra.mxu0 %v8026
        %8323 = vmatprep.subr.bf16.mxu0 %v8031
        %8324 = vmatpush1.bf16.msra.mxu0 %v8030
        %8325 = vmatprep.subr.bf16.mxu0 %v8035
        %8326 = vmatpush1.bf16.msra.mxu0 %v8034
        %8327 = vmatprep.subr.bf16.mxu0 %v8039
        %8328 = vmatpush1.bf16.msra.mxu0 %v8038
        %8329 = vmatprep.subr.bf16.mxu0 %v8043
        %8330 = vmatpush1.bf16.msra.mxu0 %v8042
        %8331 = vmatprep.subr.bf16.mxu0 %v8047
        %8332 = vmatpush1.bf16.msra.mxu0 %v8046
        %8333 = vmatprep.subr.bf16.mxu0 %v8051
        %8334 = vmatpush1.bf16.msra.mxu0 %v8050
        %8335 = vmatprep.mubr.bf16.mxu0 %v7389
        %8336 = vmatmul.mubr.bf16.gmra.mrb[0].mxu0 %v7388
        %v8337 = vpop.f32.mrb[0].mxu0
        %v8338 = vadd.f32 %v8297, %v8337
        %v8339 = vpop.f32.mrb[0].mxu0
        %v8340 = vadd.f32 %v8299, %v8339
        %v8341 = vpop.f32.mrb[0].mxu0
        %v8342 = vpop.f32.mrb[0].mxu0
        %8343 = vdwg.mxu0
        %v8344 = vsel %vm2016, %v8256, 0.0
        %v8345 = vsel %vm2016, %v8258, 0.0
        %v8346 = vadd.f32 %v8344, %v8345
        %v8347 = vsel %vm2016, %v8338, 0.0
        %v8348 = vadd.f32 %v8346, %v8347
        %v8349 = vsel %vm2016, %v8340, 0.0
        %v8350 = vadd.f32 %v8348, %v8349
        %8351 = vadd.xlane.f32.xlu0 %v8350
        %v8352 = vpop.xlane.xlu0 %8351
        %v8353 = vmul.f32 %v8352, %v2026
        %v8354 = vsub.f32 %v8256, %v8353
        %v8355 = vsub.f32 %v8258, %v8353
        %v8356 = vsub.f32 %v8338, %v8353
        %v8357 = vsub.f32 %v8340, %v8353
        %v8358 = vmul.f32 %v8354, %v8354
        %v8359 = vmul.f32 %v8355, %v8355
        %v8360 = vmul.f32 %v8356, %v8356
        %v8361 = vmul.f32 %v8357, %v8357
        %v8362 = vsel %vm2016, %v8358, 0.0
        %v8363 = vsel %vm2016, %v8359, 0.0
        %v8364 = vadd.f32 %v8362, %v8363
        %v8365 = vsel %vm2016, %v8360, 0.0
        %v8366 = vadd.f32 %v8364, %v8365
        %v8367 = vsel %vm2016, %v8361, 0.0
        %v8368 = vadd.f32 %v8366, %v8367
        %8369 = vadd.xlane.f32.xlu0 %v8368
        %v8370 = vpop.xlane.xlu0 %8369
        %v8371 = vmul.f32 %v8370, %v2026
        %v8372 = vadd.f32 %v8371, 1e-05
        %v8373 = vrsqrt.pop %v8372
        %v8374 = vmul.f32 %v8354, %v8373
        %v8375 = vmul.f32 %v8355, %v8373
        %v8376 = vmul.f32 %v8356, %v8373
        %v8377 = vmul.f32 %v8357, %v8373
        %v8378 = vmul.f32 %v8374, %v2056
        %v8379 = vmul.f32 %v8375, %v2060
        %v8380 = vmul.f32 %v8376, %v2064
        %v8381 = vmul.f32 %v8377, %v2068
        %v8382 = vadd.f32 %v8378, %v2081
        %v8383 = vadd.f32 %v8379, %v2085
        %v8384 = vadd.f32 %v8380, %v2089
        %v8385 = vadd.f32 %v8381, %v2093
        %v8386 = vadd.f32 %v8382, %v7382
        %v8387 = vadd.f32 %v8383, %v7383
        %v8388 = vadd.f32 %v8384, %v7384
        %v8389 = vadd.f32 %v8385, %v7385
        %v8390 = vpack.c.bf16 %v8386, %v8386
        %v8391 = vpack.c.bf16 %v8387, %v8387
        %v8392 = vpack.c.bf16 %v8388, %v8388
        %v8393 = vpack.c.bf16 %v8389, %v8389
        %v8394 = vld [vmem:[#allocation23] sm:$0xf]
        %v8395 = vld [vmem:[#allocation23 + $0x4] sm:$0xf]
        %v8396 = vld [vmem:[#allocation23 + $0x8] sm:$0xf]
        %v8397 = vld [vmem:[#allocation23 + $0xc] sm:$0xf]
        %v8398 = vld [vmem:[#allocation23 + $0x10] sm:$0xf]
        %v8399 = vld [vmem:[#allocation23 + $0x14] sm:$0xf]
        %v8400 = vld [vmem:[#allocation23 + $0x18] sm:$0xf]
        %v8401 = vld [vmem:[#allocation23 + $0x1c] sm:$0xf]
        %v8402 = vld [vmem:[#allocation23 + $0x20] sm:$0xf]
        %v8403 = vld [vmem:[#allocation23 + $0x24] sm:$0xf]
        %v8404 = vld [vmem:[#allocation23 + $0x28] sm:$0xf]
        %v8405 = vld [vmem:[#allocation23 + $0x2c] sm:$0xf]
        %v8406 = vld [vmem:[#allocation23 + $0x30] sm:$0xf]
        %v8407 = vld [vmem:[#allocation23 + $0x34] sm:$0xf]
        %v8408 = vld [vmem:[#allocation23 + $0x38] sm:$0xf]
        %v8409 = vld [vmem:[#allocation23 + $0x3c] sm:$0xf]
        %v8410 = vld [vmem:[#allocation23 + $0x40] sm:$0xf]
        %v8411 = vld [vmem:[#allocation23 + $0x44] sm:$0xf]
        %v8412 = vld [vmem:[#allocation23 + $0x48] sm:$0xf]
        %v8413 = vld [vmem:[#allocation23 + $0x4c] sm:$0xf]
        %v8414 = vld [vmem:[#allocation23 + $0x50] sm:$0xf]
        %v8415 = vld [vmem:[#allocation23 + $0x54] sm:$0xf]
        %v8416 = vld [vmem:[#allocation23 + $0x58] sm:$0xf]
        %v8417 = vld [vmem:[#allocation23 + $0x5c] sm:$0xf]
        %v8418 = vld [vmem:[#allocation23 + $0x60] sm:$0xf]
        %v8419 = vld [vmem:[#allocation23 + $0x64] sm:$0xf]
        %v8420 = vld [vmem:[#allocation23 + $0x68] sm:$0xf]
        %v8421 = vld [vmem:[#allocation23 + $0x6c] sm:$0xf]
        %v8422 = vld [vmem:[#allocation23 + $0x70] sm:$0xf]
        %v8423 = vld [vmem:[#allocation23 + $0x74] sm:$0xf]
        %v8424 = vld [vmem:[#allocation23 + $0x78] sm:$0xf]
        %v8425 = vld [vmem:[#allocation23 + $0x7c] sm:$0xf]
        %v8426 = vld [vmem:[#allocation23 + $0x80] sm:$0xf]
        %v8427 = vld [vmem:[#allocation23 + $0x84] sm:$0xf]
        %v8428 = vld [vmem:[#allocation23 + $0x88] sm:$0xf]
        %v8429 = vld [vmem:[#allocation23 + $0x8c] sm:$0xf]
        %v8430 = vld [vmem:[#allocation23 + $0x90] sm:$0xf]
        %v8431 = vld [vmem:[#allocation23 + $0x94] sm:$0xf]
        %v8432 = vld [vmem:[#allocation23 + $0x98] sm:$0xf]
        %v8433 = vld [vmem:[#allocation23 + $0x9c] sm:$0xf]
        %v8434 = vld [vmem:[#allocation23 + $0xa0] sm:$0xf]
        %v8435 = vld [vmem:[#allocation23 + $0xa4] sm:$0xf]
        %v8436 = vld [vmem:[#allocation23 + $0xa8] sm:$0xf]
        %v8437 = vld [vmem:[#allocation23 + $0xac] sm:$0xf]
        %v8438 = vld [vmem:[#allocation23 + $0xb0] sm:$0xf]
        %v8439 = vld [vmem:[#allocation23 + $0xb4] sm:$0xf]
        %v8440 = vld [vmem:[#allocation23 + $0xb8] sm:$0xf]
        %v8441 = vld [vmem:[#allocation23 + $0xbc] sm:$0xf]
        %v8442 = vld [vmem:[#allocation23 + $0xc0] sm:$0xf]
        %v8443 = vld [vmem:[#allocation23 + $0xc4] sm:$0xf]
        %v8444 = vld [vmem:[#allocation23 + $0xc8] sm:$0xf]
        %v8445 = vld [vmem:[#allocation23 + $0xcc] sm:$0xf]
        %v8446 = vld [vmem:[#allocation23 + $0xd0] sm:$0xf]
        %v8447 = vld [vmem:[#allocation23 + $0xd4] sm:$0xf]
        %v8448 = vld [vmem:[#allocation23 + $0xd8] sm:$0xf]
        %v8449 = vld [vmem:[#allocation23 + $0xdc] sm:$0xf]
        %v8450 = vld [vmem:[#allocation23 + $0xe0] sm:$0xf]
        %v8451 = vld [vmem:[#allocation23 + $0xe4] sm:$0xf]
        %v8452 = vld [vmem:[#allocation23 + $0xe8] sm:$0xf]
        %v8453 = vld [vmem:[#allocation23 + $0xec] sm:$0xf]
        %v8454 = vld [vmem:[#allocation23 + $0xf0] sm:$0xf]
        %v8455 = vld [vmem:[#allocation23 + $0xf4] sm:$0xf]
        %v8456 = vld [vmem:[#allocation23 + $0xf8] sm:$0xf]
        %v8457 = vld [vmem:[#allocation23 + $0xfc] sm:$0xf]
        %v8458 = vld [vmem:[#allocation24] sm:$0x1]
        %v8523 = vunpack.c.l.b16 %v8394
        %v8524 = vunpack.c.l.b16 %v8395
        %v8525 = vunpack.c.l.b16 %v8396
        %v8526 = vunpack.c.l.b16 %v8397
        %v8527 = vunpack.c.l.b16 %v8398
        %v8528 = vunpack.c.l.b16 %v8399
        %v8529 = vunpack.c.l.b16 %v8400
        %v8530 = vunpack.c.l.b16 %v8401
        %v8531 = vunpack.c.l.b16 %v8402
        %v8532 = vunpack.c.l.b16 %v8403
        %v8533 = vunpack.c.l.b16 %v8404
        %v8534 = vunpack.c.l.b16 %v8405
        %v8535 = vunpack.c.l.b16 %v8406
        %v8536 = vunpack.c.l.b16 %v8407
        %v8537 = vunpack.c.l.b16 %v8408
        %v8538 = vunpack.c.l.b16 %v8409
        %v8539 = vunpack.c.l.b16 %v8410
        %v8540 = vunpack.c.l.b16 %v8411
        %v8541 = vunpack.c.l.b16 %v8412
        %v8542 = vunpack.c.l.b16 %v8413
        %v8543 = vunpack.c.l.b16 %v8414
        %v8544 = vunpack.c.l.b16 %v8415
        %v8545 = vunpack.c.l.b16 %v8416
        %v8546 = vunpack.c.l.b16 %v8417
        %v8547 = vunpack.c.l.b16 %v8418
        %v8548 = vunpack.c.l.b16 %v8419
        %v8549 = vunpack.c.l.b16 %v8420
        %v8550 = vunpack.c.l.b16 %v8421
        %v8551 = vunpack.c.l.b16 %v8422
        %v8552 = vunpack.c.l.b16 %v8423
        %v8553 = vunpack.c.l.b16 %v8424
        %v8554 = vunpack.c.l.b16 %v8425
        %v8555 = vunpack.c.l.b16 %v8426
        %v8556 = vunpack.c.l.b16 %v8427
        %v8557 = vunpack.c.l.b16 %v8428
        %v8558 = vunpack.c.l.b16 %v8429
        %v8559 = vunpack.c.l.b16 %v8430
        %v8560 = vunpack.c.l.b16 %v8431
        %v8561 = vunpack.c.l.b16 %v8432
        %v8562 = vunpack.c.l.b16 %v8433
        %v8563 = vunpack.c.l.b16 %v8434
        %v8564 = vunpack.c.l.b16 %v8435
        %v8565 = vunpack.c.l.b16 %v8436
        %v8566 = vunpack.c.l.b16 %v8437
        %v8567 = vunpack.c.l.b16 %v8438
        %v8568 = vunpack.c.l.b16 %v8439
        %v8569 = vunpack.c.l.b16 %v8440
        %v8570 = vunpack.c.l.b16 %v8441
        %v8571 = vunpack.c.l.b16 %v8442
        %v8572 = vunpack.c.l.b16 %v8443
        %v8573 = vunpack.c.l.b16 %v8444
        %v8574 = vunpack.c.l.b16 %v8445
        %v8575 = vunpack.c.l.b16 %v8446
        %v8576 = vunpack.c.l.b16 %v8447
        %v8577 = vunpack.c.l.b16 %v8448
        %v8578 = vunpack.c.l.b16 %v8449
        %v8579 = vunpack.c.l.b16 %v8450
        %v8580 = vunpack.c.l.b16 %v8451
        %v8581 = vunpack.c.l.b16 %v8452
        %v8582 = vunpack.c.l.b16 %v8453
        %v8583 = vunpack.c.l.b16 %v8454
        %v8584 = vunpack.c.l.b16 %v8455
        %v8585 = vunpack.c.l.b16 %v8456
        %v8586 = vunpack.c.l.b16 %v8457
        %v8587 = vpack.c.b16 %v8524, %v8523
        %v8588 = vpack.c.b16 %v8526, %v8525
        %v8589 = vpack.c.b16 %v8528, %v8527
        %v8590 = vpack.c.b16 %v8530, %v8529
        %v8591 = vpack.c.b16 %v8532, %v8531
        %v8592 = vpack.c.b16 %v8534, %v8533
        %v8593 = vpack.c.b16 %v8536, %v8535
        %v8594 = vpack.c.b16 %v8538, %v8537
        %v8595 = vpack.c.b16 %v8540, %v8539
        %v8596 = vpack.c.b16 %v8542, %v8541
        %v8597 = vpack.c.b16 %v8544, %v8543
        %v8598 = vpack.c.b16 %v8546, %v8545
        %v8599 = vpack.c.b16 %v8548, %v8547
        %v8600 = vpack.c.b16 %v8550, %v8549
        %v8601 = vpack.c.b16 %v8552, %v8551
        %v8602 = vpack.c.b16 %v8554, %v8553
        %v8603 = vpack.c.b16 %v8556, %v8555
        %v8604 = vpack.c.b16 %v8558, %v8557
        %v8605 = vpack.c.b16 %v8560, %v8559
        %v8606 = vpack.c.b16 %v8562, %v8561
        %v8607 = vpack.c.b16 %v8564, %v8563
        %v8608 = vpack.c.b16 %v8566, %v8565
        %v8609 = vpack.c.b16 %v8568, %v8567
        %v8610 = vpack.c.b16 %v8570, %v8569
        %v8611 = vpack.c.b16 %v8572, %v8571
        %v8612 = vpack.c.b16 %v8574, %v8573
        %v8613 = vpack.c.b16 %v8576, %v8575
        %v8614 = vpack.c.b16 %v8578, %v8577
        %v8615 = vpack.c.b16 %v8580, %v8579
        %v8616 = vpack.c.b16 %v8582, %v8581
        %v8617 = vpack.c.b16 %v8584, %v8583
        %v8618 = vpack.c.b16 %v8586, %v8585
        %8651 = vmatprep.subr.bf16.mxu0 0
        %8652 = vmatpush1.bf16.msra.mxu0 %v8587
        %8653 = vmatprep.subr.bf16.mxu0 0
        %8654 = vmatpush1.bf16.msra.mxu0 %v8588
        %8655 = vmatprep.subr.bf16.mxu0 0
        %8656 = vmatpush1.bf16.msra.mxu0 %v8589
        %8657 = vmatprep.subr.bf16.mxu0 0
        %8658 = vmatpush1.bf16.msra.mxu0 %v8590
        %8659 = vmatprep.subr.bf16.mxu0 0
        %8660 = vmatpush1.bf16.msra.mxu0 %v8591
        %8661 = vmatprep.subr.bf16.mxu0 0
        %8662 = vmatpush1.bf16.msra.mxu0 %v8592
        %8663 = vmatprep.subr.bf16.mxu0 0
        %8664 = vmatpush1.bf16.msra.mxu0 %v8593
        %8665 = vmatprep.subr.bf16.mxu0 0
        %8666 = vmatpush1.bf16.msra.mxu0 %v8594
        %8667 = vmatprep.subr.bf16.mxu0 0
        %8668 = vmatpush1.bf16.msra.mxu0 %v8595
        %8669 = vmatprep.subr.bf16.mxu0 0
        %8670 = vmatpush1.bf16.msra.mxu0 %v8596
        %8671 = vmatprep.subr.bf16.mxu0 0
        %8672 = vmatpush1.bf16.msra.mxu0 %v8597
        %8673 = vmatprep.subr.bf16.mxu0 0
        %8674 = vmatpush1.bf16.msra.mxu0 %v8598
        %8675 = vmatprep.subr.bf16.mxu0 0
        %8676 = vmatpush1.bf16.msra.mxu0 %v8599
        %8677 = vmatprep.subr.bf16.mxu0 0
        %8678 = vmatpush1.bf16.msra.mxu0 %v8600
        %8679 = vmatprep.subr.bf16.mxu0 0
        %8680 = vmatpush1.bf16.msra.mxu0 %v8601
        %8681 = vmatprep.subr.bf16.mxu0 0
        %8682 = vmatpush1.bf16.msra.mxu0 %v8602
        %8683 = vmatprep.mubr.bf16.mxu0 %v8391
        %8684 = vmatmul.mubr.bf16.gmra.mrb[0].mxu0 %v8390
        %v8685 = vpop.f32.mrb[0].mxu0
        %v8686 = vadd.f32 %v8458, %v8685
        %v8687 = vpop.f32.mrb[0].mxu0
        %v8688 = vpop.f32.mrb[0].mxu0
        %v8689 = vpop.f32.mrb[0].mxu0
        %8690 = vdwg.mxu0
        %8691 = vmatprep.subr.bf16.mxu0 0
        %8692 = vmatpush1.bf16.msra.mxu0 %v8603
        %8693 = vmatprep.subr.bf16.mxu0 0
        %8694 = vmatpush1.bf16.msra.mxu0 %v8604
        %8695 = vmatprep.subr.bf16.mxu0 0
        %8696 = vmatpush1.bf16.msra.mxu0 %v8605
        %8697 = vmatprep.subr.bf16.mxu0 0
        %8698 = vmatpush1.bf16.msra.mxu0 %v8606
        %8699 = vmatprep.subr.bf16.mxu0 0
        %8700 = vmatpush1.bf16.msra.mxu0 %v8607
        %8701 = vmatprep.subr.bf16.mxu0 0
        %8702 = vmatpush1.bf16.msra.mxu0 %v8608
        %8703 = vmatprep.subr.bf16.mxu0 0
        %8704 = vmatpush1.bf16.msra.mxu0 %v8609
        %8705 = vmatprep.subr.bf16.mxu0 0
        %8706 = vmatpush1.bf16.msra.mxu0 %v8610
        %8707 = vmatprep.subr.bf16.mxu0 0
        %8708 = vmatpush1.bf16.msra.mxu0 %v8611
        %8709 = vmatprep.subr.bf16.mxu0 0
        %8710 = vmatpush1.bf16.msra.mxu0 %v8612
        %8711 = vmatprep.subr.bf16.mxu0 0
        %8712 = vmatpush1.bf16.msra.mxu0 %v8613
        %8713 = vmatprep.subr.bf16.mxu0 0
        %8714 = vmatpush1.bf16.msra.mxu0 %v8614
        %8715 = vmatprep.subr.bf16.mxu0 0
        %8716 = vmatpush1.bf16.msra.mxu0 %v8615
        %8717 = vmatprep.subr.bf16.mxu0 0
        %8718 = vmatpush1.bf16.msra.mxu0 %v8616
        %8719 = vmatprep.subr.bf16.mxu0 0
        %8720 = vmatpush1.bf16.msra.mxu0 %v8617
        %8721 = vmatprep.subr.bf16.mxu0 0
        %8722 = vmatpush1.bf16.msra.mxu0 %v8618
        %8723 = vmatprep.mubr.bf16.mxu0 %v8393
        %8724 = vmatmul.mubr.bf16.gmra.mrb[0].mxu0 %v8392
        %v8725 = vpop.f32.mrb[0].mxu0
        %v8726 = vadd.f32 %v8686, %v8725
        %v8727 = vpop.f32.mrb[0].mxu0
        %v8728 = vpop.f32.mrb[0].mxu0
        %v8729 = vpop.f32.mrb[0].mxu0
        %8730 = vdwg.mxu0
        %8731 = vst [vmem:[%s593] sm:$0x1] %v8726
        %s8732 = sand.u32 %s320, 1
        %s8733 = scalar_lea.sflag [#allocation8], %s8732
        %s8734 = sand.u32 %s320, 1
        %s8735 = scalar_lea.vmem [#allocation26], %s8734
        // Predicated region
        $region121: #{vit_forward.1} parent=71 // pred_check
          %p8736 = pneg %p330
        $region122: #{vit_forward.1} parent=71 // pred_check_branch
          %8738 = sbr.rel (%p8736) target = $region124
        $region123: #{vit_forward.1} parent=71 // pred_region
          %s8740 = ssub.s32 16, 16
          %8741 = vsyncadd %s8733, %s8740
          %s8742 = smul.addr %s34, 16
          %s8743 = scalar_lea.hbm %s13, %s8742
          %s8745 = sshll.u32 %s8735, 4
          %s8746 = int_to_ptr.vmem [resolvable:$true] %s8745
          %8748 = dma.vmem_to_hbm [thread:$0]  %s8746, 16, %s8743, %s8733
        $region124: #{vit_forward.1} parent=71 // pred_fallthru
          _
      $region72: #{vit_forward.1} parent=5 // pred_fallthru
        _
      %p8749 = scmp.le.s32.totalorder 2, %s29
      // Predicated region
      $region125: #{vit_forward.1} parent=5 // pred_check
        %p8750 = pneg %p8749
      $region126: #{vit_forward.1} parent=5 // pred_check_branch
        %8752 = sbr.rel (%p8750) target = $region128
      $region127: #{vit_forward.1} parent=5 // pred_region
        %s8753 = ssub.s32 %s29, 2
        // Predicated region
        $region129: #{vit_forward.1} parent=127 // pred_check
          %p8754 = pneg %p336
        $region130: #{vit_forward.1} parent=127 // pred_check_branch
          %8756 = sbr.rel (%p8754) target = $region132
        $region131: #{vit_forward.1} parent=127 // pred_region
          %s8757 = sand.u32 %s321, 1
          %s8758 = scalar_lea.sflag [#allocation8], %s8757
          %s8759 = sand.u32 %s321, 1
          %s8760 = scalar_lea.vmem [#allocation26], %s8759
          %8761 = dma.done %s8758, 16
        $region132: #{vit_forward.1} parent=127 // pred_fallthru
          _
      $region128: #{vit_forward.1} parent=5 // pred_fallthru
        _
    $region6: #{vit_forward.1} parent=1 // loop_footer
      %s33 = sadd.s32 1, %s29
    $region7: #{vit_forward.1} parent=1 // loop_footer_branch
      %28 = sbr.rel target = $region3
    $region8: #{vit_forward.1} parent=1 // loop_exit
      _
    %8762 = vsyncpa [#allocation7], 1
    %s8763 = scalar_lea.sflag [#allocation7], 1
    %8764 = vsyncpa %s8763, 1
    %8765 = vsyncpa [#allocation10], 1
    %8766 = vsyncpa [#allocation13], 1
    %8767 = vsyncpa [#allocation16], 1
    %8768 = vsyncpa [#allocation19], 1
    %8769 = vsyncpa [#allocation22], 1
    %8770 = vsyncpa [#allocation25], 1
    %8771 = vsyncpa [#allocation8], 1
    %s8772 = scalar_lea.sflag [#allocation8], 1
    %8773 = vsyncpa %s8772, 1

</llo_original>
